<compile_context>
chip_gen: v5e
topology: v5e:2x2
jax: 0.10.0
libtpu: 0.0.40
codegen_flags: <defaults>
</compile_context>

<pallas_src>
import functools

import jax
import jax.numpy as jnp
import numpy as np
from jax.experimental import pallas as pl
from jax.experimental.pallas import tpu as pltpu

EPS = 1e-5
_VMEM_LIMIT = 32 * 1024 * 1024


def _cparams():
    return pltpu.CompilerParams(
        dimension_semantics=("parallel", "parallel"),
        vmem_limit_bytes=_VMEM_LIMIT,
    )


# ---------------------------------------------------------------------------
# Pallas kernels
# ---------------------------------------------------------------------------
def _conv_stats_kernel(x0_ref, x1_ref, x2_ref, w_ref, out_ref, stats_ref,
                       *, H, W, Cin, Cout):
    # x*_ref: (H+2, W+2, Cin) bf16 -- padded depth slices d, d+1, d+2
    # w_ref : (27, Cin, Cout) bf16 (VMEM resident across the grid)
    # out_ref: (H*W, Cout) f32 raw conv output; stats_ref: (2, Cout) sum/sumsq
    acc = jnp.zeros((H * W, Cout), jnp.float32)
    for kd, xr in enumerate((x0_ref, x1_ref, x2_ref)):
        x = xr[...]
        for kh in range(3):
            for kw in range(3):
                xs = x[kh:kh + H, kw:kw + W, :].reshape(H * W, Cin)
                acc = acc + jnp.dot(xs, w_ref[kd * 9 + kh * 3 + kw],
                                    preferred_element_type=jnp.float32)
    out_ref[...] = acc
    s = jnp.sum(acc, axis=0, keepdims=True)
    ss = jnp.sum(acc * acc, axis=0, keepdims=True)
    stats_ref[...] = jnp.concatenate([s, ss], axis=0)


def _bn_relu_kernel(raw_ref, scale_ref, shift_ref, o_ref):
    y = raw_ref[...] * scale_ref[...] + shift_ref[...]
    o_ref[...] = jnp.maximum(y, 0.0).astype(o_ref.dtype)


def _bn_gate_res_relu_kernel(raw_ref, res_ref, gate_ref, scale_ref, shift_ref, o_ref):
    bn = raw_ref[...] * scale_ref[...] + shift_ref[...]      # BN2 apply
    out = bn * gate_ref[...] + res_ref[...]                  # ECA gate + residual
    o_ref[...] = jnp.maximum(out, 0.0).astype(o_ref.dtype)   # final ReLU


# ---------------------------------------------------------------------------
# Wrappers (host-side glue in plain JAX)
# ---------------------------------------------------------------------------
def _conv3d_stats(x_pad, w_flat):
    # x_pad: (N, D+2, H+2, W+2, Cin) bf16 ; w_flat: (27, Cin, Cout) bf16
    N, Dp2, Hp2, Wp2, Cin = x_pad.shape
    D, H, W = Dp2 - 2, Hp2 - 2, Wp2 - 2
    Cout = w_flat.shape[-1]
    kern = functools.partial(_conv_stats_kernel, H=H, W=W, Cin=Cin, Cout=Cout)

    def x_spec(kd):
        return pl.BlockSpec((None, None, Hp2, Wp2, Cin),
                            lambda n, d, kd=kd: (n, d + kd, 0, 0, 0))

    raw, stats = pl.pallas_call(
        kern,
        grid=(N, D),
        in_specs=[x_spec(0), x_spec(1), x_spec(2),
                  pl.BlockSpec((27, Cin, Cout), lambda n, d: (0, 0, 0))],
        out_specs=[pl.BlockSpec((None, None, H * W, Cout), lambda n, d: (n, d, 0, 0)),
                   pl.BlockSpec((None, None, 2, Cout), lambda n, d: (n, d, 0, 0))],
        out_shape=[jax.ShapeDtypeStruct((N, D, H * W, Cout), jnp.float32),
                   jax.ShapeDtypeStruct((N, D, 2, Cout), jnp.float32)],
        compiler_params=_cparams(),
    )(x_pad, x_pad, x_pad, w_flat)
    return raw, stats


def _bn_fold(stats, gamma, beta, count):
    # Finalize global batch statistics from per-(n, d) partials; fold into
    # a per-channel affine (scale, shift).
    s = jnp.sum(stats[:, :, 0, :], axis=(0, 1))
    ss = jnp.sum(stats[:, :, 1, :], axis=(0, 1))
    mean = s / count
    var = ss / count - mean * mean                     # biased, like torch BN training
    scale = gamma * jax.lax.rsqrt(var + EPS)
    shift = beta - mean * scale
    return (scale.reshape(1, -1).astype(jnp.float32),
            shift.reshape(1, -1).astype(jnp.float32))


def _bn_relu_apply(raw, scale, shift):
    N, D, HW, C = raw.shape
    return pl.pallas_call(
        _bn_relu_kernel,
        grid=(N, D),
        in_specs=[pl.BlockSpec((None, None, HW, C), lambda n, d: (n, d, 0, 0)),
                  pl.BlockSpec((1, C), lambda n, d: (0, 0)),
                  pl.BlockSpec((1, C), lambda n, d: (0, 0))],
        out_specs=pl.BlockSpec((None, None, HW, C), lambda n, d: (n, d, 0, 0)),
        out_shape=jax.ShapeDtypeStruct((N, D, HW, C), jnp.bfloat16),
        compiler_params=_cparams(),
    )(raw, scale, shift)


def _bn_gate_res_relu(raw, resid, gate, scale, shift):
    N, D, HW, C = raw.shape
    return pl.pallas_call(
        _bn_gate_res_relu_kernel,
        grid=(N, D),
        in_specs=[pl.BlockSpec((None, None, HW, C), lambda n, d: (n, d, 0, 0)),
                  pl.BlockSpec((None, None, HW, C), lambda n, d: (n, d, 0, 0)),
                  pl.BlockSpec((None, 1, C), lambda n, d: (n, 0, 0)),
                  pl.BlockSpec((1, C), lambda n, d: (0, 0)),
                  pl.BlockSpec((1, C), lambda n, d: (0, 0))],
        out_specs=pl.BlockSpec((None, None, HW, C), lambda n, d: (n, d, 0, 0)),
        out_shape=jax.ShapeDtypeStruct((N, D, HW, C), jnp.float32),
        compiler_params=_cparams(),
    )(raw, resid, gate, scale, shift)


def basic_block_forward(x_ncdhw, params):
    # TODO(synk): stride != 1 / downsample path not implemented (module defaults:
    # stride=1, downsample=None).
    N, C, D, H, W = x_ncdhw.shape
    Cout = params["w1"].shape[-1]
    count = N * D * H * W

    x = jnp.transpose(x_ncdhw, (0, 2, 3, 4, 1)).astype(jnp.float32)     # NDHWC
    w1 = params["w1"].reshape(27, C, Cout).astype(jnp.bfloat16)
    w2 = params["w2"].reshape(27, Cout, Cout).astype(jnp.bfloat16)
    pad_cfg = ((0, 0), (1, 1), (1, 1), (1, 1), (0, 0))

    # conv1 + BN1 stats, then tiled BN1-apply + ReLU
    x_pad = jnp.pad(x.astype(jnp.bfloat16), pad_cfg)
    raw1, stats1 = _conv3d_stats(x_pad, w1)
    scale1, shift1 = _bn_fold(stats1, params["gamma1"], params["beta1"], count)
    act1 = _bn_relu_apply(raw1, scale1, shift1)                         # bf16

    # conv2 + BN2 stats
    act1_pad = jnp.pad(act1.reshape(N, D, H, W, Cout), pad_cfg)
    raw2, stats2 = _conv3d_stats(act1_pad, w2)
    scale2, shift2 = _bn_fold(stats2, params["gamma2"], params["beta2"], count)

    # ECA gate from conv2 channel-sum partials (BN is affine, so the pooled BN2
    # output is affine in the pooled raw conv2 output) -- no re-read of out.
    pooled_raw = jnp.sum(stats2[:, :, 0, :], axis=1) / (D * H * W)      # (N, C)
    y = pooled_raw * scale2 + shift2                                    # (N, C)
    yp = jnp.pad(y, ((0, 0), (1, 1)))
    w3 = params["eca_w"]
    g = w3[0] * yp[:, :-2] + w3[1] * yp[:, 1:-1] + w3[2] * yp[:, 2:]
    gate = jax.nn.sigmoid(g).reshape(N, 1, Cout).astype(jnp.float32)

    # fused BN2-apply + ECA gate + residual add + final ReLU
    out = _bn_gate_res_relu(raw2, x.reshape(N, D, H * W, C), gate, scale2, shift2)
    out = out.reshape(N, D, H, W, Cout)
    return jnp.transpose(out, (0, 4, 1, 2, 3))                          # NCDHW


# ---------------------------------------------------------------------------
# Pure-JAX reference (for correctness check)
# ---------------------------------------------------------------------------
def _reference(x_ncdhw, p):
    x = jnp.transpose(x_ncdhw, (0, 2, 3, 4, 1)).astype(jnp.float32)

    def conv(v, w):
        return jax.lax.conv_general_dilated(
            v, w, (1, 1, 1), "SAME", dimension_numbers=("NDHWC", "DHWIO", "NDHWC"))

    def bn(v, g, b):
        m = jnp.mean(v, axis=(0, 1, 2, 3), keepdims=True)
        var = jnp.mean((v - m) ** 2, axis=(0, 1, 2, 3), keepdims=True)
        return (v - m) * jax.lax.rsqrt(var + EPS) * g + b

    out = jax.nn.relu(bn(conv(x, p["w1"]), p["gamma1"], p["beta1"]))
    out = bn(conv(out, p["w2"]), p["gamma2"], p["beta2"])
    y = jnp.mean(out, axis=(1, 2, 3))                                    # (N, C)
    yp = jnp.pad(y, ((0, 0), (1, 1)))
    w3 = p["eca_w"]
    g = w3[0] * yp[:, :-2] + w3[1] * yp[:, 1:-1] + w3[2] * yp[:, 2:]
    gate = jax.nn.sigmoid(g)
    out = out * gate[:, None, None, None, :] + x
    out = jax.nn.relu(out)
    return jnp.transpose(out, (0, 4, 1, 2, 3))


# ---------------------------------------------------------------------------
if __name__ == "__main__":
    key = jax.random.PRNGKey(0)
    # downsample=None, stride=1  =>  in_planes == planes
    N, C, D, H, W = 2, 32, 8, 16, 16
    ks = jax.random.split(key, 8)
    x = jax.random.normal(ks[0], (N, C, D, H, W), jnp.float32)           # NCDHW
    params = dict(
        w1=0.1 * jax.random.normal(ks[1], (3, 3, 3, C, C), jnp.float32),  # DHWIO
        gamma1=1.0 + 0.1 * jax.random.normal(ks[2], (C,), jnp.float32),
        beta1=0.1 * jax.random.normal(ks[3], (C,), jnp.float32),
        w2=0.1 * jax.random.normal(ks[4], (3, 3, 3, C, C), jnp.float32),
        gamma2=1.0 + 0.1 * jax.random.normal(ks[5], (C,), jnp.float32),
        beta2=0.1 * jax.random.normal(ks[6], (C,), jnp.float32),
        eca_w=0.5 * jax.random.normal(ks[7], (3,), jnp.float32),           # Conv1d(1,1,3)
    )

    fwd = jax.jit(basic_block_forward)
    out = jax.block_until_ready(fwd(x, params))
    ref = jax.block_until_ready(_reference(x, params))
    # bf16 MXU operands vs f32 reference -> relaxed tolerance.
    np.testing.assert_allclose(np.asarray(out), np.asarray(ref), rtol=2e-2, atol=2e-2)
    print("KERNEL_OK")
</pallas_src>

<mosaic_0001>
module attributes {stable_mosaic.version = 11 : i64} {
  func.func @_conv_stats_kernel(%arg0: i32, %arg1: i32, %arg2: memref<1x1x18x18x32xbf16, #tpu.memory_space<vmem>>, %arg3: memref<1x1x18x18x32xbf16, #tpu.memory_space<vmem>>, %arg4: memref<1x1x18x18x32xbf16, #tpu.memory_space<vmem>>, %arg5: memref<27x32x32xbf16, #tpu.memory_space<vmem>>, %arg6: memref<1x1x256x32xf32, #tpu.memory_space<vmem>>, %arg7: memref<1x1x2x32xf32, #tpu.memory_space<vmem>>) attributes {dimension_semantics = [#tpu.dimension_semantics<parallel>, #tpu.dimension_semantics<parallel>], iteration_bounds = array<i64: 2, 8>, scalar_prefetch = 0 : i64, scratch_operands = 0 : i64, tpu.core_type = #tpu.core_type<tc>, window_params = [{transform_indices = @transform_0, window_bounds = array<i64: 1, 1, 18, 18, 32>}, {transform_indices = @transform_1, window_bounds = array<i64: 1, 1, 18, 18, 32>}, {transform_indices = @transform_2, window_bounds = array<i64: 1, 1, 18, 18, 32>}, {pipeline_mode = #tpu.pipeline_mode<synchronous>, transform_indices = @transform_3, window_bounds = array<i64: 27, 32, 32>}, {transform_indices = @transform_4, window_bounds = array<i64: 1, 1, 256, 32>}, {transform_indices = @transform_5, window_bounds = array<i64: 1, 1, 2, 32>}]} {
    %cst = arith.constant 0.000000e+00 : f32
    %0 = vector.broadcast %cst : f32 to vector<256x32xf32>
    %c0 = arith.constant 0 : index
    %c0_0 = arith.constant 0 : index
    %c0_1 = arith.constant 0 : index
    %c0_2 = arith.constant 0 : index
    %c0_3 = arith.constant 0 : index
    %1 = vector.load %arg2[%c0, %c0_0, %c0_1, %c0_2, %c0_3] : memref<1x1x18x18x32xbf16, #tpu.memory_space<vmem>>, vector<1x1x18x18x32xbf16>
    %2 = vector.shape_cast %1 : vector<1x1x18x18x32xbf16> to vector<18x18x32xbf16>
    %3 = vector.extract_strided_slice %2 {offsets = [0, 0, 0], sizes = [16, 16, 32], strides = [1, 1, 1]} : vector<18x18x32xbf16> to vector<16x16x32xbf16>
    %4 = vector.shape_cast %3 : vector<16x16x32xbf16> to vector<256x32xbf16>
    %c0_4 = arith.constant 0 : index
    %c0_5 = arith.constant 0 : index
    %c0_6 = arith.constant 0 : index
    %5 = vector.load %arg5[%c0_4, %c0_5, %c0_6] : memref<27x32x32xbf16, #tpu.memory_space<vmem>>, vector<1x32x32xbf16>
    %6 = vector.shape_cast %5 : vector<1x32x32xbf16> to vector<32x32xbf16>
    %cst_7 = arith.constant dense<0.000000e+00> : vector<256x32xf32>
    %7 = tpu.matmul %4, %6, %cst_7 {dimension_numbers = #tpu.dot_dimension_numbers<[1], [0], [0], [1], [0, 0, 1, 1], [], []>} : vector<256x32xbf16>, vector<32x32xbf16>, vector<256x32xf32> -> vector<256x32xf32>
    %8 = arith.addf %0, %7 : vector<256x32xf32>
    %9 = vector.extract_strided_slice %2 {offsets = [0, 1, 0], sizes = [16, 16, 32], strides = [1, 1, 1]} : vector<18x18x32xbf16> to vector<16x16x32xbf16>
    %10 = vector.shape_cast %9 : vector<16x16x32xbf16> to vector<256x32xbf16>
    %c1 = arith.constant 1 : index
    %c0_8 = arith.constant 0 : index
    %c0_9 = arith.constant 0 : index
    %11 = vector.load %arg5[%c1, %c0_8, %c0_9] : memref<27x32x32xbf16, #tpu.memory_space<vmem>>, vector<1x32x32xbf16>
    %12 = vector.shape_cast %11 : vector<1x32x32xbf16> to vector<32x32xbf16>
    %cst_10 = arith.constant dense<0.000000e+00> : vector<256x32xf32>
    %13 = tpu.matmul %10, %12, %cst_10 {dimension_numbers = #tpu.dot_dimension_numbers<[1], [0], [0], [1], [0, 0, 1, 1], [], []>} : vector<256x32xbf16>, vector<32x32xbf16>, vector<256x32xf32> -> vector<256x32xf32>
    %14 = arith.addf %8, %13 : vector<256x32xf32>
    %15 = vector.extract_strided_slice %2 {offsets = [0, 2, 0], sizes = [16, 16, 32], strides = [1, 1, 1]} : vector<18x18x32xbf16> to vector<16x16x32xbf16>
    %16 = vector.shape_cast %15 : vector<16x16x32xbf16> to vector<256x32xbf16>
    %c2 = arith.constant 2 : index
    %c0_11 = arith.constant 0 : index
    %c0_12 = arith.constant 0 : index
    %17 = vector.load %arg5[%c2, %c0_11, %c0_12] : memref<27x32x32xbf16, #tpu.memory_space<vmem>>, vector<1x32x32xbf16>
    %18 = vector.shape_cast %17 : vector<1x32x32xbf16> to vector<32x32xbf16>
    %cst_13 = arith.constant dense<0.000000e+00> : vector<256x32xf32>
    %19 = tpu.matmul %16, %18, %cst_13 {dimension_numbers = #tpu.dot_dimension_numbers<[1], [0], [0], [1], [0, 0, 1, 1], [], []>} : vector<256x32xbf16>, vector<32x32xbf16>, vector<256x32xf32> -> vector<256x32xf32>
    %20 = arith.addf %14, %19 : vector<256x32xf32>
    %21 = vector.extract_strided_slice %2 {offsets = [1, 0, 0], sizes = [16, 16, 32], strides = [1, 1, 1]} : vector<18x18x32xbf16> to vector<16x16x32xbf16>
    %22 = vector.shape_cast %21 : vector<16x16x32xbf16> to vector<256x32xbf16>
    %c3 = arith.constant 3 : index
    %c0_14 = arith.constant 0 : index
    %c0_15 = arith.constant 0 : index
    %23 = vector.load %arg5[%c3, %c0_14, %c0_15] : memref<27x32x32xbf16, #tpu.memory_space<vmem>>, vector<1x32x32xbf16>
    %24 = vector.shape_cast %23 : vector<1x32x32xbf16> to vector<32x32xbf16>
    %cst_16 = arith.constant dense<0.000000e+00> : vector<256x32xf32>
    %25 = tpu.matmul %22, %24, %cst_16 {dimension_numbers = #tpu.dot_dimension_numbers<[1], [0], [0], [1], [0, 0, 1, 1], [], []>} : vector<256x32xbf16>, vector<32x32xbf16>, vector<256x32xf32> -> vector<256x32xf32>
    %26 = arith.addf %20, %25 : vector<256x32xf32>
    %27 = vector.extract_strided_slice %2 {offsets = [1, 1, 0], sizes = [16, 16, 32], strides = [1, 1, 1]} : vector<18x18x32xbf16> to vector<16x16x32xbf16>
    %28 = vector.shape_cast %27 : vector<16x16x32xbf16> to vector<256x32xbf16>
    %c4 = arith.constant 4 : index
    %c0_17 = arith.constant 0 : index
    %c0_18 = arith.constant 0 : index
    %29 = vector.load %arg5[%c4, %c0_17, %c0_18] : memref<27x32x32xbf16, #tpu.memory_space<vmem>>, vector<1x32x32xbf16>
    %30 = vector.shape_cast %29 : vector<1x32x32xbf16> to vector<32x32xbf16>
    %cst_19 = arith.constant dense<0.000000e+00> : vector<256x32xf32>
    %31 = tpu.matmul %28, %30, %cst_19 {dimension_numbers = #tpu.dot_dimension_numbers<[1], [0], [0], [1], [0, 0, 1, 1], [], []>} : vector<256x32xbf16>, vector<32x32xbf16>, vector<256x32xf32> -> vector<256x32xf32>
    %32 = arith.addf %26, %31 : vector<256x32xf32>
    %33 = vector.extract_strided_slice %2 {offsets = [1, 2, 0], sizes = [16, 16, 32], strides = [1, 1, 1]} : vector<18x18x32xbf16> to vector<16x16x32xbf16>
    %34 = vector.shape_cast %33 : vector<16x16x32xbf16> to vector<256x32xbf16>
    %c5 = arith.constant 5 : index
    %c0_20 = arith.constant 0 : index
    %c0_21 = arith.constant 0 : index
    %35 = vector.load %arg5[%c5, %c0_20, %c0_21] : memref<27x32x32xbf16, #tpu.memory_space<vmem>>, vector<1x32x32xbf16>
    %36 = vector.shape_cast %35 : vector<1x32x32xbf16> to vector<32x32xbf16>
    %cst_22 = arith.constant dense<0.000000e+00> : vector<256x32xf32>
    %37 = tpu.matmul %34, %36, %cst_22 {dimension_numbers = #tpu.dot_dimension_numbers<[1], [0], [0], [1], [0, 0, 1, 1], [], []>} : vector<256x32xbf16>, vector<32x32xbf16>, vector<256x32xf32> -> vector<256x32xf32>
    %38 = arith.addf %32, %37 : vector<256x32xf32>
    %39 = vector.extract_strided_slice %2 {offsets = [2, 0, 0], sizes = [16, 16, 32], strides = [1, 1, 1]} : vector<18x18x32xbf16> to vector<16x16x32xbf16>
    %40 = vector.shape_cast %39 : vector<16x16x32xbf16> to vector<256x32xbf16>
    %c6 = arith.constant 6 : index
    %c0_23 = arith.constant 0 : index
    %c0_24 = arith.constant 0 : index
    %41 = vector.load %arg5[%c6, %c0_23, %c0_24] : memref<27x32x32xbf16, #tpu.memory_space<vmem>>, vector<1x32x32xbf16>
    %42 = vector.shape_cast %41 : vector<1x32x32xbf16> to vector<32x32xbf16>
    %cst_25 = arith.constant dense<0.000000e+00> : vector<256x32xf32>
    %43 = tpu.matmul %40, %42, %cst_25 {dimension_numbers = #tpu.dot_dimension_numbers<[1], [0], [0], [1], [0, 0, 1, 1], [], []>} : vector<256x32xbf16>, vector<32x32xbf16>, vector<256x32xf32> -> vector<256x32xf32>
    %44 = arith.addf %38, %43 : vector<256x32xf32>
    %45 = vector.extract_strided_slice %2 {offsets = [2, 1, 0], sizes = [16, 16, 32], strides = [1, 1, 1]} : vector<18x18x32xbf16> to vector<16x16x32xbf16>
    %46 = vector.shape_cast %45 : vector<16x16x32xbf16> to vector<256x32xbf16>
    %c7 = arith.constant 7 : index
    %c0_26 = arith.constant 0 : index
    %c0_27 = arith.constant 0 : index
    %47 = vector.load %arg5[%c7, %c0_26, %c0_27] : memref<27x32x32xbf16, #tpu.memory_space<vmem>>, vector<1x32x32xbf16>
    %48 = vector.shape_cast %47 : vector<1x32x32xbf16> to vector<32x32xbf16>
    %cst_28 = arith.constant dense<0.000000e+00> : vector<256x32xf32>
    %49 = tpu.matmul %46, %48, %cst_28 {dimension_numbers = #tpu.dot_dimension_numbers<[1], [0], [0], [1], [0, 0, 1, 1], [], []>} : vector<256x32xbf16>, vector<32x32xbf16>, vector<256x32xf32> -> vector<256x32xf32>
    %50 = arith.addf %44, %49 : vector<256x32xf32>
    %51 = vector.extract_strided_slice %2 {offsets = [2, 2, 0], sizes = [16, 16, 32], strides = [1, 1, 1]} : vector<18x18x32xbf16> to vector<16x16x32xbf16>
    %52 = vector.shape_cast %51 : vector<16x16x32xbf16> to vector<256x32xbf16>
    %c8 = arith.constant 8 : index
    %c0_29 = arith.constant 0 : index
    %c0_30 = arith.constant 0 : index
    %53 = vector.load %arg5[%c8, %c0_29, %c0_30] : memref<27x32x32xbf16, #tpu.memory_space<vmem>>, vector<1x32x32xbf16>
    %54 = vector.shape_cast %53 : vector<1x32x32xbf16> to vector<32x32xbf16>
    %cst_31 = arith.constant dense<0.000000e+00> : vector<256x32xf32>
    %55 = tpu.matmul %52, %54, %cst_31 {dimension_numbers = #tpu.dot_dimension_numbers<[1], [0], [0], [1], [0, 0, 1, 1], [], []>} : vector<256x32xbf16>, vector<32x32xbf16>, vector<256x32xf32> -> vector<256x32xf32>
    %56 = arith.addf %50, %55 : vector<256x32xf32>
    %c0_32 = arith.constant 0 : index
    %c0_33 = arith.constant 0 : index
    %c0_34 = arith.constant 0 : index
    %c0_35 = arith.constant 0 : index
    %c0_36 = arith.constant 0 : index
    %57 = vector.load %arg3[%c0_32, %c0_33, %c0_34, %c0_35, %c0_36] : memref<1x1x18x18x32xbf16, #tpu.memory_space<vmem>>, vector<1x1x18x18x32xbf16>
    %58 = vector.shape_cast %57 : vector<1x1x18x18x32xbf16> to vector<18x18x32xbf16>
    %59 = vector.extract_strided_slice %58 {offsets = [0, 0, 0], sizes = [16, 16, 32], strides = [1, 1, 1]} : vector<18x18x32xbf16> to vector<16x16x32xbf16>
    %60 = vector.shape_cast %59 : vector<16x16x32xbf16> to vector<256x32xbf16>
    %c9 = arith.constant 9 : index
    %c0_37 = arith.constant 0 : index
    %c0_38 = arith.constant 0 : index
    %61 = vector.load %arg5[%c9, %c0_37, %c0_38] : memref<27x32x32xbf16, #tpu.memory_space<vmem>>, vector<1x32x32xbf16>
    %62 = vector.shape_cast %61 : vector<1x32x32xbf16> to vector<32x32xbf16>
    %cst_39 = arith.constant dense<0.000000e+00> : vector<256x32xf32>
    %63 = tpu.matmul %60, %62, %cst_39 {dimension_numbers = #tpu.dot_dimension_numbers<[1], [0], [0], [1], [0, 0, 1, 1], [], []>} : vector<256x32xbf16>, vector<32x32xbf16>, vector<256x32xf32> -> vector<256x32xf32>
    %64 = arith.addf %56, %63 : vector<256x32xf32>
    %65 = vector.extract_strided_slice %58 {offsets = [0, 1, 0], sizes = [16, 16, 32], strides = [1, 1, 1]} : vector<18x18x32xbf16> to vector<16x16x32xbf16>
    %66 = vector.shape_cast %65 : vector<16x16x32xbf16> to vector<256x32xbf16>
    %c10 = arith.constant 10 : index
    %c0_40 = arith.constant 0 : index
    %c0_41 = arith.constant 0 : index
    %67 = vector.load %arg5[%c10, %c0_40, %c0_41] : memref<27x32x32xbf16, #tpu.memory_space<vmem>>, vector<1x32x32xbf16>
    %68 = vector.shape_cast %67 : vector<1x32x32xbf16> to vector<32x32xbf16>
    %cst_42 = arith.constant dense<0.000000e+00> : vector<256x32xf32>
    %69 = tpu.matmul %66, %68, %cst_42 {dimension_numbers = #tpu.dot_dimension_numbers<[1], [0], [0], [1], [0, 0, 1, 1], [], []>} : vector<256x32xbf16>, vector<32x32xbf16>, vector<256x32xf32> -> vector<256x32xf32>
    %70 = arith.addf %64, %69 : vector<256x32xf32>
    %71 = vector.extract_strided_slice %58 {offsets = [0, 2, 0], sizes = [16, 16, 32], strides = [1, 1, 1]} : vector<18x18x32xbf16> to vector<16x16x32xbf16>
    %72 = vector.shape_cast %71 : vector<16x16x32xbf16> to vector<256x32xbf16>
    %c11 = arith.constant 11 : index
    %c0_43 = arith.constant 0 : index
    %c0_44 = arith.constant 0 : index
    %73 = vector.load %arg5[%c11, %c0_43, %c0_44] : memref<27x32x32xbf16, #tpu.memory_space<vmem>>, vector<1x32x32xbf16>
    %74 = vector.shape_cast %73 : vector<1x32x32xbf16> to vector<32x32xbf16>
    %cst_45 = arith.constant dense<0.000000e+00> : vector<256x32xf32>
    %75 = tpu.matmul %72, %74, %cst_45 {dimension_numbers = #tpu.dot_dimension_numbers<[1], [0], [0], [1], [0, 0, 1, 1], [], []>} : vector<256x32xbf16>, vector<32x32xbf16>, vector<256x32xf32> -> vector<256x32xf32>
    %76 = arith.addf %70, %75 : vector<256x32xf32>
    %77 = vector.extract_strided_slice %58 {offsets = [1, 0, 0], sizes = [16, 16, 32], strides = [1, 1, 1]} : vector<18x18x32xbf16> to vector<16x16x32xbf16>
    %78 = vector.shape_cast %77 : vector<16x16x32xbf16> to vector<256x32xbf16>
    %c12 = arith.constant 12 : index
    %c0_46 = arith.constant 0 : index
    %c0_47 = arith.constant 0 : index
    %79 = vector.load %arg5[%c12, %c0_46, %c0_47] : memref<27x32x32xbf16, #tpu.memory_space<vmem>>, vector<1x32x32xbf16>
    %80 = vector.shape_cast %79 : vector<1x32x32xbf16> to vector<32x32xbf16>
    %cst_48 = arith.constant dense<0.000000e+00> : vector<256x32xf32>
    %81 = tpu.matmul %78, %80, %cst_48 {dimension_numbers = #tpu.dot_dimension_numbers<[1], [0], [0], [1], [0, 0, 1, 1], [], []>} : vector<256x32xbf16>, vector<32x32xbf16>, vector<256x32xf32> -> vector<256x32xf32>
    %82 = arith.addf %76, %81 : vector<256x32xf32>
    %83 = vector.extract_strided_slice %58 {offsets = [1, 1, 0], sizes = [16, 16, 32], strides = [1, 1, 1]} : vector<18x18x32xbf16> to vector<16x16x32xbf16>
    %84 = vector.shape_cast %83 : vector<16x16x32xbf16> to vector<256x32xbf16>
    %c13 = arith.constant 13 : index
    %c0_49 = arith.constant 0 : index
    %c0_50 = arith.constant 0 : index
    %85 = vector.load %arg5[%c13, %c0_49, %c0_50] : memref<27x32x32xbf16, #tpu.memory_space<vmem>>, vector<1x32x32xbf16>
    %86 = vector.shape_cast %85 : vector<1x32x32xbf16> to vector<32x32xbf16>
    %cst_51 = arith.constant dense<0.000000e+00> : vector<256x32xf32>
    %87 = tpu.matmul %84, %86, %cst_51 {dimension_numbers = #tpu.dot_dimension_numbers<[1], [0], [0], [1], [0, 0, 1, 1], [], []>} : vector<256x32xbf16>, vector<32x32xbf16>, vector<256x32xf32> -> vector<256x32xf32>
    %88 = arith.addf %82, %87 : vector<256x32xf32>
    %89 = vector.extract_strided_slice %58 {offsets = [1, 2, 0], sizes = [16, 16, 32], strides = [1, 1, 1]} : vector<18x18x32xbf16> to vector<16x16x32xbf16>
    %90 = vector.shape_cast %89 : vector<16x16x32xbf16> to vector<256x32xbf16>
    %c14 = arith.constant 14 : index
    %c0_52 = arith.constant 0 : index
    %c0_53 = arith.constant 0 : index
    %91 = vector.load %arg5[%c14, %c0_52, %c0_53] : memref<27x32x32xbf16, #tpu.memory_space<vmem>>, vector<1x32x32xbf16>
    %92 = vector.shape_cast %91 : vector<1x32x32xbf16> to vector<32x32xbf16>
    %cst_54 = arith.constant dense<0.000000e+00> : vector<256x32xf32>
    %93 = tpu.matmul %90, %92, %cst_54 {dimension_numbers = #tpu.dot_dimension_numbers<[1], [0], [0], [1], [0, 0, 1, 1], [], []>} : vector<256x32xbf16>, vector<32x32xbf16>, vector<256x32xf32> -> vector<256x32xf32>
    %94 = arith.addf %88, %93 : vector<256x32xf32>
    %95 = vector.extract_strided_slice %58 {offsets = [2, 0, 0], sizes = [16, 16, 32], strides = [1, 1, 1]} : vector<18x18x32xbf16> to vector<16x16x32xbf16>
    %96 = vector.shape_cast %95 : vector<16x16x32xbf16> to vector<256x32xbf16>
    %c15 = arith.constant 15 : index
    %c0_55 = arith.constant 0 : index
    %c0_56 = arith.constant 0 : index
    %97 = vector.load %arg5[%c15, %c0_55, %c0_56] : memref<27x32x32xbf16, #tpu.memory_space<vmem>>, vector<1x32x32xbf16>
    %98 = vector.shape_cast %97 : vector<1x32x32xbf16> to vector<32x32xbf16>
    %cst_57 = arith.constant dense<0.000000e+00> : vector<256x32xf32>
    %99 = tpu.matmul %96, %98, %cst_57 {dimension_numbers = #tpu.dot_dimension_numbers<[1], [0], [0], [1], [0, 0, 1, 1], [], []>} : vector<256x32xbf16>, vector<32x32xbf16>, vector<256x32xf32> -> vector<256x32xf32>
    %100 = arith.addf %94, %99 : vector<256x32xf32>
    %101 = vector.extract_strided_slice %58 {offsets = [2, 1, 0], sizes = [16, 16, 32], strides = [1, 1, 1]} : vector<18x18x32xbf16> to vector<16x16x32xbf16>
    %102 = vector.shape_cast %101 : vector<16x16x32xbf16> to vector<256x32xbf16>
    %c16 = arith.constant 16 : index
    %c0_58 = arith.constant 0 : index
    %c0_59 = arith.constant 0 : index
    %103 = vector.load %arg5[%c16, %c0_58, %c0_59] : memref<27x32x32xbf16, #tpu.memory_space<vmem>>, vector<1x32x32xbf16>
    %104 = vector.shape_cast %103 : vector<1x32x32xbf16> to vector<32x32xbf16>
    %cst_60 = arith.constant dense<0.000000e+00> : vector<256x32xf32>
    %105 = tpu.matmul %102, %104, %cst_60 {dimension_numbers = #tpu.dot_dimension_numbers<[1], [0], [0], [1], [0, 0, 1, 1], [], []>} : vector<256x32xbf16>, vector<32x32xbf16>, vector<256x32xf32> -> vector<256x32xf32>
    %106 = arith.addf %100, %105 : vector<256x32xf32>
    %107 = vector.extract_strided_slice %58 {offsets = [2, 2, 0], sizes = [16, 16, 32], strides = [1, 1, 1]} : vector<18x18x32xbf16> to vector<16x16x32xbf16>
    %108 = vector.shape_cast %107 : vector<16x16x32xbf16> to vector<256x32xbf16>
    %c17 = arith.constant 17 : index
    %c0_61 = arith.constant 0 : index
    %c0_62 = arith.constant 0 : index
    %109 = vector.load %arg5[%c17, %c0_61, %c0_62] : memref<27x32x32xbf16, #tpu.memory_space<vmem>>, vector<1x32x32xbf16>
    %110 = vector.shape_cast %109 : vector<1x32x32xbf16> to vector<32x32xbf16>
    %cst_63 = arith.constant dense<0.000000e+00> : vector<256x32xf32>
    %111 = tpu.matmul %108, %110, %cst_63 {dimension_numbers = #tpu.dot_dimension_numbers<[1], [0], [0], [1], [0, 0, 1, 1], [], []>} : vector<256x32xbf16>, vector<32x32xbf16>, vector<256x32xf32> -> vector<256x32xf32>
    %112 = arith.addf %106, %111 : vector<256x32xf32>
    %c0_64 = arith.constant 0 : index
    %c0_65 = arith.constant 0 : index
    %c0_66 = arith.constant 0 : index
    %c0_67 = arith.constant 0 : index
    %c0_68 = arith.constant 0 : index
    %113 = vector.load %arg4[%c0_64, %c0_65, %c0_66, %c0_67, %c0_68] : memref<1x1x18x18x32xbf16, #tpu.memory_space<vmem>>, vector<1x1x18x18x32xbf16>
    %114 = vector.shape_cast %113 : vector<1x1x18x18x32xbf16> to vector<18x18x32xbf16>
    %115 = vector.extract_strided_slice %114 {offsets = [0, 0, 0], sizes = [16, 16, 32], strides = [1, 1, 1]} : vector<18x18x32xbf16> to vector<16x16x32xbf16>
    %116 = vector.shape_cast %115 : vector<16x16x32xbf16> to vector<256x32xbf16>
    %c18 = arith.constant 18 : index
    %c0_69 = arith.constant 0 : index
    %c0_70 = arith.constant 0 : index
    %117 = vector.load %arg5[%c18, %c0_69, %c0_70] : memref<27x32x32xbf16, #tpu.memory_space<vmem>>, vector<1x32x32xbf16>
    %118 = vector.shape_cast %117 : vector<1x32x32xbf16> to vector<32x32xbf16>
    %cst_71 = arith.constant dense<0.000000e+00> : vector<256x32xf32>
    %119 = tpu.matmul %116, %118, %cst_71 {dimension_numbers = #tpu.dot_dimension_numbers<[1], [0], [0], [1], [0, 0, 1, 1], [], []>} : vector<256x32xbf16>, vector<32x32xbf16>, vector<256x32xf32> -> vector<256x32xf32>
    %120 = arith.addf %112, %119 : vector<256x32xf32>
    %121 = vector.extract_strided_slice %114 {offsets = [0, 1, 0], sizes = [16, 16, 32], strides = [1, 1, 1]} : vector<18x18x32xbf16> to vector<16x16x32xbf16>
    %122 = vector.shape_cast %121 : vector<16x16x32xbf16> to vector<256x32xbf16>
    %c19 = arith.constant 19 : index
    %c0_72 = arith.constant 0 : index
    %c0_73 = arith.constant 0 : index
    %123 = vector.load %arg5[%c19, %c0_72, %c0_73] : memref<27x32x32xbf16, #tpu.memory_space<vmem>>, vector<1x32x32xbf16>
    %124 = vector.shape_cast %123 : vector<1x32x32xbf16> to vector<32x32xbf16>
    %cst_74 = arith.constant dense<0.000000e+00> : vector<256x32xf32>
    %125 = tpu.matmul %122, %124, %cst_74 {dimension_numbers = #tpu.dot_dimension_numbers<[1], [0], [0], [1], [0, 0, 1, 1], [], []>} : vector<256x32xbf16>, vector<32x32xbf16>, vector<256x32xf32> -> vector<256x32xf32>
    %126 = arith.addf %120, %125 : vector<256x32xf32>
    %127 = vector.extract_strided_slice %114 {offsets = [0, 2, 0], sizes = [16, 16, 32], strides = [1, 1, 1]} : vector<18x18x32xbf16> to vector<16x16x32xbf16>
    %128 = vector.shape_cast %127 : vector<16x16x32xbf16> to vector<256x32xbf16>
    %c20 = arith.constant 20 : index
    %c0_75 = arith.constant 0 : index
    %c0_76 = arith.constant 0 : index
    %129 = vector.load %arg5[%c20, %c0_75, %c0_76] : memref<27x32x32xbf16, #tpu.memory_space<vmem>>, vector<1x32x32xbf16>
    %130 = vector.shape_cast %129 : vector<1x32x32xbf16> to vector<32x32xbf16>
    %cst_77 = arith.constant dense<0.000000e+00> : vector<256x32xf32>
    %131 = tpu.matmul %128, %130, %cst_77 {dimension_numbers = #tpu.dot_dimension_numbers<[1], [0], [0], [1], [0, 0, 1, 1], [], []>} : vector<256x32xbf16>, vector<32x32xbf16>, vector<256x32xf32> -> vector<256x32xf32>
    %132 = arith.addf %126, %131 : vector<256x32xf32>
    %133 = vector.extract_strided_slice %114 {offsets = [1, 0, 0], sizes = [16, 16, 32], strides = [1, 1, 1]} : vector<18x18x32xbf16> to vector<16x16x32xbf16>
    %134 = vector.shape_cast %133 : vector<16x16x32xbf16> to vector<256x32xbf16>
    %c21 = arith.constant 21 : index
    %c0_78 = arith.constant 0 : index
    %c0_79 = arith.constant 0 : index
    %135 = vector.load %arg5[%c21, %c0_78, %c0_79] : memref<27x32x32xbf16, #tpu.memory_space<vmem>>, vector<1x32x32xbf16>
    %136 = vector.shape_cast %135 : vector<1x32x32xbf16> to vector<32x32xbf16>
    %cst_80 = arith.constant dense<0.000000e+00> : vector<256x32xf32>
    %137 = tpu.matmul %134, %136, %cst_80 {dimension_numbers = #tpu.dot_dimension_numbers<[1], [0], [0], [1], [0, 0, 1, 1], [], []>} : vector<256x32xbf16>, vector<32x32xbf16>, vector<256x32xf32> -> vector<256x32xf32>
    %138 = arith.addf %132, %137 : vector<256x32xf32>
    %139 = vector.extract_strided_slice %114 {offsets = [1, 1, 0], sizes = [16, 16, 32], strides = [1, 1, 1]} : vector<18x18x32xbf16> to vector<16x16x32xbf16>
    %140 = vector.shape_cast %139 : vector<16x16x32xbf16> to vector<256x32xbf16>
    %c22 = arith.constant 22 : index
    %c0_81 = arith.constant 0 : index
    %c0_82 = arith.constant 0 : index
    %141 = vector.load %arg5[%c22, %c0_81, %c0_82] : memref<27x32x32xbf16, #tpu.memory_space<vmem>>, vector<1x32x32xbf16>
    %142 = vector.shape_cast %141 : vector<1x32x32xbf16> to vector<32x32xbf16>
    %cst_83 = arith.constant dense<0.000000e+00> : vector<256x32xf32>
    %143 = tpu.matmul %140, %142, %cst_83 {dimension_numbers = #tpu.dot_dimension_numbers<[1], [0], [0], [1], [0, 0, 1, 1], [], []>} : vector<256x32xbf16>, vector<32x32xbf16>, vector<256x32xf32> -> vector<256x32xf32>
    %144 = arith.addf %138, %143 : vector<256x32xf32>
    %145 = vector.extract_strided_slice %114 {offsets = [1, 2, 0], sizes = [16, 16, 32], strides = [1, 1, 1]} : vector<18x18x32xbf16> to vector<16x16x32xbf16>
    %146 = vector.shape_cast %145 : vector<16x16x32xbf16> to vector<256x32xbf16>
    %c23 = arith.constant 23 : index
    %c0_84 = arith.constant 0 : index
    %c0_85 = arith.constant 0 : index
    %147 = vector.load %arg5[%c23, %c0_84, %c0_85] : memref<27x32x32xbf16, #tpu.memory_space<vmem>>, vector<1x32x32xbf16>
    %148 = vector.shape_cast %147 : vector<1x32x32xbf16> to vector<32x32xbf16>
    %cst_86 = arith.constant dense<0.000000e+00> : vector<256x32xf32>
    %149 = tpu.matmul %146, %148, %cst_86 {dimension_numbers = #tpu.dot_dimension_numbers<[1], [0], [0], [1], [0, 0, 1, 1], [], []>} : vector<256x32xbf16>, vector<32x32xbf16>, vector<256x32xf32> -> vector<256x32xf32>
    %150 = arith.addf %144, %149 : vector<256x32xf32>
    %151 = vector.extract_strided_slice %114 {offsets = [2, 0, 0], sizes = [16, 16, 32], strides = [1, 1, 1]} : vector<18x18x32xbf16> to vector<16x16x32xbf16>
    %152 = vector.shape_cast %151 : vector<16x16x32xbf16> to vector<256x32xbf16>
    %c24 = arith.constant 24 : index
    %c0_87 = arith.constant 0 : index
    %c0_88 = arith.constant 0 : index
    %153 = vector.load %arg5[%c24, %c0_87, %c0_88] : memref<27x32x32xbf16, #tpu.memory_space<vmem>>, vector<1x32x32xbf16>
    %154 = vector.shape_cast %153 : vector<1x32x32xbf16> to vector<32x32xbf16>
    %cst_89 = arith.constant dense<0.000000e+00> : vector<256x32xf32>
    %155 = tpu.matmul %152, %154, %cst_89 {dimension_numbers = #tpu.dot_dimension_numbers<[1], [0], [0], [1], [0, 0, 1, 1], [], []>} : vector<256x32xbf16>, vector<32x32xbf16>, vector<256x32xf32> -> vector<256x32xf32>
    %156 = arith.addf %150, %155 : vector<256x32xf32>
    %157 = vector.extract_strided_slice %114 {offsets = [2, 1, 0], sizes = [16, 16, 32], strides = [1, 1, 1]} : vector<18x18x32xbf16> to vector<16x16x32xbf16>
    %158 = vector.shape_cast %157 : vector<16x16x32xbf16> to vector<256x32xbf16>
    %c25 = arith.constant 25 : index
    %c0_90 = arith.constant 0 : index
    %c0_91 = arith.constant 0 : index
    %159 = vector.load %arg5[%c25, %c0_90, %c0_91] : memref<27x32x32xbf16, #tpu.memory_space<vmem>>, vector<1x32x32xbf16>
    %160 = vector.shape_cast %159 : vector<1x32x32xbf16> to vector<32x32xbf16>
    %cst_92 = arith.constant dense<0.000000e+00> : vector<256x32xf32>
    %161 = tpu.matmul %158, %160, %cst_92 {dimension_numbers = #tpu.dot_dimension_numbers<[1], [0], [0], [1], [0, 0, 1, 1], [], []>} : vector<256x32xbf16>, vector<32x32xbf16>, vector<256x32xf32> -> vector<256x32xf32>
    %162 = arith.addf %156, %161 : vector<256x32xf32>
    %163 = vector.extract_strided_slice %114 {offsets = [2, 2, 0], sizes = [16, 16, 32], strides = [1, 1, 1]} : vector<18x18x32xbf16> to vector<16x16x32xbf16>
    %164 = vector.shape_cast %163 : vector<16x16x32xbf16> to vector<256x32xbf16>
    %c26 = arith.constant 26 : index
    %c0_93 = arith.constant 0 : index
    %c0_94 = arith.constant 0 : index
    %165 = vector.load %arg5[%c26, %c0_93, %c0_94] : memref<27x32x32xbf16, #tpu.memory_space<vmem>>, vector<1x32x32xbf16>
    %166 = vector.shape_cast %165 : vector<1x32x32xbf16> to vector<32x32xbf16>
    %cst_95 = arith.constant dense<0.000000e+00> : vector<256x32xf32>
    %167 = tpu.matmul %164, %166, %cst_95 {dimension_numbers = #tpu.dot_dimension_numbers<[1], [0], [0], [1], [0, 0, 1, 1], [], []>} : vector<256x32xbf16>, vector<32x32xbf16>, vector<256x32xf32> -> vector<256x32xf32>
    %168 = arith.addf %162, %167 : vector<256x32xf32>
    %c0_96 = arith.constant 0 : index
    %c0_97 = arith.constant 0 : index
    %c0_98 = arith.constant 0 : index
    %c0_99 = arith.constant 0 : index
    %169 = vector.load %arg6[%c0_96, %c0_97, %c0_98, %c0_99] : memref<1x1x256x32xf32, #tpu.memory_space<vmem>>, vector<1x1x256x32xf32>
    %170 = vector.shape_cast %169 : vector<1x1x256x32xf32> to vector<256x32xf32>
    %171 = vector.shape_cast %168 : vector<256x32xf32> to vector<1x1x256x32xf32>
    tpu.vector_store %arg6[%c0_96, %c0_97, %c0_98, %c0_99], %171 {strides = array<i32>} : memref<1x1x256x32xf32, #tpu.memory_space<vmem>>, vector<1x1x256x32xf32>,
    %cst_100 = arith.constant dense<0.000000e+00> : vector<32xf32>
    %172 = vector.multi_reduction <add>, %168, %cst_100 [0] : vector<256x32xf32> to vector<32xf32>
    %173 = vector.shape_cast %172 : vector<32xf32> to vector<1x32xf32>
    %174 = arith.mulf %168, %168 : vector<256x32xf32>
    %cst_101 = arith.constant dense<0.000000e+00> : vector<32xf32>
    %175 = vector.multi_reduction <add>, %174, %cst_101 [0] : vector<256x32xf32> to vector<32xf32>
    %176 = vector.shape_cast %175 : vector<32xf32> to vector<1x32xf32>
    %177 = tpu.concatenate %173, %176 in 0 : vector<1x32xf32>, vector<1x32xf32> -> vector<2x32xf32>
    %c0_102 = arith.constant 0 : index
    %c0_103 = arith.constant 0 : index
    %c0_104 = arith.constant 0 : index
    %c0_105 = arith.constant 0 : index
    %178 = vector.load %arg7[%c0_102, %c0_103, %c0_104, %c0_105] : memref<1x1x2x32xf32, #tpu.memory_space<vmem>>, vector<1x1x2x32xf32>
    %179 = vector.shape_cast %178 : vector<1x1x2x32xf32> to vector<2x32xf32>
    %180 = vector.shape_cast %177 : vector<2x32xf32> to vector<1x1x2x32xf32>
    tpu.vector_store %arg7[%c0_102, %c0_103, %c0_104, %c0_105], %180 {strides = array<i32>} : memref<1x1x2x32xf32, #tpu.memory_space<vmem>>, vector<1x1x2x32xf32>,
    return
  }
  func.func @transform_0(%arg0: i32, %arg1: i32) -> (i32, i32, i32, i32, i32) {
    %c0_i32 = arith.constant 0 : i32
    %0 = arith.addi %arg1, %c0_i32 : i32
    %c0_i32_0 = arith.constant 0 : i32
    %c0_i32_1 = arith.constant 0 : i32
    %c0_i32_2 = arith.constant 0 : i32
    %c0_i32_3 = arith.constant 0 : i32
    return %arg0, %0, %c0_i32_0, %c0_i32_1, %c0_i32_2 : i32, i32, i32, i32, i32
  }
  func.func @transform_1(%arg0: i32, %arg1: i32) -> (i32, i32, i32, i32, i32) {
    %c1_i32 = arith.constant 1 : i32
    %0 = arith.addi %arg1, %c1_i32 : i32
    %c0_i32 = arith.constant 0 : i32
    %c0_i32_0 = arith.constant 0 : i32
    %c0_i32_1 = arith.constant 0 : i32
    %c0_i32_2 = arith.constant 0 : i32
    return %arg0, %0, %c0_i32, %c0_i32_0, %c0_i32_1 : i32, i32, i32, i32, i32
  }
  func.func @transform_2(%arg0: i32, %arg1: i32) -> (i32, i32, i32, i32, i32) {
    %c2_i32 = arith.constant 2 : i32
    %0 = arith.addi %arg1, %c2_i32 : i32
    %c0_i32 = arith.constant 0 : i32
    %c0_i32_0 = arith.constant 0 : i32
    %c0_i32_1 = arith.constant 0 : i32
    %c0_i32_2 = arith.constant 0 : i32
    return %arg0, %0, %c0_i32, %c0_i32_0, %c0_i32_1 : i32, i32, i32, i32, i32
  }
  func.func @transform_3(%arg0: i32, %arg1: i32) -> (i32, i32, i32) {
    %c0_i32 = arith.constant 0 : i32
    %c0_i32_0 = arith.constant 0 : i32
    %c0_i32_1 = arith.constant 0 : i32
    %c0_i32_2 = arith.constant 0 : i32
    return %c0_i32, %c0_i32_0, %c0_i32_1 : i32, i32, i32
  }
  func.func @transform_4(%arg0: i32, %arg1: i32) -> (i32, i32, i32, i32) {
    %c0_i32 = arith.constant 0 : i32
    %c0_i32_0 = arith.constant 0 : i32
    %c0_i32_1 = arith.constant 0 : i32
    return %arg0, %arg1, %c0_i32, %c0_i32_0 : i32, i32, i32, i32
  }
  func.func @transform_5(%arg0: i32, %arg1: i32) -> (i32, i32, i32, i32) {
    %c0_i32 = arith.constant 0 : i32
    %c0_i32_0 = arith.constant 0 : i32
    %c0_i32_1 = arith.constant 0 : i32
    return %arg0, %arg1, %c0_i32, %c0_i32_0 : i32, i32, i32, i32
  }
}

module attributes {stable_mosaic.version = 11 : i64} {
  func.func @_bn_relu_kernel(%arg0: i32, %arg1: i32, %arg2: memref<1x1x256x32xf32, #tpu.memory_space<vmem>>, %arg3: memref<1x32xf32, #tpu.memory_space<vmem>>, %arg4: memref<1x32xf32, #tpu.memory_space<vmem>>, %arg5: memref<1x1x256x32xbf16, #tpu.memory_space<vmem>>) attributes {dimension_semantics = [#tpu.dimension_semantics<parallel>, #tpu.dimension_semantics<parallel>], iteration_bounds = array<i64: 2, 8>, scalar_prefetch = 0 : i64, scratch_operands = 0 : i64, tpu.core_type = #tpu.core_type<tc>, window_params = [{transform_indices = @transform_0, window_bounds = array<i64: 1, 1, 256, 32>}, {pipeline_mode = #tpu.pipeline_mode<synchronous>, transform_indices = @transform_1, window_bounds = array<i64: 1, 32>}, {pipeline_mode = #tpu.pipeline_mode<synchronous>, transform_indices = @transform_2, window_bounds = array<i64: 1, 32>}, {transform_indices = @transform_3, window_bounds = array<i64: 1, 1, 256, 32>}]} {
    %c0 = arith.constant 0 : index
    %c0_0 = arith.constant 0 : index
    %c0_1 = arith.constant 0 : index
    %c0_2 = arith.constant 0 : index
    %0 = vector.load %arg2[%c0, %c0_0, %c0_1, %c0_2] : memref<1x1x256x32xf32, #tpu.memory_space<vmem>>, vector<1x1x256x32xf32>
    %1 = vector.shape_cast %0 : vector<1x1x256x32xf32> to vector<256x32xf32>
    %c0_3 = arith.constant 0 : index
    %c0_4 = arith.constant 0 : index
    %2 = vector.load %arg3[%c0_3, %c0_4] : memref<1x32xf32, #tpu.memory_space<vmem>>, vector<1x32xf32>
    %3 = vector.broadcast %2 : vector<1x32xf32> to vector<256x32xf32>
    %4 = arith.mulf %1, %3 : vector<256x32xf32>
    %c0_5 = arith.constant 0 : index
    %c0_6 = arith.constant 0 : index
    %5 = vector.load %arg4[%c0_5, %c0_6] : memref<1x32xf32, #tpu.memory_space<vmem>>, vector<1x32xf32>
    %6 = vector.broadcast %5 : vector<1x32xf32> to vector<256x32xf32>
    %7 = arith.addf %4, %6 : vector<256x32xf32>
    %cst = arith.constant 0.000000e+00 : f32
    %8 = vector.broadcast %cst : f32 to vector<256x32xf32>
    %9 = arith.maximumf %7, %8 : vector<256x32xf32>
    %10 = arith.truncf %9 : vector<256x32xf32> to vector<256x32xbf16>
    %c0_7 = arith.constant 0 : index
    %c0_8 = arith.constant 0 : index
    %c0_9 = arith.constant 0 : index
    %c0_10 = arith.constant 0 : index
    %11 = vector.load %arg5[%c0_7, %c0_8, %c0_9, %c0_10] : memref<1x1x256x32xbf16, #tpu.memory_space<vmem>>, vector<1x1x256x32xbf16>
    %12 = vector.shape_cast %11 : vector<1x1x256x32xbf16> to vector<256x32xbf16>
    %13 = vector.shape_cast %10 : vector<256x32xbf16> to vector<1x1x256x32xbf16>
    tpu.vector_store %arg5[%c0_7, %c0_8, %c0_9, %c0_10], %13 {strides = array<i32>} : memref<1x1x256x32xbf16, #tpu.memory_space<vmem>>, vector<1x1x256x32xbf16>,
    return
  }
  func.func @transform_0(%arg0: i32, %arg1: i32) -> (i32, i32, i32, i32) {
    %c0_i32 = arith.constant 0 : i32
    %c0_i32_0 = arith.constant 0 : i32
    %c0_i32_1 = arith.constant 0 : i32
    return %arg0, %arg1, %c0_i32, %c0_i32_0 : i32, i32, i32, i32
  }
  func.func @transform_1(%arg0: i32, %arg1: i32) -> (i32, i32) {
    %c0_i32 = arith.constant 0 : i32
    %c0_i32_0 = arith.constant 0 : i32
    %c0_i32_1 = arith.constant 0 : i32
    return %c0_i32, %c0_i32_0 : i32, i32
  }
  func.func @transform_2(%arg0: i32, %arg1: i32) -> (i32, i32) {
    %c0_i32 = arith.constant 0 : i32
    %c0_i32_0 = arith.constant 0 : i32
    %c0_i32_1 = arith.constant 0 : i32
    return %c0_i32, %c0_i32_0 : i32, i32
  }
  func.func @transform_3(%arg0: i32, %arg1: i32) -> (i32, i32, i32, i32) {
    %c0_i32 = arith.constant 0 : i32
    %c0_i32_0 = arith.constant 0 : i32
    %c0_i32_1 = arith.constant 0 : i32
    return %arg0, %arg1, %c0_i32, %c0_i32_0 : i32, i32, i32, i32
  }
}

module attributes {stable_mosaic.version = 11 : i64} {
  func.func @_bn_gate_res_relu_kernel(%arg0: i32, %arg1: i32, %arg2: memref<1x1x256x32xf32, #tpu.memory_space<vmem>>, %arg3: memref<1x1x256x32xf32, #tpu.memory_space<vmem>>, %arg4: memref<1x1x32xf32, #tpu.memory_space<vmem>>, %arg5: memref<1x32xf32, #tpu.memory_space<vmem>>, %arg6: memref<1x32xf32, #tpu.memory_space<vmem>>, %arg7: memref<1x1x256x32xf32, #tpu.memory_space<vmem>>) attributes {dimension_semantics = [#tpu.dimension_semantics<parallel>, #tpu.dimension_semantics<parallel>], iteration_bounds = array<i64: 2, 8>, scalar_prefetch = 0 : i64, scratch_operands = 0 : i64, tpu.core_type = #tpu.core_type<tc>, window_params = [{transform_indices = @transform_0, window_bounds = array<i64: 1, 1, 256, 32>}, {transform_indices = @transform_1, window_bounds = array<i64: 1, 1, 256, 32>}, {transform_indices = @transform_2, window_bounds = array<i64: 1, 1, 32>}, {pipeline_mode = #tpu.pipeline_mode<synchronous>, transform_indices = @transform_3, window_bounds = array<i64: 1, 32>}, {pipeline_mode = #tpu.pipeline_mode<synchronous>, transform_indices = @transform_4, window_bounds = array<i64: 1, 32>}, {transform_indices = @transform_5, window_bounds = array<i64: 1, 1, 256, 32>}]} {
    %c0 = arith.constant 0 : index
    %c0_0 = arith.constant 0 : index
    %c0_1 = arith.constant 0 : index
    %c0_2 = arith.constant 0 : index
    %0 = vector.load %arg2[%c0, %c0_0, %c0_1, %c0_2] : memref<1x1x256x32xf32, #tpu.memory_space<vmem>>, vector<1x1x256x32xf32>
    %1 = vector.shape_cast %0 : vector<1x1x256x32xf32> to vector<256x32xf32>
    %c0_3 = arith.constant 0 : index
    %c0_4 = arith.constant 0 : index
    %2 = vector.load %arg5[%c0_3, %c0_4] : memref<1x32xf32, #tpu.memory_space<vmem>>, vector<1x32xf32>
    %3 = vector.broadcast %2 : vector<1x32xf32> to vector<256x32xf32>
    %4 = arith.mulf %1, %3 : vector<256x32xf32>
    %c0_5 = arith.constant 0 : index
    %c0_6 = arith.constant 0 : index
    %5 = vector.load %arg6[%c0_5, %c0_6] : memref<1x32xf32, #tpu.memory_space<vmem>>, vector<1x32xf32>
    %6 = vector.broadcast %5 : vector<1x32xf32> to vector<256x32xf32>
    %7 = arith.addf %4, %6 : vector<256x32xf32>
    %c0_7 = arith.constant 0 : index
    %c0_8 = arith.constant 0 : index
    %c0_9 = arith.constant 0 : index
    %8 = vector.load %arg4[%c0_7, %c0_8, %c0_9] : memref<1x1x32xf32, #tpu.memory_space<vmem>>, vector<1x1x32xf32>
    %9 = vector.shape_cast %8 : vector<1x1x32xf32> to vector<1x32xf32>
    %10 = vector.broadcast %9 : vector<1x32xf32> to vector<256x32xf32>
    %11 = arith.mulf %7, %10 : vector<256x32xf32>
    %c0_10 = arith.constant 0 : index
    %c0_11 = arith.constant 0 : index
    %c0_12 = arith.constant 0 : index
    %c0_13 = arith.constant 0 : index
    %12 = vector.load %arg3[%c0_10, %c0_11, %c0_12, %c0_13] : memref<1x1x256x32xf32, #tpu.memory_space<vmem>>, vector<1x1x256x32xf32>
    %13 = vector.shape_cast %12 : vector<1x1x256x32xf32> to vector<256x32xf32>
    %14 = arith.addf %11, %13 : vector<256x32xf32>
    %cst = arith.constant 0.000000e+00 : f32
    %15 = vector.broadcast %cst : f32 to vector<256x32xf32>
    %16 = arith.maximumf %14, %15 : vector<256x32xf32>
    %c0_14 = arith.constant 0 : index
    %c0_15 = arith.constant 0 : index
    %c0_16 = arith.constant 0 : index
    %c0_17 = arith.constant 0 : index
    %17 = vector.load %arg7[%c0_14, %c0_15, %c0_16, %c0_17] : memref<1x1x256x32xf32, #tpu.memory_space<vmem>>, vector<1x1x256x32xf32>
    %18 = vector.shape_cast %17 : vector<1x1x256x32xf32> to vector<256x32xf32>
    %19 = vector.shape_cast %16 : vector<256x32xf32> to vector<1x1x256x32xf32>
    tpu.vector_store %arg7[%c0_14, %c0_15, %c0_16, %c0_17], %19 {strides = array<i32>} : memref<1x1x256x32xf32, #tpu.memory_space<vmem>>, vector<1x1x256x32xf32>,
    return
  }
  func.func @transform_0(%arg0: i32, %arg1: i32) -> (i32, i32, i32, i32) {
    %c0_i32 = arith.constant 0 : i32
    %c0_i32_0 = arith.constant 0 : i32
    %c0_i32_1 = arith.constant 0 : i32
    return %arg0, %arg1, %c0_i32, %c0_i32_0 : i32, i32, i32, i32
  }
  func.func @transform_1(%arg0: i32, %arg1: i32) -> (i32, i32, i32, i32) {
    %c0_i32 = arith.constant 0 : i32
    %c0_i32_0 = arith.constant 0 : i32
    %c0_i32_1 = arith.constant 0 : i32
    return %arg0, %arg1, %c0_i32, %c0_i32_0 : i32, i32, i32, i32
  }
  func.func @transform_2(%arg0: i32, %arg1: i32) -> (i32, i32, i32) {
    %c0_i32 = arith.constant 0 : i32
    %c0_i32_0 = arith.constant 0 : i32
    %c0_i32_1 = arith.constant 0 : i32
    return %arg0, %c0_i32, %c0_i32_0 : i32, i32, i32
  }
  func.func @transform_3(%arg0: i32, %arg1: i32) -> (i32, i32) {
    %c0_i32 = arith.constant 0 : i32
    %c0_i32_0 = arith.constant 0 : i32
    %c0_i32_1 = arith.constant 0 : i32
    return %c0_i32, %c0_i32_0 : i32, i32
  }
  func.func @transform_4(%arg0: i32, %arg1: i32) -> (i32, i32) {
    %c0_i32 = arith.constant 0 : i32
    %c0_i32_0 = arith.constant 0 : i32
    %c0_i32_1 = arith.constant 0 : i32
    return %c0_i32, %c0_i32_0 : i32, i32
  }
  func.func @transform_5(%arg0: i32, %arg1: i32) -> (i32, i32, i32, i32) {
    %c0_i32 = arith.constant 0 : i32
    %c0_i32_0 = arith.constant 0 : i32
    %c0_i32_1 = arith.constant 0 : i32
    return %arg0, %arg1, %c0_i32, %c0_i32_0 : i32, i32, i32, i32
  }
}

</mosaic_0001>

<llo_original>
// kernel: basic_block_forward.5
$region0: #{basic_block_forward.5}
  #allocation0 [shape = 'u32[]', space=smem, size = 0x4, offset = 0x4, fixed_abs, tag = 'smem constant byte address 0x4 - core index']
  #allocation1 [shape = 'u32[72,128]{1,0:T(1,128)}', space=vmem, size = 0x9000, scoped, tag = 'internal scratch']
  %s0 = inlined_call_operand.vmem [shape: f32[2,8,256,32], index: 0, kind: input, shape index: {}]
  %s1 = inlined_call_operand.vmem [shape: f32[1,32], index: 1, kind: input, shape index: {}]
  %s2 = inlined_call_operand.vmem [shape: f32[1,32], index: 2, kind: input, shape index: {}]
  %s3 = inlined_call_operand.vmem [shape: bf16[2,8,256,32], index: 3, kind: output, shape index: {}]
  %s4 = sld [smem:[#allocation0]]
  $region45: #{basic_block_forward.5} parent=0
    _
  %s6 = ssub.s32 1, %s4
  %s7 = scalar_select 0, %s6, %s4
  loop: start=0, step=1, limit=18
  $region2: #{basic_block_forward.5} parent=0 // loop_pre_header
    _
  $region3: #{basic_block_forward.5} parent=0 // loop_header
    %s9 = sphi 0, %s13
    %p10 = scmp.ge.s32.totalorder %s9, 18
    %s16 = sphi 0, %s28
    %s17 = sphi 0, %s24
    %s18 = sphi 0, %s16
    %s19 = sphi 0, %s17
    %s20 = sphi 0, %s18
    %s21 = sphi 0, %s19
    %s33 = sphi 0, %s35
    %s36 = sphi 0, %s33
    %s37 = sphi 0, %s36
    %s53 = sphi 0, %s37
    %s57 = sphi 0, %s57
    %s59 = sphi 0, %s57
    %s60 = sphi 0, %s59
    %s74 = sphi 0, %s60
    %s78 = sphi 0, %s78
    %s80 = sphi 0, %s78
    %s81 = sphi 0, %s80
    %s95 = sphi 0, %s81
    %s103 = sphi 0, %s105
    %s106 = sphi 0, %s103
    %s107 = sphi 0, %s106
    %s123 = sphi 0, %s107
  $region4: #{basic_block_forward.5} parent=0 // loop_header_branch
    %12 = sbr.rel (%p10) target = $region8
  $region5: #{basic_block_forward.5} parent=0 // loop_body
    %s14 = ssub.s32 %s9, 1
    %s15 = ssub.s32 %s9, 2
    %s22 = sadd.s32 1, %s17
    %p23 = scmp.ge.s32.totalorder %s22, 8
    %s24 = scalar_select %p23, 0, %s22
    %s25 = sadd.s32 1, %s16
    %s26 = scalar_select %p23, %s25, %s16
    %p27 = scmp.ge.s32.totalorder %s26, 2
    %s28 = scalar_select %p27, 0, %s26
    %s29 = ssub.s32 %s16, %s28
    %s30 = ssub.s32 %s17, %s24
    %s31 = sor.u32 %s29, %s30
    %p32 = scmp.eq.s32.totalorder %s31, 0
    %s34 = sadd.s32 %s33, 1
    %s35 = scalar_select %p32, %s33, %s34
    %p38 = pneg %p32
    %p39 = scmp.eq.s32.totalorder %s9, 15
    %p40 = por %p38, %p39
    %p41 = scmp.ne.s32.totalorder %s33, %s36
    %p42 = scmp.eq.s32.totalorder %s9, 0
    %p43 = por %p41, %p42
    %p44 = scmp.ne.s32.totalorder %s33, %s36
    %p45 = scmp.eq.s32.totalorder %s14, 15
    %p46 = por %p44, %p45
    %p47 = scmp.ne.s32.totalorder %s36, %s37
    %p48 = scmp.eq.s32.totalorder %s14, 0
    %p49 = por %p47, %p48
    %p50 = scmp.ne.s32.totalorder %s36, %s37
    %p51 = scmp.eq.s32.totalorder %s15, 15
    %p52 = por %p50, %p51
    %p54 = scmp.ne.s32.totalorder %s37, %s53
    %p55 = scmp.eq.s32.totalorder %s15, 0
    %p56 = por %p54, %p55
    %s58 = sadd.s32 %s57, 1
    %p61 = scmp.eq.s32.totalorder %s9, 15
    %p62 = scmp.ne.s32.totalorder %s57, %s59
    %p63 = scmp.eq.s32.totalorder %s9, 0
    %p64 = por %p62, %p63
    %p65 = scmp.ne.s32.totalorder %s57, %s59
    %p66 = scmp.eq.s32.totalorder %s14, 15
    %p67 = por %p65, %p66
    %p68 = scmp.ne.s32.totalorder %s59, %s60
    %p69 = scmp.eq.s32.totalorder %s14, 0
    %p70 = por %p68, %p69
    %p71 = scmp.ne.s32.totalorder %s59, %s60
    %p72 = scmp.eq.s32.totalorder %s15, 15
    %p73 = por %p71, %p72
    %p75 = scmp.ne.s32.totalorder %s60, %s74
    %p76 = scmp.eq.s32.totalorder %s15, 0
    %p77 = por %p75, %p76
    %s79 = sadd.s32 %s78, 1
    %p82 = scmp.eq.s32.totalorder %s9, 15
    %p83 = scmp.ne.s32.totalorder %s78, %s80
    %p84 = scmp.eq.s32.totalorder %s9, 0
    %p85 = por %p83, %p84
    %p86 = scmp.ne.s32.totalorder %s78, %s80
    %p87 = scmp.eq.s32.totalorder %s14, 15
    %p88 = por %p86, %p87
    %p89 = scmp.ne.s32.totalorder %s80, %s81
    %p90 = scmp.eq.s32.totalorder %s14, 0
    %p91 = por %p89, %p90
    %p92 = scmp.ne.s32.totalorder %s80, %s81
    %p93 = scmp.eq.s32.totalorder %s15, 15
    %p94 = por %p92, %p93
    %p96 = scmp.ne.s32.totalorder %s81, %s95
    %p97 = scmp.eq.s32.totalorder %s15, 0
    %p98 = por %p96, %p97
    %s99 = ssub.s32 %s16, %s28
    %s100 = ssub.s32 %s17, %s24
    %s101 = sor.u32 %s99, %s100
    %p102 = scmp.eq.s32.totalorder %s101, 0
    %s104 = sadd.s32 %s103, 1
    %s105 = scalar_select %p102, %s103, %s104
    %p108 = pneg %p102
    %p109 = scmp.eq.s32.totalorder %s9, 15
    %p110 = por %p108, %p109
    %p111 = scmp.ne.s32.totalorder %s103, %s106
    %p112 = scmp.eq.s32.totalorder %s9, 0
    %p113 = por %p111, %p112
    %p114 = scmp.ne.s32.totalorder %s103, %s106
    %p115 = scmp.eq.s32.totalorder %s14, 15
    %p116 = por %p114, %p115
    %p117 = scmp.ne.s32.totalorder %s106, %s107
    %p118 = scmp.eq.s32.totalorder %s14, 0
    %p119 = por %p117, %p118
    %p120 = scmp.ne.s32.totalorder %s106, %s107
    %p121 = scmp.eq.s32.totalorder %s15, 15
    %p122 = por %p120, %p121
    %p124 = scmp.ne.s32.totalorder %s107, %s123
    %p125 = scmp.eq.s32.totalorder %s15, 0
    %p126 = por %p124, %p125
    %p127 = scmp.le.s32.totalorder 1, %s9
    %p128 = scmp.lt.s32.totalorder %s9, 17
    %p129 = pnand %p127, %p128
    %p130 = pneg %p129
    // Predicated region
    $region9: #{basic_block_forward.5} parent=5 // pred_check
      _
    $region10: #{basic_block_forward.5} parent=5 // pred_check_branch
      %132 = sbr.rel (%p129) target = $region12
    $region11: #{basic_block_forward.5} parent=5 // pred_region
      %s133 = ssub.s32 %s9, 1
      // Predicated region
      $region13: #{basic_block_forward.5} parent=11 // pred_check
        %p134 = pneg %p70
      $region14: #{basic_block_forward.5} parent=11 // pred_check_branch
        %136 = sbr.rel (%p134) target = $region16
      $region15: #{basic_block_forward.5} parent=11 // pred_region
        _
      $region16: #{basic_block_forward.5} parent=11 // pred_fallthru
        _
      // Predicated region
      $region17: #{basic_block_forward.5} parent=11 // pred_check
        %p137 = pneg %p91
      $region18: #{basic_block_forward.5} parent=11 // pred_check_branch
        %139 = sbr.rel (%p137) target = $region20
      $region19: #{basic_block_forward.5} parent=11 // pred_region
        _
      $region20: #{basic_block_forward.5} parent=11 // pred_fallthru
        _
    $region12: #{basic_block_forward.5} parent=5 // pred_fallthru
      _
    %p140 = scmp.lt.s32.totalorder %s9, 16
    // Predicated region
    $region21: #{basic_block_forward.5} parent=5 // pred_check
      %p141 = pneg %p140
    $region22: #{basic_block_forward.5} parent=5 // pred_check_branch
      %143 = sbr.rel (%p141) target = $region24
    $region23: #{basic_block_forward.5} parent=5 // pred_region
      // Predicated region
      $region25: #{basic_block_forward.5} parent=23 // pred_check
        %p144 = pneg %p43
      $region26: #{basic_block_forward.5} parent=23 // pred_check_branch
        %146 = sbr.rel (%p144) target = $region28
      $region27: #{basic_block_forward.5} parent=23 // pred_region
        %p147 = scmp.lt.s32.totalorder %s16, 1
        %s148 = scalar_select %p147, %s16, 1
        %p149 = scmp.lt.s32.totalorder %s17, 7
        %s150 = scalar_select %p149, %s17, 7
        %s151 = smul.addr %s150, 32
        %s152 = smul.addr %s148, 256
        %s153 = sadd.s32 %s151, %s152
        %s154 = smul.addr %s153, 8
        %s155 = scalar_lea.vmem %s0, %s154
      $region28: #{basic_block_forward.5} parent=23 // pred_fallthru
        _
    $region24: #{basic_block_forward.5} parent=5 // pred_fallthru
      _
    %p156 = scmp.le.s32.totalorder 1, %s9
    %p157 = scmp.lt.s32.totalorder %s9, 17
    %p158 = pnand %p156, %p157
    %p159 = pneg %p158
    // Predicated region
    $region29: #{basic_block_forward.5} parent=5 // pred_check
      _
    $region30: #{basic_block_forward.5} parent=5 // pred_check_branch
      %161 = sbr.rel (%p158) target = $region32
    $region31: #{basic_block_forward.5} parent=5 // pred_region
      %s162 = ssub.s32 %s9, 1
      %p163 = scmp.lt.s32.totalorder %s18, 1
      %s164 = scalar_select %p163, %s18, 1
      %p165 = scmp.lt.s32.totalorder %s19, 7
      %s166 = scalar_select %p165, %s19, 7
      %s167 = smul.addr %s166, 32
      %s168 = smul.addr %s164, 256
      %s169 = sadd.s32 %s167, %s168
      %s170 = smul.addr %s169, 8
      %s171 = scalar_lea.vmem %s0, %s170
      %p172 = pneg %p49
      %p173 = pneg %p46
      %p174 = pneg %p70
      %p175 = pneg %p67
      %p176 = pneg %p91
      %p177 = pneg %p88
      %p178 = pneg %p119
      %p179 = pneg %p116
      %p180 = scmp.lt.s32.totalorder %s18, 1
      %s181 = scalar_select %p180, %s18, 1
      %p182 = scmp.lt.s32.totalorder %s19, 7
      %s183 = scalar_select %p182, %s19, 7
      %s184 = smul.addr %s183, 32
      %s185 = smul.addr %s181, 256
      %s186 = sadd.s32 %s184, %s185
      %s187 = smul.addr %s186, 4
      %s188 = scalar_lea.vmem %s3, %s187
      %p189 = scmp.lt.s32.totalorder %s18, 1
      %s190 = scalar_select %p189, %s18, 1
      %p191 = scmp.lt.s32.totalorder %s19, 7
      %s192 = scalar_select %p191, %s19, 7
      %s193 = smul.addr %s192, 32
      %s194 = smul.addr %s190, 256
      %s195 = sadd.s32 %s193, %s194
      %s196 = smul.addr %s195, 8
      %s197 = scalar_lea.vmem %s0, %s196
      %p198 = scmp.lt.s32.totalorder %s18, 1
      %s199 = scalar_select %p198, %s18, 1
      %p200 = scmp.lt.s32.totalorder %s19, 7
      %s201 = scalar_select %p200, %s19, 7
      %s202 = smul.addr %s201, 32
      %s203 = smul.addr %s199, 256
      %s204 = sadd.s32 %s202, %s203
      %s205 = smul.addr %s204, 4
      %s206 = scalar_lea.vmem %s3, %s205
      %v207 = vld [vmem:[%s197] sm:$0xff]
      %v208 = vld [vmem:[%s197 + $0x8] sm:$0xff]
      %v209 = vld [vmem:[%s197 + $0x10] sm:$0xff]
      %v210 = vld [vmem:[%s197 + $0x18] sm:$0xff]
      %v211 = vld [vmem:[%s197 + $0x20] sm:$0xff]
      %v212 = vld [vmem:[%s197 + $0x28] sm:$0xff]
      %v213 = vld [vmem:[%s197 + $0x30] sm:$0xff]
      %v214 = vld [vmem:[%s197 + $0x38] sm:$0xff]
      %v215 = vld [vmem:[%s197 + $0x40] sm:$0xff]
      %v216 = vld [vmem:[%s197 + $0x48] sm:$0xff]
      %v217 = vld [vmem:[%s197 + $0x50] sm:$0xff]
      %v218 = vld [vmem:[%s197 + $0x58] sm:$0xff]
      %v219 = vld [vmem:[%s197 + $0x60] sm:$0xff]
      %v220 = vld [vmem:[%s197 + $0x68] sm:$0xff]
      %v221 = vld [vmem:[%s197 + $0x70] sm:$0xff]
      %v222 = vld [vmem:[%s197 + $0x78] sm:$0xff]
      %v223 = vld [vmem:[%s197 + $0x80] sm:$0xff]
      %v224 = vld [vmem:[%s197 + $0x88] sm:$0xff]
      %v225 = vld [vmem:[%s197 + $0x90] sm:$0xff]
      %v226 = vld [vmem:[%s197 + $0x98] sm:$0xff]
      %v227 = vld [vmem:[%s197 + $0xa0] sm:$0xff]
      %v228 = vld [vmem:[%s197 + $0xa8] sm:$0xff]
      %v229 = vld [vmem:[%s197 + $0xb0] sm:$0xff]
      %v230 = vld [vmem:[%s197 + $0xb8] sm:$0xff]
      %v231 = vld [vmem:[%s197 + $0xc0] sm:$0xff]
      %v232 = vld [vmem:[%s197 + $0xc8] sm:$0xff]
      %v233 = vld [vmem:[%s197 + $0xd0] sm:$0xff]
      %v234 = vld [vmem:[%s197 + $0xd8] sm:$0xff]
      %v235 = vld [vmem:[%s197 + $0xe0] sm:$0xff]
      %v236 = vld [vmem:[%s197 + $0xe8] sm:$0xff]
      %v237 = vld [vmem:[%s197 + $0xf0] sm:$0xff]
      %v238 = vld [vmem:[%s197 + $0xf8] sm:$0xff]
      %v239 = vld [vmem:[%s1] sm:$0x1]
      %v241 = vperm.slane %v239, 0
      %v243 = vmul.f32 %v207, %v241
      %v244 = vmul.f32 %v208, %v241
      %v245 = vmul.f32 %v209, %v241
      %v246 = vmul.f32 %v210, %v241
      %v247 = vmul.f32 %v211, %v241
      %v248 = vmul.f32 %v212, %v241
      %v249 = vmul.f32 %v213, %v241
      %v250 = vmul.f32 %v214, %v241
      %v251 = vmul.f32 %v215, %v241
      %v252 = vmul.f32 %v216, %v241
      %v253 = vmul.f32 %v217, %v241
      %v254 = vmul.f32 %v218, %v241
      %v255 = vmul.f32 %v219, %v241
      %v256 = vmul.f32 %v220, %v241
      %v257 = vmul.f32 %v221, %v241
      %v258 = vmul.f32 %v222, %v241
      %v259 = vmul.f32 %v223, %v241
      %v260 = vmul.f32 %v224, %v241
      %v261 = vmul.f32 %v225, %v241
      %v262 = vmul.f32 %v226, %v241
      %v263 = vmul.f32 %v227, %v241
      %v264 = vmul.f32 %v228, %v241
      %v265 = vmul.f32 %v229, %v241
      %v266 = vmul.f32 %v230, %v241
      %v267 = vmul.f32 %v231, %v241
      %v268 = vmul.f32 %v232, %v241
      %v269 = vmul.f32 %v233, %v241
      %v270 = vmul.f32 %v234, %v241
      %v271 = vmul.f32 %v235, %v241
      %v272 = vmul.f32 %v236, %v241
      %v273 = vmul.f32 %v237, %v241
      %v274 = vmul.f32 %v238, %v241
      %v275 = vld [vmem:[%s2] sm:$0x1]
      %v277 = vperm.slane %v275, 0
      %v279 = vadd.f32 %v243, %v277
      %v280 = vadd.f32 %v244, %v277
      %v281 = vadd.f32 %v245, %v277
      %v282 = vadd.f32 %v246, %v277
      %v283 = vadd.f32 %v247, %v277
      %v284 = vadd.f32 %v248, %v277
      %v285 = vadd.f32 %v249, %v277
      %v286 = vadd.f32 %v250, %v277
      %v287 = vadd.f32 %v251, %v277
      %v288 = vadd.f32 %v252, %v277
      %v289 = vadd.f32 %v253, %v277
      %v290 = vadd.f32 %v254, %v277
      %v291 = vadd.f32 %v255, %v277
      %v292 = vadd.f32 %v256, %v277
      %v293 = vadd.f32 %v257, %v277
      %v294 = vadd.f32 %v258, %v277
      %v295 = vadd.f32 %v259, %v277
      %v296 = vadd.f32 %v260, %v277
      %v297 = vadd.f32 %v261, %v277
      %v298 = vadd.f32 %v262, %v277
      %v299 = vadd.f32 %v263, %v277
      %v300 = vadd.f32 %v264, %v277
      %v301 = vadd.f32 %v265, %v277
      %v302 = vadd.f32 %v266, %v277
      %v303 = vadd.f32 %v267, %v277
      %v304 = vadd.f32 %v268, %v277
      %v305 = vadd.f32 %v269, %v277
      %v306 = vadd.f32 %v270, %v277
      %v307 = vadd.f32 %v271, %v277
      %v308 = vadd.f32 %v272, %v277
      %v309 = vadd.f32 %v273, %v277
      %v310 = vadd.f32 %v274, %v277
      %v311 = vmax.f32 %v279, 0.0
      %v312 = vmax.f32 %v280, 0.0
      %v313 = vmax.f32 %v281, 0.0
      %v314 = vmax.f32 %v282, 0.0
      %v315 = vmax.f32 %v283, 0.0
      %v316 = vmax.f32 %v284, 0.0
      %v317 = vmax.f32 %v285, 0.0
      %v318 = vmax.f32 %v286, 0.0
      %v319 = vmax.f32 %v287, 0.0
      %v320 = vmax.f32 %v288, 0.0
      %v321 = vmax.f32 %v289, 0.0
      %v322 = vmax.f32 %v290, 0.0
      %v323 = vmax.f32 %v291, 0.0
      %v324 = vmax.f32 %v292, 0.0
      %v325 = vmax.f32 %v293, 0.0
      %v326 = vmax.f32 %v294, 0.0
      %v327 = vmax.f32 %v295, 0.0
      %v328 = vmax.f32 %v296, 0.0
      %v329 = vmax.f32 %v297, 0.0
      %v330 = vmax.f32 %v298, 0.0
      %v331 = vmax.f32 %v299, 0.0
      %v332 = vmax.f32 %v300, 0.0
      %v333 = vmax.f32 %v301, 0.0
      %v334 = vmax.f32 %v302, 0.0
      %v335 = vmax.f32 %v303, 0.0
      %v336 = vmax.f32 %v304, 0.0
      %v337 = vmax.f32 %v305, 0.0
      %v338 = vmax.f32 %v306, 0.0
      %v339 = vmax.f32 %v307, 0.0
      %v340 = vmax.f32 %v308, 0.0
      %v341 = vmax.f32 %v309, 0.0
      %v342 = vmax.f32 %v310, 0.0
      %v343 = vpack.c.bf16 %v311, %v311
      %v344 = vpack.c.bf16 %v312, %v312
      %v345 = vpack.c.bf16 %v313, %v313
      %v346 = vpack.c.bf16 %v314, %v314
      %v347 = vpack.c.bf16 %v315, %v315
      %v348 = vpack.c.bf16 %v316, %v316
      %v349 = vpack.c.bf16 %v317, %v317
      %v350 = vpack.c.bf16 %v318, %v318
      %v351 = vpack.c.bf16 %v319, %v319
      %v352 = vpack.c.bf16 %v320, %v320
      %v353 = vpack.c.bf16 %v321, %v321
      %v354 = vpack.c.bf16 %v322, %v322
      %v355 = vpack.c.bf16 %v323, %v323
      %v356 = vpack.c.bf16 %v324, %v324
      %v357 = vpack.c.bf16 %v325, %v325
      %v358 = vpack.c.bf16 %v326, %v326
      %v359 = vpack.c.bf16 %v327, %v327
      %v360 = vpack.c.bf16 %v328, %v328
      %v361 = vpack.c.bf16 %v329, %v329
      %v362 = vpack.c.bf16 %v330, %v330
      %v363 = vpack.c.bf16 %v331, %v331
      %v364 = vpack.c.bf16 %v332, %v332
      %v365 = vpack.c.bf16 %v333, %v333
      %v366 = vpack.c.bf16 %v334, %v334
      %v367 = vpack.c.bf16 %v335, %v335
      %v368 = vpack.c.bf16 %v336, %v336
      %v369 = vpack.c.bf16 %v337, %v337
      %v370 = vpack.c.bf16 %v338, %v338
      %v371 = vpack.c.bf16 %v339, %v339
      %v372 = vpack.c.bf16 %v340, %v340
      %v373 = vpack.c.bf16 %v341, %v341
      %v374 = vpack.c.bf16 %v342, %v342
      %vm375 = vcmask 257024
      %376 = vst.msk [vmem:[%s206] sm:$0xf] %vm375, %v343
      %377 = vst.msk [vmem:[%s206 + $0x4] sm:$0xf] %vm375, %v344
      %378 = vst.msk [vmem:[%s206 + $0x8] sm:$0xf] %vm375, %v345
      %379 = vst.msk [vmem:[%s206 + $0xc] sm:$0xf] %vm375, %v346
      %380 = vst.msk [vmem:[%s206 + $0x10] sm:$0xf] %vm375, %v347
      %381 = vst.msk [vmem:[%s206 + $0x14] sm:$0xf] %vm375, %v348
      %382 = vst.msk [vmem:[%s206 + $0x18] sm:$0xf] %vm375, %v349
      %383 = vst.msk [vmem:[%s206 + $0x1c] sm:$0xf] %vm375, %v350
      %384 = vst.msk [vmem:[%s206 + $0x20] sm:$0xf] %vm375, %v351
      %385 = vst.msk [vmem:[%s206 + $0x24] sm:$0xf] %vm375, %v352
      %386 = vst.msk [vmem:[%s206 + $0x28] sm:$0xf] %vm375, %v353
      %387 = vst.msk [vmem:[%s206 + $0x2c] sm:$0xf] %vm375, %v354
      %388 = vst.msk [vmem:[%s206 + $0x30] sm:$0xf] %vm375, %v355
      %389 = vst.msk [vmem:[%s206 + $0x34] sm:$0xf] %vm375, %v356
      %390 = vst.msk [vmem:[%s206 + $0x38] sm:$0xf] %vm375, %v357
      %391 = vst.msk [vmem:[%s206 + $0x3c] sm:$0xf] %vm375, %v358
      %392 = vst.msk [vmem:[%s206 + $0x40] sm:$0xf] %vm375, %v359
      %393 = vst.msk [vmem:[%s206 + $0x44] sm:$0xf] %vm375, %v360
      %394 = vst.msk [vmem:[%s206 + $0x48] sm:$0xf] %vm375, %v361
      %395 = vst.msk [vmem:[%s206 + $0x4c] sm:$0xf] %vm375, %v362
      %396 = vst.msk [vmem:[%s206 + $0x50] sm:$0xf] %vm375, %v363
      %397 = vst.msk [vmem:[%s206 + $0x54] sm:$0xf] %vm375, %v364
      %398 = vst.msk [vmem:[%s206 + $0x58] sm:$0xf] %vm375, %v365
      %399 = vst.msk [vmem:[%s206 + $0x5c] sm:$0xf] %vm375, %v366
      %400 = vst.msk [vmem:[%s206 + $0x60] sm:$0xf] %vm375, %v367
      %401 = vst.msk [vmem:[%s206 + $0x64] sm:$0xf] %vm375, %v368
      %402 = vst.msk [vmem:[%s206 + $0x68] sm:$0xf] %vm375, %v369
      %403 = vst.msk [vmem:[%s206 + $0x6c] sm:$0xf] %vm375, %v370
      %404 = vst.msk [vmem:[%s206 + $0x70] sm:$0xf] %vm375, %v371
      %405 = vst.msk [vmem:[%s206 + $0x74] sm:$0xf] %vm375, %v372
      %406 = vst.msk [vmem:[%s206 + $0x78] sm:$0xf] %vm375, %v373
      %407 = vst.msk [vmem:[%s206 + $0x7c] sm:$0xf] %vm375, %v374
      %p408 = scmp.lt.s32.totalorder %s18, 1
      %s409 = scalar_select %p408, %s18, 1
      %p410 = scmp.lt.s32.totalorder %s19, 7
      %s411 = scalar_select %p410, %s19, 7
      %s412 = smul.addr %s411, 32
      %s413 = smul.addr %s409, 256
      %s414 = sadd.s32 %s412, %s413
      %s415 = smul.addr %s414, 4
      %s416 = scalar_lea.vmem %s3, %s415
      // Predicated region
      $region33: #{basic_block_forward.5} parent=31 // pred_check
        %p417 = pneg %p116
      $region34: #{basic_block_forward.5} parent=31 // pred_check_branch
        %419 = sbr.rel (%p417) target = $region36
      $region35: #{basic_block_forward.5} parent=31 // pred_region
        _
      $region36: #{basic_block_forward.5} parent=31 // pred_fallthru
        _
    $region32: #{basic_block_forward.5} parent=5 // pred_fallthru
      _
    %p420 = scmp.le.s32.totalorder 2, %s9
    // Predicated region
    $region37: #{basic_block_forward.5} parent=5 // pred_check
      %p421 = pneg %p420
    $region38: #{basic_block_forward.5} parent=5 // pred_check_branch
      %423 = sbr.rel (%p421) target = $region40
    $region39: #{basic_block_forward.5} parent=5 // pred_region
      %s424 = ssub.s32 %s9, 2
      // Predicated region
      $region41: #{basic_block_forward.5} parent=39 // pred_check
        %p425 = pneg %p122
      $region42: #{basic_block_forward.5} parent=39 // pred_check_branch
        %427 = sbr.rel (%p425) target = $region44
      $region43: #{basic_block_forward.5} parent=39 // pred_region
        %p428 = scmp.lt.s32.totalorder %s20, 1
        %s429 = scalar_select %p428, %s20, 1
        %p430 = scmp.lt.s32.totalorder %s21, 7
        %s431 = scalar_select %p430, %s21, 7
        %s432 = smul.addr %s431, 32
        %s433 = smul.addr %s429, 256
        %s434 = sadd.s32 %s432, %s433
        %s435 = smul.addr %s434, 4
        %s436 = scalar_lea.vmem %s3, %s435
      $region44: #{basic_block_forward.5} parent=39 // pred_fallthru
        _
    $region40: #{basic_block_forward.5} parent=5 // pred_fallthru
      _
  $region6: #{basic_block_forward.5} parent=0 // loop_footer
    %s13 = sadd.s32 1, %s9
  $region7: #{basic_block_forward.5} parent=0 // loop_footer_branch
    %8 = sbr.rel target = $region3
  $region8: #{basic_block_forward.5} parent=0 // loop_exit
    _

// kernel: basic_block_forward.7
$region0: #{basic_block_forward.7}
  #allocation0 [shape = 'u32[]', space=smem, size = 0x4, offset = 0x4, fixed_abs, tag = 'smem constant byte address 0x4 - core index']
  #allocation1 [shape = 'u32[72,128]{1,0:T(1,128)}', space=vmem, size = 0x9000, scoped, tag = 'internal scratch']
  %s0 = inlined_call_operand.vmem [shape: f32[2,8,256,32], index: 0, kind: input, shape index: {}]
  %s1 = inlined_call_operand.vmem [shape: f32[2,8,256,32], index: 1, kind: input, shape index: {}]
  %s2 = inlined_call_operand.vmem [shape: f32[2,1,32], index: 2, kind: input, shape index: {}]
  %s3 = inlined_call_operand.vmem [shape: f32[1,32], index: 3, kind: input, shape index: {}]
  %s4 = inlined_call_operand.vmem [shape: f32[1,32], index: 4, kind: input, shape index: {}]
  %s5 = inlined_call_operand.hbm [shape: f32[2,8,256,32], index: 5, kind: output, shape index: {}]
  %s6 = sld [smem:[#allocation0]]
  $region53: #{basic_block_forward.7} parent=0
    _
  %s8 = ssub.s32 1, %s6
  %s9 = scalar_select 0, %s8, %s6
  $region1: #{basic_block_forward.7} parent=0
    #allocation2 [shape = 'u8[262144]{0}', space=vmem, size = 0x40000, scoped, tag = 'output window, operand 0']
    #allocation3 [shape = 's32[2]{0}', space=sflag, size = 0x8, scoped, tag = 'scoped memory for basic_block_forward.7']
    %10 = vsyncpa [#allocation3], 0
    %s11 = scalar_lea.sflag [#allocation3], 1
    %12 = vsyncpa %s11, 0
    loop: start=0, step=1, limit=18
    $region2: #{basic_block_forward.7} parent=1 // loop_pre_header
      _
    $region3: #{basic_block_forward.7} parent=1 // loop_header
      %s14 = sphi 0, %s18
      %p15 = scmp.ge.s32.totalorder %s14, 18
      %s21 = sphi 0, %s33
      %s22 = sphi 0, %s29
      %s23 = sphi 0, %s21
      %s24 = sphi 0, %s22
      %s25 = sphi 0, %s23
      %s26 = sphi 0, %s24
      %s38 = sphi 0, %s40
      %s41 = sphi 0, %s38
      %s42 = sphi 0, %s41
      %s58 = sphi 0, %s42
      %s66 = sphi 0, %s68
      %s69 = sphi 0, %s66
      %s70 = sphi 0, %s69
      %s86 = sphi 0, %s70
      %s92 = sphi 0, %s94
      %s95 = sphi 0, %s92
      %s96 = sphi 0, %s95
      %s112 = sphi 0, %s96
      %s116 = sphi 0, %s116
      %s118 = sphi 0, %s116
      %s119 = sphi 0, %s118
      %s133 = sphi 0, %s119
      %s137 = sphi 0, %s137
      %s139 = sphi 0, %s137
      %s140 = sphi 0, %s139
      %s154 = sphi 0, %s140
      %s162 = sphi 0, %s164
      %s165 = sphi 0, %s162
      %s166 = sphi 0, %s165
      %s182 = sphi 0, %s166
    $region4: #{basic_block_forward.7} parent=1 // loop_header_branch
      %17 = sbr.rel (%p15) target = $region8
    $region5: #{basic_block_forward.7} parent=1 // loop_body
      %s19 = ssub.s32 %s14, 1
      %s20 = ssub.s32 %s14, 2
      %s27 = sadd.s32 1, %s22
      %p28 = scmp.ge.s32.totalorder %s27, 8
      %s29 = scalar_select %p28, 0, %s27
      %s30 = sadd.s32 1, %s21
      %s31 = scalar_select %p28, %s30, %s21
      %p32 = scmp.ge.s32.totalorder %s31, 2
      %s33 = scalar_select %p32, 0, %s31
      %s34 = ssub.s32 %s21, %s33
      %s35 = ssub.s32 %s22, %s29
      %s36 = sor.u32 %s34, %s35
      %p37 = scmp.eq.s32.totalorder %s36, 0
      %s39 = sadd.s32 %s38, 1
      %s40 = scalar_select %p37, %s38, %s39
      %p43 = pneg %p37
      %p44 = scmp.eq.s32.totalorder %s14, 15
      %p45 = por %p43, %p44
      %p46 = scmp.ne.s32.totalorder %s38, %s41
      %p47 = scmp.eq.s32.totalorder %s14, 0
      %p48 = por %p46, %p47
      %p49 = scmp.ne.s32.totalorder %s38, %s41
      %p50 = scmp.eq.s32.totalorder %s19, 15
      %p51 = por %p49, %p50
      %p52 = scmp.ne.s32.totalorder %s41, %s42
      %p53 = scmp.eq.s32.totalorder %s19, 0
      %p54 = por %p52, %p53
      %p55 = scmp.ne.s32.totalorder %s41, %s42
      %p56 = scmp.eq.s32.totalorder %s20, 15
      %p57 = por %p55, %p56
      %p59 = scmp.ne.s32.totalorder %s42, %s58
      %p60 = scmp.eq.s32.totalorder %s20, 0
      %p61 = por %p59, %p60
      %s62 = ssub.s32 %s21, %s33
      %s63 = ssub.s32 %s22, %s29
      %s64 = sor.u32 %s62, %s63
      %p65 = scmp.eq.s32.totalorder %s64, 0
      %s67 = sadd.s32 %s66, 1
      %s68 = scalar_select %p65, %s66, %s67
      %p71 = pneg %p65
      %p72 = scmp.eq.s32.totalorder %s14, 15
      %p73 = por %p71, %p72
      %p74 = scmp.ne.s32.totalorder %s66, %s69
      %p75 = scmp.eq.s32.totalorder %s14, 0
      %p76 = por %p74, %p75
      %p77 = scmp.ne.s32.totalorder %s66, %s69
      %p78 = scmp.eq.s32.totalorder %s19, 15
      %p79 = por %p77, %p78
      %p80 = scmp.ne.s32.totalorder %s69, %s70
      %p81 = scmp.eq.s32.totalorder %s19, 0
      %p82 = por %p80, %p81
      %p83 = scmp.ne.s32.totalorder %s69, %s70
      %p84 = scmp.eq.s32.totalorder %s20, 15
      %p85 = por %p83, %p84
      %p87 = scmp.ne.s32.totalorder %s70, %s86
      %p88 = scmp.eq.s32.totalorder %s20, 0
      %p89 = por %p87, %p88
      %s90 = ssub.s32 %s21, %s33
      %p91 = scmp.eq.s32.totalorder %s90, 0
      %s93 = sadd.s32 %s92, 1
      %s94 = scalar_select %p91, %s92, %s93
      %p97 = pneg %p91
      %p98 = scmp.eq.s32.totalorder %s14, 15
      %p99 = por %p97, %p98
      %p100 = scmp.ne.s32.totalorder %s92, %s95
      %p101 = scmp.eq.s32.totalorder %s14, 0
      %p102 = por %p100, %p101
      %p103 = scmp.ne.s32.totalorder %s92, %s95
      %p104 = scmp.eq.s32.totalorder %s19, 15
      %p105 = por %p103, %p104
      %p106 = scmp.ne.s32.totalorder %s95, %s96
      %p107 = scmp.eq.s32.totalorder %s19, 0
      %p108 = por %p106, %p107
      %p109 = scmp.ne.s32.totalorder %s95, %s96
      %p110 = scmp.eq.s32.totalorder %s20, 15
      %p111 = por %p109, %p110
      %p113 = scmp.ne.s32.totalorder %s96, %s112
      %p114 = scmp.eq.s32.totalorder %s20, 0
      %p115 = por %p113, %p114
      %s117 = sadd.s32 %s116, 1
      %p120 = scmp.eq.s32.totalorder %s14, 15
      %p121 = scmp.ne.s32.totalorder %s116, %s118
      %p122 = scmp.eq.s32.totalorder %s14, 0
      %p123 = por %p121, %p122
      %p124 = scmp.ne.s32.totalorder %s116, %s118
      %p125 = scmp.eq.s32.totalorder %s19, 15
      %p126 = por %p124, %p125
      %p127 = scmp.ne.s32.totalorder %s118, %s119
      %p128 = scmp.eq.s32.totalorder %s19, 0
      %p129 = por %p127, %p128
      %p130 = scmp.ne.s32.totalorder %s118, %s119
      %p131 = scmp.eq.s32.totalorder %s20, 15
      %p132 = por %p130, %p131
      %p134 = scmp.ne.s32.totalorder %s119, %s133
      %p135 = scmp.eq.s32.totalorder %s20, 0
      %p136 = por %p134, %p135
      %s138 = sadd.s32 %s137, 1
      %p141 = scmp.eq.s32.totalorder %s14, 15
      %p142 = scmp.ne.s32.totalorder %s137, %s139
      %p143 = scmp.eq.s32.totalorder %s14, 0
      %p144 = por %p142, %p143
      %p145 = scmp.ne.s32.totalorder %s137, %s139
      %p146 = scmp.eq.s32.totalorder %s19, 15
      %p147 = por %p145, %p146
      %p148 = scmp.ne.s32.totalorder %s139, %s140
      %p149 = scmp.eq.s32.totalorder %s19, 0
      %p150 = por %p148, %p149
      %p151 = scmp.ne.s32.totalorder %s139, %s140
      %p152 = scmp.eq.s32.totalorder %s20, 15
      %p153 = por %p151, %p152
      %p155 = scmp.ne.s32.totalorder %s140, %s154
      %p156 = scmp.eq.s32.totalorder %s20, 0
      %p157 = por %p155, %p156
      %s158 = ssub.s32 %s21, %s33
      %s159 = ssub.s32 %s22, %s29
      %s160 = sor.u32 %s158, %s159
      %p161 = scmp.eq.s32.totalorder %s160, 0
      %s163 = sadd.s32 %s162, 1
      %s164 = scalar_select %p161, %s162, %s163
      %p167 = pneg %p161
      %p168 = scmp.eq.s32.totalorder %s14, 15
      %p169 = por %p167, %p168
      %p170 = scmp.ne.s32.totalorder %s162, %s165
      %p171 = scmp.eq.s32.totalorder %s14, 0
      %p172 = por %p170, %p171
      %p173 = scmp.ne.s32.totalorder %s162, %s165
      %p174 = scmp.eq.s32.totalorder %s19, 15
      %p175 = por %p173, %p174
      %p176 = scmp.ne.s32.totalorder %s165, %s166
      %p177 = scmp.eq.s32.totalorder %s19, 0
      %p178 = por %p176, %p177
      %p179 = scmp.ne.s32.totalorder %s165, %s166
      %p180 = scmp.eq.s32.totalorder %s20, 15
      %p181 = por %p179, %p180
      %p183 = scmp.ne.s32.totalorder %s166, %s182
      %p184 = scmp.eq.s32.totalorder %s20, 0
      %p185 = por %p183, %p184
      %p186 = scmp.le.s32.totalorder 1, %s14
      %p187 = scmp.lt.s32.totalorder %s14, 17
      %p188 = pnand %p186, %p187
      %p189 = pneg %p188
      // Predicated region
      $region9: #{basic_block_forward.7} parent=5 // pred_check
        _
      $region10: #{basic_block_forward.7} parent=5 // pred_check_branch
        %191 = sbr.rel (%p188) target = $region12
      $region11: #{basic_block_forward.7} parent=5 // pred_region
        %s192 = ssub.s32 %s14, 1
        // Predicated region
        $region13: #{basic_block_forward.7} parent=11 // pred_check
          %p193 = pneg %p129
        $region14: #{basic_block_forward.7} parent=11 // pred_check_branch
          %195 = sbr.rel (%p193) target = $region16
        $region15: #{basic_block_forward.7} parent=11 // pred_region
          _
        $region16: #{basic_block_forward.7} parent=11 // pred_fallthru
          _
        // Predicated region
        $region17: #{basic_block_forward.7} parent=11 // pred_check
          %p196 = pneg %p150
        $region18: #{basic_block_forward.7} parent=11 // pred_check_branch
          %198 = sbr.rel (%p196) target = $region20
        $region19: #{basic_block_forward.7} parent=11 // pred_region
          _
        $region20: #{basic_block_forward.7} parent=11 // pred_fallthru
          _
      $region12: #{basic_block_forward.7} parent=5 // pred_fallthru
        _
      %p199 = scmp.lt.s32.totalorder %s14, 16
      // Predicated region
      $region21: #{basic_block_forward.7} parent=5 // pred_check
        %p200 = pneg %p199
      $region22: #{basic_block_forward.7} parent=5 // pred_check_branch
        %202 = sbr.rel (%p200) target = $region24
      $region23: #{basic_block_forward.7} parent=5 // pred_region
        // Predicated region
        $region25: #{basic_block_forward.7} parent=23 // pred_check
          %p203 = pneg %p48
        $region26: #{basic_block_forward.7} parent=23 // pred_check_branch
          %205 = sbr.rel (%p203) target = $region28
        $region27: #{basic_block_forward.7} parent=23 // pred_region
          %p206 = scmp.lt.s32.totalorder %s21, 1
          %s207 = scalar_select %p206, %s21, 1
          %p208 = scmp.lt.s32.totalorder %s22, 7
          %s209 = scalar_select %p208, %s22, 7
          %s210 = smul.addr %s209, 32
          %s211 = smul.addr %s207, 256
          %s212 = sadd.s32 %s210, %s211
          %s213 = smul.addr %s212, 8
          %s214 = scalar_lea.vmem %s0, %s213
        $region28: #{basic_block_forward.7} parent=23 // pred_fallthru
          _
        // Predicated region
        $region29: #{basic_block_forward.7} parent=23 // pred_check
          %p215 = pneg %p76
        $region30: #{basic_block_forward.7} parent=23 // pred_check_branch
          %217 = sbr.rel (%p215) target = $region32
        $region31: #{basic_block_forward.7} parent=23 // pred_region
          %p218 = scmp.lt.s32.totalorder %s21, 1
          %s219 = scalar_select %p218, %s21, 1
          %p220 = scmp.lt.s32.totalorder %s22, 7
          %s221 = scalar_select %p220, %s22, 7
          %s222 = smul.addr %s221, 32
          %s223 = smul.addr %s219, 256
          %s224 = sadd.s32 %s222, %s223
          %s225 = smul.addr %s224, 8
          %s226 = scalar_lea.vmem %s1, %s225
        $region32: #{basic_block_forward.7} parent=23 // pred_fallthru
          _
        // Predicated region
        $region33: #{basic_block_forward.7} parent=23 // pred_check
          %p227 = pneg %p102
        $region34: #{basic_block_forward.7} parent=23 // pred_check_branch
          %229 = sbr.rel (%p227) target = $region36
        $region35: #{basic_block_forward.7} parent=23 // pred_region
          %p230 = scmp.lt.s32.totalorder %s21, 1
          %s231 = scalar_select %p230, %s21, 1
          %s232 = scalar_lea.vmem %s2, %s231
        $region36: #{basic_block_forward.7} parent=23 // pred_fallthru
          _
      $region24: #{basic_block_forward.7} parent=5 // pred_fallthru
        _
      %p233 = scmp.le.s32.totalorder 1, %s14
      %p234 = scmp.lt.s32.totalorder %s14, 17
      %p235 = pnand %p233, %p234
      %p236 = pneg %p235
      // Predicated region
      $region37: #{basic_block_forward.7} parent=5 // pred_check
        _
      $region38: #{basic_block_forward.7} parent=5 // pred_check_branch
        %238 = sbr.rel (%p235) target = $region40
      $region39: #{basic_block_forward.7} parent=5 // pred_region
        %s239 = ssub.s32 %s14, 1
        %p240 = scmp.lt.s32.totalorder %s23, 1
        %s241 = scalar_select %p240, %s23, 1
        %p242 = scmp.lt.s32.totalorder %s24, 7
        %s243 = scalar_select %p242, %s24, 7
        %s244 = smul.addr %s243, 32
        %s245 = smul.addr %s241, 256
        %s246 = sadd.s32 %s244, %s245
        %s247 = smul.addr %s246, 8
        %s248 = scalar_lea.vmem %s0, %s247
        %p249 = pneg %p54
        %p250 = pneg %p51
        %p251 = scmp.lt.s32.totalorder %s23, 1
        %s252 = scalar_select %p251, %s23, 1
        %p253 = scmp.lt.s32.totalorder %s24, 7
        %s254 = scalar_select %p253, %s24, 7
        %s255 = smul.addr %s254, 32
        %s256 = smul.addr %s252, 256
        %s257 = sadd.s32 %s255, %s256
        %s258 = smul.addr %s257, 8
        %s259 = scalar_lea.vmem %s1, %s258
        %p260 = pneg %p82
        %p261 = pneg %p79
        %p262 = scmp.lt.s32.totalorder %s23, 1
        %s263 = scalar_select %p262, %s23, 1
        %s264 = scalar_lea.vmem %s2, %s263
        %p265 = pneg %p108
        %p266 = pneg %p105
        %p267 = pneg %p129
        %p268 = pneg %p126
        %p269 = pneg %p150
        %p270 = pneg %p147
        %p271 = pneg %p178
        %p272 = pneg %p175
        %s273 = sand.u32 %s165, 1
        %s274 = scalar_lea.sflag [#allocation3], %s273
        %s275 = sand.u32 %s165, 1
        %s276 = smul.addr %s275, 256
        %s277 = scalar_lea.vmem [#allocation2], %s276
        %p278 = scmp.lt.s32.totalorder %s23, 1
        %s279 = scalar_select %p278, %s23, 1
        %p280 = scmp.lt.s32.totalorder %s24, 7
        %s281 = scalar_select %p280, %s24, 7
        %s282 = smul.addr %s281, 32
        %s283 = smul.addr %s279, 256
        %s284 = sadd.s32 %s282, %s283
        %s285 = smul.addr %s284, 8
        %s286 = scalar_lea.vmem %s0, %s285
        %p287 = scmp.lt.s32.totalorder %s23, 1
        %s288 = scalar_select %p287, %s23, 1
        %p289 = scmp.lt.s32.totalorder %s24, 7
        %s290 = scalar_select %p289, %s24, 7
        %s291 = smul.addr %s290, 32
        %s292 = smul.addr %s288, 256
        %s293 = sadd.s32 %s291, %s292
        %s294 = smul.addr %s293, 8
        %s295 = scalar_lea.vmem %s1, %s294
        %p296 = scmp.lt.s32.totalorder %s23, 1
        %s297 = scalar_select %p296, %s23, 1
        %s298 = scalar_lea.vmem %s2, %s297
        %v299 = vld [vmem:[%s286] sm:$0xff]
        %v300 = vld [vmem:[%s286 + $0x8] sm:$0xff]
        %v301 = vld [vmem:[%s286 + $0x10] sm:$0xff]
        %v302 = vld [vmem:[%s286 + $0x18] sm:$0xff]
        %v303 = vld [vmem:[%s286 + $0x20] sm:$0xff]
        %v304 = vld [vmem:[%s286 + $0x28] sm:$0xff]
        %v305 = vld [vmem:[%s286 + $0x30] sm:$0xff]
        %v306 = vld [vmem:[%s286 + $0x38] sm:$0xff]
        %v307 = vld [vmem:[%s286 + $0x40] sm:$0xff]
        %v308 = vld [vmem:[%s286 + $0x48] sm:$0xff]
        %v309 = vld [vmem:[%s286 + $0x50] sm:$0xff]
        %v310 = vld [vmem:[%s286 + $0x58] sm:$0xff]
        %v311 = vld [vmem:[%s286 + $0x60] sm:$0xff]
        %v312 = vld [vmem:[%s286 + $0x68] sm:$0xff]
        %v313 = vld [vmem:[%s286 + $0x70] sm:$0xff]
        %v314 = vld [vmem:[%s286 + $0x78] sm:$0xff]
        %v315 = vld [vmem:[%s286 + $0x80] sm:$0xff]
        %v316 = vld [vmem:[%s286 + $0x88] sm:$0xff]
        %v317 = vld [vmem:[%s286 + $0x90] sm:$0xff]
        %v318 = vld [vmem:[%s286 + $0x98] sm:$0xff]
        %v319 = vld [vmem:[%s286 + $0xa0] sm:$0xff]
        %v320 = vld [vmem:[%s286 + $0xa8] sm:$0xff]
        %v321 = vld [vmem:[%s286 + $0xb0] sm:$0xff]
        %v322 = vld [vmem:[%s286 + $0xb8] sm:$0xff]
        %v323 = vld [vmem:[%s286 + $0xc0] sm:$0xff]
        %v324 = vld [vmem:[%s286 + $0xc8] sm:$0xff]
        %v325 = vld [vmem:[%s286 + $0xd0] sm:$0xff]
        %v326 = vld [vmem:[%s286 + $0xd8] sm:$0xff]
        %v327 = vld [vmem:[%s286 + $0xe0] sm:$0xff]
        %v328 = vld [vmem:[%s286 + $0xe8] sm:$0xff]
        %v329 = vld [vmem:[%s286 + $0xf0] sm:$0xff]
        %v330 = vld [vmem:[%s286 + $0xf8] sm:$0xff]
        %v331 = vld [vmem:[%s3] sm:$0x1]
        %v333 = vperm.slane %v331, 0
        %v335 = vmul.f32 %v299, %v333
        %v336 = vmul.f32 %v300, %v333
        %v337 = vmul.f32 %v301, %v333
        %v338 = vmul.f32 %v302, %v333
        %v339 = vmul.f32 %v303, %v333
        %v340 = vmul.f32 %v304, %v333
        %v341 = vmul.f32 %v305, %v333
        %v342 = vmul.f32 %v306, %v333
        %v343 = vmul.f32 %v307, %v333
        %v344 = vmul.f32 %v308, %v333
        %v345 = vmul.f32 %v309, %v333
        %v346 = vmul.f32 %v310, %v333
        %v347 = vmul.f32 %v311, %v333
        %v348 = vmul.f32 %v312, %v333
        %v349 = vmul.f32 %v313, %v333
        %v350 = vmul.f32 %v314, %v333
        %v351 = vmul.f32 %v315, %v333
        %v352 = vmul.f32 %v316, %v333
        %v353 = vmul.f32 %v317, %v333
        %v354 = vmul.f32 %v318, %v333
        %v355 = vmul.f32 %v319, %v333
        %v356 = vmul.f32 %v320, %v333
        %v357 = vmul.f32 %v321, %v333
        %v358 = vmul.f32 %v322, %v333
        %v359 = vmul.f32 %v323, %v333
        %v360 = vmul.f32 %v324, %v333
        %v361 = vmul.f32 %v325, %v333
        %v362 = vmul.f32 %v326, %v333
        %v363 = vmul.f32 %v327, %v333
        %v364 = vmul.f32 %v328, %v333
        %v365 = vmul.f32 %v329, %v333
        %v366 = vmul.f32 %v330, %v333
        %v367 = vld [vmem:[%s4] sm:$0x1]
        %v369 = vperm.slane %v367, 0
        %v371 = vadd.f32 %v335, %v369
        %v372 = vadd.f32 %v336, %v369
        %v373 = vadd.f32 %v337, %v369
        %v374 = vadd.f32 %v338, %v369
        %v375 = vadd.f32 %v339, %v369
        %v376 = vadd.f32 %v340, %v369
        %v377 = vadd.f32 %v341, %v369
        %v378 = vadd.f32 %v342, %v369
        %v379 = vadd.f32 %v343, %v369
        %v380 = vadd.f32 %v344, %v369
        %v381 = vadd.f32 %v345, %v369
        %v382 = vadd.f32 %v346, %v369
        %v383 = vadd.f32 %v347, %v369
        %v384 = vadd.f32 %v348, %v369
        %v385 = vadd.f32 %v349, %v369
        %v386 = vadd.f32 %v350, %v369
        %v387 = vadd.f32 %v351, %v369
        %v388 = vadd.f32 %v352, %v369
        %v389 = vadd.f32 %v353, %v369
        %v390 = vadd.f32 %v354, %v369
        %v391 = vadd.f32 %v355, %v369
        %v392 = vadd.f32 %v356, %v369
        %v393 = vadd.f32 %v357, %v369
        %v394 = vadd.f32 %v358, %v369
        %v395 = vadd.f32 %v359, %v369
        %v396 = vadd.f32 %v360, %v369
        %v397 = vadd.f32 %v361, %v369
        %v398 = vadd.f32 %v362, %v369
        %v399 = vadd.f32 %v363, %v369
        %v400 = vadd.f32 %v364, %v369
        %v401 = vadd.f32 %v365, %v369
        %v402 = vadd.f32 %v366, %v369
        %v403 = vld [vmem:[%s298] sm:$0x1]
        %v405 = vperm.slane %v403, 0
        %v407 = vmul.f32 %v371, %v405
        %v408 = vmul.f32 %v372, %v405
        %v409 = vmul.f32 %v373, %v405
        %v410 = vmul.f32 %v374, %v405
        %v411 = vmul.f32 %v375, %v405
        %v412 = vmul.f32 %v376, %v405
        %v413 = vmul.f32 %v377, %v405
        %v414 = vmul.f32 %v378, %v405
        %v415 = vmul.f32 %v379, %v405
        %v416 = vmul.f32 %v380, %v405
        %v417 = vmul.f32 %v381, %v405
        %v418 = vmul.f32 %v382, %v405
        %v419 = vmul.f32 %v383, %v405
        %v420 = vmul.f32 %v384, %v405
        %v421 = vmul.f32 %v385, %v405
        %v422 = vmul.f32 %v386, %v405
        %v423 = vmul.f32 %v387, %v405
        %v424 = vmul.f32 %v388, %v405
        %v425 = vmul.f32 %v389, %v405
        %v426 = vmul.f32 %v390, %v405
        %v427 = vmul.f32 %v391, %v405
        %v428 = vmul.f32 %v392, %v405
        %v429 = vmul.f32 %v393, %v405
        %v430 = vmul.f32 %v394, %v405
        %v431 = vmul.f32 %v395, %v405
        %v432 = vmul.f32 %v396, %v405
        %v433 = vmul.f32 %v397, %v405
        %v434 = vmul.f32 %v398, %v405
        %v435 = vmul.f32 %v399, %v405
        %v436 = vmul.f32 %v400, %v405
        %v437 = vmul.f32 %v401, %v405
        %v438 = vmul.f32 %v402, %v405
        %v439 = vld [vmem:[%s295] sm:$0xff]
        %v440 = vld [vmem:[%s295 + $0x8] sm:$0xff]
        %v441 = vld [vmem:[%s295 + $0x10] sm:$0xff]
        %v442 = vld [vmem:[%s295 + $0x18] sm:$0xff]
        %v443 = vld [vmem:[%s295 + $0x20] sm:$0xff]
        %v444 = vld [vmem:[%s295 + $0x28] sm:$0xff]
        %v445 = vld [vmem:[%s295 + $0x30] sm:$0xff]
        %v446 = vld [vmem:[%s295 + $0x38] sm:$0xff]
        %v447 = vld [vmem:[%s295 + $0x40] sm:$0xff]
        %v448 = vld [vmem:[%s295 + $0x48] sm:$0xff]
        %v449 = vld [vmem:[%s295 + $0x50] sm:$0xff]
        %v450 = vld [vmem:[%s295 + $0x58] sm:$0xff]
        %v451 = vld [vmem:[%s295 + $0x60] sm:$0xff]
        %v452 = vld [vmem:[%s295 + $0x68] sm:$0xff]
        %v453 = vld [vmem:[%s295 + $0x70] sm:$0xff]
        %v454 = vld [vmem:[%s295 + $0x78] sm:$0xff]
        %v455 = vld [vmem:[%s295 + $0x80] sm:$0xff]
        %v456 = vld [vmem:[%s295 + $0x88] sm:$0xff]
        %v457 = vld [vmem:[%s295 + $0x90] sm:$0xff]
        %v458 = vld [vmem:[%s295 + $0x98] sm:$0xff]
        %v459 = vld [vmem:[%s295 + $0xa0] sm:$0xff]
        %v460 = vld [vmem:[%s295 + $0xa8] sm:$0xff]
        %v461 = vld [vmem:[%s295 + $0xb0] sm:$0xff]
        %v462 = vld [vmem:[%s295 + $0xb8] sm:$0xff]
        %v463 = vld [vmem:[%s295 + $0xc0] sm:$0xff]
        %v464 = vld [vmem:[%s295 + $0xc8] sm:$0xff]
        %v465 = vld [vmem:[%s295 + $0xd0] sm:$0xff]
        %v466 = vld [vmem:[%s295 + $0xd8] sm:$0xff]
        %v467 = vld [vmem:[%s295 + $0xe0] sm:$0xff]
        %v468 = vld [vmem:[%s295 + $0xe8] sm:$0xff]
        %v469 = vld [vmem:[%s295 + $0xf0] sm:$0xff]
        %v470 = vld [vmem:[%s295 + $0xf8] sm:$0xff]
        %v471 = vadd.f32 %v407, %v439
        %v472 = vadd.f32 %v408, %v440
        %v473 = vadd.f32 %v409, %v441
        %v474 = vadd.f32 %v410, %v442
        %v475 = vadd.f32 %v411, %v443
        %v476 = vadd.f32 %v412, %v444
        %v477 = vadd.f32 %v413, %v445
        %v478 = vadd.f32 %v414, %v446
        %v479 = vadd.f32 %v415, %v447
        %v480 = vadd.f32 %v416, %v448
        %v481 = vadd.f32 %v417, %v449
        %v482 = vadd.f32 %v418, %v450
        %v483 = vadd.f32 %v419, %v451
        %v484 = vadd.f32 %v420, %v452
        %v485 = vadd.f32 %v421, %v453
        %v486 = vadd.f32 %v422, %v454
        %v487 = vadd.f32 %v423, %v455
        %v488 = vadd.f32 %v424, %v456
        %v489 = vadd.f32 %v425, %v457
        %v490 = vadd.f32 %v426, %v458
        %v491 = vadd.f32 %v427, %v459
        %v492 = vadd.f32 %v428, %v460
        %v493 = vadd.f32 %v429, %v461
        %v494 = vadd.f32 %v430, %v462
        %v495 = vadd.f32 %v431, %v463
        %v496 = vadd.f32 %v432, %v464
        %v497 = vadd.f32 %v433, %v465
        %v498 = vadd.f32 %v434, %v466
        %v499 = vadd.f32 %v435, %v467
        %v500 = vadd.f32 %v436, %v468
        %v501 = vadd.f32 %v437, %v469
        %v502 = vadd.f32 %v438, %v470
        %v503 = vmax.f32 %v471, 0.0
        %v504 = vmax.f32 %v472, 0.0
        %v505 = vmax.f32 %v473, 0.0
        %v506 = vmax.f32 %v474, 0.0
        %v507 = vmax.f32 %v475, 0.0
        %v508 = vmax.f32 %v476, 0.0
        %v509 = vmax.f32 %v477, 0.0
        %v510 = vmax.f32 %v478, 0.0
        %v511 = vmax.f32 %v479, 0.0
        %v512 = vmax.f32 %v480, 0.0
        %v513 = vmax.f32 %v481, 0.0
        %v514 = vmax.f32 %v482, 0.0
        %v515 = vmax.f32 %v483, 0.0
        %v516 = vmax.f32 %v484, 0.0
        %v517 = vmax.f32 %v485, 0.0
        %v518 = vmax.f32 %v486, 0.0
        %v519 = vmax.f32 %v487, 0.0
        %v520 = vmax.f32 %v488, 0.0
        %v521 = vmax.f32 %v489, 0.0
        %v522 = vmax.f32 %v490, 0.0
        %v523 = vmax.f32 %v491, 0.0
        %v524 = vmax.f32 %v492, 0.0
        %v525 = vmax.f32 %v493, 0.0
        %v526 = vmax.f32 %v494, 0.0
        %v527 = vmax.f32 %v495, 0.0
        %v528 = vmax.f32 %v496, 0.0
        %v529 = vmax.f32 %v497, 0.0
        %v530 = vmax.f32 %v498, 0.0
        %v531 = vmax.f32 %v499, 0.0
        %v532 = vmax.f32 %v500, 0.0
        %v533 = vmax.f32 %v501, 0.0
        %v534 = vmax.f32 %v502, 0.0
        %vm535 = vcmask 261120
        %536 = vst.msk [vmem:[%s277] sm:$0xff] %vm535, %v503
        %537 = vst.msk [vmem:[%s277 + $0x8] sm:$0xff] %vm535, %v504
        %538 = vst.msk [vmem:[%s277 + $0x10] sm:$0xff] %vm535, %v505
        %539 = vst.msk [vmem:[%s277 + $0x18] sm:$0xff] %vm535, %v506
        %540 = vst.msk [vmem:[%s277 + $0x20] sm:$0xff] %vm535, %v507
        %541 = vst.msk [vmem:[%s277 + $0x28] sm:$0xff] %vm535, %v508
        %542 = vst.msk [vmem:[%s277 + $0x30] sm:$0xff] %vm535, %v509
        %543 = vst.msk [vmem:[%s277 + $0x38] sm:$0xff] %vm535, %v510
        %544 = vst.msk [vmem:[%s277 + $0x40] sm:$0xff] %vm535, %v511
        %545 = vst.msk [vmem:[%s277 + $0x48] sm:$0xff] %vm535, %v512
        %546 = vst.msk [vmem:[%s277 + $0x50] sm:$0xff] %vm535, %v513
        %547 = vst.msk [vmem:[%s277 + $0x58] sm:$0xff] %vm535, %v514
        %548 = vst.msk [vmem:[%s277 + $0x60] sm:$0xff] %vm535, %v515
        %549 = vst.msk [vmem:[%s277 + $0x68] sm:$0xff] %vm535, %v516
        %550 = vst.msk [vmem:[%s277 + $0x70] sm:$0xff] %vm535, %v517
        %551 = vst.msk [vmem:[%s277 + $0x78] sm:$0xff] %vm535, %v518
        %552 = vst.msk [vmem:[%s277 + $0x80] sm:$0xff] %vm535, %v519
        %553 = vst.msk [vmem:[%s277 + $0x88] sm:$0xff] %vm535, %v520
        %554 = vst.msk [vmem:[%s277 + $0x90] sm:$0xff] %vm535, %v521
        %555 = vst.msk [vmem:[%s277 + $0x98] sm:$0xff] %vm535, %v522
        %556 = vst.msk [vmem:[%s277 + $0xa0] sm:$0xff] %vm535, %v523
        %557 = vst.msk [vmem:[%s277 + $0xa8] sm:$0xff] %vm535, %v524
        %558 = vst.msk [vmem:[%s277 + $0xb0] sm:$0xff] %vm535, %v525
        %559 = vst.msk [vmem:[%s277 + $0xb8] sm:$0xff] %vm535, %v526
        %560 = vst.msk [vmem:[%s277 + $0xc0] sm:$0xff] %vm535, %v527
        %561 = vst.msk [vmem:[%s277 + $0xc8] sm:$0xff] %vm535, %v528
        %562 = vst.msk [vmem:[%s277 + $0xd0] sm:$0xff] %vm535, %v529
        %563 = vst.msk [vmem:[%s277 + $0xd8] sm:$0xff] %vm535, %v530
        %564 = vst.msk [vmem:[%s277 + $0xe0] sm:$0xff] %vm535, %v531
        %565 = vst.msk [vmem:[%s277 + $0xe8] sm:$0xff] %vm535, %v532
        %566 = vst.msk [vmem:[%s277 + $0xf0] sm:$0xff] %vm535, %v533
        %567 = vst.msk [vmem:[%s277 + $0xf8] sm:$0xff] %vm535, %v534
        %s568 = sand.u32 %s165, 1
        %s569 = scalar_lea.sflag [#allocation3], %s568
        %s570 = sand.u32 %s165, 1
        %s571 = smul.addr %s570, 256
        %s572 = scalar_lea.vmem [#allocation2], %s571
        // Predicated region
        $region41: #{basic_block_forward.7} parent=39 // pred_check
          %p573 = pneg %p175
        $region42: #{basic_block_forward.7} parent=39 // pred_check_branch
          %575 = sbr.rel (%p573) target = $region44
        $region43: #{basic_block_forward.7} parent=39 // pred_region
          %577 = vsyncadd %s569, 0
          %s578 = smul.addr %s24, 32
          %s579 = smul.addr %s23, 256
          %s580 = sadd.s32 %s578, %s579
          %s581 = smul.addr %s580, 8
          %s582 = scalar_lea.hbm %s5, %s581
          %s583 = sshll.u32 %s572, 4
          %s584 = int_to_ptr.vmem [resolvable:$true] %s583
          %s585 = sshll.u32 %s582, 4
          %s586 = int_to_ptr.hbm [resolvable:$true] %s585
          %591 = dma.vmem_to_hbm [thread:$0]  %s584, 4096, %s586, %s569, 128, 128, 8
        $region44: #{basic_block_forward.7} parent=39 // pred_fallthru
          _
      $region40: #{basic_block_forward.7} parent=5 // pred_fallthru
        _
      %p592 = scmp.le.s32.totalorder 2, %s14
      // Predicated region
      $region45: #{basic_block_forward.7} parent=5 // pred_check
        %p593 = pneg %p592
      $region46: #{basic_block_forward.7} parent=5 // pred_check_branch
        %595 = sbr.rel (%p593) target = $region48
      $region47: #{basic_block_forward.7} parent=5 // pred_region
        %s596 = ssub.s32 %s14, 2
        // Predicated region
        $region49: #{basic_block_forward.7} parent=47 // pred_check
          %p597 = pneg %p181
        $region50: #{basic_block_forward.7} parent=47 // pred_check_branch
          %599 = sbr.rel (%p597) target = $region52
        $region51: #{basic_block_forward.7} parent=47 // pred_region
          %s600 = sand.u32 %s166, 1
          %s601 = scalar_lea.sflag [#allocation3], %s600
          %s602 = sand.u32 %s166, 1
          %s603 = smul.addr %s602, 256
          %s604 = scalar_lea.vmem [#allocation2], %s603
          %606 = dma.done %s601, 4096
        $region52: #{basic_block_forward.7} parent=47 // pred_fallthru
          _
      $region48: #{basic_block_forward.7} parent=5 // pred_fallthru
        _
    $region6: #{basic_block_forward.7} parent=1 // loop_footer
      %s18 = sadd.s32 1, %s14
    $region7: #{basic_block_forward.7} parent=1 // loop_footer_branch
      %13 = sbr.rel target = $region3
    $region8: #{basic_block_forward.7} parent=1 // loop_exit
      _
    %607 = vsyncpa [#allocation3], 1
    %s608 = scalar_lea.sflag [#allocation3], 1
    %609 = vsyncpa %s608, 1

// kernel: basic_block_forward.4
$region0: #{basic_block_forward.4}
  #allocation0 [shape = 'u32[]', space=smem, size = 0x4, offset = 0x4, fixed_abs, tag = 'smem constant byte address 0x4 - core index']
  #allocation1 [shape = 'u32[72,128]{1,0:T(1,128)}', space=vmem, size = 0x9000, scoped, tag = 'internal scratch']
  %s0 = inlined_call_operand.vmem [shape: bf16[2,10,18,18,32], index: 0, kind: input, shape index: {}, may-alias: {0,1,2}]
  %s1 = inlined_call_operand.vmem [shape: bf16[2,10,18,18,32], index: 1, kind: input, shape index: {}, may-alias: {0,1,2}]
  %s2 = inlined_call_operand.vmem [shape: bf16[2,10,18,18,32], index: 2, kind: input, shape index: {}, may-alias: {0,1,2}]
  %s3 = inlined_call_operand.vmem [shape: bf16[27,32,32], index: 3, kind: input, shape index: {}]
  %s4 = inlined_call_operand.vmem [shape: f32[2,8,256,32], index: 4, kind: output, shape index: {0}]
  %s5 = inlined_call_operand.vmem [shape: f32[2,8,2,32], index: 5, kind: output, shape index: {1}]
  %6 = xla_tuple %s4, %s5
  %s7 = sld [smem:[#allocation0]]
  $region57: #{basic_block_forward.4} parent=0
    _
  %s9 = ssub.s32 1, %s7
  %s10 = scalar_select 0, %s9, %s7
  loop: start=0, step=1, limit=18
  $region2: #{basic_block_forward.4} parent=0 // loop_pre_header
    _
  $region3: #{basic_block_forward.4} parent=0 // loop_header
    %s12 = sphi 0, %s16
    %p13 = scmp.ge.s32.totalorder %s12, 18
    %s19 = sphi 0, %s31
    %s20 = sphi 0, %s27
    %s21 = sphi 0, %s19
    %s22 = sphi 0, %s20
    %s23 = sphi 0, %s21
    %s24 = sphi 0, %s22
    %s36 = sphi 0, %s38
    %s39 = sphi 0, %s36
    %s40 = sphi 0, %s39
    %s56 = sphi 0, %s40
    %s66 = sphi 0, %s68
    %s69 = sphi 0, %s66
    %s70 = sphi 0, %s69
    %s86 = sphi 0, %s70
    %s96 = sphi 0, %s98
    %s99 = sphi 0, %s96
    %s100 = sphi 0, %s99
    %s116 = sphi 0, %s100
    %s120 = sphi 0, %s120
    %s122 = sphi 0, %s120
    %s123 = sphi 0, %s122
    %s137 = sphi 0, %s123
    %s145 = sphi 0, %s147
    %s148 = sphi 0, %s145
    %s149 = sphi 0, %s148
    %s165 = sphi 0, %s149
    %s173 = sphi 0, %s175
    %s176 = sphi 0, %s173
    %s177 = sphi 0, %s176
    %s193 = sphi 0, %s177
  $region4: #{basic_block_forward.4} parent=0 // loop_header_branch
    %15 = sbr.rel (%p13) target = $region8
  $region5: #{basic_block_forward.4} parent=0 // loop_body
    %s17 = ssub.s32 %s12, 1
    %s18 = ssub.s32 %s12, 2
    %s25 = sadd.s32 1, %s20
    %p26 = scmp.ge.s32.totalorder %s25, 8
    %s27 = scalar_select %p26, 0, %s25
    %s28 = sadd.s32 1, %s19
    %s29 = scalar_select %p26, %s28, %s19
    %p30 = scmp.ge.s32.totalorder %s29, 2
    %s31 = scalar_select %p30, 0, %s29
    %s32 = ssub.s32 %s19, %s31
    %s33 = ssub.s32 %s20, %s27
    %s34 = sor.u32 %s32, %s33
    %p35 = scmp.eq.s32.totalorder %s34, 0
    %s37 = sadd.s32 %s36, 1
    %s38 = scalar_select %p35, %s36, %s37
    %p41 = pneg %p35
    %p42 = scmp.eq.s32.totalorder %s12, 15
    %p43 = por %p41, %p42
    %p44 = scmp.ne.s32.totalorder %s36, %s39
    %p45 = scmp.eq.s32.totalorder %s12, 0
    %p46 = por %p44, %p45
    %p47 = scmp.ne.s32.totalorder %s36, %s39
    %p48 = scmp.eq.s32.totalorder %s17, 15
    %p49 = por %p47, %p48
    %p50 = scmp.ne.s32.totalorder %s39, %s40
    %p51 = scmp.eq.s32.totalorder %s17, 0
    %p52 = por %p50, %p51
    %p53 = scmp.ne.s32.totalorder %s39, %s40
    %p54 = scmp.eq.s32.totalorder %s18, 15
    %p55 = por %p53, %p54
    %p57 = scmp.ne.s32.totalorder %s40, %s56
    %p58 = scmp.eq.s32.totalorder %s18, 0
    %p59 = por %p57, %p58
    %s60 = sadd.s32 %s20, 1
    %s61 = sadd.s32 %s27, 1
    %s62 = ssub.s32 %s19, %s31
    %s63 = ssub.s32 %s60, %s61
    %s64 = sor.u32 %s62, %s63
    %p65 = scmp.eq.s32.totalorder %s64, 0
    %s67 = sadd.s32 %s66, 1
    %s68 = scalar_select %p65, %s66, %s67
    %p71 = pneg %p65
    %p72 = scmp.eq.s32.totalorder %s12, 15
    %p73 = por %p71, %p72
    %p74 = scmp.ne.s32.totalorder %s66, %s69
    %p75 = scmp.eq.s32.totalorder %s12, 0
    %p76 = por %p74, %p75
    %p77 = scmp.ne.s32.totalorder %s66, %s69
    %p78 = scmp.eq.s32.totalorder %s17, 15
    %p79 = por %p77, %p78
    %p80 = scmp.ne.s32.totalorder %s69, %s70
    %p81 = scmp.eq.s32.totalorder %s17, 0
    %p82 = por %p80, %p81
    %p83 = scmp.ne.s32.totalorder %s69, %s70
    %p84 = scmp.eq.s32.totalorder %s18, 15
    %p85 = por %p83, %p84
    %p87 = scmp.ne.s32.totalorder %s70, %s86
    %p88 = scmp.eq.s32.totalorder %s18, 0
    %p89 = por %p87, %p88
    %s90 = sadd.s32 %s20, 2
    %s91 = sadd.s32 %s27, 2
    %s92 = ssub.s32 %s19, %s31
    %s93 = ssub.s32 %s90, %s91
    %s94 = sor.u32 %s92, %s93
    %p95 = scmp.eq.s32.totalorder %s94, 0
    %s97 = sadd.s32 %s96, 1
    %s98 = scalar_select %p95, %s96, %s97
    %p101 = pneg %p95
    %p102 = scmp.eq.s32.totalorder %s12, 15
    %p103 = por %p101, %p102
    %p104 = scmp.ne.s32.totalorder %s96, %s99
    %p105 = scmp.eq.s32.totalorder %s12, 0
    %p106 = por %p104, %p105
    %p107 = scmp.ne.s32.totalorder %s96, %s99
    %p108 = scmp.eq.s32.totalorder %s17, 15
    %p109 = por %p107, %p108
    %p110 = scmp.ne.s32.totalorder %s99, %s100
    %p111 = scmp.eq.s32.totalorder %s17, 0
    %p112 = por %p110, %p111
    %p113 = scmp.ne.s32.totalorder %s99, %s100
    %p114 = scmp.eq.s32.totalorder %s18, 15
    %p115 = por %p113, %p114
    %p117 = scmp.ne.s32.totalorder %s100, %s116
    %p118 = scmp.eq.s32.totalorder %s18, 0
    %p119 = por %p117, %p118
    %s121 = sadd.s32 %s120, 1
    %p124 = scmp.eq.s32.totalorder %s12, 15
    %p125 = scmp.ne.s32.totalorder %s120, %s122
    %p126 = scmp.eq.s32.totalorder %s12, 0
    %p127 = por %p125, %p126
    %p128 = scmp.ne.s32.totalorder %s120, %s122
    %p129 = scmp.eq.s32.totalorder %s17, 15
    %p130 = por %p128, %p129
    %p131 = scmp.ne.s32.totalorder %s122, %s123
    %p132 = scmp.eq.s32.totalorder %s17, 0
    %p133 = por %p131, %p132
    %p134 = scmp.ne.s32.totalorder %s122, %s123
    %p135 = scmp.eq.s32.totalorder %s18, 15
    %p136 = por %p134, %p135
    %p138 = scmp.ne.s32.totalorder %s123, %s137
    %p139 = scmp.eq.s32.totalorder %s18, 0
    %p140 = por %p138, %p139
    %s141 = ssub.s32 %s19, %s31
    %s142 = ssub.s32 %s20, %s27
    %s143 = sor.u32 %s141, %s142
    %p144 = scmp.eq.s32.totalorder %s143, 0
    %s146 = sadd.s32 %s145, 1
    %s147 = scalar_select %p144, %s145, %s146
    %p150 = pneg %p144
    %p151 = scmp.eq.s32.totalorder %s12, 15
    %p152 = por %p150, %p151
    %p153 = scmp.ne.s32.totalorder %s145, %s148
    %p154 = scmp.eq.s32.totalorder %s12, 0
    %p155 = por %p153, %p154
    %p156 = scmp.ne.s32.totalorder %s145, %s148
    %p157 = scmp.eq.s32.totalorder %s17, 15
    %p158 = por %p156, %p157
    %p159 = scmp.ne.s32.totalorder %s148, %s149
    %p160 = scmp.eq.s32.totalorder %s17, 0
    %p161 = por %p159, %p160
    %p162 = scmp.ne.s32.totalorder %s148, %s149
    %p163 = scmp.eq.s32.totalorder %s18, 15
    %p164 = por %p162, %p163
    %p166 = scmp.ne.s32.totalorder %s149, %s165
    %p167 = scmp.eq.s32.totalorder %s18, 0
    %p168 = por %p166, %p167
    %s169 = ssub.s32 %s19, %s31
    %s170 = ssub.s32 %s20, %s27
    %s171 = sor.u32 %s169, %s170
    %p172 = scmp.eq.s32.totalorder %s171, 0
    %s174 = sadd.s32 %s173, 1
    %s175 = scalar_select %p172, %s173, %s174
    %p178 = pneg %p172
    %p179 = scmp.eq.s32.totalorder %s12, 15
    %p180 = por %p178, %p179
    %p181 = scmp.ne.s32.totalorder %s173, %s176
    %p182 = scmp.eq.s32.totalorder %s12, 0
    %p183 = por %p181, %p182
    %p184 = scmp.ne.s32.totalorder %s173, %s176
    %p185 = scmp.eq.s32.totalorder %s17, 15
    %p186 = por %p184, %p185
    %p187 = scmp.ne.s32.totalorder %s176, %s177
    %p188 = scmp.eq.s32.totalorder %s17, 0
    %p189 = por %p187, %p188
    %p190 = scmp.ne.s32.totalorder %s176, %s177
    %p191 = scmp.eq.s32.totalorder %s18, 15
    %p192 = por %p190, %p191
    %p194 = scmp.ne.s32.totalorder %s177, %s193
    %p195 = scmp.eq.s32.totalorder %s18, 0
    %p196 = por %p194, %p195
    %p197 = scmp.le.s32.totalorder 1, %s12
    %p198 = scmp.lt.s32.totalorder %s12, 17
    %p199 = pnand %p197, %p198
    %p200 = pneg %p199
    // Predicated region
    $region9: #{basic_block_forward.4} parent=5 // pred_check
      _
    $region10: #{basic_block_forward.4} parent=5 // pred_check_branch
      %202 = sbr.rel (%p199) target = $region12
    $region11: #{basic_block_forward.4} parent=5 // pred_region
      %s203 = ssub.s32 %s12, 1
      // Predicated region
      $region13: #{basic_block_forward.4} parent=11 // pred_check
        %p204 = pneg %p133
      $region14: #{basic_block_forward.4} parent=11 // pred_check_branch
        %206 = sbr.rel (%p204) target = $region16
      $region15: #{basic_block_forward.4} parent=11 // pred_region
        _
      $region16: #{basic_block_forward.4} parent=11 // pred_fallthru
        _
    $region12: #{basic_block_forward.4} parent=5 // pred_fallthru
      _
    %p207 = scmp.lt.s32.totalorder %s12, 16
    // Predicated region
    $region17: #{basic_block_forward.4} parent=5 // pred_check
      %p208 = pneg %p207
    $region18: #{basic_block_forward.4} parent=5 // pred_check_branch
      %210 = sbr.rel (%p208) target = $region20
    $region19: #{basic_block_forward.4} parent=5 // pred_region
      // Predicated region
      $region21: #{basic_block_forward.4} parent=19 // pred_check
        %p211 = pneg %p46
      $region22: #{basic_block_forward.4} parent=19 // pred_check_branch
        %213 = sbr.rel (%p211) target = $region24
      $region23: #{basic_block_forward.4} parent=19 // pred_region
        %p214 = scmp.lt.s32.totalorder %s19, 1
        %s215 = scalar_select %p214, %s19, 1
        %p216 = scmp.lt.s32.totalorder %s20, 9
        %s217 = scalar_select %p216, %s20, 9
        %s218 = smul.addr %s217, 54
        %s219 = smul.addr %s215, 540
        %s220 = sadd.s32 %s218, %s219
        %s221 = smul.addr %s220, 4
        %s222 = scalar_lea.vmem %s0, %s221
      $region24: #{basic_block_forward.4} parent=19 // pred_fallthru
        _
      // Predicated region
      $region25: #{basic_block_forward.4} parent=19 // pred_check
        %p223 = pneg %p76
      $region26: #{basic_block_forward.4} parent=19 // pred_check_branch
        %225 = sbr.rel (%p223) target = $region28
      $region27: #{basic_block_forward.4} parent=19 // pred_region
        %s226 = sadd.s32 %s20, 1
        %p227 = scmp.lt.s32.totalorder %s19, 1
        %s228 = scalar_select %p227, %s19, 1
        %p229 = scmp.lt.s32.totalorder %s226, 9
        %s230 = scalar_select %p229, %s226, 9
        %s231 = smul.addr %s230, 54
        %s232 = smul.addr %s228, 540
        %s233 = sadd.s32 %s231, %s232
        %s234 = smul.addr %s233, 4
        %s235 = scalar_lea.vmem %s1, %s234
        %s236 = sadd.s32 %s20, 1
      $region28: #{basic_block_forward.4} parent=19 // pred_fallthru
        _
      // Predicated region
      $region29: #{basic_block_forward.4} parent=19 // pred_check
        %p237 = pneg %p106
      $region30: #{basic_block_forward.4} parent=19 // pred_check_branch
        %239 = sbr.rel (%p237) target = $region32
      $region31: #{basic_block_forward.4} parent=19 // pred_region
        %s240 = sadd.s32 %s20, 2
        %p241 = scmp.lt.s32.totalorder %s19, 1
        %s242 = scalar_select %p241, %s19, 1
        %p243 = scmp.lt.s32.totalorder %s240, 9
        %s244 = scalar_select %p243, %s240, 9
        %s245 = smul.addr %s244, 54
        %s246 = smul.addr %s242, 540
        %s247 = sadd.s32 %s245, %s246
        %s248 = smul.addr %s247, 4
        %s249 = scalar_lea.vmem %s2, %s248
        %s250 = sadd.s32 %s20, 2
      $region32: #{basic_block_forward.4} parent=19 // pred_fallthru
        _
    $region20: #{basic_block_forward.4} parent=5 // pred_fallthru
      _
    %p251 = scmp.le.s32.totalorder 1, %s12
    %p252 = scmp.lt.s32.totalorder %s12, 17
    %p253 = pnand %p251, %p252
    %p254 = pneg %p253
    // Predicated region
    $region33: #{basic_block_forward.4} parent=5 // pred_check
      _
    $region34: #{basic_block_forward.4} parent=5 // pred_check_branch
      %256 = sbr.rel (%p253) target = $region36
    $region35: #{basic_block_forward.4} parent=5 // pred_region
      %s257 = ssub.s32 %s12, 1
      %p258 = scmp.lt.s32.totalorder %s21, 1
      %s259 = scalar_select %p258, %s21, 1
      %p260 = scmp.lt.s32.totalorder %s22, 9
      %s261 = scalar_select %p260, %s22, 9
      %s262 = smul.addr %s261, 54
      %s263 = smul.addr %s259, 540
      %s264 = sadd.s32 %s262, %s263
      %s265 = smul.addr %s264, 4
      %s266 = scalar_lea.vmem %s0, %s265
      %p267 = pneg %p52
      %p268 = pneg %p49
      %s269 = sadd.s32 %s22, 1
      %p270 = scmp.lt.s32.totalorder %s21, 1
      %s271 = scalar_select %p270, %s21, 1
      %p272 = scmp.lt.s32.totalorder %s269, 9
      %s273 = scalar_select %p272, %s269, 9
      %s274 = smul.addr %s273, 54
      %s275 = smul.addr %s271, 540
      %s276 = sadd.s32 %s274, %s275
      %s277 = smul.addr %s276, 4
      %s278 = scalar_lea.vmem %s1, %s277
      %p279 = pneg %p82
      %p280 = pneg %p79
      %s281 = sadd.s32 %s22, 2
      %p282 = scmp.lt.s32.totalorder %s21, 1
      %s283 = scalar_select %p282, %s21, 1
      %p284 = scmp.lt.s32.totalorder %s281, 9
      %s285 = scalar_select %p284, %s281, 9
      %s286 = smul.addr %s285, 54
      %s287 = smul.addr %s283, 540
      %s288 = sadd.s32 %s286, %s287
      %s289 = smul.addr %s288, 4
      %s290 = scalar_lea.vmem %s2, %s289
      %p291 = pneg %p112
      %p292 = pneg %p109
      %p293 = pneg %p133
      %p294 = pneg %p130
      %p295 = pneg %p161
      %p296 = pneg %p158
      %p297 = scmp.lt.s32.totalorder %s21, 1
      %s298 = scalar_select %p297, %s21, 1
      %p299 = scmp.lt.s32.totalorder %s22, 7
      %s300 = scalar_select %p299, %s22, 7
      %s301 = smul.addr %s300, 32
      %s302 = smul.addr %s298, 256
      %s303 = sadd.s32 %s301, %s302
      %s304 = smul.addr %s303, 8
      %s305 = scalar_lea.vmem %s4, %s304
      %p306 = pneg %p189
      %p307 = pneg %p186
      %p308 = scmp.lt.s32.totalorder %s21, 1
      %s309 = scalar_select %p308, %s21, 1
      %p310 = scmp.lt.s32.totalorder %s22, 7
      %s311 = scalar_select %p310, %s22, 7
      %s312 = smul.addr %s309, 8
      %s313 = sadd.s32 %s311, %s312
      %s314 = smul.addr %s313, 2
      %s315 = scalar_lea.vmem %s5, %s314
      %p316 = scmp.lt.s32.totalorder %s21, 1
      %s317 = scalar_select %p316, %s21, 1
      %p318 = scmp.lt.s32.totalorder %s22, 9
      %s319 = scalar_select %p318, %s22, 9
      %s320 = smul.addr %s319, 54
      %s321 = smul.addr %s317, 540
      %s322 = sadd.s32 %s320, %s321
      %s323 = smul.addr %s322, 4
      %s324 = scalar_lea.vmem %s0, %s323
      %s325 = sadd.s32 %s22, 1
      %p326 = scmp.lt.s32.totalorder %s21, 1
      %s327 = scalar_select %p326, %s21, 1
      %p328 = scmp.lt.s32.totalorder %s325, 9
      %s329 = scalar_select %p328, %s325, 9
      %s330 = smul.addr %s329, 54
      %s331 = smul.addr %s327, 540
      %s332 = sadd.s32 %s330, %s331
      %s333 = smul.addr %s332, 4
      %s334 = scalar_lea.vmem %s1, %s333
      %s335 = sadd.s32 %s22, 1
      %s336 = sadd.s32 %s22, 2
      %p337 = scmp.lt.s32.totalorder %s21, 1
      %s338 = scalar_select %p337, %s21, 1
      %p339 = scmp.lt.s32.totalorder %s336, 9
      %s340 = scalar_select %p339, %s336, 9
      %s341 = smul.addr %s340, 54
      %s342 = smul.addr %s338, 540
      %s343 = sadd.s32 %s341, %s342
      %s344 = smul.addr %s343, 4
      %s345 = scalar_lea.vmem %s2, %s344
      %s346 = sadd.s32 %s22, 2
      %p347 = scmp.lt.s32.totalorder %s21, 1
      %s348 = scalar_select %p347, %s21, 1
      %p349 = scmp.lt.s32.totalorder %s22, 7
      %s350 = scalar_select %p349, %s22, 7
      %s351 = smul.addr %s350, 32
      %s352 = smul.addr %s348, 256
      %s353 = sadd.s32 %s351, %s352
      %s354 = smul.addr %s353, 8
      %s355 = scalar_lea.vmem %s4, %s354
      %p356 = scmp.lt.s32.totalorder %s21, 1
      %s357 = scalar_select %p356, %s21, 1
      %p358 = scmp.lt.s32.totalorder %s22, 7
      %s359 = scalar_select %p358, %s22, 7
      %s360 = smul.addr %s357, 8
      %s361 = sadd.s32 %s359, %s360
      %s362 = smul.addr %s361, 2
      %s363 = scalar_lea.vmem %s5, %s362
      %v365 = vld [vmem:[%s324] sm:$0xf]
      %v366 = vld [vmem:[%s324 + $0x4] sm:$0xf]
      %v367 = vld [vmem:[%s324 + $0x8] sm:$0x1]
      %v368 = vld [vmem:[%s324 + $0xc] sm:$0xf]
      %v369 = vld [vmem:[%s324 + $0x10] sm:$0xf]
      %v370 = vld [vmem:[%s324 + $0x14] sm:$0x1]
      %v371 = vld [vmem:[%s324 + $0x18] sm:$0xf]
      %v372 = vld [vmem:[%s324 + $0x1c] sm:$0xf]
      %v373 = vld [vmem:[%s324 + $0x20] sm:$0x1]
      %v374 = vld [vmem:[%s324 + $0x24] sm:$0xf]
      %v375 = vld [vmem:[%s324 + $0x28] sm:$0xf]
      %v376 = vld [vmem:[%s324 + $0x2c] sm:$0x1]
      %v377 = vld [vmem:[%s324 + $0x30] sm:$0xf]
      %v378 = vld [vmem:[%s324 + $0x34] sm:$0xf]
      %v379 = vld [vmem:[%s324 + $0x38] sm:$0x1]
      %v380 = vld [vmem:[%s324 + $0x3c] sm:$0xf]
      %v381 = vld [vmem:[%s324 + $0x40] sm:$0xf]
      %v382 = vld [vmem:[%s324 + $0x44] sm:$0x1]
      %v383 = vld [vmem:[%s324 + $0x48] sm:$0xf]
      %v384 = vld [vmem:[%s324 + $0x4c] sm:$0xf]
      %v385 = vld [vmem:[%s324 + $0x50] sm:$0x1]
      %v386 = vld [vmem:[%s324 + $0x54] sm:$0xf]
      %v387 = vld [vmem:[%s324 + $0x58] sm:$0xf]
      %v388 = vld [vmem:[%s324 + $0x5c] sm:$0x1]
      %v389 = vld [vmem:[%s324 + $0x60] sm:$0xf]
      %v390 = vld [vmem:[%s324 + $0x64] sm:$0xf]
      %v391 = vld [vmem:[%s324 + $0x68] sm:$0x1]
      %v392 = vld [vmem:[%s324 + $0x6c] sm:$0xf]
      %v393 = vld [vmem:[%s324 + $0x70] sm:$0xf]
      %v394 = vld [vmem:[%s324 + $0x74] sm:$0x1]
      %v395 = vld [vmem:[%s324 + $0x78] sm:$0xf]
      %v396 = vld [vmem:[%s324 + $0x7c] sm:$0xf]
      %v397 = vld [vmem:[%s324 + $0x80] sm:$0x1]
      %v398 = vld [vmem:[%s324 + $0x84] sm:$0xf]
      %v399 = vld [vmem:[%s324 + $0x88] sm:$0xf]
      %v400 = vld [vmem:[%s324 + $0x8c] sm:$0x1]
      %v401 = vld [vmem:[%s324 + $0x90] sm:$0xf]
      %v402 = vld [vmem:[%s324 + $0x94] sm:$0xf]
      %v403 = vld [vmem:[%s324 + $0x98] sm:$0x1]
      %v404 = vld [vmem:[%s324 + $0x9c] sm:$0xf]
      %v405 = vld [vmem:[%s324 + $0xa0] sm:$0xf]
      %v406 = vld [vmem:[%s324 + $0xa4] sm:$0x1]
      %v407 = vld [vmem:[%s324 + $0xa8] sm:$0xf]
      %v408 = vld [vmem:[%s324 + $0xac] sm:$0xf]
      %v409 = vld [vmem:[%s324 + $0xb0] sm:$0x1]
      %v410 = vld [vmem:[%s324 + $0xb4] sm:$0xf]
      %v411 = vld [vmem:[%s324 + $0xb8] sm:$0xf]
      %v412 = vld [vmem:[%s324 + $0xbc] sm:$0x1]
      %v413 = vld [vmem:[%s324 + $0xc0] sm:$0xf]
      %v414 = vld [vmem:[%s324 + $0xc4] sm:$0xf]
      %v415 = vld [vmem:[%s324 + $0xc8] sm:$0x1]
      %v416 = vld [vmem:[%s324 + $0xcc] sm:$0xf]
      %v417 = vld [vmem:[%s324 + $0xd0] sm:$0xf]
      %v418 = vld [vmem:[%s324 + $0xd4] sm:$0x1]
      %v419 = vld [vmem:[%s3] sm:$0xf]
      %v420 = vld [vmem:[%s3 + $0x4] sm:$0xf]
      %v421 = vld [vmem:[%s3 + $0x8] sm:$0xf]
      %v422 = vld [vmem:[%s3 + $0xc] sm:$0xf]
      %vm423 = vsmask.f32 3328
      %vm424 = vsmask.f32 7440
      %vm425 = vmor %vm423, %vm424
      %v427 = vshrl.u32 %v365, 16
      %v429 = vrot.slane %v427, 4
      %v430 = vshll.u32 %v365, 16
      %v432 = vrot.slane %v430, 5
      %v433 = vor.u32 %v429, %v432
      %v434 = vrot.slane %v433, 4
      %v436 = vshll.u32 %v366, 16
      %v438 = vrot.slane %v436, 5
      %v439 = vsel %vm425, %v434, %v438
      %v440 = vshrl.u32 %v366, 16
      %v442 = vrot.slane %v440, 4
      %v443 = vor.u32 %v442, %v438
      %v444 = vrot.slane %v443, 4
      %v446 = vshll.u32 %v367, 16
      %v448 = vrot.slane %v446, 5
      %v449 = vsel %vm425, %v444, %v448
      %v451 = vshrl.u32 %v368, 16
      %v453 = vrot.slane %v451, 4
      %v454 = vshll.u32 %v368, 16
      %v456 = vrot.slane %v454, 5
      %v457 = vor.u32 %v453, %v456
      %v458 = vrot.slane %v457, 4
      %v460 = vshll.u32 %v369, 16
      %v462 = vrot.slane %v460, 5
      %v463 = vsel %vm425, %v458, %v462
      %v464 = vshrl.u32 %v369, 16
      %v466 = vrot.slane %v464, 4
      %v467 = vor.u32 %v466, %v462
      %v468 = vrot.slane %v467, 4
      %v470 = vshll.u32 %v370, 16
      %v472 = vrot.slane %v470, 5
      %v473 = vsel %vm425, %v468, %v472
      %v475 = vshrl.u32 %v371, 16
      %v477 = vrot.slane %v475, 4
      %v478 = vshll.u32 %v371, 16
      %v480 = vrot.slane %v478, 5
      %v481 = vor.u32 %v477, %v480
      %v482 = vrot.slane %v481, 4
      %v484 = vshll.u32 %v372, 16
      %v486 = vrot.slane %v484, 5
      %v487 = vsel %vm425, %v482, %v486
      %v488 = vshrl.u32 %v372, 16
      %v490 = vrot.slane %v488, 4
      %v491 = vor.u32 %v490, %v486
      %v492 = vrot.slane %v491, 4
      %v494 = vshll.u32 %v373, 16
      %v496 = vrot.slane %v494, 5
      %v497 = vsel %vm425, %v492, %v496
      %v499 = vshrl.u32 %v374, 16
      %v501 = vrot.slane %v499, 4
      %v502 = vshll.u32 %v374, 16
      %v504 = vrot.slane %v502, 5
      %v505 = vor.u32 %v501, %v504
      %v506 = vrot.slane %v505, 4
      %v508 = vshll.u32 %v375, 16
      %v510 = vrot.slane %v508, 5
      %v511 = vsel %vm425, %v506, %v510
      %v512 = vshrl.u32 %v375, 16
      %v514 = vrot.slane %v512, 4
      %v515 = vor.u32 %v514, %v510
      %v516 = vrot.slane %v515, 4
      %v518 = vshll.u32 %v376, 16
      %v520 = vrot.slane %v518, 5
      %v521 = vsel %vm425, %v516, %v520
      %v523 = vshrl.u32 %v377, 16
      %v525 = vrot.slane %v523, 4
      %v526 = vshll.u32 %v377, 16
      %v528 = vrot.slane %v526, 5
      %v529 = vor.u32 %v525, %v528
      %v530 = vrot.slane %v529, 4
      %v532 = vshll.u32 %v378, 16
      %v534 = vrot.slane %v532, 5
      %v535 = vsel %vm425, %v530, %v534
      %v536 = vshrl.u32 %v378, 16
      %v538 = vrot.slane %v536, 4
      %v539 = vor.u32 %v538, %v534
      %v540 = vrot.slane %v539, 4
      %v542 = vshll.u32 %v379, 16
      %v544 = vrot.slane %v542, 5
      %v545 = vsel %vm425, %v540, %v544
      %v547 = vshrl.u32 %v380, 16
      %v549 = vrot.slane %v547, 4
      %v550 = vshll.u32 %v380, 16
      %v552 = vrot.slane %v550, 5
      %v553 = vor.u32 %v549, %v552
      %v554 = vrot.slane %v553, 4
      %v556 = vshll.u32 %v381, 16
      %v558 = vrot.slane %v556, 5
      %v559 = vsel %vm425, %v554, %v558
      %v560 = vshrl.u32 %v381, 16
      %v562 = vrot.slane %v560, 4
      %v563 = vor.u32 %v562, %v558
      %v564 = vrot.slane %v563, 4
      %v566 = vshll.u32 %v382, 16
      %v568 = vrot.slane %v566, 5
      %v569 = vsel %vm425, %v564, %v568
      %v571 = vshrl.u32 %v383, 16
      %v573 = vrot.slane %v571, 4
      %v574 = vshll.u32 %v383, 16
      %v576 = vrot.slane %v574, 5
      %v577 = vor.u32 %v573, %v576
      %v578 = vrot.slane %v577, 4
      %v580 = vshll.u32 %v384, 16
      %v582 = vrot.slane %v580, 5
      %v583 = vsel %vm425, %v578, %v582
      %v584 = vshrl.u32 %v384, 16
      %v586 = vrot.slane %v584, 4
      %v587 = vor.u32 %v586, %v582
      %v588 = vrot.slane %v587, 4
      %v590 = vshll.u32 %v385, 16
      %v592 = vrot.slane %v590, 5
      %v593 = vsel %vm425, %v588, %v592
      %v595 = vshrl.u32 %v386, 16
      %v597 = vrot.slane %v595, 4
      %v598 = vshll.u32 %v386, 16
      %v600 = vrot.slane %v598, 5
      %v601 = vor.u32 %v597, %v600
      %v602 = vrot.slane %v601, 4
      %v604 = vshll.u32 %v387, 16
      %v606 = vrot.slane %v604, 5
      %v607 = vsel %vm425, %v602, %v606
      %v608 = vshrl.u32 %v387, 16
      %v610 = vrot.slane %v608, 4
      %v611 = vor.u32 %v610, %v606
      %v612 = vrot.slane %v611, 4
      %v614 = vshll.u32 %v388, 16
      %v616 = vrot.slane %v614, 5
      %v617 = vsel %vm425, %v612, %v616
      %v619 = vshrl.u32 %v389, 16
      %v621 = vrot.slane %v619, 4
      %v622 = vshll.u32 %v389, 16
      %v624 = vrot.slane %v622, 5
      %v625 = vor.u32 %v621, %v624
      %v626 = vrot.slane %v625, 4
      %v628 = vshll.u32 %v390, 16
      %v630 = vrot.slane %v628, 5
      %v631 = vsel %vm425, %v626, %v630
      %v632 = vshrl.u32 %v390, 16
      %v634 = vrot.slane %v632, 4
      %v635 = vor.u32 %v634, %v630
      %v636 = vrot.slane %v635, 4
      %v638 = vshll.u32 %v391, 16
      %v640 = vrot.slane %v638, 5
      %v641 = vsel %vm425, %v636, %v640
      %v643 = vshrl.u32 %v392, 16
      %v645 = vrot.slane %v643, 4
      %v646 = vshll.u32 %v392, 16
      %v648 = vrot.slane %v646, 5
      %v649 = vor.u32 %v645, %v648
      %v650 = vrot.slane %v649, 4
      %v652 = vshll.u32 %v393, 16
      %v654 = vrot.slane %v652, 5
      %v655 = vsel %vm425, %v650, %v654
      %v656 = vshrl.u32 %v393, 16
      %v658 = vrot.slane %v656, 4
      %v659 = vor.u32 %v658, %v654
      %v660 = vrot.slane %v659, 4
      %v662 = vshll.u32 %v394, 16
      %v664 = vrot.slane %v662, 5
      %v665 = vsel %vm425, %v660, %v664
      %v667 = vshrl.u32 %v395, 16
      %v669 = vrot.slane %v667, 4
      %v670 = vshll.u32 %v395, 16
      %v672 = vrot.slane %v670, 5
      %v673 = vor.u32 %v669, %v672
      %v674 = vrot.slane %v673, 4
      %v676 = vshll.u32 %v396, 16
      %v678 = vrot.slane %v676, 5
      %v679 = vsel %vm425, %v674, %v678
      %v680 = vshrl.u32 %v396, 16
      %v682 = vrot.slane %v680, 4
      %v683 = vor.u32 %v682, %v678
      %v684 = vrot.slane %v683, 4
      %v686 = vshll.u32 %v397, 16
      %v688 = vrot.slane %v686, 5
      %v689 = vsel %vm425, %v684, %v688
      %v691 = vshrl.u32 %v398, 16
      %v693 = vrot.slane %v691, 4
      %v694 = vshll.u32 %v398, 16
      %v696 = vrot.slane %v694, 5
      %v697 = vor.u32 %v693, %v696
      %v698 = vrot.slane %v697, 4
      %v700 = vshll.u32 %v399, 16
      %v702 = vrot.slane %v700, 5
      %v703 = vsel %vm425, %v698, %v702
      %v704 = vshrl.u32 %v399, 16
      %v706 = vrot.slane %v704, 4
      %v707 = vor.u32 %v706, %v702
      %v708 = vrot.slane %v707, 4
      %v710 = vshll.u32 %v400, 16
      %v712 = vrot.slane %v710, 5
      %v713 = vsel %vm425, %v708, %v712
      %v715 = vshrl.u32 %v401, 16
      %v717 = vrot.slane %v715, 4
      %v718 = vshll.u32 %v401, 16
      %v720 = vrot.slane %v718, 5
      %v721 = vor.u32 %v717, %v720
      %v722 = vrot.slane %v721, 4
      %v724 = vshll.u32 %v402, 16
      %v726 = vrot.slane %v724, 5
      %v727 = vsel %vm425, %v722, %v726
      %v728 = vshrl.u32 %v402, 16
      %v730 = vrot.slane %v728, 4
      %v731 = vor.u32 %v730, %v726
      %v732 = vrot.slane %v731, 4
      %v734 = vshll.u32 %v403, 16
      %v736 = vrot.slane %v734, 5
      %v737 = vsel %vm425, %v732, %v736
      %v739 = vshrl.u32 %v404, 16
      %v741 = vrot.slane %v739, 4
      %v742 = vshll.u32 %v404, 16
      %v744 = vrot.slane %v742, 5
      %v745 = vor.u32 %v741, %v744
      %v746 = vrot.slane %v745, 4
      %v748 = vshll.u32 %v405, 16
      %v750 = vrot.slane %v748, 5
      %v751 = vsel %vm425, %v746, %v750
      %v752 = vshrl.u32 %v405, 16
      %v754 = vrot.slane %v752, 4
      %v755 = vor.u32 %v754, %v750
      %v756 = vrot.slane %v755, 4
      %v758 = vshll.u32 %v406, 16
      %v760 = vrot.slane %v758, 5
      %v761 = vsel %vm425, %v756, %v760
      %v763 = vshrl.u32 %v407, 16
      %v765 = vrot.slane %v763, 4
      %v766 = vshll.u32 %v407, 16
      %v768 = vrot.slane %v766, 5
      %v769 = vor.u32 %v765, %v768
      %v770 = vrot.slane %v769, 4
      %v772 = vshll.u32 %v408, 16
      %v774 = vrot.slane %v772, 5
      %v775 = vsel %vm425, %v770, %v774
      %v776 = vshrl.u32 %v408, 16
      %v778 = vrot.slane %v776, 4
      %v779 = vor.u32 %v778, %v774
      %v780 = vrot.slane %v779, 4
      %v782 = vshll.u32 %v409, 16
      %v784 = vrot.slane %v782, 5
      %v785 = vsel %vm425, %v780, %v784
      %v787 = vshrl.u32 %v410, 16
      %v789 = vrot.slane %v787, 4
      %v790 = vshll.u32 %v410, 16
      %v792 = vrot.slane %v790, 5
      %v793 = vor.u32 %v789, %v792
      %v794 = vrot.slane %v793, 4
      %v796 = vshll.u32 %v411, 16
      %v798 = vrot.slane %v796, 5
      %v799 = vsel %vm425, %v794, %v798
      %v800 = vshrl.u32 %v411, 16
      %v802 = vrot.slane %v800, 4
      %v803 = vor.u32 %v802, %v798
      %v804 = vrot.slane %v803, 4
      %v806 = vshll.u32 %v412, 16
      %v808 = vrot.slane %v806, 5
      %v809 = vsel %vm425, %v804, %v808
      %s810 = scalar_lea.vmem %s3, 16
      %v811 = vld [vmem:[%s810] sm:$0xf]
      %v812 = vld [vmem:[%s810 + $0x4] sm:$0xf]
      %v813 = vld [vmem:[%s810 + $0x8] sm:$0xf]
      %v814 = vld [vmem:[%s810 + $0xc] sm:$0xf]
      %v815 = vunpack.c.l.b16 %v439
      %v816 = vunpack.c.l.b16 %v449
      %v817 = vunpack.c.l.b16 %v463
      %v818 = vunpack.c.l.b16 %v473
      %v819 = vunpack.c.l.b16 %v487
      %v820 = vunpack.c.l.b16 %v497
      %v821 = vunpack.c.l.b16 %v511
      %v822 = vunpack.c.l.b16 %v521
      %v823 = vunpack.c.l.b16 %v535
      %v824 = vunpack.c.l.b16 %v545
      %v825 = vunpack.c.l.b16 %v559
      %v826 = vunpack.c.l.b16 %v569
      %v827 = vunpack.c.l.b16 %v583
      %v828 = vunpack.c.l.b16 %v593
      %v829 = vunpack.c.l.b16 %v607
      %v830 = vunpack.c.l.b16 %v617
      %v831 = vunpack.c.l.b16 %v631
      %v832 = vunpack.c.l.b16 %v641
      %v833 = vunpack.c.l.b16 %v655
      %v834 = vunpack.c.l.b16 %v665
      %v835 = vunpack.c.l.b16 %v679
      %v836 = vunpack.c.l.b16 %v689
      %v837 = vunpack.c.l.b16 %v703
      %v838 = vunpack.c.l.b16 %v713
      %v839 = vunpack.c.l.b16 %v727
      %v840 = vunpack.c.l.b16 %v737
      %v841 = vunpack.c.l.b16 %v751
      %v842 = vunpack.c.l.b16 %v761
      %v843 = vunpack.c.l.b16 %v775
      %v844 = vunpack.c.l.b16 %v785
      %v845 = vunpack.c.l.b16 %v799
      %v846 = vunpack.c.l.b16 %v809
      %v847 = vpack.c.b16 %v816, %v815
      %v848 = vpack.c.b16 %v818, %v817
      %v849 = vpack.c.b16 %v820, %v819
      %v850 = vpack.c.b16 %v822, %v821
      %v851 = vpack.c.b16 %v824, %v823
      %v852 = vpack.c.b16 %v826, %v825
      %v853 = vpack.c.b16 %v828, %v827
      %v854 = vpack.c.b16 %v830, %v829
      %v855 = vpack.c.b16 %v832, %v831
      %v856 = vpack.c.b16 %v834, %v833
      %v857 = vpack.c.b16 %v836, %v835
      %v858 = vpack.c.b16 %v838, %v837
      %v859 = vpack.c.b16 %v840, %v839
      %v860 = vpack.c.b16 %v842, %v841
      %v861 = vpack.c.b16 %v844, %v843
      %v862 = vpack.c.b16 %v846, %v845
      %v867 = vunpack.c.l.b16 %v811
      %v868 = vunpack.c.l.b16 %v812
      %v869 = vunpack.c.l.b16 %v813
      %v870 = vunpack.c.l.b16 %v814
      %v871 = vpack.c.b16 %v868, %v867
      %v872 = vpack.c.b16 %v870, %v869
      %vm875 = vcmask 261120
      %v877 = vsel %vm875, %v847, 0
      %v880 = vsel %vm875, %v848, 0
      %v883 = vsel %vm875, %v849, 0
      %v886 = vsel %vm875, %v850, 0
      %v889 = vsel %vm875, %v851, 0
      %v892 = vsel %vm875, %v852, 0
      %v895 = vsel %vm875, %v853, 0
      %v898 = vsel %vm875, %v854, 0
      %v901 = vsel %vm875, %v855, 0
      %v904 = vsel %vm875, %v856, 0
      %v907 = vsel %vm875, %v857, 0
      %v910 = vsel %vm875, %v858, 0
      %v913 = vsel %vm875, %v859, 0
      %v916 = vsel %vm875, %v860, 0
      %v919 = vsel %vm875, %v861, 0
      %v922 = vsel %vm875, %v862, 0
      %924 = vmatpush.bf16.msra.mxu0 0
      %925 = vmatpush.bf16.msra.mxu0 0
      %926 = vmatpush.bf16.msra.mxu0 0
      %927 = vmatpush.bf16.msra.mxu0 0
      %928 = vmatpush.bf16.msra.mxu0 0
      %929 = vmatpush.bf16.msra.mxu0 0
      %930 = vmatpush.bf16.msra.mxu0 %v872
      %931 = vmatpush.bf16.msra.mxu0 %v871
      %932 = vmatmul.bf16.gmra.mxu0 %v877
      %v933 = vpop.f32.mrf.mxu0
      %v934 = vadd.f32 0.0, %v933
      %v935 = vpop.f32.mrf.mxu0
      %v936 = vadd.f32 0.0, %v935
      %937 = vmatmul.bf16.gmra.mxu0 %v880
      %v938 = vpop.f32.mrf.mxu0
      %v939 = vadd.f32 0.0, %v938
      %v940 = vpop.f32.mrf.mxu0
      %v941 = vadd.f32 0.0, %v940
      %942 = vmatmul.bf16.gmra.mxu0 %v883
      %v943 = vpop.f32.mrf.mxu0
      %v944 = vadd.f32 0.0, %v943
      %v945 = vpop.f32.mrf.mxu0
      %v946 = vadd.f32 0.0, %v945
      %947 = vmatmul.bf16.gmra.mxu0 %v886
      %v948 = vpop.f32.mrf.mxu0
      %v949 = vadd.f32 0.0, %v948
      %v950 = vpop.f32.mrf.mxu0
      %v951 = vadd.f32 0.0, %v950
      %952 = vmatmul.bf16.gmra.mxu0 %v889
      %v953 = vpop.f32.mrf.mxu0
      %v954 = vadd.f32 0.0, %v953
      %v955 = vpop.f32.mrf.mxu0
      %v956 = vadd.f32 0.0, %v955
      %957 = vmatmul.bf16.gmra.mxu0 %v892
      %v958 = vpop.f32.mrf.mxu0
      %v959 = vadd.f32 0.0, %v958
      %v960 = vpop.f32.mrf.mxu0
      %v961 = vadd.f32 0.0, %v960
      %962 = vmatmul.bf16.gmra.mxu0 %v895
      %v963 = vpop.f32.mrf.mxu0
      %v964 = vadd.f32 0.0, %v963
      %v965 = vpop.f32.mrf.mxu0
      %v966 = vadd.f32 0.0, %v965
      %967 = vmatmul.bf16.gmra.mxu0 %v898
      %v968 = vpop.f32.mrf.mxu0
      %v969 = vadd.f32 0.0, %v968
      %v970 = vpop.f32.mrf.mxu0
      %v971 = vadd.f32 0.0, %v970
      %972 = vmatmul.bf16.gmra.mxu0 %v901
      %v973 = vpop.f32.mrf.mxu0
      %v974 = vadd.f32 0.0, %v973
      %v975 = vpop.f32.mrf.mxu0
      %v976 = vadd.f32 0.0, %v975
      %977 = vmatmul.bf16.gmra.mxu0 %v904
      %v978 = vpop.f32.mrf.mxu0
      %v979 = vadd.f32 0.0, %v978
      %v980 = vpop.f32.mrf.mxu0
      %v981 = vadd.f32 0.0, %v980
      %982 = vmatmul.bf16.gmra.mxu0 %v907
      %v983 = vpop.f32.mrf.mxu0
      %v984 = vadd.f32 0.0, %v983
      %v985 = vpop.f32.mrf.mxu0
      %v986 = vadd.f32 0.0, %v985
      %987 = vmatmul.bf16.gmra.mxu0 %v910
      %v988 = vpop.f32.mrf.mxu0
      %v989 = vadd.f32 0.0, %v988
      %v990 = vpop.f32.mrf.mxu0
      %v991 = vadd.f32 0.0, %v990
      %992 = vmatmul.bf16.gmra.mxu0 %v913
      %v993 = vpop.f32.mrf.mxu0
      %v994 = vadd.f32 0.0, %v993
      %v995 = vpop.f32.mrf.mxu0
      %v996 = vadd.f32 0.0, %v995
      %997 = vmatmul.bf16.gmra.mxu0 %v916
      %v998 = vpop.f32.mrf.mxu0
      %v999 = vadd.f32 0.0, %v998
      %v1000 = vpop.f32.mrf.mxu0
      %v1001 = vadd.f32 0.0, %v1000
      %1002 = vmatmul.bf16.gmra.mxu0 %v919
      %v1003 = vpop.f32.mrf.mxu0
      %v1004 = vadd.f32 0.0, %v1003
      %v1005 = vpop.f32.mrf.mxu0
      %v1006 = vadd.f32 0.0, %v1005
      %1007 = vmatmul.bf16.gmra.mxu0 %v922
      %v1008 = vpop.f32.mrf.mxu0
      %v1009 = vadd.f32 0.0, %v1008
      %v1010 = vpop.f32.mrf.mxu0
      %v1011 = vadd.f32 0.0, %v1010
      %1012 = vdwg.mxu0
      %v1045 = vunpack.c.l.b16 %v365
      %v1046 = vunpack.c.l.b16 %v366
      %v1047 = vunpack.c.l.b16 %v368
      %v1048 = vunpack.c.l.b16 %v369
      %v1049 = vunpack.c.l.b16 %v371
      %v1050 = vunpack.c.l.b16 %v372
      %v1051 = vunpack.c.l.b16 %v374
      %v1052 = vunpack.c.l.b16 %v375
      %v1053 = vunpack.c.l.b16 %v377
      %v1054 = vunpack.c.l.b16 %v378
      %v1055 = vunpack.c.l.b16 %v380
      %v1056 = vunpack.c.l.b16 %v381
      %v1057 = vunpack.c.l.b16 %v383
      %v1058 = vunpack.c.l.b16 %v384
      %v1059 = vunpack.c.l.b16 %v386
      %v1060 = vunpack.c.l.b16 %v387
      %v1061 = vunpack.c.l.b16 %v389
      %v1062 = vunpack.c.l.b16 %v390
      %v1063 = vunpack.c.l.b16 %v392
      %v1064 = vunpack.c.l.b16 %v393
      %v1065 = vunpack.c.l.b16 %v395
      %v1066 = vunpack.c.l.b16 %v396
      %v1067 = vunpack.c.l.b16 %v398
      %v1068 = vunpack.c.l.b16 %v399
      %v1069 = vunpack.c.l.b16 %v401
      %v1070 = vunpack.c.l.b16 %v402
      %v1071 = vunpack.c.l.b16 %v404
      %v1072 = vunpack.c.l.b16 %v405
      %v1073 = vunpack.c.l.b16 %v407
      %v1074 = vunpack.c.l.b16 %v408
      %v1075 = vunpack.c.l.b16 %v410
      %v1076 = vunpack.c.l.b16 %v411
      %v1077 = vpack.c.b16 %v1046, %v1045
      %v1078 = vpack.c.b16 %v1048, %v1047
      %v1079 = vpack.c.b16 %v1050, %v1049
      %v1080 = vpack.c.b16 %v1052, %v1051
      %v1081 = vpack.c.b16 %v1054, %v1053
      %v1082 = vpack.c.b16 %v1056, %v1055
      %v1083 = vpack.c.b16 %v1058, %v1057
      %v1084 = vpack.c.b16 %v1060, %v1059
      %v1085 = vpack.c.b16 %v1062, %v1061
      %v1086 = vpack.c.b16 %v1064, %v1063
      %v1087 = vpack.c.b16 %v1066, %v1065
      %v1088 = vpack.c.b16 %v1068, %v1067
      %v1089 = vpack.c.b16 %v1070, %v1069
      %v1090 = vpack.c.b16 %v1072, %v1071
      %v1091 = vpack.c.b16 %v1074, %v1073
      %v1092 = vpack.c.b16 %v1076, %v1075
      %v1097 = vunpack.c.l.b16 %v419
      %v1098 = vunpack.c.l.b16 %v420
      %v1099 = vunpack.c.l.b16 %v421
      %v1100 = vunpack.c.l.b16 %v422
      %v1101 = vpack.c.b16 %v1098, %v1097
      %v1102 = vpack.c.b16 %v1100, %v1099
      %v1106 = vsel %vm875, %v1077, 0
      %v1109 = vsel %vm875, %v1078, 0
      %v1112 = vsel %vm875, %v1079, 0
      %v1115 = vsel %vm875, %v1080, 0
      %v1118 = vsel %vm875, %v1081, 0
      %v1121 = vsel %vm875, %v1082, 0
      %v1124 = vsel %vm875, %v1083, 0
      %v1127 = vsel %vm875, %v1084, 0
      %v1130 = vsel %vm875, %v1085, 0
      %v1133 = vsel %vm875, %v1086, 0
      %v1136 = vsel %vm875, %v1087, 0
      %v1139 = vsel %vm875, %v1088, 0
      %v1142 = vsel %vm875, %v1089, 0
      %v1145 = vsel %vm875, %v1090, 0
      %v1148 = vsel %vm875, %v1091, 0
      %v1151 = vsel %vm875, %v1092, 0
      %1153 = vmatpush.bf16.msra.mxu0 0
      %1154 = vmatpush.bf16.msra.mxu0 0
      %1155 = vmatpush.bf16.msra.mxu0 0
      %1156 = vmatpush.bf16.msra.mxu0 0
      %1157 = vmatpush.bf16.msra.mxu0 0
      %1158 = vmatpush.bf16.msra.mxu0 0
      %1159 = vmatpush.bf16.msra.mxu0 %v1102
      %1160 = vmatpush.bf16.msra.mxu0 %v1101
      %1161 = vmatmul.bf16.gmra.mxu0 %v1106
      %v1162 = vpop.f32.mrf.mxu0
      %v1163 = vadd.f32 %v934, %v1162
      %v1164 = vpop.f32.mrf.mxu0
      %v1165 = vadd.f32 %v936, %v1164
      %1166 = vmatmul.bf16.gmra.mxu0 %v1109
      %v1167 = vpop.f32.mrf.mxu0
      %v1168 = vadd.f32 %v939, %v1167
      %v1169 = vpop.f32.mrf.mxu0
      %v1170 = vadd.f32 %v941, %v1169
      %1171 = vmatmul.bf16.gmra.mxu0 %v1112
      %v1172 = vpop.f32.mrf.mxu0
      %v1173 = vadd.f32 %v944, %v1172
      %v1174 = vpop.f32.mrf.mxu0
      %v1175 = vadd.f32 %v946, %v1174
      %1176 = vmatmul.bf16.gmra.mxu0 %v1115
      %v1177 = vpop.f32.mrf.mxu0
      %v1178 = vadd.f32 %v949, %v1177
      %v1179 = vpop.f32.mrf.mxu0
      %v1180 = vadd.f32 %v951, %v1179
      %1181 = vmatmul.bf16.gmra.mxu0 %v1118
      %v1182 = vpop.f32.mrf.mxu0
      %v1183 = vadd.f32 %v954, %v1182
      %v1184 = vpop.f32.mrf.mxu0
      %v1185 = vadd.f32 %v956, %v1184
      %1186 = vmatmul.bf16.gmra.mxu0 %v1121
      %v1187 = vpop.f32.mrf.mxu0
      %v1188 = vadd.f32 %v959, %v1187
      %v1189 = vpop.f32.mrf.mxu0
      %v1190 = vadd.f32 %v961, %v1189
      %1191 = vmatmul.bf16.gmra.mxu0 %v1124
      %v1192 = vpop.f32.mrf.mxu0
      %v1193 = vadd.f32 %v964, %v1192
      %v1194 = vpop.f32.mrf.mxu0
      %v1195 = vadd.f32 %v966, %v1194
      %1196 = vmatmul.bf16.gmra.mxu0 %v1127
      %v1197 = vpop.f32.mrf.mxu0
      %v1198 = vadd.f32 %v969, %v1197
      %v1199 = vpop.f32.mrf.mxu0
      %v1200 = vadd.f32 %v971, %v1199
      %1201 = vmatmul.bf16.gmra.mxu0 %v1130
      %v1202 = vpop.f32.mrf.mxu0
      %v1203 = vadd.f32 %v974, %v1202
      %v1204 = vpop.f32.mrf.mxu0
      %v1205 = vadd.f32 %v976, %v1204
      %1206 = vmatmul.bf16.gmra.mxu0 %v1133
      %v1207 = vpop.f32.mrf.mxu0
      %v1208 = vadd.f32 %v979, %v1207
      %v1209 = vpop.f32.mrf.mxu0
      %v1210 = vadd.f32 %v981, %v1209
      %1211 = vmatmul.bf16.gmra.mxu0 %v1136
      %v1212 = vpop.f32.mrf.mxu0
      %v1213 = vadd.f32 %v984, %v1212
      %v1214 = vpop.f32.mrf.mxu0
      %v1215 = vadd.f32 %v986, %v1214
      %1216 = vmatmul.bf16.gmra.mxu0 %v1139
      %v1217 = vpop.f32.mrf.mxu0
      %v1218 = vadd.f32 %v989, %v1217
      %v1219 = vpop.f32.mrf.mxu0
      %v1220 = vadd.f32 %v991, %v1219
      %1221 = vmatmul.bf16.gmra.mxu0 %v1142
      %v1222 = vpop.f32.mrf.mxu0
      %v1223 = vadd.f32 %v994, %v1222
      %v1224 = vpop.f32.mrf.mxu0
      %v1225 = vadd.f32 %v996, %v1224
      %1226 = vmatmul.bf16.gmra.mxu0 %v1145
      %v1227 = vpop.f32.mrf.mxu0
      %v1228 = vadd.f32 %v999, %v1227
      %v1229 = vpop.f32.mrf.mxu0
      %v1230 = vadd.f32 %v1001, %v1229
      %1231 = vmatmul.bf16.gmra.mxu0 %v1148
      %v1232 = vpop.f32.mrf.mxu0
      %v1233 = vadd.f32 %v1004, %v1232
      %v1234 = vpop.f32.mrf.mxu0
      %v1235 = vadd.f32 %v1006, %v1234
      %1236 = vmatmul.bf16.gmra.mxu0 %v1151
      %v1237 = vpop.f32.mrf.mxu0
      %v1238 = vadd.f32 %v1009, %v1237
      %v1239 = vpop.f32.mrf.mxu0
      %v1240 = vadd.f32 %v1011, %v1239
      %1241 = vdwg.mxu0
      %vm1258 = vcmask 1042432
      %vm1259 = vcmask 1046532
      %vm1260 = vmor %vm1258, %vm1259
      %v1261 = vrot.slane %v365, 5
      %v1262 = vrot.slane %v1261, 4
      %v1263 = vrot.slane %v366, 5
      %v1264 = vsel %vm1260, %v1262, %v1263
      %v1265 = vrot.slane %v1263, 4
      %v1266 = vrot.slane %v367, 5
      %v1267 = vsel %vm1260, %v1265, %v1266
      %v1268 = vrot.slane %v368, 5
      %v1269 = vrot.slane %v1268, 4
      %v1270 = vrot.slane %v369, 5
      %v1271 = vsel %vm1260, %v1269, %v1270
      %v1272 = vrot.slane %v1270, 4
      %v1273 = vrot.slane %v370, 5
      %v1274 = vsel %vm1260, %v1272, %v1273
      %v1275 = vrot.slane %v371, 5
      %v1276 = vrot.slane %v1275, 4
      %v1277 = vrot.slane %v372, 5
      %v1278 = vsel %vm1260, %v1276, %v1277
      %v1279 = vrot.slane %v1277, 4
      %v1280 = vrot.slane %v373, 5
      %v1281 = vsel %vm1260, %v1279, %v1280
      %v1282 = vrot.slane %v374, 5
      %v1283 = vrot.slane %v1282, 4
      %v1284 = vrot.slane %v375, 5
      %v1285 = vsel %vm1260, %v1283, %v1284
      %v1286 = vrot.slane %v1284, 4
      %v1287 = vrot.slane %v376, 5
      %v1288 = vsel %vm1260, %v1286, %v1287
      %v1289 = vrot.slane %v377, 5
      %v1290 = vrot.slane %v1289, 4
      %v1291 = vrot.slane %v378, 5
      %v1292 = vsel %vm1260, %v1290, %v1291
      %v1293 = vrot.slane %v1291, 4
      %v1294 = vrot.slane %v379, 5
      %v1295 = vsel %vm1260, %v1293, %v1294
      %v1296 = vrot.slane %v380, 5
      %v1297 = vrot.slane %v1296, 4
      %v1298 = vrot.slane %v381, 5
      %v1299 = vsel %vm1260, %v1297, %v1298
      %v1300 = vrot.slane %v1298, 4
      %v1301 = vrot.slane %v382, 5
      %v1302 = vsel %vm1260, %v1300, %v1301
      %v1303 = vrot.slane %v383, 5
      %v1304 = vrot.slane %v1303, 4
      %v1305 = vrot.slane %v384, 5
      %v1306 = vsel %vm1260, %v1304, %v1305
      %v1307 = vrot.slane %v1305, 4
      %v1308 = vrot.slane %v385, 5
      %v1309 = vsel %vm1260, %v1307, %v1308
      %v1310 = vrot.slane %v386, 5
      %v1311 = vrot.slane %v1310, 4
      %v1312 = vrot.slane %v387, 5
      %v1313 = vsel %vm1260, %v1311, %v1312
      %v1314 = vrot.slane %v1312, 4
      %v1315 = vrot.slane %v388, 5
      %v1316 = vsel %vm1260, %v1314, %v1315
      %v1317 = vrot.slane %v389, 5
      %v1318 = vrot.slane %v1317, 4
      %v1319 = vrot.slane %v390, 5
      %v1320 = vsel %vm1260, %v1318, %v1319
      %v1321 = vrot.slane %v1319, 4
      %v1322 = vrot.slane %v391, 5
      %v1323 = vsel %vm1260, %v1321, %v1322
      %v1324 = vrot.slane %v392, 5
      %v1325 = vrot.slane %v1324, 4
      %v1326 = vrot.slane %v393, 5
      %v1327 = vsel %vm1260, %v1325, %v1326
      %v1328 = vrot.slane %v1326, 4
      %v1329 = vrot.slane %v394, 5
      %v1330 = vsel %vm1260, %v1328, %v1329
      %v1331 = vrot.slane %v395, 5
      %v1332 = vrot.slane %v1331, 4
      %v1333 = vrot.slane %v396, 5
      %v1334 = vsel %vm1260, %v1332, %v1333
      %v1335 = vrot.slane %v1333, 4
      %v1336 = vrot.slane %v397, 5
      %v1337 = vsel %vm1260, %v1335, %v1336
      %v1338 = vrot.slane %v398, 5
      %v1339 = vrot.slane %v1338, 4
      %v1340 = vrot.slane %v399, 5
      %v1341 = vsel %vm1260, %v1339, %v1340
      %v1342 = vrot.slane %v1340, 4
      %v1343 = vrot.slane %v400, 5
      %v1344 = vsel %vm1260, %v1342, %v1343
      %v1345 = vrot.slane %v401, 5
      %v1346 = vrot.slane %v1345, 4
      %v1347 = vrot.slane %v402, 5
      %v1348 = vsel %vm1260, %v1346, %v1347
      %v1349 = vrot.slane %v1347, 4
      %v1350 = vrot.slane %v403, 5
      %v1351 = vsel %vm1260, %v1349, %v1350
      %v1352 = vrot.slane %v404, 5
      %v1353 = vrot.slane %v1352, 4
      %v1354 = vrot.slane %v405, 5
      %v1355 = vsel %vm1260, %v1353, %v1354
      %v1356 = vrot.slane %v1354, 4
      %v1357 = vrot.slane %v406, 5
      %v1358 = vsel %vm1260, %v1356, %v1357
      %v1359 = vrot.slane %v407, 5
      %v1360 = vrot.slane %v1359, 4
      %v1361 = vrot.slane %v408, 5
      %v1362 = vsel %vm1260, %v1360, %v1361
      %v1363 = vrot.slane %v1361, 4
      %v1364 = vrot.slane %v409, 5
      %v1365 = vsel %vm1260, %v1363, %v1364
      %v1366 = vrot.slane %v410, 5
      %v1367 = vrot.slane %v1366, 4
      %v1368 = vrot.slane %v411, 5
      %v1369 = vsel %vm1260, %v1367, %v1368
      %v1370 = vrot.slane %v1368, 4
      %v1371 = vrot.slane %v412, 5
      %v1372 = vsel %vm1260, %v1370, %v1371
      %s1373 = scalar_lea.vmem %s3, 32
      %v1374 = vld [vmem:[%s1373] sm:$0xf]
      %v1375 = vld [vmem:[%s1373 + $0x4] sm:$0xf]
      %v1376 = vld [vmem:[%s1373 + $0x8] sm:$0xf]
      %v1377 = vld [vmem:[%s1373 + $0xc] sm:$0xf]
      %v1378 = vunpack.c.l.b16 %v1264
      %v1379 = vunpack.c.l.b16 %v1267
      %v1380 = vunpack.c.l.b16 %v1271
      %v1381 = vunpack.c.l.b16 %v1274
      %v1382 = vunpack.c.l.b16 %v1278
      %v1383 = vunpack.c.l.b16 %v1281
      %v1384 = vunpack.c.l.b16 %v1285
      %v1385 = vunpack.c.l.b16 %v1288
      %v1386 = vunpack.c.l.b16 %v1292
      %v1387 = vunpack.c.l.b16 %v1295
      %v1388 = vunpack.c.l.b16 %v1299
      %v1389 = vunpack.c.l.b16 %v1302
      %v1390 = vunpack.c.l.b16 %v1306
      %v1391 = vunpack.c.l.b16 %v1309
      %v1392 = vunpack.c.l.b16 %v1313
      %v1393 = vunpack.c.l.b16 %v1316
      %v1394 = vunpack.c.l.b16 %v1320
      %v1395 = vunpack.c.l.b16 %v1323
      %v1396 = vunpack.c.l.b16 %v1327
      %v1397 = vunpack.c.l.b16 %v1330
      %v1398 = vunpack.c.l.b16 %v1334
      %v1399 = vunpack.c.l.b16 %v1337
      %v1400 = vunpack.c.l.b16 %v1341
      %v1401 = vunpack.c.l.b16 %v1344
      %v1402 = vunpack.c.l.b16 %v1348
      %v1403 = vunpack.c.l.b16 %v1351
      %v1404 = vunpack.c.l.b16 %v1355
      %v1405 = vunpack.c.l.b16 %v1358
      %v1406 = vunpack.c.l.b16 %v1362
      %v1407 = vunpack.c.l.b16 %v1365
      %v1408 = vunpack.c.l.b16 %v1369
      %v1409 = vunpack.c.l.b16 %v1372
      %v1410 = vpack.c.b16 %v1379, %v1378
      %v1411 = vpack.c.b16 %v1381, %v1380
      %v1412 = vpack.c.b16 %v1383, %v1382
      %v1413 = vpack.c.b16 %v1385, %v1384
      %v1414 = vpack.c.b16 %v1387, %v1386
      %v1415 = vpack.c.b16 %v1389, %v1388
      %v1416 = vpack.c.b16 %v1391, %v1390
      %v1417 = vpack.c.b16 %v1393, %v1392
      %v1418 = vpack.c.b16 %v1395, %v1394
      %v1419 = vpack.c.b16 %v1397, %v1396
      %v1420 = vpack.c.b16 %v1399, %v1398
      %v1421 = vpack.c.b16 %v1401, %v1400
      %v1422 = vpack.c.b16 %v1403, %v1402
      %v1423 = vpack.c.b16 %v1405, %v1404
      %v1424 = vpack.c.b16 %v1407, %v1406
      %v1425 = vpack.c.b16 %v1409, %v1408
      %v1430 = vunpack.c.l.b16 %v1374
      %v1431 = vunpack.c.l.b16 %v1375
      %v1432 = vunpack.c.l.b16 %v1376
      %v1433 = vunpack.c.l.b16 %v1377
      %v1434 = vpack.c.b16 %v1431, %v1430
      %v1435 = vpack.c.b16 %v1433, %v1432
      %v1439 = vsel %vm875, %v1410, 0
      %v1442 = vsel %vm875, %v1411, 0
      %v1445 = vsel %vm875, %v1412, 0
      %v1448 = vsel %vm875, %v1413, 0
      %v1451 = vsel %vm875, %v1414, 0
      %v1454 = vsel %vm875, %v1415, 0
      %v1457 = vsel %vm875, %v1416, 0
      %v1460 = vsel %vm875, %v1417, 0
      %v1463 = vsel %vm875, %v1418, 0
      %v1466 = vsel %vm875, %v1419, 0
      %v1469 = vsel %vm875, %v1420, 0
      %v1472 = vsel %vm875, %v1421, 0
      %v1475 = vsel %vm875, %v1422, 0
      %v1478 = vsel %vm875, %v1423, 0
      %v1481 = vsel %vm875, %v1424, 0
      %v1484 = vsel %vm875, %v1425, 0
      %1486 = vmatpush.bf16.msra.mxu0 0
      %1487 = vmatpush.bf16.msra.mxu0 0
      %1488 = vmatpush.bf16.msra.mxu0 0
      %1489 = vmatpush.bf16.msra.mxu0 0
      %1490 = vmatpush.bf16.msra.mxu0 0
      %1491 = vmatpush.bf16.msra.mxu0 0
      %1492 = vmatpush.bf16.msra.mxu0 %v1435
      %1493 = vmatpush.bf16.msra.mxu0 %v1434
      %1494 = vmatmul.bf16.gmra.mxu0 %v1439
      %v1495 = vpop.f32.mrf.mxu0
      %v1496 = vadd.f32 0.0, %v1495
      %v1497 = vpop.f32.mrf.mxu0
      %v1498 = vadd.f32 0.0, %v1497
      %1499 = vmatmul.bf16.gmra.mxu0 %v1442
      %v1500 = vpop.f32.mrf.mxu0
      %v1501 = vadd.f32 0.0, %v1500
      %v1502 = vpop.f32.mrf.mxu0
      %v1503 = vadd.f32 0.0, %v1502
      %1504 = vmatmul.bf16.gmra.mxu0 %v1445
      %v1505 = vpop.f32.mrf.mxu0
      %v1506 = vadd.f32 0.0, %v1505
      %v1507 = vpop.f32.mrf.mxu0
      %v1508 = vadd.f32 0.0, %v1507
      %1509 = vmatmul.bf16.gmra.mxu0 %v1448
      %v1510 = vpop.f32.mrf.mxu0
      %v1511 = vadd.f32 0.0, %v1510
      %v1512 = vpop.f32.mrf.mxu0
      %v1513 = vadd.f32 0.0, %v1512
      %1514 = vmatmul.bf16.gmra.mxu0 %v1451
      %v1515 = vpop.f32.mrf.mxu0
      %v1516 = vadd.f32 0.0, %v1515
      %v1517 = vpop.f32.mrf.mxu0
      %v1518 = vadd.f32 0.0, %v1517
      %1519 = vmatmul.bf16.gmra.mxu0 %v1454
      %v1520 = vpop.f32.mrf.mxu0
      %v1521 = vadd.f32 0.0, %v1520
      %v1522 = vpop.f32.mrf.mxu0
      %v1523 = vadd.f32 0.0, %v1522
      %1524 = vmatmul.bf16.gmra.mxu0 %v1457
      %v1525 = vpop.f32.mrf.mxu0
      %v1526 = vadd.f32 0.0, %v1525
      %v1527 = vpop.f32.mrf.mxu0
      %v1528 = vadd.f32 0.0, %v1527
      %1529 = vmatmul.bf16.gmra.mxu0 %v1460
      %v1530 = vpop.f32.mrf.mxu0
      %v1531 = vadd.f32 0.0, %v1530
      %v1532 = vpop.f32.mrf.mxu0
      %v1533 = vadd.f32 0.0, %v1532
      %1534 = vmatmul.bf16.gmra.mxu0 %v1463
      %v1535 = vpop.f32.mrf.mxu0
      %v1536 = vadd.f32 0.0, %v1535
      %v1537 = vpop.f32.mrf.mxu0
      %v1538 = vadd.f32 0.0, %v1537
      %1539 = vmatmul.bf16.gmra.mxu0 %v1466
      %v1540 = vpop.f32.mrf.mxu0
      %v1541 = vadd.f32 0.0, %v1540
      %v1542 = vpop.f32.mrf.mxu0
      %v1543 = vadd.f32 0.0, %v1542
      %1544 = vmatmul.bf16.gmra.mxu0 %v1469
      %v1545 = vpop.f32.mrf.mxu0
      %v1546 = vadd.f32 0.0, %v1545
      %v1547 = vpop.f32.mrf.mxu0
      %v1548 = vadd.f32 0.0, %v1547
      %1549 = vmatmul.bf16.gmra.mxu0 %v1472
      %v1550 = vpop.f32.mrf.mxu0
      %v1551 = vadd.f32 0.0, %v1550
      %v1552 = vpop.f32.mrf.mxu0
      %v1553 = vadd.f32 0.0, %v1552
      %1554 = vmatmul.bf16.gmra.mxu0 %v1475
      %v1555 = vpop.f32.mrf.mxu0
      %v1556 = vadd.f32 0.0, %v1555
      %v1557 = vpop.f32.mrf.mxu0
      %v1558 = vadd.f32 0.0, %v1557
      %1559 = vmatmul.bf16.gmra.mxu0 %v1478
      %v1560 = vpop.f32.mrf.mxu0
      %v1561 = vadd.f32 0.0, %v1560
      %v1562 = vpop.f32.mrf.mxu0
      %v1563 = vadd.f32 0.0, %v1562
      %1564 = vmatmul.bf16.gmra.mxu0 %v1481
      %v1565 = vpop.f32.mrf.mxu0
      %v1566 = vadd.f32 0.0, %v1565
      %v1567 = vpop.f32.mrf.mxu0
      %v1568 = vadd.f32 0.0, %v1567
      %1569 = vmatmul.bf16.gmra.mxu0 %v1484
      %v1570 = vpop.f32.mrf.mxu0
      %v1571 = vadd.f32 0.0, %v1570
      %v1572 = vpop.f32.mrf.mxu0
      %v1573 = vadd.f32 0.0, %v1572
      %1574 = vdwg.mxu0
      %v1575 = vadd.f32 %v1163, %v1496
      %v1576 = vadd.f32 %v1165, %v1498
      %v1577 = vadd.f32 %v1168, %v1501
      %v1578 = vadd.f32 %v1170, %v1503
      %v1579 = vadd.f32 %v1173, %v1506
      %v1580 = vadd.f32 %v1175, %v1508
      %v1581 = vadd.f32 %v1178, %v1511
      %v1582 = vadd.f32 %v1180, %v1513
      %v1583 = vadd.f32 %v1183, %v1516
      %v1584 = vadd.f32 %v1185, %v1518
      %v1585 = vadd.f32 %v1188, %v1521
      %v1586 = vadd.f32 %v1190, %v1523
      %v1587 = vadd.f32 %v1193, %v1526
      %v1588 = vadd.f32 %v1195, %v1528
      %v1589 = vadd.f32 %v1198, %v1531
      %v1590 = vadd.f32 %v1200, %v1533
      %v1591 = vadd.f32 %v1203, %v1536
      %v1592 = vadd.f32 %v1205, %v1538
      %v1593 = vadd.f32 %v1208, %v1541
      %v1594 = vadd.f32 %v1210, %v1543
      %v1595 = vadd.f32 %v1213, %v1546
      %v1596 = vadd.f32 %v1215, %v1548
      %v1597 = vadd.f32 %v1218, %v1551
      %v1598 = vadd.f32 %v1220, %v1553
      %v1599 = vadd.f32 %v1223, %v1556
      %v1600 = vadd.f32 %v1225, %v1558
      %v1601 = vadd.f32 %v1228, %v1561
      %v1602 = vadd.f32 %v1230, %v1563
      %v1603 = vadd.f32 %v1233, %v1566
      %v1604 = vadd.f32 %v1235, %v1568
      %v1605 = vadd.f32 %v1238, %v1571
      %v1606 = vadd.f32 %v1240, %v1573
      %s1607 = scalar_lea.vmem %s3, 48
      %v1608 = vld [vmem:[%s1607] sm:$0xf]
      %v1609 = vld [vmem:[%s1607 + $0x4] sm:$0xf]
      %v1610 = vld [vmem:[%s1607 + $0x8] sm:$0xf]
      %v1611 = vld [vmem:[%s1607 + $0xc] sm:$0xf]
      %v1614 = vunpack.c.l.b16 %v413
      %v1615 = vunpack.c.l.b16 %v414
      %v1616 = vpack.c.b16 %v1615, %v1614
      %v1621 = vunpack.c.l.b16 %v1608
      %v1622 = vunpack.c.l.b16 %v1609
      %v1623 = vunpack.c.l.b16 %v1610
      %v1624 = vunpack.c.l.b16 %v1611
      %v1625 = vpack.c.b16 %v1622, %v1621
      %v1626 = vpack.c.b16 %v1624, %v1623
      %v1630 = vsel %vm875, %v1616, 0
      %1632 = vmatpush.bf16.msra.mxu0 0
      %1633 = vmatpush.bf16.msra.mxu0 0
      %1634 = vmatpush.bf16.msra.mxu0 0
      %1635 = vmatpush.bf16.msra.mxu0 0
      %1636 = vmatpush.bf16.msra.mxu0 0
      %1637 = vmatpush.bf16.msra.mxu0 0
      %1638 = vmatpush.bf16.msra.mxu0 %v1626
      %1639 = vmatpush.bf16.msra.mxu0 %v1625
      %1640 = vmatmul.bf16.gmra.mxu0 %v1109
      %v1641 = vpop.f32.mrf.mxu0
      %v1642 = vadd.f32 0.0, %v1641
      %v1643 = vpop.f32.mrf.mxu0
      %v1644 = vadd.f32 0.0, %v1643
      %1645 = vmatmul.bf16.gmra.mxu0 %v1112
      %v1646 = vpop.f32.mrf.mxu0
      %v1647 = vadd.f32 0.0, %v1646
      %v1648 = vpop.f32.mrf.mxu0
      %v1649 = vadd.f32 0.0, %v1648
      %1650 = vmatmul.bf16.gmra.mxu0 %v1115
      %v1651 = vpop.f32.mrf.mxu0
      %v1652 = vadd.f32 0.0, %v1651
      %v1653 = vpop.f32.mrf.mxu0
      %v1654 = vadd.f32 0.0, %v1653
      %1655 = vmatmul.bf16.gmra.mxu0 %v1118
      %v1656 = vpop.f32.mrf.mxu0
      %v1657 = vadd.f32 0.0, %v1656
      %v1658 = vpop.f32.mrf.mxu0
      %v1659 = vadd.f32 0.0, %v1658
      %1660 = vmatmul.bf16.gmra.mxu0 %v1121
      %v1661 = vpop.f32.mrf.mxu0
      %v1662 = vadd.f32 0.0, %v1661
      %v1663 = vpop.f32.mrf.mxu0
      %v1664 = vadd.f32 0.0, %v1663
      %1665 = vmatmul.bf16.gmra.mxu0 %v1124
      %v1666 = vpop.f32.mrf.mxu0
      %v1667 = vadd.f32 0.0, %v1666
      %v1668 = vpop.f32.mrf.mxu0
      %v1669 = vadd.f32 0.0, %v1668
      %1670 = vmatmul.bf16.gmra.mxu0 %v1127
      %v1671 = vpop.f32.mrf.mxu0
      %v1672 = vadd.f32 0.0, %v1671
      %v1673 = vpop.f32.mrf.mxu0
      %v1674 = vadd.f32 0.0, %v1673
      %1675 = vmatmul.bf16.gmra.mxu0 %v1130
      %v1676 = vpop.f32.mrf.mxu0
      %v1677 = vadd.f32 0.0, %v1676
      %v1678 = vpop.f32.mrf.mxu0
      %v1679 = vadd.f32 0.0, %v1678
      %1680 = vmatmul.bf16.gmra.mxu0 %v1133
      %v1681 = vpop.f32.mrf.mxu0
      %v1682 = vadd.f32 0.0, %v1681
      %v1683 = vpop.f32.mrf.mxu0
      %v1684 = vadd.f32 0.0, %v1683
      %1685 = vmatmul.bf16.gmra.mxu0 %v1136
      %v1686 = vpop.f32.mrf.mxu0
      %v1687 = vadd.f32 0.0, %v1686
      %v1688 = vpop.f32.mrf.mxu0
      %v1689 = vadd.f32 0.0, %v1688
      %1690 = vmatmul.bf16.gmra.mxu0 %v1139
      %v1691 = vpop.f32.mrf.mxu0
      %v1692 = vadd.f32 0.0, %v1691
      %v1693 = vpop.f32.mrf.mxu0
      %v1694 = vadd.f32 0.0, %v1693
      %1695 = vmatmul.bf16.gmra.mxu0 %v1142
      %v1696 = vpop.f32.mrf.mxu0
      %v1697 = vadd.f32 0.0, %v1696
      %v1698 = vpop.f32.mrf.mxu0
      %v1699 = vadd.f32 0.0, %v1698
      %1700 = vmatmul.bf16.gmra.mxu0 %v1145
      %v1701 = vpop.f32.mrf.mxu0
      %v1702 = vadd.f32 0.0, %v1701
      %v1703 = vpop.f32.mrf.mxu0
      %v1704 = vadd.f32 0.0, %v1703
      %1705 = vmatmul.bf16.gmra.mxu0 %v1148
      %v1706 = vpop.f32.mrf.mxu0
      %v1707 = vadd.f32 0.0, %v1706
      %v1708 = vpop.f32.mrf.mxu0
      %v1709 = vadd.f32 0.0, %v1708
      %1710 = vmatmul.bf16.gmra.mxu0 %v1151
      %v1711 = vpop.f32.mrf.mxu0
      %v1712 = vadd.f32 0.0, %v1711
      %v1713 = vpop.f32.mrf.mxu0
      %v1714 = vadd.f32 0.0, %v1713
      %1715 = vmatmul.bf16.gmra.mxu0 %v1630
      %v1716 = vpop.f32.mrf.mxu0
      %v1717 = vadd.f32 0.0, %v1716
      %v1718 = vpop.f32.mrf.mxu0
      %v1719 = vadd.f32 0.0, %v1718
      %1720 = vdwg.mxu0
      %v1721 = vadd.f32 %v1575, %v1642
      %v1722 = vadd.f32 %v1576, %v1644
      %v1723 = vadd.f32 %v1577, %v1647
      %v1724 = vadd.f32 %v1578, %v1649
      %v1725 = vadd.f32 %v1579, %v1652
      %v1726 = vadd.f32 %v1580, %v1654
      %v1727 = vadd.f32 %v1581, %v1657
      %v1728 = vadd.f32 %v1582, %v1659
      %v1729 = vadd.f32 %v1583, %v1662
      %v1730 = vadd.f32 %v1584, %v1664
      %v1731 = vadd.f32 %v1585, %v1667
      %v1732 = vadd.f32 %v1586, %v1669
      %v1733 = vadd.f32 %v1587, %v1672
      %v1734 = vadd.f32 %v1588, %v1674
      %v1735 = vadd.f32 %v1589, %v1677
      %v1736 = vadd.f32 %v1590, %v1679
      %v1737 = vadd.f32 %v1591, %v1682
      %v1738 = vadd.f32 %v1592, %v1684
      %v1739 = vadd.f32 %v1593, %v1687
      %v1740 = vadd.f32 %v1594, %v1689
      %v1741 = vadd.f32 %v1595, %v1692
      %v1742 = vadd.f32 %v1596, %v1694
      %v1743 = vadd.f32 %v1597, %v1697
      %v1744 = vadd.f32 %v1598, %v1699
      %v1745 = vadd.f32 %v1599, %v1702
      %v1746 = vadd.f32 %v1600, %v1704
      %v1747 = vadd.f32 %v1601, %v1707
      %v1748 = vadd.f32 %v1602, %v1709
      %v1749 = vadd.f32 %v1603, %v1712
      %v1750 = vadd.f32 %v1604, %v1714
      %v1751 = vadd.f32 %v1605, %v1717
      %v1752 = vadd.f32 %v1606, %v1719
      %v1754 = vshrl.u32 %v413, 16
      %v1756 = vrot.slane %v1754, 4
      %v1757 = vshll.u32 %v413, 16
      %v1759 = vrot.slane %v1757, 5
      %v1760 = vor.u32 %v1756, %v1759
      %v1761 = vrot.slane %v1760, 4
      %v1763 = vshll.u32 %v414, 16
      %v1765 = vrot.slane %v1763, 5
      %v1766 = vsel %vm425, %v1761, %v1765
      %v1767 = vshrl.u32 %v414, 16
      %v1769 = vrot.slane %v1767, 4
      %v1770 = vor.u32 %v1769, %v1765
      %v1771 = vrot.slane %v1770, 4
      %v1773 = vshll.u32 %v415, 16
      %v1775 = vrot.slane %v1773, 5
      %v1776 = vsel %vm425, %v1771, %v1775
      %s1777 = scalar_lea.vmem %s3, 64
      %v1778 = vld [vmem:[%s1777] sm:$0xf]
      %v1779 = vld [vmem:[%s1777 + $0x4] sm:$0xf]
      %v1780 = vld [vmem:[%s1777 + $0x8] sm:$0xf]
      %v1781 = vld [vmem:[%s1777 + $0xc] sm:$0xf]
      %v1782 = vunpack.c.l.b16 %v1766
      %v1783 = vunpack.c.l.b16 %v1776
      %v1784 = vpack.c.b16 %v1783, %v1782
      %v1789 = vunpack.c.l.b16 %v1778
      %v1790 = vunpack.c.l.b16 %v1779
      %v1791 = vunpack.c.l.b16 %v1780
      %v1792 = vunpack.c.l.b16 %v1781
      %v1793 = vpack.c.b16 %v1790, %v1789
      %v1794 = vpack.c.b16 %v1792, %v1791
      %v1798 = vsel %vm875, %v1784, 0
      %1800 = vmatpush.bf16.msra.mxu0 0
      %1801 = vmatpush.bf16.msra.mxu0 0
      %1802 = vmatpush.bf16.msra.mxu0 0
      %1803 = vmatpush.bf16.msra.mxu0 0
      %1804 = vmatpush.bf16.msra.mxu0 0
      %1805 = vmatpush.bf16.msra.mxu0 0
      %1806 = vmatpush.bf16.msra.mxu0 %v1794
      %1807 = vmatpush.bf16.msra.mxu0 %v1793
      %1808 = vmatmul.bf16.gmra.mxu0 %v880
      %v1809 = vpop.f32.mrf.mxu0
      %v1810 = vadd.f32 0.0, %v1809
      %v1811 = vpop.f32.mrf.mxu0
      %v1812 = vadd.f32 0.0, %v1811
      %1813 = vmatmul.bf16.gmra.mxu0 %v883
      %v1814 = vpop.f32.mrf.mxu0
      %v1815 = vadd.f32 0.0, %v1814
      %v1816 = vpop.f32.mrf.mxu0
      %v1817 = vadd.f32 0.0, %v1816
      %1818 = vmatmul.bf16.gmra.mxu0 %v886
      %v1819 = vpop.f32.mrf.mxu0
      %v1820 = vadd.f32 0.0, %v1819
      %v1821 = vpop.f32.mrf.mxu0
      %v1822 = vadd.f32 0.0, %v1821
      %1823 = vmatmul.bf16.gmra.mxu0 %v889
      %v1824 = vpop.f32.mrf.mxu0
      %v1825 = vadd.f32 0.0, %v1824
      %v1826 = vpop.f32.mrf.mxu0
      %v1827 = vadd.f32 0.0, %v1826
      %1828 = vmatmul.bf16.gmra.mxu0 %v892
      %v1829 = vpop.f32.mrf.mxu0
      %v1830 = vadd.f32 0.0, %v1829
      %v1831 = vpop.f32.mrf.mxu0
      %v1832 = vadd.f32 0.0, %v1831
      %1833 = vmatmul.bf16.gmra.mxu0 %v895
      %v1834 = vpop.f32.mrf.mxu0
      %v1835 = vadd.f32 0.0, %v1834
      %v1836 = vpop.f32.mrf.mxu0
      %v1837 = vadd.f32 0.0, %v1836
      %1838 = vmatmul.bf16.gmra.mxu0 %v898
      %v1839 = vpop.f32.mrf.mxu0
      %v1840 = vadd.f32 0.0, %v1839
      %v1841 = vpop.f32.mrf.mxu0
      %v1842 = vadd.f32 0.0, %v1841
      %1843 = vmatmul.bf16.gmra.mxu0 %v901
      %v1844 = vpop.f32.mrf.mxu0
      %v1845 = vadd.f32 0.0, %v1844
      %v1846 = vpop.f32.mrf.mxu0
      %v1847 = vadd.f32 0.0, %v1846
      %1848 = vmatmul.bf16.gmra.mxu0 %v904
      %v1849 = vpop.f32.mrf.mxu0
      %v1850 = vadd.f32 0.0, %v1849
      %v1851 = vpop.f32.mrf.mxu0
      %v1852 = vadd.f32 0.0, %v1851
      %1853 = vmatmul.bf16.gmra.mxu0 %v907
      %v1854 = vpop.f32.mrf.mxu0
      %v1855 = vadd.f32 0.0, %v1854
      %v1856 = vpop.f32.mrf.mxu0
      %v1857 = vadd.f32 0.0, %v1856
      %1858 = vmatmul.bf16.gmra.mxu0 %v910
      %v1859 = vpop.f32.mrf.mxu0
      %v1860 = vadd.f32 0.0, %v1859
      %v1861 = vpop.f32.mrf.mxu0
      %v1862 = vadd.f32 0.0, %v1861
      %1863 = vmatmul.bf16.gmra.mxu0 %v913
      %v1864 = vpop.f32.mrf.mxu0
      %v1865 = vadd.f32 0.0, %v1864
      %v1866 = vpop.f32.mrf.mxu0
      %v1867 = vadd.f32 0.0, %v1866
      %1868 = vmatmul.bf16.gmra.mxu0 %v916
      %v1869 = vpop.f32.mrf.mxu0
      %v1870 = vadd.f32 0.0, %v1869
      %v1871 = vpop.f32.mrf.mxu0
      %v1872 = vadd.f32 0.0, %v1871
      %1873 = vmatmul.bf16.gmra.mxu0 %v919
      %v1874 = vpop.f32.mrf.mxu0
      %v1875 = vadd.f32 0.0, %v1874
      %v1876 = vpop.f32.mrf.mxu0
      %v1877 = vadd.f32 0.0, %v1876
      %1878 = vmatmul.bf16.gmra.mxu0 %v922
      %v1879 = vpop.f32.mrf.mxu0
      %v1880 = vadd.f32 0.0, %v1879
      %v1881 = vpop.f32.mrf.mxu0
      %v1882 = vadd.f32 0.0, %v1881
      %1883 = vmatmul.bf16.gmra.mxu0 %v1798
      %v1884 = vpop.f32.mrf.mxu0
      %v1885 = vadd.f32 0.0, %v1884
      %v1886 = vpop.f32.mrf.mxu0
      %v1887 = vadd.f32 0.0, %v1886
      %1888 = vdwg.mxu0
      %v1889 = vadd.f32 %v1721, %v1810
      %v1890 = vadd.f32 %v1722, %v1812
      %v1891 = vadd.f32 %v1723, %v1815
      %v1892 = vadd.f32 %v1724, %v1817
      %v1893 = vadd.f32 %v1725, %v1820
      %v1894 = vadd.f32 %v1726, %v1822
      %v1895 = vadd.f32 %v1727, %v1825
      %v1896 = vadd.f32 %v1728, %v1827
      %v1897 = vadd.f32 %v1729, %v1830
      %v1898 = vadd.f32 %v1730, %v1832
      %v1899 = vadd.f32 %v1731, %v1835
      %v1900 = vadd.f32 %v1732, %v1837
      %v1901 = vadd.f32 %v1733, %v1840
      %v1902 = vadd.f32 %v1734, %v1842
      %v1903 = vadd.f32 %v1735, %v1845
      %v1904 = vadd.f32 %v1736, %v1847
      %v1905 = vadd.f32 %v1737, %v1850
      %v1906 = vadd.f32 %v1738, %v1852
      %v1907 = vadd.f32 %v1739, %v1855
      %v1908 = vadd.f32 %v1740, %v1857
      %v1909 = vadd.f32 %v1741, %v1860
      %v1910 = vadd.f32 %v1742, %v1862
      %v1911 = vadd.f32 %v1743, %v1865
      %v1912 = vadd.f32 %v1744, %v1867
      %v1913 = vadd.f32 %v1745, %v1870
      %v1914 = vadd.f32 %v1746, %v1872
      %v1915 = vadd.f32 %v1747, %v1875
      %v1916 = vadd.f32 %v1748, %v1877
      %v1917 = vadd.f32 %v1749, %v1880
      %v1918 = vadd.f32 %v1750, %v1882
      %v1919 = vadd.f32 %v1751, %v1885
      %v1920 = vadd.f32 %v1752, %v1887
      %v1922 = vrot.slane %v413, 5
      %v1923 = vrot.slane %v1922, 4
      %v1924 = vrot.slane %v414, 5
      %v1925 = vsel %vm1260, %v1923, %v1924
      %v1926 = vrot.slane %v1924, 4
      %v1927 = vrot.slane %v415, 5
      %v1928 = vsel %vm1260, %v1926, %v1927
      %s1929 = scalar_lea.vmem %s3, 80
      %v1930 = vld [vmem:[%s1929] sm:$0xf]
      %v1931 = vld [vmem:[%s1929 + $0x4] sm:$0xf]
      %v1932 = vld [vmem:[%s1929 + $0x8] sm:$0xf]
      %v1933 = vld [vmem:[%s1929 + $0xc] sm:$0xf]
      %v1934 = vunpack.c.l.b16 %v1925
      %v1935 = vunpack.c.l.b16 %v1928
      %v1936 = vpack.c.b16 %v1935, %v1934
      %v1941 = vunpack.c.l.b16 %v1930
      %v1942 = vunpack.c.l.b16 %v1931
      %v1943 = vunpack.c.l.b16 %v1932
      %v1944 = vunpack.c.l.b16 %v1933
      %v1945 = vpack.c.b16 %v1942, %v1941
      %v1946 = vpack.c.b16 %v1944, %v1943
      %v1950 = vsel %vm875, %v1936, 0
      %1952 = vmatpush.bf16.msra.mxu0 0
      %1953 = vmatpush.bf16.msra.mxu0 0
      %1954 = vmatpush.bf16.msra.mxu0 0
      %1955 = vmatpush.bf16.msra.mxu0 0
      %1956 = vmatpush.bf16.msra.mxu0 0
      %1957 = vmatpush.bf16.msra.mxu0 0
      %1958 = vmatpush.bf16.msra.mxu0 %v1946
      %1959 = vmatpush.bf16.msra.mxu0 %v1945
      %1960 = vmatmul.bf16.gmra.mxu0 %v1442
      %v1961 = vpop.f32.mrf.mxu0
      %v1962 = vadd.f32 0.0, %v1961
      %v1963 = vpop.f32.mrf.mxu0
      %v1964 = vadd.f32 0.0, %v1963
      %1965 = vmatmul.bf16.gmra.mxu0 %v1445
      %v1966 = vpop.f32.mrf.mxu0
      %v1967 = vadd.f32 0.0, %v1966
      %v1968 = vpop.f32.mrf.mxu0
      %v1969 = vadd.f32 0.0, %v1968
      %1970 = vmatmul.bf16.gmra.mxu0 %v1448
      %v1971 = vpop.f32.mrf.mxu0
      %v1972 = vadd.f32 0.0, %v1971
      %v1973 = vpop.f32.mrf.mxu0
      %v1974 = vadd.f32 0.0, %v1973
      %1975 = vmatmul.bf16.gmra.mxu0 %v1451
      %v1976 = vpop.f32.mrf.mxu0
      %v1977 = vadd.f32 0.0, %v1976
      %v1978 = vpop.f32.mrf.mxu0
      %v1979 = vadd.f32 0.0, %v1978
      %1980 = vmatmul.bf16.gmra.mxu0 %v1454
      %v1981 = vpop.f32.mrf.mxu0
      %v1982 = vadd.f32 0.0, %v1981
      %v1983 = vpop.f32.mrf.mxu0
      %v1984 = vadd.f32 0.0, %v1983
      %1985 = vmatmul.bf16.gmra.mxu0 %v1457
      %v1986 = vpop.f32.mrf.mxu0
      %v1987 = vadd.f32 0.0, %v1986
      %v1988 = vpop.f32.mrf.mxu0
      %v1989 = vadd.f32 0.0, %v1988
      %1990 = vmatmul.bf16.gmra.mxu0 %v1460
      %v1991 = vpop.f32.mrf.mxu0
      %v1992 = vadd.f32 0.0, %v1991
      %v1993 = vpop.f32.mrf.mxu0
      %v1994 = vadd.f32 0.0, %v1993
      %1995 = vmatmul.bf16.gmra.mxu0 %v1463
      %v1996 = vpop.f32.mrf.mxu0
      %v1997 = vadd.f32 0.0, %v1996
      %v1998 = vpop.f32.mrf.mxu0
      %v1999 = vadd.f32 0.0, %v1998
      %2000 = vmatmul.bf16.gmra.mxu0 %v1466
      %v2001 = vpop.f32.mrf.mxu0
      %v2002 = vadd.f32 0.0, %v2001
      %v2003 = vpop.f32.mrf.mxu0
      %v2004 = vadd.f32 0.0, %v2003
      %2005 = vmatmul.bf16.gmra.mxu0 %v1469
      %v2006 = vpop.f32.mrf.mxu0
      %v2007 = vadd.f32 0.0, %v2006
      %v2008 = vpop.f32.mrf.mxu0
      %v2009 = vadd.f32 0.0, %v2008
      %2010 = vmatmul.bf16.gmra.mxu0 %v1472
      %v2011 = vpop.f32.mrf.mxu0
      %v2012 = vadd.f32 0.0, %v2011
      %v2013 = vpop.f32.mrf.mxu0
      %v2014 = vadd.f32 0.0, %v2013
      %2015 = vmatmul.bf16.gmra.mxu0 %v1475
      %v2016 = vpop.f32.mrf.mxu0
      %v2017 = vadd.f32 0.0, %v2016
      %v2018 = vpop.f32.mrf.mxu0
      %v2019 = vadd.f32 0.0, %v2018
      %2020 = vmatmul.bf16.gmra.mxu0 %v1478
      %v2021 = vpop.f32.mrf.mxu0
      %v2022 = vadd.f32 0.0, %v2021
      %v2023 = vpop.f32.mrf.mxu0
      %v2024 = vadd.f32 0.0, %v2023
      %2025 = vmatmul.bf16.gmra.mxu0 %v1481
      %v2026 = vpop.f32.mrf.mxu0
      %v2027 = vadd.f32 0.0, %v2026
      %v2028 = vpop.f32.mrf.mxu0
      %v2029 = vadd.f32 0.0, %v2028
      %2030 = vmatmul.bf16.gmra.mxu0 %v1484
      %v2031 = vpop.f32.mrf.mxu0
      %v2032 = vadd.f32 0.0, %v2031
      %v2033 = vpop.f32.mrf.mxu0
      %v2034 = vadd.f32 0.0, %v2033
      %2035 = vmatmul.bf16.gmra.mxu0 %v1950
      %v2036 = vpop.f32.mrf.mxu0
      %v2037 = vadd.f32 0.0, %v2036
      %v2038 = vpop.f32.mrf.mxu0
      %v2039 = vadd.f32 0.0, %v2038
      %2040 = vdwg.mxu0
      %v2041 = vadd.f32 %v1889, %v1962
      %v2042 = vadd.f32 %v1890, %v1964
      %v2043 = vadd.f32 %v1891, %v1967
      %v2044 = vadd.f32 %v1892, %v1969
      %v2045 = vadd.f32 %v1893, %v1972
      %v2046 = vadd.f32 %v1894, %v1974
      %v2047 = vadd.f32 %v1895, %v1977
      %v2048 = vadd.f32 %v1896, %v1979
      %v2049 = vadd.f32 %v1897, %v1982
      %v2050 = vadd.f32 %v1898, %v1984
      %v2051 = vadd.f32 %v1899, %v1987
      %v2052 = vadd.f32 %v1900, %v1989
      %v2053 = vadd.f32 %v1901, %v1992
      %v2054 = vadd.f32 %v1902, %v1994
      %v2055 = vadd.f32 %v1903, %v1997
      %v2056 = vadd.f32 %v1904, %v1999
      %v2057 = vadd.f32 %v1905, %v2002
      %v2058 = vadd.f32 %v1906, %v2004
      %v2059 = vadd.f32 %v1907, %v2007
      %v2060 = vadd.f32 %v1908, %v2009
      %v2061 = vadd.f32 %v1909, %v2012
      %v2062 = vadd.f32 %v1910, %v2014
      %v2063 = vadd.f32 %v1911, %v2017
      %v2064 = vadd.f32 %v1912, %v2019
      %v2065 = vadd.f32 %v1913, %v2022
      %v2066 = vadd.f32 %v1914, %v2024
      %v2067 = vadd.f32 %v1915, %v2027
      %v2068 = vadd.f32 %v1916, %v2029
      %v2069 = vadd.f32 %v1917, %v2032
      %v2070 = vadd.f32 %v1918, %v2034
      %v2071 = vadd.f32 %v1919, %v2037
      %v2072 = vadd.f32 %v1920, %v2039
      %s2073 = scalar_lea.vmem %s3, 96
      %v2074 = vld [vmem:[%s2073] sm:$0xf]
      %v2075 = vld [vmem:[%s2073 + $0x4] sm:$0xf]
      %v2076 = vld [vmem:[%s2073 + $0x8] sm:$0xf]
      %v2077 = vld [vmem:[%s2073 + $0xc] sm:$0xf]
      %v2080 = vunpack.c.l.b16 %v416
      %v2081 = vunpack.c.l.b16 %v417
      %v2082 = vpack.c.b16 %v2081, %v2080
      %v2087 = vunpack.c.l.b16 %v2074
      %v2088 = vunpack.c.l.b16 %v2075
      %v2089 = vunpack.c.l.b16 %v2076
      %v2090 = vunpack.c.l.b16 %v2077
      %v2091 = vpack.c.b16 %v2088, %v2087
      %v2092 = vpack.c.b16 %v2090, %v2089
      %v2096 = vsel %vm875, %v2082, 0
      %2098 = vmatpush.bf16.msra.mxu0 0
      %2099 = vmatpush.bf16.msra.mxu0 0
      %2100 = vmatpush.bf16.msra.mxu0 0
      %2101 = vmatpush.bf16.msra.mxu0 0
      %2102 = vmatpush.bf16.msra.mxu0 0
      %2103 = vmatpush.bf16.msra.mxu0 0
      %2104 = vmatpush.bf16.msra.mxu0 %v2092
      %2105 = vmatpush.bf16.msra.mxu0 %v2091
      %2106 = vmatmul.bf16.gmra.mxu0 %v1112
      %v2107 = vpop.f32.mrf.mxu0
      %v2108 = vadd.f32 0.0, %v2107
      %v2109 = vpop.f32.mrf.mxu0
      %v2110 = vadd.f32 0.0, %v2109
      %2111 = vmatmul.bf16.gmra.mxu0 %v1115
      %v2112 = vpop.f32.mrf.mxu0
      %v2113 = vadd.f32 0.0, %v2112
      %v2114 = vpop.f32.mrf.mxu0
      %v2115 = vadd.f32 0.0, %v2114
      %2116 = vmatmul.bf16.gmra.mxu0 %v1118
      %v2117 = vpop.f32.mrf.mxu0
      %v2118 = vadd.f32 0.0, %v2117
      %v2119 = vpop.f32.mrf.mxu0
      %v2120 = vadd.f32 0.0, %v2119
      %2121 = vmatmul.bf16.gmra.mxu0 %v1121
      %v2122 = vpop.f32.mrf.mxu0
      %v2123 = vadd.f32 0.0, %v2122
      %v2124 = vpop.f32.mrf.mxu0
      %v2125 = vadd.f32 0.0, %v2124
      %2126 = vmatmul.bf16.gmra.mxu0 %v1124
      %v2127 = vpop.f32.mrf.mxu0
      %v2128 = vadd.f32 0.0, %v2127
      %v2129 = vpop.f32.mrf.mxu0
      %v2130 = vadd.f32 0.0, %v2129
      %2131 = vmatmul.bf16.gmra.mxu0 %v1127
      %v2132 = vpop.f32.mrf.mxu0
      %v2133 = vadd.f32 0.0, %v2132
      %v2134 = vpop.f32.mrf.mxu0
      %v2135 = vadd.f32 0.0, %v2134
      %2136 = vmatmul.bf16.gmra.mxu0 %v1130
      %v2137 = vpop.f32.mrf.mxu0
      %v2138 = vadd.f32 0.0, %v2137
      %v2139 = vpop.f32.mrf.mxu0
      %v2140 = vadd.f32 0.0, %v2139
      %2141 = vmatmul.bf16.gmra.mxu0 %v1133
      %v2142 = vpop.f32.mrf.mxu0
      %v2143 = vadd.f32 0.0, %v2142
      %v2144 = vpop.f32.mrf.mxu0
      %v2145 = vadd.f32 0.0, %v2144
      %2146 = vmatmul.bf16.gmra.mxu0 %v1136
      %v2147 = vpop.f32.mrf.mxu0
      %v2148 = vadd.f32 0.0, %v2147
      %v2149 = vpop.f32.mrf.mxu0
      %v2150 = vadd.f32 0.0, %v2149
      %2151 = vmatmul.bf16.gmra.mxu0 %v1139
      %v2152 = vpop.f32.mrf.mxu0
      %v2153 = vadd.f32 0.0, %v2152
      %v2154 = vpop.f32.mrf.mxu0
      %v2155 = vadd.f32 0.0, %v2154
      %2156 = vmatmul.bf16.gmra.mxu0 %v1142
      %v2157 = vpop.f32.mrf.mxu0
      %v2158 = vadd.f32 0.0, %v2157
      %v2159 = vpop.f32.mrf.mxu0
      %v2160 = vadd.f32 0.0, %v2159
      %2161 = vmatmul.bf16.gmra.mxu0 %v1145
      %v2162 = vpop.f32.mrf.mxu0
      %v2163 = vadd.f32 0.0, %v2162
      %v2164 = vpop.f32.mrf.mxu0
      %v2165 = vadd.f32 0.0, %v2164
      %2166 = vmatmul.bf16.gmra.mxu0 %v1148
      %v2167 = vpop.f32.mrf.mxu0
      %v2168 = vadd.f32 0.0, %v2167
      %v2169 = vpop.f32.mrf.mxu0
      %v2170 = vadd.f32 0.0, %v2169
      %2171 = vmatmul.bf16.gmra.mxu0 %v1151
      %v2172 = vpop.f32.mrf.mxu0
      %v2173 = vadd.f32 0.0, %v2172
      %v2174 = vpop.f32.mrf.mxu0
      %v2175 = vadd.f32 0.0, %v2174
      %2176 = vmatmul.bf16.gmra.mxu0 %v1630
      %v2177 = vpop.f32.mrf.mxu0
      %v2178 = vadd.f32 0.0, %v2177
      %v2179 = vpop.f32.mrf.mxu0
      %v2180 = vadd.f32 0.0, %v2179
      %2181 = vmatmul.bf16.gmra.mxu0 %v2096
      %v2182 = vpop.f32.mrf.mxu0
      %v2183 = vadd.f32 0.0, %v2182
      %v2184 = vpop.f32.mrf.mxu0
      %v2185 = vadd.f32 0.0, %v2184
      %2186 = vdwg.mxu0
      %v2187 = vadd.f32 %v2041, %v2108
      %v2188 = vadd.f32 %v2042, %v2110
      %v2189 = vadd.f32 %v2043, %v2113
      %v2190 = vadd.f32 %v2044, %v2115
      %v2191 = vadd.f32 %v2045, %v2118
      %v2192 = vadd.f32 %v2046, %v2120
      %v2193 = vadd.f32 %v2047, %v2123
      %v2194 = vadd.f32 %v2048, %v2125
      %v2195 = vadd.f32 %v2049, %v2128
      %v2196 = vadd.f32 %v2050, %v2130
      %v2197 = vadd.f32 %v2051, %v2133
      %v2198 = vadd.f32 %v2052, %v2135
      %v2199 = vadd.f32 %v2053, %v2138
      %v2200 = vadd.f32 %v2054, %v2140
      %v2201 = vadd.f32 %v2055, %v2143
      %v2202 = vadd.f32 %v2056, %v2145
      %v2203 = vadd.f32 %v2057, %v2148
      %v2204 = vadd.f32 %v2058, %v2150
      %v2205 = vadd.f32 %v2059, %v2153
      %v2206 = vadd.f32 %v2060, %v2155
      %v2207 = vadd.f32 %v2061, %v2158
      %v2208 = vadd.f32 %v2062, %v2160
      %v2209 = vadd.f32 %v2063, %v2163
      %v2210 = vadd.f32 %v2064, %v2165
      %v2211 = vadd.f32 %v2065, %v2168
      %v2212 = vadd.f32 %v2066, %v2170
      %v2213 = vadd.f32 %v2067, %v2173
      %v2214 = vadd.f32 %v2068, %v2175
      %v2215 = vadd.f32 %v2069, %v2178
      %v2216 = vadd.f32 %v2070, %v2180
      %v2217 = vadd.f32 %v2071, %v2183
      %v2218 = vadd.f32 %v2072, %v2185
      %v2220 = vshrl.u32 %v416, 16
      %v2222 = vrot.slane %v2220, 4
      %v2223 = vshll.u32 %v416, 16
      %v2225 = vrot.slane %v2223, 5
      %v2226 = vor.u32 %v2222, %v2225
      %v2227 = vrot.slane %v2226, 4
      %v2229 = vshll.u32 %v417, 16
      %v2231 = vrot.slane %v2229, 5
      %v2232 = vsel %vm425, %v2227, %v2231
      %v2233 = vshrl.u32 %v417, 16
      %v2235 = vrot.slane %v2233, 4
      %v2236 = vor.u32 %v2235, %v2231
      %v2237 = vrot.slane %v2236, 4
      %v2239 = vshll.u32 %v418, 16
      %v2241 = vrot.slane %v2239, 5
      %v2242 = vsel %vm425, %v2237, %v2241
      %s2243 = scalar_lea.vmem %s3, 112
      %v2244 = vld [vmem:[%s2243] sm:$0xf]
      %v2245 = vld [vmem:[%s2243 + $0x4] sm:$0xf]
      %v2246 = vld [vmem:[%s2243 + $0x8] sm:$0xf]
      %v2247 = vld [vmem:[%s2243 + $0xc] sm:$0xf]
      %v2248 = vunpack.c.l.b16 %v2232
      %v2249 = vunpack.c.l.b16 %v2242
      %v2250 = vpack.c.b16 %v2249, %v2248
      %v2255 = vunpack.c.l.b16 %v2244
      %v2256 = vunpack.c.l.b16 %v2245
      %v2257 = vunpack.c.l.b16 %v2246
      %v2258 = vunpack.c.l.b16 %v2247
      %v2259 = vpack.c.b16 %v2256, %v2255
      %v2260 = vpack.c.b16 %v2258, %v2257
      %v2264 = vsel %vm875, %v2250, 0
      %2266 = vmatpush.bf16.msra.mxu0 0
      %2267 = vmatpush.bf16.msra.mxu0 0
      %2268 = vmatpush.bf16.msra.mxu0 0
      %2269 = vmatpush.bf16.msra.mxu0 0
      %2270 = vmatpush.bf16.msra.mxu0 0
      %2271 = vmatpush.bf16.msra.mxu0 0
      %2272 = vmatpush.bf16.msra.mxu0 %v2260
      %2273 = vmatpush.bf16.msra.mxu0 %v2259
      %2274 = vmatmul.bf16.gmra.mxu0 %v883
      %v2275 = vpop.f32.mrf.mxu0
      %v2276 = vadd.f32 0.0, %v2275
      %v2277 = vpop.f32.mrf.mxu0
      %v2278 = vadd.f32 0.0, %v2277
      %2279 = vmatmul.bf16.gmra.mxu0 %v886
      %v2280 = vpop.f32.mrf.mxu0
      %v2281 = vadd.f32 0.0, %v2280
      %v2282 = vpop.f32.mrf.mxu0
      %v2283 = vadd.f32 0.0, %v2282
      %2284 = vmatmul.bf16.gmra.mxu0 %v889
      %v2285 = vpop.f32.mrf.mxu0
      %v2286 = vadd.f32 0.0, %v2285
      %v2287 = vpop.f32.mrf.mxu0
      %v2288 = vadd.f32 0.0, %v2287
      %2289 = vmatmul.bf16.gmra.mxu0 %v892
      %v2290 = vpop.f32.mrf.mxu0
      %v2291 = vadd.f32 0.0, %v2290
      %v2292 = vpop.f32.mrf.mxu0
      %v2293 = vadd.f32 0.0, %v2292
      %2294 = vmatmul.bf16.gmra.mxu0 %v895
      %v2295 = vpop.f32.mrf.mxu0
      %v2296 = vadd.f32 0.0, %v2295
      %v2297 = vpop.f32.mrf.mxu0
      %v2298 = vadd.f32 0.0, %v2297
      %2299 = vmatmul.bf16.gmra.mxu0 %v898
      %v2300 = vpop.f32.mrf.mxu0
      %v2301 = vadd.f32 0.0, %v2300
      %v2302 = vpop.f32.mrf.mxu0
      %v2303 = vadd.f32 0.0, %v2302
      %2304 = vmatmul.bf16.gmra.mxu0 %v901
      %v2305 = vpop.f32.mrf.mxu0
      %v2306 = vadd.f32 0.0, %v2305
      %v2307 = vpop.f32.mrf.mxu0
      %v2308 = vadd.f32 0.0, %v2307
      %2309 = vmatmul.bf16.gmra.mxu0 %v904
      %v2310 = vpop.f32.mrf.mxu0
      %v2311 = vadd.f32 0.0, %v2310
      %v2312 = vpop.f32.mrf.mxu0
      %v2313 = vadd.f32 0.0, %v2312
      %2314 = vmatmul.bf16.gmra.mxu0 %v907
      %v2315 = vpop.f32.mrf.mxu0
      %v2316 = vadd.f32 0.0, %v2315
      %v2317 = vpop.f32.mrf.mxu0
      %v2318 = vadd.f32 0.0, %v2317
      %2319 = vmatmul.bf16.gmra.mxu0 %v910
      %v2320 = vpop.f32.mrf.mxu0
      %v2321 = vadd.f32 0.0, %v2320
      %v2322 = vpop.f32.mrf.mxu0
      %v2323 = vadd.f32 0.0, %v2322
      %2324 = vmatmul.bf16.gmra.mxu0 %v913
      %v2325 = vpop.f32.mrf.mxu0
      %v2326 = vadd.f32 0.0, %v2325
      %v2327 = vpop.f32.mrf.mxu0
      %v2328 = vadd.f32 0.0, %v2327
      %2329 = vmatmul.bf16.gmra.mxu0 %v916
      %v2330 = vpop.f32.mrf.mxu0
      %v2331 = vadd.f32 0.0, %v2330
      %v2332 = vpop.f32.mrf.mxu0
      %v2333 = vadd.f32 0.0, %v2332
      %2334 = vmatmul.bf16.gmra.mxu0 %v919
      %v2335 = vpop.f32.mrf.mxu0
      %v2336 = vadd.f32 0.0, %v2335
      %v2337 = vpop.f32.mrf.mxu0
      %v2338 = vadd.f32 0.0, %v2337
      %2339 = vmatmul.bf16.gmra.mxu0 %v922
      %v2340 = vpop.f32.mrf.mxu0
      %v2341 = vadd.f32 0.0, %v2340
      %v2342 = vpop.f32.mrf.mxu0
      %v2343 = vadd.f32 0.0, %v2342
      %2344 = vmatmul.bf16.gmra.mxu0 %v1798
      %v2345 = vpop.f32.mrf.mxu0
      %v2346 = vadd.f32 0.0, %v2345
      %v2347 = vpop.f32.mrf.mxu0
      %v2348 = vadd.f32 0.0, %v2347
      %2349 = vmatmul.bf16.gmra.mxu0 %v2264
      %v2350 = vpop.f32.mrf.mxu0
      %v2351 = vadd.f32 0.0, %v2350
      %v2352 = vpop.f32.mrf.mxu0
      %v2353 = vadd.f32 0.0, %v2352
      %2354 = vdwg.mxu0
      %v2355 = vadd.f32 %v2187, %v2276
      %v2356 = vadd.f32 %v2188, %v2278
      %v2357 = vadd.f32 %v2189, %v2281
      %v2358 = vadd.f32 %v2190, %v2283
      %v2359 = vadd.f32 %v2191, %v2286
      %v2360 = vadd.f32 %v2192, %v2288
      %v2361 = vadd.f32 %v2193, %v2291
      %v2362 = vadd.f32 %v2194, %v2293
      %v2363 = vadd.f32 %v2195, %v2296
      %v2364 = vadd.f32 %v2196, %v2298
      %v2365 = vadd.f32 %v2197, %v2301
      %v2366 = vadd.f32 %v2198, %v2303
      %v2367 = vadd.f32 %v2199, %v2306
      %v2368 = vadd.f32 %v2200, %v2308
      %v2369 = vadd.f32 %v2201, %v2311
      %v2370 = vadd.f32 %v2202, %v2313
      %v2371 = vadd.f32 %v2203, %v2316
      %v2372 = vadd.f32 %v2204, %v2318
      %v2373 = vadd.f32 %v2205, %v2321
      %v2374 = vadd.f32 %v2206, %v2323
      %v2375 = vadd.f32 %v2207, %v2326
      %v2376 = vadd.f32 %v2208, %v2328
      %v2377 = vadd.f32 %v2209, %v2331
      %v2378 = vadd.f32 %v2210, %v2333
      %v2379 = vadd.f32 %v2211, %v2336
      %v2380 = vadd.f32 %v2212, %v2338
      %v2381 = vadd.f32 %v2213, %v2341
      %v2382 = vadd.f32 %v2214, %v2343
      %v2383 = vadd.f32 %v2215, %v2346
      %v2384 = vadd.f32 %v2216, %v2348
      %v2385 = vadd.f32 %v2217, %v2351
      %v2386 = vadd.f32 %v2218, %v2353
      %v2388 = vrot.slane %v416, 5
      %v2389 = vrot.slane %v2388, 4
      %v2390 = vrot.slane %v417, 5
      %v2391 = vsel %vm1260, %v2389, %v2390
      %v2392 = vrot.slane %v2390, 4
      %v2393 = vrot.slane %v418, 5
      %v2394 = vsel %vm1260, %v2392, %v2393
      %s2395 = scalar_lea.vmem %s3, 128
      %v2396 = vld [vmem:[%s2395] sm:$0xf]
      %v2397 = vld [vmem:[%s2395 + $0x4] sm:$0xf]
      %v2398 = vld [vmem:[%s2395 + $0x8] sm:$0xf]
      %v2399 = vld [vmem:[%s2395 + $0xc] sm:$0xf]
      %v2400 = vunpack.c.l.b16 %v2391
      %v2401 = vunpack.c.l.b16 %v2394
      %v2402 = vpack.c.b16 %v2401, %v2400
      %v2407 = vunpack.c.l.b16 %v2396
      %v2408 = vunpack.c.l.b16 %v2397
      %v2409 = vunpack.c.l.b16 %v2398
      %v2410 = vunpack.c.l.b16 %v2399
      %v2411 = vpack.c.b16 %v2408, %v2407
      %v2412 = vpack.c.b16 %v2410, %v2409
      %v2416 = vsel %vm875, %v2402, 0
      %2418 = vmatpush.bf16.msra.mxu0 0
      %2419 = vmatpush.bf16.msra.mxu0 0
      %2420 = vmatpush.bf16.msra.mxu0 0
      %2421 = vmatpush.bf16.msra.mxu0 0
      %2422 = vmatpush.bf16.msra.mxu0 0
      %2423 = vmatpush.bf16.msra.mxu0 0
      %2424 = vmatpush.bf16.msra.mxu0 %v2412
      %2425 = vmatpush.bf16.msra.mxu0 %v2411
      %2426 = vmatmul.bf16.gmra.mxu0 %v1445
      %v2427 = vpop.f32.mrf.mxu0
      %v2428 = vadd.f32 0.0, %v2427
      %v2429 = vpop.f32.mrf.mxu0
      %v2430 = vadd.f32 0.0, %v2429
      %2431 = vmatmul.bf16.gmra.mxu0 %v1448
      %v2432 = vpop.f32.mrf.mxu0
      %v2433 = vadd.f32 0.0, %v2432
      %v2434 = vpop.f32.mrf.mxu0
      %v2435 = vadd.f32 0.0, %v2434
      %2436 = vmatmul.bf16.gmra.mxu0 %v1451
      %v2437 = vpop.f32.mrf.mxu0
      %v2438 = vadd.f32 0.0, %v2437
      %v2439 = vpop.f32.mrf.mxu0
      %v2440 = vadd.f32 0.0, %v2439
      %2441 = vmatmul.bf16.gmra.mxu0 %v1454
      %v2442 = vpop.f32.mrf.mxu0
      %v2443 = vadd.f32 0.0, %v2442
      %v2444 = vpop.f32.mrf.mxu0
      %v2445 = vadd.f32 0.0, %v2444
      %2446 = vmatmul.bf16.gmra.mxu0 %v1457
      %v2447 = vpop.f32.mrf.mxu0
      %v2448 = vadd.f32 0.0, %v2447
      %v2449 = vpop.f32.mrf.mxu0
      %v2450 = vadd.f32 0.0, %v2449
      %2451 = vmatmul.bf16.gmra.mxu0 %v1460
      %v2452 = vpop.f32.mrf.mxu0
      %v2453 = vadd.f32 0.0, %v2452
      %v2454 = vpop.f32.mrf.mxu0
      %v2455 = vadd.f32 0.0, %v2454
      %2456 = vmatmul.bf16.gmra.mxu0 %v1463
      %v2457 = vpop.f32.mrf.mxu0
      %v2458 = vadd.f32 0.0, %v2457
      %v2459 = vpop.f32.mrf.mxu0
      %v2460 = vadd.f32 0.0, %v2459
      %2461 = vmatmul.bf16.gmra.mxu0 %v1466
      %v2462 = vpop.f32.mrf.mxu0
      %v2463 = vadd.f32 0.0, %v2462
      %v2464 = vpop.f32.mrf.mxu0
      %v2465 = vadd.f32 0.0, %v2464
      %2466 = vmatmul.bf16.gmra.mxu0 %v1469
      %v2467 = vpop.f32.mrf.mxu0
      %v2468 = vadd.f32 0.0, %v2467
      %v2469 = vpop.f32.mrf.mxu0
      %v2470 = vadd.f32 0.0, %v2469
      %2471 = vmatmul.bf16.gmra.mxu0 %v1472
      %v2472 = vpop.f32.mrf.mxu0
      %v2473 = vadd.f32 0.0, %v2472
      %v2474 = vpop.f32.mrf.mxu0
      %v2475 = vadd.f32 0.0, %v2474
      %2476 = vmatmul.bf16.gmra.mxu0 %v1475
      %v2477 = vpop.f32.mrf.mxu0
      %v2478 = vadd.f32 0.0, %v2477
      %v2479 = vpop.f32.mrf.mxu0
      %v2480 = vadd.f32 0.0, %v2479
      %2481 = vmatmul.bf16.gmra.mxu0 %v1478
      %v2482 = vpop.f32.mrf.mxu0
      %v2483 = vadd.f32 0.0, %v2482
      %v2484 = vpop.f32.mrf.mxu0
      %v2485 = vadd.f32 0.0, %v2484
      %2486 = vmatmul.bf16.gmra.mxu0 %v1481
      %v2487 = vpop.f32.mrf.mxu0
      %v2488 = vadd.f32 0.0, %v2487
      %v2489 = vpop.f32.mrf.mxu0
      %v2490 = vadd.f32 0.0, %v2489
      %2491 = vmatmul.bf16.gmra.mxu0 %v1484
      %v2492 = vpop.f32.mrf.mxu0
      %v2493 = vadd.f32 0.0, %v2492
      %v2494 = vpop.f32.mrf.mxu0
      %v2495 = vadd.f32 0.0, %v2494
      %2496 = vmatmul.bf16.gmra.mxu0 %v1950
      %v2497 = vpop.f32.mrf.mxu0
      %v2498 = vadd.f32 0.0, %v2497
      %v2499 = vpop.f32.mrf.mxu0
      %v2500 = vadd.f32 0.0, %v2499
      %2501 = vmatmul.bf16.gmra.mxu0 %v2416
      %v2502 = vpop.f32.mrf.mxu0
      %v2503 = vadd.f32 0.0, %v2502
      %v2504 = vpop.f32.mrf.mxu0
      %v2505 = vadd.f32 0.0, %v2504
      %2506 = vdwg.mxu0
      %v2507 = vadd.f32 %v2355, %v2428
      %v2508 = vadd.f32 %v2356, %v2430
      %v2509 = vadd.f32 %v2357, %v2433
      %v2510 = vadd.f32 %v2358, %v2435
      %v2511 = vadd.f32 %v2359, %v2438
      %v2512 = vadd.f32 %v2360, %v2440
      %v2513 = vadd.f32 %v2361, %v2443
      %v2514 = vadd.f32 %v2362, %v2445
      %v2515 = vadd.f32 %v2363, %v2448
      %v2516 = vadd.f32 %v2364, %v2450
      %v2517 = vadd.f32 %v2365, %v2453
      %v2518 = vadd.f32 %v2366, %v2455
      %v2519 = vadd.f32 %v2367, %v2458
      %v2520 = vadd.f32 %v2368, %v2460
      %v2521 = vadd.f32 %v2369, %v2463
      %v2522 = vadd.f32 %v2370, %v2465
      %v2523 = vadd.f32 %v2371, %v2468
      %v2524 = vadd.f32 %v2372, %v2470
      %v2525 = vadd.f32 %v2373, %v2473
      %v2526 = vadd.f32 %v2374, %v2475
      %v2527 = vadd.f32 %v2375, %v2478
      %v2528 = vadd.f32 %v2376, %v2480
      %v2529 = vadd.f32 %v2377, %v2483
      %v2530 = vadd.f32 %v2378, %v2485
      %v2531 = vadd.f32 %v2379, %v2488
      %v2532 = vadd.f32 %v2380, %v2490
      %v2533 = vadd.f32 %v2381, %v2493
      %v2534 = vadd.f32 %v2382, %v2495
      %v2535 = vadd.f32 %v2383, %v2498
      %v2536 = vadd.f32 %v2384, %v2500
      %v2537 = vadd.f32 %v2385, %v2503
      %v2538 = vadd.f32 %v2386, %v2505
      %v2539 = vld [vmem:[%s334] sm:$0xf]
      %v2540 = vld [vmem:[%s334 + $0x4] sm:$0xf]
      %v2541 = vld [vmem:[%s334 + $0x8] sm:$0x1]
      %v2542 = vld [vmem:[%s334 + $0xc] sm:$0xf]
      %v2543 = vld [vmem:[%s334 + $0x10] sm:$0xf]
      %v2544 = vld [vmem:[%s334 + $0x14] sm:$0x1]
      %v2545 = vld [vmem:[%s334 + $0x18] sm:$0xf]
      %v2546 = vld [vmem:[%s334 + $0x1c] sm:$0xf]
      %v2547 = vld [vmem:[%s334 + $0x20] sm:$0x1]
      %v2548 = vld [vmem:[%s334 + $0x24] sm:$0xf]
      %v2549 = vld [vmem:[%s334 + $0x28] sm:$0xf]
      %v2550 = vld [vmem:[%s334 + $0x2c] sm:$0x1]
      %v2551 = vld [vmem:[%s334 + $0x30] sm:$0xf]
      %v2552 = vld [vmem:[%s334 + $0x34] sm:$0xf]
      %v2553 = vld [vmem:[%s334 + $0x38] sm:$0x1]
      %v2554 = vld [vmem:[%s334 + $0x3c] sm:$0xf]
      %v2555 = vld [vmem:[%s334 + $0x40] sm:$0xf]
      %v2556 = vld [vmem:[%s334 + $0x44] sm:$0x1]
      %v2557 = vld [vmem:[%s334 + $0x48] sm:$0xf]
      %v2558 = vld [vmem:[%s334 + $0x4c] sm:$0xf]
      %v2559 = vld [vmem:[%s334 + $0x50] sm:$0x1]
      %v2560 = vld [vmem:[%s334 + $0x54] sm:$0xf]
      %v2561 = vld [vmem:[%s334 + $0x58] sm:$0xf]
      %v2562 = vld [vmem:[%s334 + $0x5c] sm:$0x1]
      %v2563 = vld [vmem:[%s334 + $0x60] sm:$0xf]
      %v2564 = vld [vmem:[%s334 + $0x64] sm:$0xf]
      %v2565 = vld [vmem:[%s334 + $0x68] sm:$0x1]
      %v2566 = vld [vmem:[%s334 + $0x6c] sm:$0xf]
      %v2567 = vld [vmem:[%s334 + $0x70] sm:$0xf]
      %v2568 = vld [vmem:[%s334 + $0x74] sm:$0x1]
      %v2569 = vld [vmem:[%s334 + $0x78] sm:$0xf]
      %v2570 = vld [vmem:[%s334 + $0x7c] sm:$0xf]
      %v2571 = vld [vmem:[%s334 + $0x80] sm:$0x1]
      %v2572 = vld [vmem:[%s334 + $0x84] sm:$0xf]
      %v2573 = vld [vmem:[%s334 + $0x88] sm:$0xf]
      %v2574 = vld [vmem:[%s334 + $0x8c] sm:$0x1]
      %v2575 = vld [vmem:[%s334 + $0x90] sm:$0xf]
      %v2576 = vld [vmem:[%s334 + $0x94] sm:$0xf]
      %v2577 = vld [vmem:[%s334 + $0x98] sm:$0x1]
      %v2578 = vld [vmem:[%s334 + $0x9c] sm:$0xf]
      %v2579 = vld [vmem:[%s334 + $0xa0] sm:$0xf]
      %v2580 = vld [vmem:[%s334 + $0xa4] sm:$0x1]
      %v2581 = vld [vmem:[%s334 + $0xa8] sm:$0xf]
      %v2582 = vld [vmem:[%s334 + $0xac] sm:$0xf]
      %v2583 = vld [vmem:[%s334 + $0xb0] sm:$0x1]
      %v2584 = vld [vmem:[%s334 + $0xb4] sm:$0xf]
      %v2585 = vld [vmem:[%s334 + $0xb8] sm:$0xf]
      %v2586 = vld [vmem:[%s334 + $0xbc] sm:$0x1]
      %v2587 = vld [vmem:[%s334 + $0xc0] sm:$0xf]
      %v2588 = vld [vmem:[%s334 + $0xc4] sm:$0xf]
      %v2589 = vld [vmem:[%s334 + $0xc8] sm:$0x1]
      %v2590 = vld [vmem:[%s334 + $0xcc] sm:$0xf]
      %v2591 = vld [vmem:[%s334 + $0xd0] sm:$0xf]
      %v2592 = vld [vmem:[%s334 + $0xd4] sm:$0x1]
      %s2593 = scalar_lea.vmem %s3, 144
      %v2594 = vld [vmem:[%s2593] sm:$0xf]
      %v2595 = vld [vmem:[%s2593 + $0x4] sm:$0xf]
      %v2596 = vld [vmem:[%s2593 + $0x8] sm:$0xf]
      %v2597 = vld [vmem:[%s2593 + $0xc] sm:$0xf]
      %v2630 = vunpack.c.l.b16 %v2539
      %v2631 = vunpack.c.l.b16 %v2540
      %v2632 = vunpack.c.l.b16 %v2542
      %v2633 = vunpack.c.l.b16 %v2543
      %v2634 = vunpack.c.l.b16 %v2545
      %v2635 = vunpack.c.l.b16 %v2546
      %v2636 = vunpack.c.l.b16 %v2548
      %v2637 = vunpack.c.l.b16 %v2549
      %v2638 = vunpack.c.l.b16 %v2551
      %v2639 = vunpack.c.l.b16 %v2552
      %v2640 = vunpack.c.l.b16 %v2554
      %v2641 = vunpack.c.l.b16 %v2555
      %v2642 = vunpack.c.l.b16 %v2557
      %v2643 = vunpack.c.l.b16 %v2558
      %v2644 = vunpack.c.l.b16 %v2560
      %v2645 = vunpack.c.l.b16 %v2561
      %v2646 = vunpack.c.l.b16 %v2563
      %v2647 = vunpack.c.l.b16 %v2564
      %v2648 = vunpack.c.l.b16 %v2566
      %v2649 = vunpack.c.l.b16 %v2567
      %v2650 = vunpack.c.l.b16 %v2569
      %v2651 = vunpack.c.l.b16 %v2570
      %v2652 = vunpack.c.l.b16 %v2572
      %v2653 = vunpack.c.l.b16 %v2573
      %v2654 = vunpack.c.l.b16 %v2575
      %v2655 = vunpack.c.l.b16 %v2576
      %v2656 = vunpack.c.l.b16 %v2578
      %v2657 = vunpack.c.l.b16 %v2579
      %v2658 = vunpack.c.l.b16 %v2581
      %v2659 = vunpack.c.l.b16 %v2582
      %v2660 = vunpack.c.l.b16 %v2584
      %v2661 = vunpack.c.l.b16 %v2585
      %v2662 = vpack.c.b16 %v2631, %v2630
      %v2663 = vpack.c.b16 %v2633, %v2632
      %v2664 = vpack.c.b16 %v2635, %v2634
      %v2665 = vpack.c.b16 %v2637, %v2636
      %v2666 = vpack.c.b16 %v2639, %v2638
      %v2667 = vpack.c.b16 %v2641, %v2640
      %v2668 = vpack.c.b16 %v2643, %v2642
      %v2669 = vpack.c.b16 %v2645, %v2644
      %v2670 = vpack.c.b16 %v2647, %v2646
      %v2671 = vpack.c.b16 %v2649, %v2648
      %v2672 = vpack.c.b16 %v2651, %v2650
      %v2673 = vpack.c.b16 %v2653, %v2652
      %v2674 = vpack.c.b16 %v2655, %v2654
      %v2675 = vpack.c.b16 %v2657, %v2656
      %v2676 = vpack.c.b16 %v2659, %v2658
      %v2677 = vpack.c.b16 %v2661, %v2660
      %v2682 = vunpack.c.l.b16 %v2594
      %v2683 = vunpack.c.l.b16 %v2595
      %v2684 = vunpack.c.l.b16 %v2596
      %v2685 = vunpack.c.l.b16 %v2597
      %v2686 = vpack.c.b16 %v2683, %v2682
      %v2687 = vpack.c.b16 %v2685, %v2684
      %v2691 = vsel %vm875, %v2662, 0
      %v2694 = vsel %vm875, %v2663, 0
      %v2697 = vsel %vm875, %v2664, 0
      %v2700 = vsel %vm875, %v2665, 0
      %v2703 = vsel %vm875, %v2666, 0
      %v2706 = vsel %vm875, %v2667, 0
      %v2709 = vsel %vm875, %v2668, 0
      %v2712 = vsel %vm875, %v2669, 0
      %v2715 = vsel %vm875, %v2670, 0
      %v2718 = vsel %vm875, %v2671, 0
      %v2721 = vsel %vm875, %v2672, 0
      %v2724 = vsel %vm875, %v2673, 0
      %v2727 = vsel %vm875, %v2674, 0
      %v2730 = vsel %vm875, %v2675, 0
      %v2733 = vsel %vm875, %v2676, 0
      %v2736 = vsel %vm875, %v2677, 0
      %2738 = vmatpush.bf16.msra.mxu0 0
      %2739 = vmatpush.bf16.msra.mxu0 0
      %2740 = vmatpush.bf16.msra.mxu0 0
      %2741 = vmatpush.bf16.msra.mxu0 0
      %2742 = vmatpush.bf16.msra.mxu0 0
      %2743 = vmatpush.bf16.msra.mxu0 0
      %2744 = vmatpush.bf16.msra.mxu0 %v2687
      %2745 = vmatpush.bf16.msra.mxu0 %v2686
      %2746 = vmatmul.bf16.gmra.mxu0 %v2691
      %v2747 = vpop.f32.mrf.mxu0
      %v2748 = vadd.f32 0.0, %v2747
      %v2749 = vpop.f32.mrf.mxu0
      %v2750 = vadd.f32 0.0, %v2749
      %2751 = vmatmul.bf16.gmra.mxu0 %v2694
      %v2752 = vpop.f32.mrf.mxu0
      %v2753 = vadd.f32 0.0, %v2752
      %v2754 = vpop.f32.mrf.mxu0
      %v2755 = vadd.f32 0.0, %v2754
      %2756 = vmatmul.bf16.gmra.mxu0 %v2697
      %v2757 = vpop.f32.mrf.mxu0
      %v2758 = vadd.f32 0.0, %v2757
      %v2759 = vpop.f32.mrf.mxu0
      %v2760 = vadd.f32 0.0, %v2759
      %2761 = vmatmul.bf16.gmra.mxu0 %v2700
      %v2762 = vpop.f32.mrf.mxu0
      %v2763 = vadd.f32 0.0, %v2762
      %v2764 = vpop.f32.mrf.mxu0
      %v2765 = vadd.f32 0.0, %v2764
      %2766 = vmatmul.bf16.gmra.mxu0 %v2703
      %v2767 = vpop.f32.mrf.mxu0
      %v2768 = vadd.f32 0.0, %v2767
      %v2769 = vpop.f32.mrf.mxu0
      %v2770 = vadd.f32 0.0, %v2769
      %2771 = vmatmul.bf16.gmra.mxu0 %v2706
      %v2772 = vpop.f32.mrf.mxu0
      %v2773 = vadd.f32 0.0, %v2772
      %v2774 = vpop.f32.mrf.mxu0
      %v2775 = vadd.f32 0.0, %v2774
      %2776 = vmatmul.bf16.gmra.mxu0 %v2709
      %v2777 = vpop.f32.mrf.mxu0
      %v2778 = vadd.f32 0.0, %v2777
      %v2779 = vpop.f32.mrf.mxu0
      %v2780 = vadd.f32 0.0, %v2779
      %2781 = vmatmul.bf16.gmra.mxu0 %v2712
      %v2782 = vpop.f32.mrf.mxu0
      %v2783 = vadd.f32 0.0, %v2782
      %v2784 = vpop.f32.mrf.mxu0
      %v2785 = vadd.f32 0.0, %v2784
      %2786 = vmatmul.bf16.gmra.mxu0 %v2715
      %v2787 = vpop.f32.mrf.mxu0
      %v2788 = vadd.f32 0.0, %v2787
      %v2789 = vpop.f32.mrf.mxu0
      %v2790 = vadd.f32 0.0, %v2789
      %2791 = vmatmul.bf16.gmra.mxu0 %v2718
      %v2792 = vpop.f32.mrf.mxu0
      %v2793 = vadd.f32 0.0, %v2792
      %v2794 = vpop.f32.mrf.mxu0
      %v2795 = vadd.f32 0.0, %v2794
      %2796 = vmatmul.bf16.gmra.mxu0 %v2721
      %v2797 = vpop.f32.mrf.mxu0
      %v2798 = vadd.f32 0.0, %v2797
      %v2799 = vpop.f32.mrf.mxu0
      %v2800 = vadd.f32 0.0, %v2799
      %2801 = vmatmul.bf16.gmra.mxu0 %v2724
      %v2802 = vpop.f32.mrf.mxu0
      %v2803 = vadd.f32 0.0, %v2802
      %v2804 = vpop.f32.mrf.mxu0
      %v2805 = vadd.f32 0.0, %v2804
      %2806 = vmatmul.bf16.gmra.mxu0 %v2727
      %v2807 = vpop.f32.mrf.mxu0
      %v2808 = vadd.f32 0.0, %v2807
      %v2809 = vpop.f32.mrf.mxu0
      %v2810 = vadd.f32 0.0, %v2809
      %2811 = vmatmul.bf16.gmra.mxu0 %v2730
      %v2812 = vpop.f32.mrf.mxu0
      %v2813 = vadd.f32 0.0, %v2812
      %v2814 = vpop.f32.mrf.mxu0
      %v2815 = vadd.f32 0.0, %v2814
      %2816 = vmatmul.bf16.gmra.mxu0 %v2733
      %v2817 = vpop.f32.mrf.mxu0
      %v2818 = vadd.f32 0.0, %v2817
      %v2819 = vpop.f32.mrf.mxu0
      %v2820 = vadd.f32 0.0, %v2819
      %2821 = vmatmul.bf16.gmra.mxu0 %v2736
      %v2822 = vpop.f32.mrf.mxu0
      %v2823 = vadd.f32 0.0, %v2822
      %v2824 = vpop.f32.mrf.mxu0
      %v2825 = vadd.f32 0.0, %v2824
      %2826 = vdwg.mxu0
      %v2827 = vadd.f32 %v2507, %v2748
      %v2828 = vadd.f32 %v2508, %v2750
      %v2829 = vadd.f32 %v2509, %v2753
      %v2830 = vadd.f32 %v2510, %v2755
      %v2831 = vadd.f32 %v2511, %v2758
      %v2832 = vadd.f32 %v2512, %v2760
      %v2833 = vadd.f32 %v2513, %v2763
      %v2834 = vadd.f32 %v2514, %v2765
      %v2835 = vadd.f32 %v2515, %v2768
      %v2836 = vadd.f32 %v2516, %v2770
      %v2837 = vadd.f32 %v2517, %v2773
      %v2838 = vadd.f32 %v2518, %v2775
      %v2839 = vadd.f32 %v2519, %v2778
      %v2840 = vadd.f32 %v2520, %v2780
      %v2841 = vadd.f32 %v2521, %v2783
      %v2842 = vadd.f32 %v2522, %v2785
      %v2843 = vadd.f32 %v2523, %v2788
      %v2844 = vadd.f32 %v2524, %v2790
      %v2845 = vadd.f32 %v2525, %v2793
      %v2846 = vadd.f32 %v2526, %v2795
      %v2847 = vadd.f32 %v2527, %v2798
      %v2848 = vadd.f32 %v2528, %v2800
      %v2849 = vadd.f32 %v2529, %v2803
      %v2850 = vadd.f32 %v2530, %v2805
      %v2851 = vadd.f32 %v2531, %v2808
      %v2852 = vadd.f32 %v2532, %v2810
      %v2853 = vadd.f32 %v2533, %v2813
      %v2854 = vadd.f32 %v2534, %v2815
      %v2855 = vadd.f32 %v2535, %v2818
      %v2856 = vadd.f32 %v2536, %v2820
      %v2857 = vadd.f32 %v2537, %v2823
      %v2858 = vadd.f32 %v2538, %v2825
      %v2860 = vshrl.u32 %v2539, 16
      %v2862 = vrot.slane %v2860, 4
      %v2863 = vshll.u32 %v2539, 16
      %v2865 = vrot.slane %v2863, 5
      %v2866 = vor.u32 %v2862, %v2865
      %v2867 = vrot.slane %v2866, 4
      %v2869 = vshll.u32 %v2540, 16
      %v2871 = vrot.slane %v2869, 5
      %v2872 = vsel %vm425, %v2867, %v2871
      %v2873 = vshrl.u32 %v2540, 16
      %v2875 = vrot.slane %v2873, 4
      %v2876 = vor.u32 %v2875, %v2871
      %v2877 = vrot.slane %v2876, 4
      %v2879 = vshll.u32 %v2541, 16
      %v2881 = vrot.slane %v2879, 5
      %v2882 = vsel %vm425, %v2877, %v2881
      %v2884 = vshrl.u32 %v2542, 16
      %v2886 = vrot.slane %v2884, 4
      %v2887 = vshll.u32 %v2542, 16
      %v2889 = vrot.slane %v2887, 5
      %v2890 = vor.u32 %v2886, %v2889
      %v2891 = vrot.slane %v2890, 4
      %v2893 = vshll.u32 %v2543, 16
      %v2895 = vrot.slane %v2893, 5
      %v2896 = vsel %vm425, %v2891, %v2895
      %v2897 = vshrl.u32 %v2543, 16
      %v2899 = vrot.slane %v2897, 4
      %v2900 = vor.u32 %v2899, %v2895
      %v2901 = vrot.slane %v2900, 4
      %v2903 = vshll.u32 %v2544, 16
      %v2905 = vrot.slane %v2903, 5
      %v2906 = vsel %vm425, %v2901, %v2905
      %v2908 = vshrl.u32 %v2545, 16
      %v2910 = vrot.slane %v2908, 4
      %v2911 = vshll.u32 %v2545, 16
      %v2913 = vrot.slane %v2911, 5
      %v2914 = vor.u32 %v2910, %v2913
      %v2915 = vrot.slane %v2914, 4
      %v2917 = vshll.u32 %v2546, 16
      %v2919 = vrot.slane %v2917, 5
      %v2920 = vsel %vm425, %v2915, %v2919
      %v2921 = vshrl.u32 %v2546, 16
      %v2923 = vrot.slane %v2921, 4
      %v2924 = vor.u32 %v2923, %v2919
      %v2925 = vrot.slane %v2924, 4
      %v2927 = vshll.u32 %v2547, 16
      %v2929 = vrot.slane %v2927, 5
      %v2930 = vsel %vm425, %v2925, %v2929
      %v2932 = vshrl.u32 %v2548, 16
      %v2934 = vrot.slane %v2932, 4
      %v2935 = vshll.u32 %v2548, 16
      %v2937 = vrot.slane %v2935, 5
      %v2938 = vor.u32 %v2934, %v2937
      %v2939 = vrot.slane %v2938, 4
      %v2941 = vshll.u32 %v2549, 16
      %v2943 = vrot.slane %v2941, 5
      %v2944 = vsel %vm425, %v2939, %v2943
      %v2945 = vshrl.u32 %v2549, 16
      %v2947 = vrot.slane %v2945, 4
      %v2948 = vor.u32 %v2947, %v2943
      %v2949 = vrot.slane %v2948, 4
      %v2951 = vshll.u32 %v2550, 16
      %v2953 = vrot.slane %v2951, 5
      %v2954 = vsel %vm425, %v2949, %v2953
      %v2956 = vshrl.u32 %v2551, 16
      %v2958 = vrot.slane %v2956, 4
      %v2959 = vshll.u32 %v2551, 16
      %v2961 = vrot.slane %v2959, 5
      %v2962 = vor.u32 %v2958, %v2961
      %v2963 = vrot.slane %v2962, 4
      %v2965 = vshll.u32 %v2552, 16
      %v2967 = vrot.slane %v2965, 5
      %v2968 = vsel %vm425, %v2963, %v2967
      %v2969 = vshrl.u32 %v2552, 16
      %v2971 = vrot.slane %v2969, 4
      %v2972 = vor.u32 %v2971, %v2967
      %v2973 = vrot.slane %v2972, 4
      %v2975 = vshll.u32 %v2553, 16
      %v2977 = vrot.slane %v2975, 5
      %v2978 = vsel %vm425, %v2973, %v2977
      %v2980 = vshrl.u32 %v2554, 16
      %v2982 = vrot.slane %v2980, 4
      %v2983 = vshll.u32 %v2554, 16
      %v2985 = vrot.slane %v2983, 5
      %v2986 = vor.u32 %v2982, %v2985
      %v2987 = vrot.slane %v2986, 4
      %v2989 = vshll.u32 %v2555, 16
      %v2991 = vrot.slane %v2989, 5
      %v2992 = vsel %vm425, %v2987, %v2991
      %v2993 = vshrl.u32 %v2555, 16
      %v2995 = vrot.slane %v2993, 4
      %v2996 = vor.u32 %v2995, %v2991
      %v2997 = vrot.slane %v2996, 4
      %v2999 = vshll.u32 %v2556, 16
      %v3001 = vrot.slane %v2999, 5
      %v3002 = vsel %vm425, %v2997, %v3001
      %v3004 = vshrl.u32 %v2557, 16
      %v3006 = vrot.slane %v3004, 4
      %v3007 = vshll.u32 %v2557, 16
      %v3009 = vrot.slane %v3007, 5
      %v3010 = vor.u32 %v3006, %v3009
      %v3011 = vrot.slane %v3010, 4
      %v3013 = vshll.u32 %v2558, 16
      %v3015 = vrot.slane %v3013, 5
      %v3016 = vsel %vm425, %v3011, %v3015
      %v3017 = vshrl.u32 %v2558, 16
      %v3019 = vrot.slane %v3017, 4
      %v3020 = vor.u32 %v3019, %v3015
      %v3021 = vrot.slane %v3020, 4
      %v3023 = vshll.u32 %v2559, 16
      %v3025 = vrot.slane %v3023, 5
      %v3026 = vsel %vm425, %v3021, %v3025
      %v3028 = vshrl.u32 %v2560, 16
      %v3030 = vrot.slane %v3028, 4
      %v3031 = vshll.u32 %v2560, 16
      %v3033 = vrot.slane %v3031, 5
      %v3034 = vor.u32 %v3030, %v3033
      %v3035 = vrot.slane %v3034, 4
      %v3037 = vshll.u32 %v2561, 16
      %v3039 = vrot.slane %v3037, 5
      %v3040 = vsel %vm425, %v3035, %v3039
      %v3041 = vshrl.u32 %v2561, 16
      %v3043 = vrot.slane %v3041, 4
      %v3044 = vor.u32 %v3043, %v3039
      %v3045 = vrot.slane %v3044, 4
      %v3047 = vshll.u32 %v2562, 16
      %v3049 = vrot.slane %v3047, 5
      %v3050 = vsel %vm425, %v3045, %v3049
      %v3052 = vshrl.u32 %v2563, 16
      %v3054 = vrot.slane %v3052, 4
      %v3055 = vshll.u32 %v2563, 16
      %v3057 = vrot.slane %v3055, 5
      %v3058 = vor.u32 %v3054, %v3057
      %v3059 = vrot.slane %v3058, 4
      %v3061 = vshll.u32 %v2564, 16
      %v3063 = vrot.slane %v3061, 5
      %v3064 = vsel %vm425, %v3059, %v3063
      %v3065 = vshrl.u32 %v2564, 16
      %v3067 = vrot.slane %v3065, 4
      %v3068 = vor.u32 %v3067, %v3063
      %v3069 = vrot.slane %v3068, 4
      %v3071 = vshll.u32 %v2565, 16
      %v3073 = vrot.slane %v3071, 5
      %v3074 = vsel %vm425, %v3069, %v3073
      %v3076 = vshrl.u32 %v2566, 16
      %v3078 = vrot.slane %v3076, 4
      %v3079 = vshll.u32 %v2566, 16
      %v3081 = vrot.slane %v3079, 5
      %v3082 = vor.u32 %v3078, %v3081
      %v3083 = vrot.slane %v3082, 4
      %v3085 = vshll.u32 %v2567, 16
      %v3087 = vrot.slane %v3085, 5
      %v3088 = vsel %vm425, %v3083, %v3087
      %v3089 = vshrl.u32 %v2567, 16
      %v3091 = vrot.slane %v3089, 4
      %v3092 = vor.u32 %v3091, %v3087
      %v3093 = vrot.slane %v3092, 4
      %v3095 = vshll.u32 %v2568, 16
      %v3097 = vrot.slane %v3095, 5
      %v3098 = vsel %vm425, %v3093, %v3097
      %v3100 = vshrl.u32 %v2569, 16
      %v3102 = vrot.slane %v3100, 4
      %v3103 = vshll.u32 %v2569, 16
      %v3105 = vrot.slane %v3103, 5
      %v3106 = vor.u32 %v3102, %v3105
      %v3107 = vrot.slane %v3106, 4
      %v3109 = vshll.u32 %v2570, 16
      %v3111 = vrot.slane %v3109, 5
      %v3112 = vsel %vm425, %v3107, %v3111
      %v3113 = vshrl.u32 %v2570, 16
      %v3115 = vrot.slane %v3113, 4
      %v3116 = vor.u32 %v3115, %v3111
      %v3117 = vrot.slane %v3116, 4
      %v3119 = vshll.u32 %v2571, 16
      %v3121 = vrot.slane %v3119, 5
      %v3122 = vsel %vm425, %v3117, %v3121
      %v3124 = vshrl.u32 %v2572, 16
      %v3126 = vrot.slane %v3124, 4
      %v3127 = vshll.u32 %v2572, 16
      %v3129 = vrot.slane %v3127, 5
      %v3130 = vor.u32 %v3126, %v3129
      %v3131 = vrot.slane %v3130, 4
      %v3133 = vshll.u32 %v2573, 16
      %v3135 = vrot.slane %v3133, 5
      %v3136 = vsel %vm425, %v3131, %v3135
      %v3137 = vshrl.u32 %v2573, 16
      %v3139 = vrot.slane %v3137, 4
      %v3140 = vor.u32 %v3139, %v3135
      %v3141 = vrot.slane %v3140, 4
      %v3143 = vshll.u32 %v2574, 16
      %v3145 = vrot.slane %v3143, 5
      %v3146 = vsel %vm425, %v3141, %v3145
      %v3148 = vshrl.u32 %v2575, 16
      %v3150 = vrot.slane %v3148, 4
      %v3151 = vshll.u32 %v2575, 16
      %v3153 = vrot.slane %v3151, 5
      %v3154 = vor.u32 %v3150, %v3153
      %v3155 = vrot.slane %v3154, 4
      %v3157 = vshll.u32 %v2576, 16
      %v3159 = vrot.slane %v3157, 5
      %v3160 = vsel %vm425, %v3155, %v3159
      %v3161 = vshrl.u32 %v2576, 16
      %v3163 = vrot.slane %v3161, 4
      %v3164 = vor.u32 %v3163, %v3159
      %v3165 = vrot.slane %v3164, 4
      %v3167 = vshll.u32 %v2577, 16
      %v3169 = vrot.slane %v3167, 5
      %v3170 = vsel %vm425, %v3165, %v3169
      %v3172 = vshrl.u32 %v2578, 16
      %v3174 = vrot.slane %v3172, 4
      %v3175 = vshll.u32 %v2578, 16
      %v3177 = vrot.slane %v3175, 5
      %v3178 = vor.u32 %v3174, %v3177
      %v3179 = vrot.slane %v3178, 4
      %v3181 = vshll.u32 %v2579, 16
      %v3183 = vrot.slane %v3181, 5
      %v3184 = vsel %vm425, %v3179, %v3183
      %v3185 = vshrl.u32 %v2579, 16
      %v3187 = vrot.slane %v3185, 4
      %v3188 = vor.u32 %v3187, %v3183
      %v3189 = vrot.slane %v3188, 4
      %v3191 = vshll.u32 %v2580, 16
      %v3193 = vrot.slane %v3191, 5
      %v3194 = vsel %vm425, %v3189, %v3193
      %v3196 = vshrl.u32 %v2581, 16
      %v3198 = vrot.slane %v3196, 4
      %v3199 = vshll.u32 %v2581, 16
      %v3201 = vrot.slane %v3199, 5
      %v3202 = vor.u32 %v3198, %v3201
      %v3203 = vrot.slane %v3202, 4
      %v3205 = vshll.u32 %v2582, 16
      %v3207 = vrot.slane %v3205, 5
      %v3208 = vsel %vm425, %v3203, %v3207
      %v3209 = vshrl.u32 %v2582, 16
      %v3211 = vrot.slane %v3209, 4
      %v3212 = vor.u32 %v3211, %v3207
      %v3213 = vrot.slane %v3212, 4
      %v3215 = vshll.u32 %v2583, 16
      %v3217 = vrot.slane %v3215, 5
      %v3218 = vsel %vm425, %v3213, %v3217
      %v3220 = vshrl.u32 %v2584, 16
      %v3222 = vrot.slane %v3220, 4
      %v3223 = vshll.u32 %v2584, 16
      %v3225 = vrot.slane %v3223, 5
      %v3226 = vor.u32 %v3222, %v3225
      %v3227 = vrot.slane %v3226, 4
      %v3229 = vshll.u32 %v2585, 16
      %v3231 = vrot.slane %v3229, 5
      %v3232 = vsel %vm425, %v3227, %v3231
      %v3233 = vshrl.u32 %v2585, 16
      %v3235 = vrot.slane %v3233, 4
      %v3236 = vor.u32 %v3235, %v3231
      %v3237 = vrot.slane %v3236, 4
      %v3239 = vshll.u32 %v2586, 16
      %v3241 = vrot.slane %v3239, 5
      %v3242 = vsel %vm425, %v3237, %v3241
      %s3243 = scalar_lea.vmem %s3, 160
      %v3244 = vld [vmem:[%s3243] sm:$0xf]
      %v3245 = vld [vmem:[%s3243 + $0x4] sm:$0xf]
      %v3246 = vld [vmem:[%s3243 + $0x8] sm:$0xf]
      %v3247 = vld [vmem:[%s3243 + $0xc] sm:$0xf]
      %v3248 = vunpack.c.l.b16 %v2872
      %v3249 = vunpack.c.l.b16 %v2882
      %v3250 = vunpack.c.l.b16 %v2896
      %v3251 = vunpack.c.l.b16 %v2906
      %v3252 = vunpack.c.l.b16 %v2920
      %v3253 = vunpack.c.l.b16 %v2930
      %v3254 = vunpack.c.l.b16 %v2944
      %v3255 = vunpack.c.l.b16 %v2954
      %v3256 = vunpack.c.l.b16 %v2968
      %v3257 = vunpack.c.l.b16 %v2978
      %v3258 = vunpack.c.l.b16 %v2992
      %v3259 = vunpack.c.l.b16 %v3002
      %v3260 = vunpack.c.l.b16 %v3016
      %v3261 = vunpack.c.l.b16 %v3026
      %v3262 = vunpack.c.l.b16 %v3040
      %v3263 = vunpack.c.l.b16 %v3050
      %v3264 = vunpack.c.l.b16 %v3064
      %v3265 = vunpack.c.l.b16 %v3074
      %v3266 = vunpack.c.l.b16 %v3088
      %v3267 = vunpack.c.l.b16 %v3098
      %v3268 = vunpack.c.l.b16 %v3112
      %v3269 = vunpack.c.l.b16 %v3122
      %v3270 = vunpack.c.l.b16 %v3136
      %v3271 = vunpack.c.l.b16 %v3146
      %v3272 = vunpack.c.l.b16 %v3160
      %v3273 = vunpack.c.l.b16 %v3170
      %v3274 = vunpack.c.l.b16 %v3184
      %v3275 = vunpack.c.l.b16 %v3194
      %v3276 = vunpack.c.l.b16 %v3208
      %v3277 = vunpack.c.l.b16 %v3218
      %v3278 = vunpack.c.l.b16 %v3232
      %v3279 = vunpack.c.l.b16 %v3242
      %v3280 = vpack.c.b16 %v3249, %v3248
      %v3281 = vpack.c.b16 %v3251, %v3250
      %v3282 = vpack.c.b16 %v3253, %v3252
      %v3283 = vpack.c.b16 %v3255, %v3254
      %v3284 = vpack.c.b16 %v3257, %v3256
      %v3285 = vpack.c.b16 %v3259, %v3258
      %v3286 = vpack.c.b16 %v3261, %v3260
      %v3287 = vpack.c.b16 %v3263, %v3262
      %v3288 = vpack.c.b16 %v3265, %v3264
      %v3289 = vpack.c.b16 %v3267, %v3266
      %v3290 = vpack.c.b16 %v3269, %v3268
      %v3291 = vpack.c.b16 %v3271, %v3270
      %v3292 = vpack.c.b16 %v3273, %v3272
      %v3293 = vpack.c.b16 %v3275, %v3274
      %v3294 = vpack.c.b16 %v3277, %v3276
      %v3295 = vpack.c.b16 %v3279, %v3278
      %v3300 = vunpack.c.l.b16 %v3244
      %v3301 = vunpack.c.l.b16 %v3245
      %v3302 = vunpack.c.l.b16 %v3246
      %v3303 = vunpack.c.l.b16 %v3247
      %v3304 = vpack.c.b16 %v3301, %v3300
      %v3305 = vpack.c.b16 %v3303, %v3302
      %v3309 = vsel %vm875, %v3280, 0
      %v3312 = vsel %vm875, %v3281, 0
      %v3315 = vsel %vm875, %v3282, 0
      %v3318 = vsel %vm875, %v3283, 0
      %v3321 = vsel %vm875, %v3284, 0
      %v3324 = vsel %vm875, %v3285, 0
      %v3327 = vsel %vm875, %v3286, 0
      %v3330 = vsel %vm875, %v3287, 0
      %v3333 = vsel %vm875, %v3288, 0
      %v3336 = vsel %vm875, %v3289, 0
      %v3339 = vsel %vm875, %v3290, 0
      %v3342 = vsel %vm875, %v3291, 0
      %v3345 = vsel %vm875, %v3292, 0
      %v3348 = vsel %vm875, %v3293, 0
      %v3351 = vsel %vm875, %v3294, 0
      %v3354 = vsel %vm875, %v3295, 0
      %3356 = vmatpush.bf16.msra.mxu0 0
      %3357 = vmatpush.bf16.msra.mxu0 0
      %3358 = vmatpush.bf16.msra.mxu0 0
      %3359 = vmatpush.bf16.msra.mxu0 0
      %3360 = vmatpush.bf16.msra.mxu0 0
      %3361 = vmatpush.bf16.msra.mxu0 0
      %3362 = vmatpush.bf16.msra.mxu0 %v3305
      %3363 = vmatpush.bf16.msra.mxu0 %v3304
      %3364 = vmatmul.bf16.gmra.mxu0 %v3309
      %v3365 = vpop.f32.mrf.mxu0
      %v3366 = vadd.f32 0.0, %v3365
      %v3367 = vpop.f32.mrf.mxu0
      %v3368 = vadd.f32 0.0, %v3367
      %3369 = vmatmul.bf16.gmra.mxu0 %v3312
      %v3370 = vpop.f32.mrf.mxu0
      %v3371 = vadd.f32 0.0, %v3370
      %v3372 = vpop.f32.mrf.mxu0
      %v3373 = vadd.f32 0.0, %v3372
      %3374 = vmatmul.bf16.gmra.mxu0 %v3315
      %v3375 = vpop.f32.mrf.mxu0
      %v3376 = vadd.f32 0.0, %v3375
      %v3377 = vpop.f32.mrf.mxu0
      %v3378 = vadd.f32 0.0, %v3377
      %3379 = vmatmul.bf16.gmra.mxu0 %v3318
      %v3380 = vpop.f32.mrf.mxu0
      %v3381 = vadd.f32 0.0, %v3380
      %v3382 = vpop.f32.mrf.mxu0
      %v3383 = vadd.f32 0.0, %v3382
      %3384 = vmatmul.bf16.gmra.mxu0 %v3321
      %v3385 = vpop.f32.mrf.mxu0
      %v3386 = vadd.f32 0.0, %v3385
      %v3387 = vpop.f32.mrf.mxu0
      %v3388 = vadd.f32 0.0, %v3387
      %3389 = vmatmul.bf16.gmra.mxu0 %v3324
      %v3390 = vpop.f32.mrf.mxu0
      %v3391 = vadd.f32 0.0, %v3390
      %v3392 = vpop.f32.mrf.mxu0
      %v3393 = vadd.f32 0.0, %v3392
      %3394 = vmatmul.bf16.gmra.mxu0 %v3327
      %v3395 = vpop.f32.mrf.mxu0
      %v3396 = vadd.f32 0.0, %v3395
      %v3397 = vpop.f32.mrf.mxu0
      %v3398 = vadd.f32 0.0, %v3397
      %3399 = vmatmul.bf16.gmra.mxu0 %v3330
      %v3400 = vpop.f32.mrf.mxu0
      %v3401 = vadd.f32 0.0, %v3400
      %v3402 = vpop.f32.mrf.mxu0
      %v3403 = vadd.f32 0.0, %v3402
      %3404 = vmatmul.bf16.gmra.mxu0 %v3333
      %v3405 = vpop.f32.mrf.mxu0
      %v3406 = vadd.f32 0.0, %v3405
      %v3407 = vpop.f32.mrf.mxu0
      %v3408 = vadd.f32 0.0, %v3407
      %3409 = vmatmul.bf16.gmra.mxu0 %v3336
      %v3410 = vpop.f32.mrf.mxu0
      %v3411 = vadd.f32 0.0, %v3410
      %v3412 = vpop.f32.mrf.mxu0
      %v3413 = vadd.f32 0.0, %v3412
      %3414 = vmatmul.bf16.gmra.mxu0 %v3339
      %v3415 = vpop.f32.mrf.mxu0
      %v3416 = vadd.f32 0.0, %v3415
      %v3417 = vpop.f32.mrf.mxu0
      %v3418 = vadd.f32 0.0, %v3417
      %3419 = vmatmul.bf16.gmra.mxu0 %v3342
      %v3420 = vpop.f32.mrf.mxu0
      %v3421 = vadd.f32 0.0, %v3420
      %v3422 = vpop.f32.mrf.mxu0
      %v3423 = vadd.f32 0.0, %v3422
      %3424 = vmatmul.bf16.gmra.mxu0 %v3345
      %v3425 = vpop.f32.mrf.mxu0
      %v3426 = vadd.f32 0.0, %v3425
      %v3427 = vpop.f32.mrf.mxu0
      %v3428 = vadd.f32 0.0, %v3427
      %3429 = vmatmul.bf16.gmra.mxu0 %v3348
      %v3430 = vpop.f32.mrf.mxu0
      %v3431 = vadd.f32 0.0, %v3430
      %v3432 = vpop.f32.mrf.mxu0
      %v3433 = vadd.f32 0.0, %v3432
      %3434 = vmatmul.bf16.gmra.mxu0 %v3351
      %v3435 = vpop.f32.mrf.mxu0
      %v3436 = vadd.f32 0.0, %v3435
      %v3437 = vpop.f32.mrf.mxu0
      %v3438 = vadd.f32 0.0, %v3437
      %3439 = vmatmul.bf16.gmra.mxu0 %v3354
      %v3440 = vpop.f32.mrf.mxu0
      %v3441 = vadd.f32 0.0, %v3440
      %v3442 = vpop.f32.mrf.mxu0
      %v3443 = vadd.f32 0.0, %v3442
      %3444 = vdwg.mxu0
      %v3445 = vadd.f32 %v2827, %v3366
      %v3446 = vadd.f32 %v2828, %v3368
      %v3447 = vadd.f32 %v2829, %v3371
      %v3448 = vadd.f32 %v2830, %v3373
      %v3449 = vadd.f32 %v2831, %v3376
      %v3450 = vadd.f32 %v2832, %v3378
      %v3451 = vadd.f32 %v2833, %v3381
      %v3452 = vadd.f32 %v2834, %v3383
      %v3453 = vadd.f32 %v2835, %v3386
      %v3454 = vadd.f32 %v2836, %v3388
      %v3455 = vadd.f32 %v2837, %v3391
      %v3456 = vadd.f32 %v2838, %v3393
      %v3457 = vadd.f32 %v2839, %v3396
      %v3458 = vadd.f32 %v2840, %v3398
      %v3459 = vadd.f32 %v2841, %v3401
      %v3460 = vadd.f32 %v2842, %v3403
      %v3461 = vadd.f32 %v2843, %v3406
      %v3462 = vadd.f32 %v2844, %v3408
      %v3463 = vadd.f32 %v2845, %v3411
      %v3464 = vadd.f32 %v2846, %v3413
      %v3465 = vadd.f32 %v2847, %v3416
      %v3466 = vadd.f32 %v2848, %v3418
      %v3467 = vadd.f32 %v2849, %v3421
      %v3468 = vadd.f32 %v2850, %v3423
      %v3469 = vadd.f32 %v2851, %v3426
      %v3470 = vadd.f32 %v2852, %v3428
      %v3471 = vadd.f32 %v2853, %v3431
      %v3472 = vadd.f32 %v2854, %v3433
      %v3473 = vadd.f32 %v2855, %v3436
      %v3474 = vadd.f32 %v2856, %v3438
      %v3475 = vadd.f32 %v2857, %v3441
      %v3476 = vadd.f32 %v2858, %v3443
      %v3493 = vrot.slane %v2539, 5
      %v3494 = vrot.slane %v3493, 4
      %v3495 = vrot.slane %v2540, 5
      %v3496 = vsel %vm1260, %v3494, %v3495
      %v3497 = vrot.slane %v3495, 4
      %v3498 = vrot.slane %v2541, 5
      %v3499 = vsel %vm1260, %v3497, %v3498
      %v3500 = vrot.slane %v2542, 5
      %v3501 = vrot.slane %v3500, 4
      %v3502 = vrot.slane %v2543, 5
      %v3503 = vsel %vm1260, %v3501, %v3502
      %v3504 = vrot.slane %v3502, 4
      %v3505 = vrot.slane %v2544, 5
      %v3506 = vsel %vm1260, %v3504, %v3505
      %v3507 = vrot.slane %v2545, 5
      %v3508 = vrot.slane %v3507, 4
      %v3509 = vrot.slane %v2546, 5
      %v3510 = vsel %vm1260, %v3508, %v3509
      %v3511 = vrot.slane %v3509, 4
      %v3512 = vrot.slane %v2547, 5
      %v3513 = vsel %vm1260, %v3511, %v3512
      %v3514 = vrot.slane %v2548, 5
      %v3515 = vrot.slane %v3514, 4
      %v3516 = vrot.slane %v2549, 5
      %v3517 = vsel %vm1260, %v3515, %v3516
      %v3518 = vrot.slane %v3516, 4
      %v3519 = vrot.slane %v2550, 5
      %v3520 = vsel %vm1260, %v3518, %v3519
      %v3521 = vrot.slane %v2551, 5
      %v3522 = vrot.slane %v3521, 4
      %v3523 = vrot.slane %v2552, 5
      %v3524 = vsel %vm1260, %v3522, %v3523
      %v3525 = vrot.slane %v3523, 4
      %v3526 = vrot.slane %v2553, 5
      %v3527 = vsel %vm1260, %v3525, %v3526
      %v3528 = vrot.slane %v2554, 5
      %v3529 = vrot.slane %v3528, 4
      %v3530 = vrot.slane %v2555, 5
      %v3531 = vsel %vm1260, %v3529, %v3530
      %v3532 = vrot.slane %v3530, 4
      %v3533 = vrot.slane %v2556, 5
      %v3534 = vsel %vm1260, %v3532, %v3533
      %v3535 = vrot.slane %v2557, 5
      %v3536 = vrot.slane %v3535, 4
      %v3537 = vrot.slane %v2558, 5
      %v3538 = vsel %vm1260, %v3536, %v3537
      %v3539 = vrot.slane %v3537, 4
      %v3540 = vrot.slane %v2559, 5
      %v3541 = vsel %vm1260, %v3539, %v3540
      %v3542 = vrot.slane %v2560, 5
      %v3543 = vrot.slane %v3542, 4
      %v3544 = vrot.slane %v2561, 5
      %v3545 = vsel %vm1260, %v3543, %v3544
      %v3546 = vrot.slane %v3544, 4
      %v3547 = vrot.slane %v2562, 5
      %v3548 = vsel %vm1260, %v3546, %v3547
      %v3549 = vrot.slane %v2563, 5
      %v3550 = vrot.slane %v3549, 4
      %v3551 = vrot.slane %v2564, 5
      %v3552 = vsel %vm1260, %v3550, %v3551
      %v3553 = vrot.slane %v3551, 4
      %v3554 = vrot.slane %v2565, 5
      %v3555 = vsel %vm1260, %v3553, %v3554
      %v3556 = vrot.slane %v2566, 5
      %v3557 = vrot.slane %v3556, 4
      %v3558 = vrot.slane %v2567, 5
      %v3559 = vsel %vm1260, %v3557, %v3558
      %v3560 = vrot.slane %v3558, 4
      %v3561 = vrot.slane %v2568, 5
      %v3562 = vsel %vm1260, %v3560, %v3561
      %v3563 = vrot.slane %v2569, 5
      %v3564 = vrot.slane %v3563, 4
      %v3565 = vrot.slane %v2570, 5
      %v3566 = vsel %vm1260, %v3564, %v3565
      %v3567 = vrot.slane %v3565, 4
      %v3568 = vrot.slane %v2571, 5
      %v3569 = vsel %vm1260, %v3567, %v3568
      %v3570 = vrot.slane %v2572, 5
      %v3571 = vrot.slane %v3570, 4
      %v3572 = vrot.slane %v2573, 5
      %v3573 = vsel %vm1260, %v3571, %v3572
      %v3574 = vrot.slane %v3572, 4
      %v3575 = vrot.slane %v2574, 5
      %v3576 = vsel %vm1260, %v3574, %v3575
      %v3577 = vrot.slane %v2575, 5
      %v3578 = vrot.slane %v3577, 4
      %v3579 = vrot.slane %v2576, 5
      %v3580 = vsel %vm1260, %v3578, %v3579
      %v3581 = vrot.slane %v3579, 4
      %v3582 = vrot.slane %v2577, 5
      %v3583 = vsel %vm1260, %v3581, %v3582
      %v3584 = vrot.slane %v2578, 5
      %v3585 = vrot.slane %v3584, 4
      %v3586 = vrot.slane %v2579, 5
      %v3587 = vsel %vm1260, %v3585, %v3586
      %v3588 = vrot.slane %v3586, 4
      %v3589 = vrot.slane %v2580, 5
      %v3590 = vsel %vm1260, %v3588, %v3589
      %v3591 = vrot.slane %v2581, 5
      %v3592 = vrot.slane %v3591, 4
      %v3593 = vrot.slane %v2582, 5
      %v3594 = vsel %vm1260, %v3592, %v3593
      %v3595 = vrot.slane %v3593, 4
      %v3596 = vrot.slane %v2583, 5
      %v3597 = vsel %vm1260, %v3595, %v3596
      %v3598 = vrot.slane %v2584, 5
      %v3599 = vrot.slane %v3598, 4
      %v3600 = vrot.slane %v2585, 5
      %v3601 = vsel %vm1260, %v3599, %v3600
      %v3602 = vrot.slane %v3600, 4
      %v3603 = vrot.slane %v2586, 5
      %v3604 = vsel %vm1260, %v3602, %v3603
      %s3605 = scalar_lea.vmem %s3, 176
      %v3606 = vld [vmem:[%s3605] sm:$0xf]
      %v3607 = vld [vmem:[%s3605 + $0x4] sm:$0xf]
      %v3608 = vld [vmem:[%s3605 + $0x8] sm:$0xf]
      %v3609 = vld [vmem:[%s3605 + $0xc] sm:$0xf]
      %v3610 = vunpack.c.l.b16 %v3496
      %v3611 = vunpack.c.l.b16 %v3499
      %v3612 = vunpack.c.l.b16 %v3503
      %v3613 = vunpack.c.l.b16 %v3506
      %v3614 = vunpack.c.l.b16 %v3510
      %v3615 = vunpack.c.l.b16 %v3513
      %v3616 = vunpack.c.l.b16 %v3517
      %v3617 = vunpack.c.l.b16 %v3520
      %v3618 = vunpack.c.l.b16 %v3524
      %v3619 = vunpack.c.l.b16 %v3527
      %v3620 = vunpack.c.l.b16 %v3531
      %v3621 = vunpack.c.l.b16 %v3534
      %v3622 = vunpack.c.l.b16 %v3538
      %v3623 = vunpack.c.l.b16 %v3541
      %v3624 = vunpack.c.l.b16 %v3545
      %v3625 = vunpack.c.l.b16 %v3548
      %v3626 = vunpack.c.l.b16 %v3552
      %v3627 = vunpack.c.l.b16 %v3555
      %v3628 = vunpack.c.l.b16 %v3559
      %v3629 = vunpack.c.l.b16 %v3562
      %v3630 = vunpack.c.l.b16 %v3566
      %v3631 = vunpack.c.l.b16 %v3569
      %v3632 = vunpack.c.l.b16 %v3573
      %v3633 = vunpack.c.l.b16 %v3576
      %v3634 = vunpack.c.l.b16 %v3580
      %v3635 = vunpack.c.l.b16 %v3583
      %v3636 = vunpack.c.l.b16 %v3587
      %v3637 = vunpack.c.l.b16 %v3590
      %v3638 = vunpack.c.l.b16 %v3594
      %v3639 = vunpack.c.l.b16 %v3597
      %v3640 = vunpack.c.l.b16 %v3601
      %v3641 = vunpack.c.l.b16 %v3604
      %v3642 = vpack.c.b16 %v3611, %v3610
      %v3643 = vpack.c.b16 %v3613, %v3612
      %v3644 = vpack.c.b16 %v3615, %v3614
      %v3645 = vpack.c.b16 %v3617, %v3616
      %v3646 = vpack.c.b16 %v3619, %v3618
      %v3647 = vpack.c.b16 %v3621, %v3620
      %v3648 = vpack.c.b16 %v3623, %v3622
      %v3649 = vpack.c.b16 %v3625, %v3624
      %v3650 = vpack.c.b16 %v3627, %v3626
      %v3651 = vpack.c.b16 %v3629, %v3628
      %v3652 = vpack.c.b16 %v3631, %v3630
      %v3653 = vpack.c.b16 %v3633, %v3632
      %v3654 = vpack.c.b16 %v3635, %v3634
      %v3655 = vpack.c.b16 %v3637, %v3636
      %v3656 = vpack.c.b16 %v3639, %v3638
      %v3657 = vpack.c.b16 %v3641, %v3640
      %v3662 = vunpack.c.l.b16 %v3606
      %v3663 = vunpack.c.l.b16 %v3607
      %v3664 = vunpack.c.l.b16 %v3608
      %v3665 = vunpack.c.l.b16 %v3609
      %v3666 = vpack.c.b16 %v3663, %v3662
      %v3667 = vpack.c.b16 %v3665, %v3664
      %v3671 = vsel %vm875, %v3642, 0
      %v3674 = vsel %vm875, %v3643, 0
      %v3677 = vsel %vm875, %v3644, 0
      %v3680 = vsel %vm875, %v3645, 0
      %v3683 = vsel %vm875, %v3646, 0
      %v3686 = vsel %vm875, %v3647, 0
      %v3689 = vsel %vm875, %v3648, 0
      %v3692 = vsel %vm875, %v3649, 0
      %v3695 = vsel %vm875, %v3650, 0
      %v3698 = vsel %vm875, %v3651, 0
      %v3701 = vsel %vm875, %v3652, 0
      %v3704 = vsel %vm875, %v3653, 0
      %v3707 = vsel %vm875, %v3654, 0
      %v3710 = vsel %vm875, %v3655, 0
      %v3713 = vsel %vm875, %v3656, 0
      %v3716 = vsel %vm875, %v3657, 0
      %3718 = vmatpush.bf16.msra.mxu0 0
      %3719 = vmatpush.bf16.msra.mxu0 0
      %3720 = vmatpush.bf16.msra.mxu0 0
      %3721 = vmatpush.bf16.msra.mxu0 0
      %3722 = vmatpush.bf16.msra.mxu0 0
      %3723 = vmatpush.bf16.msra.mxu0 0
      %3724 = vmatpush.bf16.msra.mxu0 %v3667
      %3725 = vmatpush.bf16.msra.mxu0 %v3666
      %3726 = vmatmul.bf16.gmra.mxu0 %v3671
      %v3727 = vpop.f32.mrf.mxu0
      %v3728 = vadd.f32 0.0, %v3727
      %v3729 = vpop.f32.mrf.mxu0
      %v3730 = vadd.f32 0.0, %v3729
      %3731 = vmatmul.bf16.gmra.mxu0 %v3674
      %v3732 = vpop.f32.mrf.mxu0
      %v3733 = vadd.f32 0.0, %v3732
      %v3734 = vpop.f32.mrf.mxu0
      %v3735 = vadd.f32 0.0, %v3734
      %3736 = vmatmul.bf16.gmra.mxu0 %v3677
      %v3737 = vpop.f32.mrf.mxu0
      %v3738 = vadd.f32 0.0, %v3737
      %v3739 = vpop.f32.mrf.mxu0
      %v3740 = vadd.f32 0.0, %v3739
      %3741 = vmatmul.bf16.gmra.mxu0 %v3680
      %v3742 = vpop.f32.mrf.mxu0
      %v3743 = vadd.f32 0.0, %v3742
      %v3744 = vpop.f32.mrf.mxu0
      %v3745 = vadd.f32 0.0, %v3744
      %3746 = vmatmul.bf16.gmra.mxu0 %v3683
      %v3747 = vpop.f32.mrf.mxu0
      %v3748 = vadd.f32 0.0, %v3747
      %v3749 = vpop.f32.mrf.mxu0
      %v3750 = vadd.f32 0.0, %v3749
      %3751 = vmatmul.bf16.gmra.mxu0 %v3686
      %v3752 = vpop.f32.mrf.mxu0
      %v3753 = vadd.f32 0.0, %v3752
      %v3754 = vpop.f32.mrf.mxu0
      %v3755 = vadd.f32 0.0, %v3754
      %3756 = vmatmul.bf16.gmra.mxu0 %v3689
      %v3757 = vpop.f32.mrf.mxu0
      %v3758 = vadd.f32 0.0, %v3757
      %v3759 = vpop.f32.mrf.mxu0
      %v3760 = vadd.f32 0.0, %v3759
      %3761 = vmatmul.bf16.gmra.mxu0 %v3692
      %v3762 = vpop.f32.mrf.mxu0
      %v3763 = vadd.f32 0.0, %v3762
      %v3764 = vpop.f32.mrf.mxu0
      %v3765 = vadd.f32 0.0, %v3764
      %3766 = vmatmul.bf16.gmra.mxu0 %v3695
      %v3767 = vpop.f32.mrf.mxu0
      %v3768 = vadd.f32 0.0, %v3767
      %v3769 = vpop.f32.mrf.mxu0
      %v3770 = vadd.f32 0.0, %v3769
      %3771 = vmatmul.bf16.gmra.mxu0 %v3698
      %v3772 = vpop.f32.mrf.mxu0
      %v3773 = vadd.f32 0.0, %v3772
      %v3774 = vpop.f32.mrf.mxu0
      %v3775 = vadd.f32 0.0, %v3774
      %3776 = vmatmul.bf16.gmra.mxu0 %v3701
      %v3777 = vpop.f32.mrf.mxu0
      %v3778 = vadd.f32 0.0, %v3777
      %v3779 = vpop.f32.mrf.mxu0
      %v3780 = vadd.f32 0.0, %v3779
      %3781 = vmatmul.bf16.gmra.mxu0 %v3704
      %v3782 = vpop.f32.mrf.mxu0
      %v3783 = vadd.f32 0.0, %v3782
      %v3784 = vpop.f32.mrf.mxu0
      %v3785 = vadd.f32 0.0, %v3784
      %3786 = vmatmul.bf16.gmra.mxu0 %v3707
      %v3787 = vpop.f32.mrf.mxu0
      %v3788 = vadd.f32 0.0, %v3787
      %v3789 = vpop.f32.mrf.mxu0
      %v3790 = vadd.f32 0.0, %v3789
      %3791 = vmatmul.bf16.gmra.mxu0 %v3710
      %v3792 = vpop.f32.mrf.mxu0
      %v3793 = vadd.f32 0.0, %v3792
      %v3794 = vpop.f32.mrf.mxu0
      %v3795 = vadd.f32 0.0, %v3794
      %3796 = vmatmul.bf16.gmra.mxu0 %v3713
      %v3797 = vpop.f32.mrf.mxu0
      %v3798 = vadd.f32 0.0, %v3797
      %v3799 = vpop.f32.mrf.mxu0
      %v3800 = vadd.f32 0.0, %v3799
      %3801 = vmatmul.bf16.gmra.mxu0 %v3716
      %v3802 = vpop.f32.mrf.mxu0
      %v3803 = vadd.f32 0.0, %v3802
      %v3804 = vpop.f32.mrf.mxu0
      %v3805 = vadd.f32 0.0, %v3804
      %3806 = vdwg.mxu0
      %v3807 = vadd.f32 %v3445, %v3728
      %v3808 = vadd.f32 %v3446, %v3730
      %v3809 = vadd.f32 %v3447, %v3733
      %v3810 = vadd.f32 %v3448, %v3735
      %v3811 = vadd.f32 %v3449, %v3738
      %v3812 = vadd.f32 %v3450, %v3740
      %v3813 = vadd.f32 %v3451, %v3743
      %v3814 = vadd.f32 %v3452, %v3745
      %v3815 = vadd.f32 %v3453, %v3748
      %v3816 = vadd.f32 %v3454, %v3750
      %v3817 = vadd.f32 %v3455, %v3753
      %v3818 = vadd.f32 %v3456, %v3755
      %v3819 = vadd.f32 %v3457, %v3758
      %v3820 = vadd.f32 %v3458, %v3760
      %v3821 = vadd.f32 %v3459, %v3763
      %v3822 = vadd.f32 %v3460, %v3765
      %v3823 = vadd.f32 %v3461, %v3768
      %v3824 = vadd.f32 %v3462, %v3770
      %v3825 = vadd.f32 %v3463, %v3773
      %v3826 = vadd.f32 %v3464, %v3775
      %v3827 = vadd.f32 %v3465, %v3778
      %v3828 = vadd.f32 %v3466, %v3780
      %v3829 = vadd.f32 %v3467, %v3783
      %v3830 = vadd.f32 %v3468, %v3785
      %v3831 = vadd.f32 %v3469, %v3788
      %v3832 = vadd.f32 %v3470, %v3790
      %v3833 = vadd.f32 %v3471, %v3793
      %v3834 = vadd.f32 %v3472, %v3795
      %v3835 = vadd.f32 %v3473, %v3798
      %v3836 = vadd.f32 %v3474, %v3800
      %v3837 = vadd.f32 %v3475, %v3803
      %v3838 = vadd.f32 %v3476, %v3805
      %s3839 = scalar_lea.vmem %s3, 192
      %v3840 = vld [vmem:[%s3839] sm:$0xf]
      %v3841 = vld [vmem:[%s3839 + $0x4] sm:$0xf]
      %v3842 = vld [vmem:[%s3839 + $0x8] sm:$0xf]
      %v3843 = vld [vmem:[%s3839 + $0xc] sm:$0xf]
      %v3846 = vunpack.c.l.b16 %v2587
      %v3847 = vunpack.c.l.b16 %v2588
      %v3848 = vpack.c.b16 %v3847, %v3846
      %v3853 = vunpack.c.l.b16 %v3840
      %v3854 = vunpack.c.l.b16 %v3841
      %v3855 = vunpack.c.l.b16 %v3842
      %v3856 = vunpack.c.l.b16 %v3843
      %v3857 = vpack.c.b16 %v3854, %v3853
      %v3858 = vpack.c.b16 %v3856, %v3855
      %v3862 = vsel %vm875, %v3848, 0
      %3864 = vmatpush.bf16.msra.mxu0 0
      %3865 = vmatpush.bf16.msra.mxu0 0
      %3866 = vmatpush.bf16.msra.mxu0 0
      %3867 = vmatpush.bf16.msra.mxu0 0
      %3868 = vmatpush.bf16.msra.mxu0 0
      %3869 = vmatpush.bf16.msra.mxu0 0
      %3870 = vmatpush.bf16.msra.mxu0 %v3858
      %3871 = vmatpush.bf16.msra.mxu0 %v3857
      %3872 = vmatmul.bf16.gmra.mxu0 %v2694
      %v3873 = vpop.f32.mrf.mxu0
      %v3874 = vadd.f32 0.0, %v3873
      %v3875 = vpop.f32.mrf.mxu0
      %v3876 = vadd.f32 0.0, %v3875
      %3877 = vmatmul.bf16.gmra.mxu0 %v2697
      %v3878 = vpop.f32.mrf.mxu0
      %v3879 = vadd.f32 0.0, %v3878
      %v3880 = vpop.f32.mrf.mxu0
      %v3881 = vadd.f32 0.0, %v3880
      %3882 = vmatmul.bf16.gmra.mxu0 %v2700
      %v3883 = vpop.f32.mrf.mxu0
      %v3884 = vadd.f32 0.0, %v3883
      %v3885 = vpop.f32.mrf.mxu0
      %v3886 = vadd.f32 0.0, %v3885
      %3887 = vmatmul.bf16.gmra.mxu0 %v2703
      %v3888 = vpop.f32.mrf.mxu0
      %v3889 = vadd.f32 0.0, %v3888
      %v3890 = vpop.f32.mrf.mxu0
      %v3891 = vadd.f32 0.0, %v3890
      %3892 = vmatmul.bf16.gmra.mxu0 %v2706
      %v3893 = vpop.f32.mrf.mxu0
      %v3894 = vadd.f32 0.0, %v3893
      %v3895 = vpop.f32.mrf.mxu0
      %v3896 = vadd.f32 0.0, %v3895
      %3897 = vmatmul.bf16.gmra.mxu0 %v2709
      %v3898 = vpop.f32.mrf.mxu0
      %v3899 = vadd.f32 0.0, %v3898
      %v3900 = vpop.f32.mrf.mxu0
      %v3901 = vadd.f32 0.0, %v3900
      %3902 = vmatmul.bf16.gmra.mxu0 %v2712
      %v3903 = vpop.f32.mrf.mxu0
      %v3904 = vadd.f32 0.0, %v3903
      %v3905 = vpop.f32.mrf.mxu0
      %v3906 = vadd.f32 0.0, %v3905
      %3907 = vmatmul.bf16.gmra.mxu0 %v2715
      %v3908 = vpop.f32.mrf.mxu0
      %v3909 = vadd.f32 0.0, %v3908
      %v3910 = vpop.f32.mrf.mxu0
      %v3911 = vadd.f32 0.0, %v3910
      %3912 = vmatmul.bf16.gmra.mxu0 %v2718
      %v3913 = vpop.f32.mrf.mxu0
      %v3914 = vadd.f32 0.0, %v3913
      %v3915 = vpop.f32.mrf.mxu0
      %v3916 = vadd.f32 0.0, %v3915
      %3917 = vmatmul.bf16.gmra.mxu0 %v2721
      %v3918 = vpop.f32.mrf.mxu0
      %v3919 = vadd.f32 0.0, %v3918
      %v3920 = vpop.f32.mrf.mxu0
      %v3921 = vadd.f32 0.0, %v3920
      %3922 = vmatmul.bf16.gmra.mxu0 %v2724
      %v3923 = vpop.f32.mrf.mxu0
      %v3924 = vadd.f32 0.0, %v3923
      %v3925 = vpop.f32.mrf.mxu0
      %v3926 = vadd.f32 0.0, %v3925
      %3927 = vmatmul.bf16.gmra.mxu0 %v2727
      %v3928 = vpop.f32.mrf.mxu0
      %v3929 = vadd.f32 0.0, %v3928
      %v3930 = vpop.f32.mrf.mxu0
      %v3931 = vadd.f32 0.0, %v3930
      %3932 = vmatmul.bf16.gmra.mxu0 %v2730
      %v3933 = vpop.f32.mrf.mxu0
      %v3934 = vadd.f32 0.0, %v3933
      %v3935 = vpop.f32.mrf.mxu0
      %v3936 = vadd.f32 0.0, %v3935
      %3937 = vmatmul.bf16.gmra.mxu0 %v2733
      %v3938 = vpop.f32.mrf.mxu0
      %v3939 = vadd.f32 0.0, %v3938
      %v3940 = vpop.f32.mrf.mxu0
      %v3941 = vadd.f32 0.0, %v3940
      %3942 = vmatmul.bf16.gmra.mxu0 %v2736
      %v3943 = vpop.f32.mrf.mxu0
      %v3944 = vadd.f32 0.0, %v3943
      %v3945 = vpop.f32.mrf.mxu0
      %v3946 = vadd.f32 0.0, %v3945
      %3947 = vmatmul.bf16.gmra.mxu0 %v3862
      %v3948 = vpop.f32.mrf.mxu0
      %v3949 = vadd.f32 0.0, %v3948
      %v3950 = vpop.f32.mrf.mxu0
      %v3951 = vadd.f32 0.0, %v3950
      %3952 = vdwg.mxu0
      %v3953 = vadd.f32 %v3807, %v3874
      %v3954 = vadd.f32 %v3808, %v3876
      %v3955 = vadd.f32 %v3809, %v3879
      %v3956 = vadd.f32 %v3810, %v3881
      %v3957 = vadd.f32 %v3811, %v3884
      %v3958 = vadd.f32 %v3812, %v3886
      %v3959 = vadd.f32 %v3813, %v3889
      %v3960 = vadd.f32 %v3814, %v3891
      %v3961 = vadd.f32 %v3815, %v3894
      %v3962 = vadd.f32 %v3816, %v3896
      %v3963 = vadd.f32 %v3817, %v3899
      %v3964 = vadd.f32 %v3818, %v3901
      %v3965 = vadd.f32 %v3819, %v3904
      %v3966 = vadd.f32 %v3820, %v3906
      %v3967 = vadd.f32 %v3821, %v3909
      %v3968 = vadd.f32 %v3822, %v3911
      %v3969 = vadd.f32 %v3823, %v3914
      %v3970 = vadd.f32 %v3824, %v3916
      %v3971 = vadd.f32 %v3825, %v3919
      %v3972 = vadd.f32 %v3826, %v3921
      %v3973 = vadd.f32 %v3827, %v3924
      %v3974 = vadd.f32 %v3828, %v3926
      %v3975 = vadd.f32 %v3829, %v3929
      %v3976 = vadd.f32 %v3830, %v3931
      %v3977 = vadd.f32 %v3831, %v3934
      %v3978 = vadd.f32 %v3832, %v3936
      %v3979 = vadd.f32 %v3833, %v3939
      %v3980 = vadd.f32 %v3834, %v3941
      %v3981 = vadd.f32 %v3835, %v3944
      %v3982 = vadd.f32 %v3836, %v3946
      %v3983 = vadd.f32 %v3837, %v3949
      %v3984 = vadd.f32 %v3838, %v3951
      %v3986 = vshrl.u32 %v2587, 16
      %v3988 = vrot.slane %v3986, 4
      %v3989 = vshll.u32 %v2587, 16
      %v3991 = vrot.slane %v3989, 5
      %v3992 = vor.u32 %v3988, %v3991
      %v3993 = vrot.slane %v3992, 4
      %v3995 = vshll.u32 %v2588, 16
      %v3997 = vrot.slane %v3995, 5
      %v3998 = vsel %vm425, %v3993, %v3997
      %v3999 = vshrl.u32 %v2588, 16
      %v4001 = vrot.slane %v3999, 4
      %v4002 = vor.u32 %v4001, %v3997
      %v4003 = vrot.slane %v4002, 4
      %v4005 = vshll.u32 %v2589, 16
      %v4007 = vrot.slane %v4005, 5
      %v4008 = vsel %vm425, %v4003, %v4007
      %s4009 = scalar_lea.vmem %s3, 208
      %v4010 = vld [vmem:[%s4009] sm:$0xf]
      %v4011 = vld [vmem:[%s4009 + $0x4] sm:$0xf]
      %v4012 = vld [vmem:[%s4009 + $0x8] sm:$0xf]
      %v4013 = vld [vmem:[%s4009 + $0xc] sm:$0xf]
      %v4014 = vunpack.c.l.b16 %v3998
      %v4015 = vunpack.c.l.b16 %v4008
      %v4016 = vpack.c.b16 %v4015, %v4014
      %v4021 = vunpack.c.l.b16 %v4010
      %v4022 = vunpack.c.l.b16 %v4011
      %v4023 = vunpack.c.l.b16 %v4012
      %v4024 = vunpack.c.l.b16 %v4013
      %v4025 = vpack.c.b16 %v4022, %v4021
      %v4026 = vpack.c.b16 %v4024, %v4023
      %v4030 = vsel %vm875, %v4016, 0
      %4032 = vmatpush.bf16.msra.mxu0 0
      %4033 = vmatpush.bf16.msra.mxu0 0
      %4034 = vmatpush.bf16.msra.mxu0 0
      %4035 = vmatpush.bf16.msra.mxu0 0
      %4036 = vmatpush.bf16.msra.mxu0 0
      %4037 = vmatpush.bf16.msra.mxu0 0
      %4038 = vmatpush.bf16.msra.mxu0 %v4026
      %4039 = vmatpush.bf16.msra.mxu0 %v4025
      %4040 = vmatmul.bf16.gmra.mxu0 %v3312
      %v4041 = vpop.f32.mrf.mxu0
      %v4042 = vadd.f32 0.0, %v4041
      %v4043 = vpop.f32.mrf.mxu0
      %v4044 = vadd.f32 0.0, %v4043
      %4045 = vmatmul.bf16.gmra.mxu0 %v3315
      %v4046 = vpop.f32.mrf.mxu0
      %v4047 = vadd.f32 0.0, %v4046
      %v4048 = vpop.f32.mrf.mxu0
      %v4049 = vadd.f32 0.0, %v4048
      %4050 = vmatmul.bf16.gmra.mxu0 %v3318
      %v4051 = vpop.f32.mrf.mxu0
      %v4052 = vadd.f32 0.0, %v4051
      %v4053 = vpop.f32.mrf.mxu0
      %v4054 = vadd.f32 0.0, %v4053
      %4055 = vmatmul.bf16.gmra.mxu0 %v3321
      %v4056 = vpop.f32.mrf.mxu0
      %v4057 = vadd.f32 0.0, %v4056
      %v4058 = vpop.f32.mrf.mxu0
      %v4059 = vadd.f32 0.0, %v4058
      %4060 = vmatmul.bf16.gmra.mxu0 %v3324
      %v4061 = vpop.f32.mrf.mxu0
      %v4062 = vadd.f32 0.0, %v4061
      %v4063 = vpop.f32.mrf.mxu0
      %v4064 = vadd.f32 0.0, %v4063
      %4065 = vmatmul.bf16.gmra.mxu0 %v3327
      %v4066 = vpop.f32.mrf.mxu0
      %v4067 = vadd.f32 0.0, %v4066
      %v4068 = vpop.f32.mrf.mxu0
      %v4069 = vadd.f32 0.0, %v4068
      %4070 = vmatmul.bf16.gmra.mxu0 %v3330
      %v4071 = vpop.f32.mrf.mxu0
      %v4072 = vadd.f32 0.0, %v4071
      %v4073 = vpop.f32.mrf.mxu0
      %v4074 = vadd.f32 0.0, %v4073
      %4075 = vmatmul.bf16.gmra.mxu0 %v3333
      %v4076 = vpop.f32.mrf.mxu0
      %v4077 = vadd.f32 0.0, %v4076
      %v4078 = vpop.f32.mrf.mxu0
      %v4079 = vadd.f32 0.0, %v4078
      %4080 = vmatmul.bf16.gmra.mxu0 %v3336
      %v4081 = vpop.f32.mrf.mxu0
      %v4082 = vadd.f32 0.0, %v4081
      %v4083 = vpop.f32.mrf.mxu0
      %v4084 = vadd.f32 0.0, %v4083
      %4085 = vmatmul.bf16.gmra.mxu0 %v3339
      %v4086 = vpop.f32.mrf.mxu0
      %v4087 = vadd.f32 0.0, %v4086
      %v4088 = vpop.f32.mrf.mxu0
      %v4089 = vadd.f32 0.0, %v4088
      %4090 = vmatmul.bf16.gmra.mxu0 %v3342
      %v4091 = vpop.f32.mrf.mxu0
      %v4092 = vadd.f32 0.0, %v4091
      %v4093 = vpop.f32.mrf.mxu0
      %v4094 = vadd.f32 0.0, %v4093
      %4095 = vmatmul.bf16.gmra.mxu0 %v3345
      %v4096 = vpop.f32.mrf.mxu0
      %v4097 = vadd.f32 0.0, %v4096
      %v4098 = vpop.f32.mrf.mxu0
      %v4099 = vadd.f32 0.0, %v4098
      %4100 = vmatmul.bf16.gmra.mxu0 %v3348
      %v4101 = vpop.f32.mrf.mxu0
      %v4102 = vadd.f32 0.0, %v4101
      %v4103 = vpop.f32.mrf.mxu0
      %v4104 = vadd.f32 0.0, %v4103
      %4105 = vmatmul.bf16.gmra.mxu0 %v3351
      %v4106 = vpop.f32.mrf.mxu0
      %v4107 = vadd.f32 0.0, %v4106
      %v4108 = vpop.f32.mrf.mxu0
      %v4109 = vadd.f32 0.0, %v4108
      %4110 = vmatmul.bf16.gmra.mxu0 %v3354
      %v4111 = vpop.f32.mrf.mxu0
      %v4112 = vadd.f32 0.0, %v4111
      %v4113 = vpop.f32.mrf.mxu0
      %v4114 = vadd.f32 0.0, %v4113
      %4115 = vmatmul.bf16.gmra.mxu0 %v4030
      %v4116 = vpop.f32.mrf.mxu0
      %v4117 = vadd.f32 0.0, %v4116
      %v4118 = vpop.f32.mrf.mxu0
      %v4119 = vadd.f32 0.0, %v4118
      %4120 = vdwg.mxu0
      %v4121 = vadd.f32 %v3953, %v4042
      %v4122 = vadd.f32 %v3954, %v4044
      %v4123 = vadd.f32 %v3955, %v4047
      %v4124 = vadd.f32 %v3956, %v4049
      %v4125 = vadd.f32 %v3957, %v4052
      %v4126 = vadd.f32 %v3958, %v4054
      %v4127 = vadd.f32 %v3959, %v4057
      %v4128 = vadd.f32 %v3960, %v4059
      %v4129 = vadd.f32 %v3961, %v4062
      %v4130 = vadd.f32 %v3962, %v4064
      %v4131 = vadd.f32 %v3963, %v4067
      %v4132 = vadd.f32 %v3964, %v4069
      %v4133 = vadd.f32 %v3965, %v4072
      %v4134 = vadd.f32 %v3966, %v4074
      %v4135 = vadd.f32 %v3967, %v4077
      %v4136 = vadd.f32 %v3968, %v4079
      %v4137 = vadd.f32 %v3969, %v4082
      %v4138 = vadd.f32 %v3970, %v4084
      %v4139 = vadd.f32 %v3971, %v4087
      %v4140 = vadd.f32 %v3972, %v4089
      %v4141 = vadd.f32 %v3973, %v4092
      %v4142 = vadd.f32 %v3974, %v4094
      %v4143 = vadd.f32 %v3975, %v4097
      %v4144 = vadd.f32 %v3976, %v4099
      %v4145 = vadd.f32 %v3977, %v4102
      %v4146 = vadd.f32 %v3978, %v4104
      %v4147 = vadd.f32 %v3979, %v4107
      %v4148 = vadd.f32 %v3980, %v4109
      %v4149 = vadd.f32 %v3981, %v4112
      %v4150 = vadd.f32 %v3982, %v4114
      %v4151 = vadd.f32 %v3983, %v4117
      %v4152 = vadd.f32 %v3984, %v4119
      %v4154 = vrot.slane %v2587, 5
      %v4155 = vrot.slane %v4154, 4
      %v4156 = vrot.slane %v2588, 5
      %v4157 = vsel %vm1260, %v4155, %v4156
      %v4158 = vrot.slane %v4156, 4
      %v4159 = vrot.slane %v2589, 5
      %v4160 = vsel %vm1260, %v4158, %v4159
      %s4161 = scalar_lea.vmem %s3, 224
      %v4162 = vld [vmem:[%s4161] sm:$0xf]
      %v4163 = vld [vmem:[%s4161 + $0x4] sm:$0xf]
      %v4164 = vld [vmem:[%s4161 + $0x8] sm:$0xf]
      %v4165 = vld [vmem:[%s4161 + $0xc] sm:$0xf]
      %v4166 = vunpack.c.l.b16 %v4157
      %v4167 = vunpack.c.l.b16 %v4160
      %v4168 = vpack.c.b16 %v4167, %v4166
      %v4173 = vunpack.c.l.b16 %v4162
      %v4174 = vunpack.c.l.b16 %v4163
      %v4175 = vunpack.c.l.b16 %v4164
      %v4176 = vunpack.c.l.b16 %v4165
      %v4177 = vpack.c.b16 %v4174, %v4173
      %v4178 = vpack.c.b16 %v4176, %v4175
      %v4182 = vsel %vm875, %v4168, 0
      %4184 = vmatpush.bf16.msra.mxu0 0
      %4185 = vmatpush.bf16.msra.mxu0 0
      %4186 = vmatpush.bf16.msra.mxu0 0
      %4187 = vmatpush.bf16.msra.mxu0 0
      %4188 = vmatpush.bf16.msra.mxu0 0
      %4189 = vmatpush.bf16.msra.mxu0 0
      %4190 = vmatpush.bf16.msra.mxu0 %v4178
      %4191 = vmatpush.bf16.msra.mxu0 %v4177
      %4192 = vmatmul.bf16.gmra.mxu0 %v3674
      %v4193 = vpop.f32.mrf.mxu0
      %v4194 = vadd.f32 0.0, %v4193
      %v4195 = vpop.f32.mrf.mxu0
      %v4196 = vadd.f32 0.0, %v4195
      %4197 = vmatmul.bf16.gmra.mxu0 %v3677
      %v4198 = vpop.f32.mrf.mxu0
      %v4199 = vadd.f32 0.0, %v4198
      %v4200 = vpop.f32.mrf.mxu0
      %v4201 = vadd.f32 0.0, %v4200
      %4202 = vmatmul.bf16.gmra.mxu0 %v3680
      %v4203 = vpop.f32.mrf.mxu0
      %v4204 = vadd.f32 0.0, %v4203
      %v4205 = vpop.f32.mrf.mxu0
      %v4206 = vadd.f32 0.0, %v4205
      %4207 = vmatmul.bf16.gmra.mxu0 %v3683
      %v4208 = vpop.f32.mrf.mxu0
      %v4209 = vadd.f32 0.0, %v4208
      %v4210 = vpop.f32.mrf.mxu0
      %v4211 = vadd.f32 0.0, %v4210
      %4212 = vmatmul.bf16.gmra.mxu0 %v3686
      %v4213 = vpop.f32.mrf.mxu0
      %v4214 = vadd.f32 0.0, %v4213
      %v4215 = vpop.f32.mrf.mxu0
      %v4216 = vadd.f32 0.0, %v4215
      %4217 = vmatmul.bf16.gmra.mxu0 %v3689
      %v4218 = vpop.f32.mrf.mxu0
      %v4219 = vadd.f32 0.0, %v4218
      %v4220 = vpop.f32.mrf.mxu0
      %v4221 = vadd.f32 0.0, %v4220
      %4222 = vmatmul.bf16.gmra.mxu0 %v3692
      %v4223 = vpop.f32.mrf.mxu0
      %v4224 = vadd.f32 0.0, %v4223
      %v4225 = vpop.f32.mrf.mxu0
      %v4226 = vadd.f32 0.0, %v4225
      %4227 = vmatmul.bf16.gmra.mxu0 %v3695
      %v4228 = vpop.f32.mrf.mxu0
      %v4229 = vadd.f32 0.0, %v4228
      %v4230 = vpop.f32.mrf.mxu0
      %v4231 = vadd.f32 0.0, %v4230
      %4232 = vmatmul.bf16.gmra.mxu0 %v3698
      %v4233 = vpop.f32.mrf.mxu0
      %v4234 = vadd.f32 0.0, %v4233
      %v4235 = vpop.f32.mrf.mxu0
      %v4236 = vadd.f32 0.0, %v4235
      %4237 = vmatmul.bf16.gmra.mxu0 %v3701
      %v4238 = vpop.f32.mrf.mxu0
      %v4239 = vadd.f32 0.0, %v4238
      %v4240 = vpop.f32.mrf.mxu0
      %v4241 = vadd.f32 0.0, %v4240
      %4242 = vmatmul.bf16.gmra.mxu0 %v3704
      %v4243 = vpop.f32.mrf.mxu0
      %v4244 = vadd.f32 0.0, %v4243
      %v4245 = vpop.f32.mrf.mxu0
      %v4246 = vadd.f32 0.0, %v4245
      %4247 = vmatmul.bf16.gmra.mxu0 %v3707
      %v4248 = vpop.f32.mrf.mxu0
      %v4249 = vadd.f32 0.0, %v4248
      %v4250 = vpop.f32.mrf.mxu0
      %v4251 = vadd.f32 0.0, %v4250
      %4252 = vmatmul.bf16.gmra.mxu0 %v3710
      %v4253 = vpop.f32.mrf.mxu0
      %v4254 = vadd.f32 0.0, %v4253
      %v4255 = vpop.f32.mrf.mxu0
      %v4256 = vadd.f32 0.0, %v4255
      %4257 = vmatmul.bf16.gmra.mxu0 %v3713
      %v4258 = vpop.f32.mrf.mxu0
      %v4259 = vadd.f32 0.0, %v4258
      %v4260 = vpop.f32.mrf.mxu0
      %v4261 = vadd.f32 0.0, %v4260
      %4262 = vmatmul.bf16.gmra.mxu0 %v3716
      %v4263 = vpop.f32.mrf.mxu0
      %v4264 = vadd.f32 0.0, %v4263
      %v4265 = vpop.f32.mrf.mxu0
      %v4266 = vadd.f32 0.0, %v4265
      %4267 = vmatmul.bf16.gmra.mxu0 %v4182
      %v4268 = vpop.f32.mrf.mxu0
      %v4269 = vadd.f32 0.0, %v4268
      %v4270 = vpop.f32.mrf.mxu0
      %v4271 = vadd.f32 0.0, %v4270
      %4272 = vdwg.mxu0
      %v4273 = vadd.f32 %v4121, %v4194
      %v4274 = vadd.f32 %v4122, %v4196
      %v4275 = vadd.f32 %v4123, %v4199
      %v4276 = vadd.f32 %v4124, %v4201
      %v4277 = vadd.f32 %v4125, %v4204
      %v4278 = vadd.f32 %v4126, %v4206
      %v4279 = vadd.f32 %v4127, %v4209
      %v4280 = vadd.f32 %v4128, %v4211
      %v4281 = vadd.f32 %v4129, %v4214
      %v4282 = vadd.f32 %v4130, %v4216
      %v4283 = vadd.f32 %v4131, %v4219
      %v4284 = vadd.f32 %v4132, %v4221
      %v4285 = vadd.f32 %v4133, %v4224
      %v4286 = vadd.f32 %v4134, %v4226
      %v4287 = vadd.f32 %v4135, %v4229
      %v4288 = vadd.f32 %v4136, %v4231
      %v4289 = vadd.f32 %v4137, %v4234
      %v4290 = vadd.f32 %v4138, %v4236
      %v4291 = vadd.f32 %v4139, %v4239
      %v4292 = vadd.f32 %v4140, %v4241
      %v4293 = vadd.f32 %v4141, %v4244
      %v4294 = vadd.f32 %v4142, %v4246
      %v4295 = vadd.f32 %v4143, %v4249
      %v4296 = vadd.f32 %v4144, %v4251
      %v4297 = vadd.f32 %v4145, %v4254
      %v4298 = vadd.f32 %v4146, %v4256
      %v4299 = vadd.f32 %v4147, %v4259
      %v4300 = vadd.f32 %v4148, %v4261
      %v4301 = vadd.f32 %v4149, %v4264
      %v4302 = vadd.f32 %v4150, %v4266
      %v4303 = vadd.f32 %v4151, %v4269
      %v4304 = vadd.f32 %v4152, %v4271
      %s4305 = scalar_lea.vmem %s3, 240
      %v4306 = vld [vmem:[%s4305] sm:$0xf]
      %v4307 = vld [vmem:[%s4305 + $0x4] sm:$0xf]
      %v4308 = vld [vmem:[%s4305 + $0x8] sm:$0xf]
      %v4309 = vld [vmem:[%s4305 + $0xc] sm:$0xf]
      %v4312 = vunpack.c.l.b16 %v2590
      %v4313 = vunpack.c.l.b16 %v2591
      %v4314 = vpack.c.b16 %v4313, %v4312
      %v4319 = vunpack.c.l.b16 %v4306
      %v4320 = vunpack.c.l.b16 %v4307
      %v4321 = vunpack.c.l.b16 %v4308
      %v4322 = vunpack.c.l.b16 %v4309
      %v4323 = vpack.c.b16 %v4320, %v4319
      %v4324 = vpack.c.b16 %v4322, %v4321
      %v4328 = vsel %vm875, %v4314, 0
      %4330 = vmatpush.bf16.msra.mxu0 0
      %4331 = vmatpush.bf16.msra.mxu0 0
      %4332 = vmatpush.bf16.msra.mxu0 0
      %4333 = vmatpush.bf16.msra.mxu0 0
      %4334 = vmatpush.bf16.msra.mxu0 0
      %4335 = vmatpush.bf16.msra.mxu0 0
      %4336 = vmatpush.bf16.msra.mxu0 %v4324
      %4337 = vmatpush.bf16.msra.mxu0 %v4323
      %4338 = vmatmul.bf16.gmra.mxu0 %v2697
      %v4339 = vpop.f32.mrf.mxu0
      %v4340 = vadd.f32 0.0, %v4339
      %v4341 = vpop.f32.mrf.mxu0
      %v4342 = vadd.f32 0.0, %v4341
      %4343 = vmatmul.bf16.gmra.mxu0 %v2700
      %v4344 = vpop.f32.mrf.mxu0
      %v4345 = vadd.f32 0.0, %v4344
      %v4346 = vpop.f32.mrf.mxu0
      %v4347 = vadd.f32 0.0, %v4346
      %4348 = vmatmul.bf16.gmra.mxu0 %v2703
      %v4349 = vpop.f32.mrf.mxu0
      %v4350 = vadd.f32 0.0, %v4349
      %v4351 = vpop.f32.mrf.mxu0
      %v4352 = vadd.f32 0.0, %v4351
      %4353 = vmatmul.bf16.gmra.mxu0 %v2706
      %v4354 = vpop.f32.mrf.mxu0
      %v4355 = vadd.f32 0.0, %v4354
      %v4356 = vpop.f32.mrf.mxu0
      %v4357 = vadd.f32 0.0, %v4356
      %4358 = vmatmul.bf16.gmra.mxu0 %v2709
      %v4359 = vpop.f32.mrf.mxu0
      %v4360 = vadd.f32 0.0, %v4359
      %v4361 = vpop.f32.mrf.mxu0
      %v4362 = vadd.f32 0.0, %v4361
      %4363 = vmatmul.bf16.gmra.mxu0 %v2712
      %v4364 = vpop.f32.mrf.mxu0
      %v4365 = vadd.f32 0.0, %v4364
      %v4366 = vpop.f32.mrf.mxu0
      %v4367 = vadd.f32 0.0, %v4366
      %4368 = vmatmul.bf16.gmra.mxu0 %v2715
      %v4369 = vpop.f32.mrf.mxu0
      %v4370 = vadd.f32 0.0, %v4369
      %v4371 = vpop.f32.mrf.mxu0
      %v4372 = vadd.f32 0.0, %v4371
      %4373 = vmatmul.bf16.gmra.mxu0 %v2718
      %v4374 = vpop.f32.mrf.mxu0
      %v4375 = vadd.f32 0.0, %v4374
      %v4376 = vpop.f32.mrf.mxu0
      %v4377 = vadd.f32 0.0, %v4376
      %4378 = vmatmul.bf16.gmra.mxu0 %v2721
      %v4379 = vpop.f32.mrf.mxu0
      %v4380 = vadd.f32 0.0, %v4379
      %v4381 = vpop.f32.mrf.mxu0
      %v4382 = vadd.f32 0.0, %v4381
      %4383 = vmatmul.bf16.gmra.mxu0 %v2724
      %v4384 = vpop.f32.mrf.mxu0
      %v4385 = vadd.f32 0.0, %v4384
      %v4386 = vpop.f32.mrf.mxu0
      %v4387 = vadd.f32 0.0, %v4386
      %4388 = vmatmul.bf16.gmra.mxu0 %v2727
      %v4389 = vpop.f32.mrf.mxu0
      %v4390 = vadd.f32 0.0, %v4389
      %v4391 = vpop.f32.mrf.mxu0
      %v4392 = vadd.f32 0.0, %v4391
      %4393 = vmatmul.bf16.gmra.mxu0 %v2730
      %v4394 = vpop.f32.mrf.mxu0
      %v4395 = vadd.f32 0.0, %v4394
      %v4396 = vpop.f32.mrf.mxu0
      %v4397 = vadd.f32 0.0, %v4396
      %4398 = vmatmul.bf16.gmra.mxu0 %v2733
      %v4399 = vpop.f32.mrf.mxu0
      %v4400 = vadd.f32 0.0, %v4399
      %v4401 = vpop.f32.mrf.mxu0
      %v4402 = vadd.f32 0.0, %v4401
      %4403 = vmatmul.bf16.gmra.mxu0 %v2736
      %v4404 = vpop.f32.mrf.mxu0
      %v4405 = vadd.f32 0.0, %v4404
      %v4406 = vpop.f32.mrf.mxu0
      %v4407 = vadd.f32 0.0, %v4406
      %4408 = vmatmul.bf16.gmra.mxu0 %v3862
      %v4409 = vpop.f32.mrf.mxu0
      %v4410 = vadd.f32 0.0, %v4409
      %v4411 = vpop.f32.mrf.mxu0
      %v4412 = vadd.f32 0.0, %v4411
      %4413 = vmatmul.bf16.gmra.mxu0 %v4328
      %v4414 = vpop.f32.mrf.mxu0
      %v4415 = vadd.f32 0.0, %v4414
      %v4416 = vpop.f32.mrf.mxu0
      %v4417 = vadd.f32 0.0, %v4416
      %4418 = vdwg.mxu0
      %v4419 = vadd.f32 %v4273, %v4340
      %v4420 = vadd.f32 %v4274, %v4342
      %v4421 = vadd.f32 %v4275, %v4345
      %v4422 = vadd.f32 %v4276, %v4347
      %v4423 = vadd.f32 %v4277, %v4350
      %v4424 = vadd.f32 %v4278, %v4352
      %v4425 = vadd.f32 %v4279, %v4355
      %v4426 = vadd.f32 %v4280, %v4357
      %v4427 = vadd.f32 %v4281, %v4360
      %v4428 = vadd.f32 %v4282, %v4362
      %v4429 = vadd.f32 %v4283, %v4365
      %v4430 = vadd.f32 %v4284, %v4367
      %v4431 = vadd.f32 %v4285, %v4370
      %v4432 = vadd.f32 %v4286, %v4372
      %v4433 = vadd.f32 %v4287, %v4375
      %v4434 = vadd.f32 %v4288, %v4377
      %v4435 = vadd.f32 %v4289, %v4380
      %v4436 = vadd.f32 %v4290, %v4382
      %v4437 = vadd.f32 %v4291, %v4385
      %v4438 = vadd.f32 %v4292, %v4387
      %v4439 = vadd.f32 %v4293, %v4390
      %v4440 = vadd.f32 %v4294, %v4392
      %v4441 = vadd.f32 %v4295, %v4395
      %v4442 = vadd.f32 %v4296, %v4397
      %v4443 = vadd.f32 %v4297, %v4400
      %v4444 = vadd.f32 %v4298, %v4402
      %v4445 = vadd.f32 %v4299, %v4405
      %v4446 = vadd.f32 %v4300, %v4407
      %v4447 = vadd.f32 %v4301, %v4410
      %v4448 = vadd.f32 %v4302, %v4412
      %v4449 = vadd.f32 %v4303, %v4415
      %v4450 = vadd.f32 %v4304, %v4417
      %v4452 = vshrl.u32 %v2590, 16
      %v4454 = vrot.slane %v4452, 4
      %v4455 = vshll.u32 %v2590, 16
      %v4457 = vrot.slane %v4455, 5
      %v4458 = vor.u32 %v4454, %v4457
      %v4459 = vrot.slane %v4458, 4
      %v4461 = vshll.u32 %v2591, 16
      %v4463 = vrot.slane %v4461, 5
      %v4464 = vsel %vm425, %v4459, %v4463
      %v4465 = vshrl.u32 %v2591, 16
      %v4467 = vrot.slane %v4465, 4
      %v4468 = vor.u32 %v4467, %v4463
      %v4469 = vrot.slane %v4468, 4
      %v4471 = vshll.u32 %v2592, 16
      %v4473 = vrot.slane %v4471, 5
      %v4474 = vsel %vm425, %v4469, %v4473
      %s4475 = scalar_lea.vmem %s3, 256
      %v4476 = vld [vmem:[%s4475] sm:$0xf]
      %v4477 = vld [vmem:[%s4475 + $0x4] sm:$0xf]
      %v4478 = vld [vmem:[%s4475 + $0x8] sm:$0xf]
      %v4479 = vld [vmem:[%s4475 + $0xc] sm:$0xf]
      %v4480 = vunpack.c.l.b16 %v4464
      %v4481 = vunpack.c.l.b16 %v4474
      %v4482 = vpack.c.b16 %v4481, %v4480
      %v4487 = vunpack.c.l.b16 %v4476
      %v4488 = vunpack.c.l.b16 %v4477
      %v4489 = vunpack.c.l.b16 %v4478
      %v4490 = vunpack.c.l.b16 %v4479
      %v4491 = vpack.c.b16 %v4488, %v4487
      %v4492 = vpack.c.b16 %v4490, %v4489
      %v4496 = vsel %vm875, %v4482, 0
      %4498 = vmatpush.bf16.msra.mxu0 0
      %4499 = vmatpush.bf16.msra.mxu0 0
      %4500 = vmatpush.bf16.msra.mxu0 0
      %4501 = vmatpush.bf16.msra.mxu0 0
      %4502 = vmatpush.bf16.msra.mxu0 0
      %4503 = vmatpush.bf16.msra.mxu0 0
      %4504 = vmatpush.bf16.msra.mxu0 %v4492
      %4505 = vmatpush.bf16.msra.mxu0 %v4491
      %4506 = vmatmul.bf16.gmra.mxu0 %v3315
      %v4507 = vpop.f32.mrf.mxu0
      %v4508 = vadd.f32 0.0, %v4507
      %v4509 = vpop.f32.mrf.mxu0
      %v4510 = vadd.f32 0.0, %v4509
      %4511 = vmatmul.bf16.gmra.mxu0 %v3318
      %v4512 = vpop.f32.mrf.mxu0
      %v4513 = vadd.f32 0.0, %v4512
      %v4514 = vpop.f32.mrf.mxu0
      %v4515 = vadd.f32 0.0, %v4514
      %4516 = vmatmul.bf16.gmra.mxu0 %v3321
      %v4517 = vpop.f32.mrf.mxu0
      %v4518 = vadd.f32 0.0, %v4517
      %v4519 = vpop.f32.mrf.mxu0
      %v4520 = vadd.f32 0.0, %v4519
      %4521 = vmatmul.bf16.gmra.mxu0 %v3324
      %v4522 = vpop.f32.mrf.mxu0
      %v4523 = vadd.f32 0.0, %v4522
      %v4524 = vpop.f32.mrf.mxu0
      %v4525 = vadd.f32 0.0, %v4524
      %4526 = vmatmul.bf16.gmra.mxu0 %v3327
      %v4527 = vpop.f32.mrf.mxu0
      %v4528 = vadd.f32 0.0, %v4527
      %v4529 = vpop.f32.mrf.mxu0
      %v4530 = vadd.f32 0.0, %v4529
      %4531 = vmatmul.bf16.gmra.mxu0 %v3330
      %v4532 = vpop.f32.mrf.mxu0
      %v4533 = vadd.f32 0.0, %v4532
      %v4534 = vpop.f32.mrf.mxu0
      %v4535 = vadd.f32 0.0, %v4534
      %4536 = vmatmul.bf16.gmra.mxu0 %v3333
      %v4537 = vpop.f32.mrf.mxu0
      %v4538 = vadd.f32 0.0, %v4537
      %v4539 = vpop.f32.mrf.mxu0
      %v4540 = vadd.f32 0.0, %v4539
      %4541 = vmatmul.bf16.gmra.mxu0 %v3336
      %v4542 = vpop.f32.mrf.mxu0
      %v4543 = vadd.f32 0.0, %v4542
      %v4544 = vpop.f32.mrf.mxu0
      %v4545 = vadd.f32 0.0, %v4544
      %4546 = vmatmul.bf16.gmra.mxu0 %v3339
      %v4547 = vpop.f32.mrf.mxu0
      %v4548 = vadd.f32 0.0, %v4547
      %v4549 = vpop.f32.mrf.mxu0
      %v4550 = vadd.f32 0.0, %v4549
      %4551 = vmatmul.bf16.gmra.mxu0 %v3342
      %v4552 = vpop.f32.mrf.mxu0
      %v4553 = vadd.f32 0.0, %v4552
      %v4554 = vpop.f32.mrf.mxu0
      %v4555 = vadd.f32 0.0, %v4554
      %4556 = vmatmul.bf16.gmra.mxu0 %v3345
      %v4557 = vpop.f32.mrf.mxu0
      %v4558 = vadd.f32 0.0, %v4557
      %v4559 = vpop.f32.mrf.mxu0
      %v4560 = vadd.f32 0.0, %v4559
      %4561 = vmatmul.bf16.gmra.mxu0 %v3348
      %v4562 = vpop.f32.mrf.mxu0
      %v4563 = vadd.f32 0.0, %v4562
      %v4564 = vpop.f32.mrf.mxu0
      %v4565 = vadd.f32 0.0, %v4564
      %4566 = vmatmul.bf16.gmra.mxu0 %v3351
      %v4567 = vpop.f32.mrf.mxu0
      %v4568 = vadd.f32 0.0, %v4567
      %v4569 = vpop.f32.mrf.mxu0
      %v4570 = vadd.f32 0.0, %v4569
      %4571 = vmatmul.bf16.gmra.mxu0 %v3354
      %v4572 = vpop.f32.mrf.mxu0
      %v4573 = vadd.f32 0.0, %v4572
      %v4574 = vpop.f32.mrf.mxu0
      %v4575 = vadd.f32 0.0, %v4574
      %4576 = vmatmul.bf16.gmra.mxu0 %v4030
      %v4577 = vpop.f32.mrf.mxu0
      %v4578 = vadd.f32 0.0, %v4577
      %v4579 = vpop.f32.mrf.mxu0
      %v4580 = vadd.f32 0.0, %v4579
      %4581 = vmatmul.bf16.gmra.mxu0 %v4496
      %v4582 = vpop.f32.mrf.mxu0
      %v4583 = vadd.f32 0.0, %v4582
      %v4584 = vpop.f32.mrf.mxu0
      %v4585 = vadd.f32 0.0, %v4584
      %4586 = vdwg.mxu0
      %v4587 = vadd.f32 %v4419, %v4508
      %v4588 = vadd.f32 %v4420, %v4510
      %v4589 = vadd.f32 %v4421, %v4513
      %v4590 = vadd.f32 %v4422, %v4515
      %v4591 = vadd.f32 %v4423, %v4518
      %v4592 = vadd.f32 %v4424, %v4520
      %v4593 = vadd.f32 %v4425, %v4523
      %v4594 = vadd.f32 %v4426, %v4525
      %v4595 = vadd.f32 %v4427, %v4528
      %v4596 = vadd.f32 %v4428, %v4530
      %v4597 = vadd.f32 %v4429, %v4533
      %v4598 = vadd.f32 %v4430, %v4535
      %v4599 = vadd.f32 %v4431, %v4538
      %v4600 = vadd.f32 %v4432, %v4540
      %v4601 = vadd.f32 %v4433, %v4543
      %v4602 = vadd.f32 %v4434, %v4545
      %v4603 = vadd.f32 %v4435, %v4548
      %v4604 = vadd.f32 %v4436, %v4550
      %v4605 = vadd.f32 %v4437, %v4553
      %v4606 = vadd.f32 %v4438, %v4555
      %v4607 = vadd.f32 %v4439, %v4558
      %v4608 = vadd.f32 %v4440, %v4560
      %v4609 = vadd.f32 %v4441, %v4563
      %v4610 = vadd.f32 %v4442, %v4565
      %v4611 = vadd.f32 %v4443, %v4568
      %v4612 = vadd.f32 %v4444, %v4570
      %v4613 = vadd.f32 %v4445, %v4573
      %v4614 = vadd.f32 %v4446, %v4575
      %v4615 = vadd.f32 %v4447, %v4578
      %v4616 = vadd.f32 %v4448, %v4580
      %v4617 = vadd.f32 %v4449, %v4583
      %v4618 = vadd.f32 %v4450, %v4585
      %v4620 = vrot.slane %v2590, 5
      %v4621 = vrot.slane %v4620, 4
      %v4622 = vrot.slane %v2591, 5
      %v4623 = vsel %vm1260, %v4621, %v4622
      %v4624 = vrot.slane %v4622, 4
      %v4625 = vrot.slane %v2592, 5
      %v4626 = vsel %vm1260, %v4624, %v4625
      %s4627 = scalar_lea.vmem %s3, 272
      %v4628 = vld [vmem:[%s4627] sm:$0xf]
      %v4629 = vld [vmem:[%s4627 + $0x4] sm:$0xf]
      %v4630 = vld [vmem:[%s4627 + $0x8] sm:$0xf]
      %v4631 = vld [vmem:[%s4627 + $0xc] sm:$0xf]
      %v4632 = vunpack.c.l.b16 %v4623
      %v4633 = vunpack.c.l.b16 %v4626
      %v4634 = vpack.c.b16 %v4633, %v4632
      %v4639 = vunpack.c.l.b16 %v4628
      %v4640 = vunpack.c.l.b16 %v4629
      %v4641 = vunpack.c.l.b16 %v4630
      %v4642 = vunpack.c.l.b16 %v4631
      %v4643 = vpack.c.b16 %v4640, %v4639
      %v4644 = vpack.c.b16 %v4642, %v4641
      %v4648 = vsel %vm875, %v4634, 0
      %4650 = vmatpush.bf16.msra.mxu0 0
      %4651 = vmatpush.bf16.msra.mxu0 0
      %4652 = vmatpush.bf16.msra.mxu0 0
      %4653 = vmatpush.bf16.msra.mxu0 0
      %4654 = vmatpush.bf16.msra.mxu0 0
      %4655 = vmatpush.bf16.msra.mxu0 0
      %4656 = vmatpush.bf16.msra.mxu0 %v4644
      %4657 = vmatpush.bf16.msra.mxu0 %v4643
      %4658 = vmatmul.bf16.gmra.mxu0 %v3677
      %v4659 = vpop.f32.mrf.mxu0
      %v4660 = vadd.f32 0.0, %v4659
      %v4661 = vpop.f32.mrf.mxu0
      %v4662 = vadd.f32 0.0, %v4661
      %4663 = vmatmul.bf16.gmra.mxu0 %v3680
      %v4664 = vpop.f32.mrf.mxu0
      %v4665 = vadd.f32 0.0, %v4664
      %v4666 = vpop.f32.mrf.mxu0
      %v4667 = vadd.f32 0.0, %v4666
      %4668 = vmatmul.bf16.gmra.mxu0 %v3683
      %v4669 = vpop.f32.mrf.mxu0
      %v4670 = vadd.f32 0.0, %v4669
      %v4671 = vpop.f32.mrf.mxu0
      %v4672 = vadd.f32 0.0, %v4671
      %4673 = vmatmul.bf16.gmra.mxu0 %v3686
      %v4674 = vpop.f32.mrf.mxu0
      %v4675 = vadd.f32 0.0, %v4674
      %v4676 = vpop.f32.mrf.mxu0
      %v4677 = vadd.f32 0.0, %v4676
      %4678 = vmatmul.bf16.gmra.mxu0 %v3689
      %v4679 = vpop.f32.mrf.mxu0
      %v4680 = vadd.f32 0.0, %v4679
      %v4681 = vpop.f32.mrf.mxu0
      %v4682 = vadd.f32 0.0, %v4681
      %4683 = vmatmul.bf16.gmra.mxu0 %v3692
      %v4684 = vpop.f32.mrf.mxu0
      %v4685 = vadd.f32 0.0, %v4684
      %v4686 = vpop.f32.mrf.mxu0
      %v4687 = vadd.f32 0.0, %v4686
      %4688 = vmatmul.bf16.gmra.mxu0 %v3695
      %v4689 = vpop.f32.mrf.mxu0
      %v4690 = vadd.f32 0.0, %v4689
      %v4691 = vpop.f32.mrf.mxu0
      %v4692 = vadd.f32 0.0, %v4691
      %4693 = vmatmul.bf16.gmra.mxu0 %v3698
      %v4694 = vpop.f32.mrf.mxu0
      %v4695 = vadd.f32 0.0, %v4694
      %v4696 = vpop.f32.mrf.mxu0
      %v4697 = vadd.f32 0.0, %v4696
      %4698 = vmatmul.bf16.gmra.mxu0 %v3701
      %v4699 = vpop.f32.mrf.mxu0
      %v4700 = vadd.f32 0.0, %v4699
      %v4701 = vpop.f32.mrf.mxu0
      %v4702 = vadd.f32 0.0, %v4701
      %4703 = vmatmul.bf16.gmra.mxu0 %v3704
      %v4704 = vpop.f32.mrf.mxu0
      %v4705 = vadd.f32 0.0, %v4704
      %v4706 = vpop.f32.mrf.mxu0
      %v4707 = vadd.f32 0.0, %v4706
      %4708 = vmatmul.bf16.gmra.mxu0 %v3707
      %v4709 = vpop.f32.mrf.mxu0
      %v4710 = vadd.f32 0.0, %v4709
      %v4711 = vpop.f32.mrf.mxu0
      %v4712 = vadd.f32 0.0, %v4711
      %4713 = vmatmul.bf16.gmra.mxu0 %v3710
      %v4714 = vpop.f32.mrf.mxu0
      %v4715 = vadd.f32 0.0, %v4714
      %v4716 = vpop.f32.mrf.mxu0
      %v4717 = vadd.f32 0.0, %v4716
      %4718 = vmatmul.bf16.gmra.mxu0 %v3713
      %v4719 = vpop.f32.mrf.mxu0
      %v4720 = vadd.f32 0.0, %v4719
      %v4721 = vpop.f32.mrf.mxu0
      %v4722 = vadd.f32 0.0, %v4721
      %4723 = vmatmul.bf16.gmra.mxu0 %v3716
      %v4724 = vpop.f32.mrf.mxu0
      %v4725 = vadd.f32 0.0, %v4724
      %v4726 = vpop.f32.mrf.mxu0
      %v4727 = vadd.f32 0.0, %v4726
      %4728 = vmatmul.bf16.gmra.mxu0 %v4182
      %v4729 = vpop.f32.mrf.mxu0
      %v4730 = vadd.f32 0.0, %v4729
      %v4731 = vpop.f32.mrf.mxu0
      %v4732 = vadd.f32 0.0, %v4731
      %4733 = vmatmul.bf16.gmra.mxu0 %v4648
      %v4734 = vpop.f32.mrf.mxu0
      %v4735 = vadd.f32 0.0, %v4734
      %v4736 = vpop.f32.mrf.mxu0
      %v4737 = vadd.f32 0.0, %v4736
      %4738 = vdwg.mxu0
      %v4739 = vadd.f32 %v4587, %v4660
      %v4740 = vadd.f32 %v4588, %v4662
      %v4741 = vadd.f32 %v4589, %v4665
      %v4742 = vadd.f32 %v4590, %v4667
      %v4743 = vadd.f32 %v4591, %v4670
      %v4744 = vadd.f32 %v4592, %v4672
      %v4745 = vadd.f32 %v4593, %v4675
      %v4746 = vadd.f32 %v4594, %v4677
      %v4747 = vadd.f32 %v4595, %v4680
      %v4748 = vadd.f32 %v4596, %v4682
      %v4749 = vadd.f32 %v4597, %v4685
      %v4750 = vadd.f32 %v4598, %v4687
      %v4751 = vadd.f32 %v4599, %v4690
      %v4752 = vadd.f32 %v4600, %v4692
      %v4753 = vadd.f32 %v4601, %v4695
      %v4754 = vadd.f32 %v4602, %v4697
      %v4755 = vadd.f32 %v4603, %v4700
      %v4756 = vadd.f32 %v4604, %v4702
      %v4757 = vadd.f32 %v4605, %v4705
      %v4758 = vadd.f32 %v4606, %v4707
      %v4759 = vadd.f32 %v4607, %v4710
      %v4760 = vadd.f32 %v4608, %v4712
      %v4761 = vadd.f32 %v4609, %v4715
      %v4762 = vadd.f32 %v4610, %v4717
      %v4763 = vadd.f32 %v4611, %v4720
      %v4764 = vadd.f32 %v4612, %v4722
      %v4765 = vadd.f32 %v4613, %v4725
      %v4766 = vadd.f32 %v4614, %v4727
      %v4767 = vadd.f32 %v4615, %v4730
      %v4768 = vadd.f32 %v4616, %v4732
      %v4769 = vadd.f32 %v4617, %v4735
      %v4770 = vadd.f32 %v4618, %v4737
      %v4771 = vld [vmem:[%s345] sm:$0xf]
      %v4772 = vld [vmem:[%s345 + $0x4] sm:$0xf]
      %v4773 = vld [vmem:[%s345 + $0x8] sm:$0x1]
      %v4774 = vld [vmem:[%s345 + $0xc] sm:$0xf]
      %v4775 = vld [vmem:[%s345 + $0x10] sm:$0xf]
      %v4776 = vld [vmem:[%s345 + $0x14] sm:$0x1]
      %v4777 = vld [vmem:[%s345 + $0x18] sm:$0xf]
      %v4778 = vld [vmem:[%s345 + $0x1c] sm:$0xf]
      %v4779 = vld [vmem:[%s345 + $0x20] sm:$0x1]
      %v4780 = vld [vmem:[%s345 + $0x24] sm:$0xf]
      %v4781 = vld [vmem:[%s345 + $0x28] sm:$0xf]
      %v4782 = vld [vmem:[%s345 + $0x2c] sm:$0x1]
      %v4783 = vld [vmem:[%s345 + $0x30] sm:$0xf]
      %v4784 = vld [vmem:[%s345 + $0x34] sm:$0xf]
      %v4785 = vld [vmem:[%s345 + $0x38] sm:$0x1]
      %v4786 = vld [vmem:[%s345 + $0x3c] sm:$0xf]
      %v4787 = vld [vmem:[%s345 + $0x40] sm:$0xf]
      %v4788 = vld [vmem:[%s345 + $0x44] sm:$0x1]
      %v4789 = vld [vmem:[%s345 + $0x48] sm:$0xf]
      %v4790 = vld [vmem:[%s345 + $0x4c] sm:$0xf]
      %v4791 = vld [vmem:[%s345 + $0x50] sm:$0x1]
      %v4792 = vld [vmem:[%s345 + $0x54] sm:$0xf]
      %v4793 = vld [vmem:[%s345 + $0x58] sm:$0xf]
      %v4794 = vld [vmem:[%s345 + $0x5c] sm:$0x1]
      %v4795 = vld [vmem:[%s345 + $0x60] sm:$0xf]
      %v4796 = vld [vmem:[%s345 + $0x64] sm:$0xf]
      %v4797 = vld [vmem:[%s345 + $0x68] sm:$0x1]
      %v4798 = vld [vmem:[%s345 + $0x6c] sm:$0xf]
      %v4799 = vld [vmem:[%s345 + $0x70] sm:$0xf]
      %v4800 = vld [vmem:[%s345 + $0x74] sm:$0x1]
      %v4801 = vld [vmem:[%s345 + $0x78] sm:$0xf]
      %v4802 = vld [vmem:[%s345 + $0x7c] sm:$0xf]
      %v4803 = vld [vmem:[%s345 + $0x80] sm:$0x1]
      %v4804 = vld [vmem:[%s345 + $0x84] sm:$0xf]
      %v4805 = vld [vmem:[%s345 + $0x88] sm:$0xf]
      %v4806 = vld [vmem:[%s345 + $0x8c] sm:$0x1]
      %v4807 = vld [vmem:[%s345 + $0x90] sm:$0xf]
      %v4808 = vld [vmem:[%s345 + $0x94] sm:$0xf]
      %v4809 = vld [vmem:[%s345 + $0x98] sm:$0x1]
      %v4810 = vld [vmem:[%s345 + $0x9c] sm:$0xf]
      %v4811 = vld [vmem:[%s345 + $0xa0] sm:$0xf]
      %v4812 = vld [vmem:[%s345 + $0xa4] sm:$0x1]
      %v4813 = vld [vmem:[%s345 + $0xa8] sm:$0xf]
      %v4814 = vld [vmem:[%s345 + $0xac] sm:$0xf]
      %v4815 = vld [vmem:[%s345 + $0xb0] sm:$0x1]
      %v4816 = vld [vmem:[%s345 + $0xb4] sm:$0xf]
      %v4817 = vld [vmem:[%s345 + $0xb8] sm:$0xf]
      %v4818 = vld [vmem:[%s345 + $0xbc] sm:$0x1]
      %v4819 = vld [vmem:[%s345 + $0xc0] sm:$0xf]
      %v4820 = vld [vmem:[%s345 + $0xc4] sm:$0xf]
      %v4821 = vld [vmem:[%s345 + $0xc8] sm:$0x1]
      %v4822 = vld [vmem:[%s345 + $0xcc] sm:$0xf]
      %v4823 = vld [vmem:[%s345 + $0xd0] sm:$0xf]
      %v4824 = vld [vmem:[%s345 + $0xd4] sm:$0x1]
      %s4825 = scalar_lea.vmem %s3, 288
      %v4826 = vld [vmem:[%s4825] sm:$0xf]
      %v4827 = vld [vmem:[%s4825 + $0x4] sm:$0xf]
      %v4828 = vld [vmem:[%s4825 + $0x8] sm:$0xf]
      %v4829 = vld [vmem:[%s4825 + $0xc] sm:$0xf]
      %v4862 = vunpack.c.l.b16 %v4771
      %v4863 = vunpack.c.l.b16 %v4772
      %v4864 = vunpack.c.l.b16 %v4774
      %v4865 = vunpack.c.l.b16 %v4775
      %v4866 = vunpack.c.l.b16 %v4777
      %v4867 = vunpack.c.l.b16 %v4778
      %v4868 = vunpack.c.l.b16 %v4780
      %v4869 = vunpack.c.l.b16 %v4781
      %v4870 = vunpack.c.l.b16 %v4783
      %v4871 = vunpack.c.l.b16 %v4784
      %v4872 = vunpack.c.l.b16 %v4786
      %v4873 = vunpack.c.l.b16 %v4787
      %v4874 = vunpack.c.l.b16 %v4789
      %v4875 = vunpack.c.l.b16 %v4790
      %v4876 = vunpack.c.l.b16 %v4792
      %v4877 = vunpack.c.l.b16 %v4793
      %v4878 = vunpack.c.l.b16 %v4795
      %v4879 = vunpack.c.l.b16 %v4796
      %v4880 = vunpack.c.l.b16 %v4798
      %v4881 = vunpack.c.l.b16 %v4799
      %v4882 = vunpack.c.l.b16 %v4801
      %v4883 = vunpack.c.l.b16 %v4802
      %v4884 = vunpack.c.l.b16 %v4804
      %v4885 = vunpack.c.l.b16 %v4805
      %v4886 = vunpack.c.l.b16 %v4807
      %v4887 = vunpack.c.l.b16 %v4808
      %v4888 = vunpack.c.l.b16 %v4810
      %v4889 = vunpack.c.l.b16 %v4811
      %v4890 = vunpack.c.l.b16 %v4813
      %v4891 = vunpack.c.l.b16 %v4814
      %v4892 = vunpack.c.l.b16 %v4816
      %v4893 = vunpack.c.l.b16 %v4817
      %v4894 = vpack.c.b16 %v4863, %v4862
      %v4895 = vpack.c.b16 %v4865, %v4864
      %v4896 = vpack.c.b16 %v4867, %v4866
      %v4897 = vpack.c.b16 %v4869, %v4868
      %v4898 = vpack.c.b16 %v4871, %v4870
      %v4899 = vpack.c.b16 %v4873, %v4872
      %v4900 = vpack.c.b16 %v4875, %v4874
      %v4901 = vpack.c.b16 %v4877, %v4876
      %v4902 = vpack.c.b16 %v4879, %v4878
      %v4903 = vpack.c.b16 %v4881, %v4880
      %v4904 = vpack.c.b16 %v4883, %v4882
      %v4905 = vpack.c.b16 %v4885, %v4884
      %v4906 = vpack.c.b16 %v4887, %v4886
      %v4907 = vpack.c.b16 %v4889, %v4888
      %v4908 = vpack.c.b16 %v4891, %v4890
      %v4909 = vpack.c.b16 %v4893, %v4892
      %v4914 = vunpack.c.l.b16 %v4826
      %v4915 = vunpack.c.l.b16 %v4827
      %v4916 = vunpack.c.l.b16 %v4828
      %v4917 = vunpack.c.l.b16 %v4829
      %v4918 = vpack.c.b16 %v4915, %v4914
      %v4919 = vpack.c.b16 %v4917, %v4916
      %v4923 = vsel %vm875, %v4894, 0
      %v4926 = vsel %vm875, %v4895, 0
      %v4929 = vsel %vm875, %v4896, 0
      %v4932 = vsel %vm875, %v4897, 0
      %v4935 = vsel %vm875, %v4898, 0
      %v4938 = vsel %vm875, %v4899, 0
      %v4941 = vsel %vm875, %v4900, 0
      %v4944 = vsel %vm875, %v4901, 0
      %v4947 = vsel %vm875, %v4902, 0
      %v4950 = vsel %vm875, %v4903, 0
      %v4953 = vsel %vm875, %v4904, 0
      %v4956 = vsel %vm875, %v4905, 0
      %v4959 = vsel %vm875, %v4906, 0
      %v4962 = vsel %vm875, %v4907, 0
      %v4965 = vsel %vm875, %v4908, 0
      %v4968 = vsel %vm875, %v4909, 0
      %4970 = vmatpush.bf16.msra.mxu0 0
      %4971 = vmatpush.bf16.msra.mxu0 0
      %4972 = vmatpush.bf16.msra.mxu0 0
      %4973 = vmatpush.bf16.msra.mxu0 0
      %4974 = vmatpush.bf16.msra.mxu0 0
      %4975 = vmatpush.bf16.msra.mxu0 0
      %4976 = vmatpush.bf16.msra.mxu0 %v4919
      %4977 = vmatpush.bf16.msra.mxu0 %v4918
      %4978 = vmatmul.bf16.gmra.mxu0 %v4923
      %v4979 = vpop.f32.mrf.mxu0
      %v4980 = vadd.f32 0.0, %v4979
      %v4981 = vpop.f32.mrf.mxu0
      %v4982 = vadd.f32 0.0, %v4981
      %4983 = vmatmul.bf16.gmra.mxu0 %v4926
      %v4984 = vpop.f32.mrf.mxu0
      %v4985 = vadd.f32 0.0, %v4984
      %v4986 = vpop.f32.mrf.mxu0
      %v4987 = vadd.f32 0.0, %v4986
      %4988 = vmatmul.bf16.gmra.mxu0 %v4929
      %v4989 = vpop.f32.mrf.mxu0
      %v4990 = vadd.f32 0.0, %v4989
      %v4991 = vpop.f32.mrf.mxu0
      %v4992 = vadd.f32 0.0, %v4991
      %4993 = vmatmul.bf16.gmra.mxu0 %v4932
      %v4994 = vpop.f32.mrf.mxu0
      %v4995 = vadd.f32 0.0, %v4994
      %v4996 = vpop.f32.mrf.mxu0
      %v4997 = vadd.f32 0.0, %v4996
      %4998 = vmatmul.bf16.gmra.mxu0 %v4935
      %v4999 = vpop.f32.mrf.mxu0
      %v5000 = vadd.f32 0.0, %v4999
      %v5001 = vpop.f32.mrf.mxu0
      %v5002 = vadd.f32 0.0, %v5001
      %5003 = vmatmul.bf16.gmra.mxu0 %v4938
      %v5004 = vpop.f32.mrf.mxu0
      %v5005 = vadd.f32 0.0, %v5004
      %v5006 = vpop.f32.mrf.mxu0
      %v5007 = vadd.f32 0.0, %v5006
      %5008 = vmatmul.bf16.gmra.mxu0 %v4941
      %v5009 = vpop.f32.mrf.mxu0
      %v5010 = vadd.f32 0.0, %v5009
      %v5011 = vpop.f32.mrf.mxu0
      %v5012 = vadd.f32 0.0, %v5011
      %5013 = vmatmul.bf16.gmra.mxu0 %v4944
      %v5014 = vpop.f32.mrf.mxu0
      %v5015 = vadd.f32 0.0, %v5014
      %v5016 = vpop.f32.mrf.mxu0
      %v5017 = vadd.f32 0.0, %v5016
      %5018 = vmatmul.bf16.gmra.mxu0 %v4947
      %v5019 = vpop.f32.mrf.mxu0
      %v5020 = vadd.f32 0.0, %v5019
      %v5021 = vpop.f32.mrf.mxu0
      %v5022 = vadd.f32 0.0, %v5021
      %5023 = vmatmul.bf16.gmra.mxu0 %v4950
      %v5024 = vpop.f32.mrf.mxu0
      %v5025 = vadd.f32 0.0, %v5024
      %v5026 = vpop.f32.mrf.mxu0
      %v5027 = vadd.f32 0.0, %v5026
      %5028 = vmatmul.bf16.gmra.mxu0 %v4953
      %v5029 = vpop.f32.mrf.mxu0
      %v5030 = vadd.f32 0.0, %v5029
      %v5031 = vpop.f32.mrf.mxu0
      %v5032 = vadd.f32 0.0, %v5031
      %5033 = vmatmul.bf16.gmra.mxu0 %v4956
      %v5034 = vpop.f32.mrf.mxu0
      %v5035 = vadd.f32 0.0, %v5034
      %v5036 = vpop.f32.mrf.mxu0
      %v5037 = vadd.f32 0.0, %v5036
      %5038 = vmatmul.bf16.gmra.mxu0 %v4959
      %v5039 = vpop.f32.mrf.mxu0
      %v5040 = vadd.f32 0.0, %v5039
      %v5041 = vpop.f32.mrf.mxu0
      %v5042 = vadd.f32 0.0, %v5041
      %5043 = vmatmul.bf16.gmra.mxu0 %v4962
      %v5044 = vpop.f32.mrf.mxu0
      %v5045 = vadd.f32 0.0, %v5044
      %v5046 = vpop.f32.mrf.mxu0
      %v5047 = vadd.f32 0.0, %v5046
      %5048 = vmatmul.bf16.gmra.mxu0 %v4965
      %v5049 = vpop.f32.mrf.mxu0
      %v5050 = vadd.f32 0.0, %v5049
      %v5051 = vpop.f32.mrf.mxu0
      %v5052 = vadd.f32 0.0, %v5051
      %5053 = vmatmul.bf16.gmra.mxu0 %v4968
      %v5054 = vpop.f32.mrf.mxu0
      %v5055 = vadd.f32 0.0, %v5054
      %v5056 = vpop.f32.mrf.mxu0
      %v5057 = vadd.f32 0.0, %v5056
      %5058 = vdwg.mxu0
      %v5059 = vadd.f32 %v4739, %v4980
      %v5060 = vadd.f32 %v4740, %v4982
      %v5061 = vadd.f32 %v4741, %v4985
      %v5062 = vadd.f32 %v4742, %v4987
      %v5063 = vadd.f32 %v4743, %v4990
      %v5064 = vadd.f32 %v4744, %v4992
      %v5065 = vadd.f32 %v4745, %v4995
      %v5066 = vadd.f32 %v4746, %v4997
      %v5067 = vadd.f32 %v4747, %v5000
      %v5068 = vadd.f32 %v4748, %v5002
      %v5069 = vadd.f32 %v4749, %v5005
      %v5070 = vadd.f32 %v4750, %v5007
      %v5071 = vadd.f32 %v4751, %v5010
      %v5072 = vadd.f32 %v4752, %v5012
      %v5073 = vadd.f32 %v4753, %v5015
      %v5074 = vadd.f32 %v4754, %v5017
      %v5075 = vadd.f32 %v4755, %v5020
      %v5076 = vadd.f32 %v4756, %v5022
      %v5077 = vadd.f32 %v4757, %v5025
      %v5078 = vadd.f32 %v4758, %v5027
      %v5079 = vadd.f32 %v4759, %v5030
      %v5080 = vadd.f32 %v4760, %v5032
      %v5081 = vadd.f32 %v4761, %v5035
      %v5082 = vadd.f32 %v4762, %v5037
      %v5083 = vadd.f32 %v4763, %v5040
      %v5084 = vadd.f32 %v4764, %v5042
      %v5085 = vadd.f32 %v4765, %v5045
      %v5086 = vadd.f32 %v4766, %v5047
      %v5087 = vadd.f32 %v4767, %v5050
      %v5088 = vadd.f32 %v4768, %v5052
      %v5089 = vadd.f32 %v4769, %v5055
      %v5090 = vadd.f32 %v4770, %v5057
      %v5092 = vshrl.u32 %v4771, 16
      %v5094 = vrot.slane %v5092, 4
      %v5095 = vshll.u32 %v4771, 16
      %v5097 = vrot.slane %v5095, 5
      %v5098 = vor.u32 %v5094, %v5097
      %v5099 = vrot.slane %v5098, 4
      %v5101 = vshll.u32 %v4772, 16
      %v5103 = vrot.slane %v5101, 5
      %v5104 = vsel %vm425, %v5099, %v5103
      %v5105 = vshrl.u32 %v4772, 16
      %v5107 = vrot.slane %v5105, 4
      %v5108 = vor.u32 %v5107, %v5103
      %v5109 = vrot.slane %v5108, 4
      %v5111 = vshll.u32 %v4773, 16
      %v5113 = vrot.slane %v5111, 5
      %v5114 = vsel %vm425, %v5109, %v5113
      %v5116 = vshrl.u32 %v4774, 16
      %v5118 = vrot.slane %v5116, 4
      %v5119 = vshll.u32 %v4774, 16
      %v5121 = vrot.slane %v5119, 5
      %v5122 = vor.u32 %v5118, %v5121
      %v5123 = vrot.slane %v5122, 4
      %v5125 = vshll.u32 %v4775, 16
      %v5127 = vrot.slane %v5125, 5
      %v5128 = vsel %vm425, %v5123, %v5127
      %v5129 = vshrl.u32 %v4775, 16
      %v5131 = vrot.slane %v5129, 4
      %v5132 = vor.u32 %v5131, %v5127
      %v5133 = vrot.slane %v5132, 4
      %v5135 = vshll.u32 %v4776, 16
      %v5137 = vrot.slane %v5135, 5
      %v5138 = vsel %vm425, %v5133, %v5137
      %v5140 = vshrl.u32 %v4777, 16
      %v5142 = vrot.slane %v5140, 4
      %v5143 = vshll.u32 %v4777, 16
      %v5145 = vrot.slane %v5143, 5
      %v5146 = vor.u32 %v5142, %v5145
      %v5147 = vrot.slane %v5146, 4
      %v5149 = vshll.u32 %v4778, 16
      %v5151 = vrot.slane %v5149, 5
      %v5152 = vsel %vm425, %v5147, %v5151
      %v5153 = vshrl.u32 %v4778, 16
      %v5155 = vrot.slane %v5153, 4
      %v5156 = vor.u32 %v5155, %v5151
      %v5157 = vrot.slane %v5156, 4
      %v5159 = vshll.u32 %v4779, 16
      %v5161 = vrot.slane %v5159, 5
      %v5162 = vsel %vm425, %v5157, %v5161
      %v5164 = vshrl.u32 %v4780, 16
      %v5166 = vrot.slane %v5164, 4
      %v5167 = vshll.u32 %v4780, 16
      %v5169 = vrot.slane %v5167, 5
      %v5170 = vor.u32 %v5166, %v5169
      %v5171 = vrot.slane %v5170, 4
      %v5173 = vshll.u32 %v4781, 16
      %v5175 = vrot.slane %v5173, 5
      %v5176 = vsel %vm425, %v5171, %v5175
      %v5177 = vshrl.u32 %v4781, 16
      %v5179 = vrot.slane %v5177, 4
      %v5180 = vor.u32 %v5179, %v5175
      %v5181 = vrot.slane %v5180, 4
      %v5183 = vshll.u32 %v4782, 16
      %v5185 = vrot.slane %v5183, 5
      %v5186 = vsel %vm425, %v5181, %v5185
      %v5188 = vshrl.u32 %v4783, 16
      %v5190 = vrot.slane %v5188, 4
      %v5191 = vshll.u32 %v4783, 16
      %v5193 = vrot.slane %v5191, 5
      %v5194 = vor.u32 %v5190, %v5193
      %v5195 = vrot.slane %v5194, 4
      %v5197 = vshll.u32 %v4784, 16
      %v5199 = vrot.slane %v5197, 5
      %v5200 = vsel %vm425, %v5195, %v5199
      %v5201 = vshrl.u32 %v4784, 16
      %v5203 = vrot.slane %v5201, 4
      %v5204 = vor.u32 %v5203, %v5199
      %v5205 = vrot.slane %v5204, 4
      %v5207 = vshll.u32 %v4785, 16
      %v5209 = vrot.slane %v5207, 5
      %v5210 = vsel %vm425, %v5205, %v5209
      %v5212 = vshrl.u32 %v4786, 16
      %v5214 = vrot.slane %v5212, 4
      %v5215 = vshll.u32 %v4786, 16
      %v5217 = vrot.slane %v5215, 5
      %v5218 = vor.u32 %v5214, %v5217
      %v5219 = vrot.slane %v5218, 4
      %v5221 = vshll.u32 %v4787, 16
      %v5223 = vrot.slane %v5221, 5
      %v5224 = vsel %vm425, %v5219, %v5223
      %v5225 = vshrl.u32 %v4787, 16
      %v5227 = vrot.slane %v5225, 4
      %v5228 = vor.u32 %v5227, %v5223
      %v5229 = vrot.slane %v5228, 4
      %v5231 = vshll.u32 %v4788, 16
      %v5233 = vrot.slane %v5231, 5
      %v5234 = vsel %vm425, %v5229, %v5233
      %v5236 = vshrl.u32 %v4789, 16
      %v5238 = vrot.slane %v5236, 4
      %v5239 = vshll.u32 %v4789, 16
      %v5241 = vrot.slane %v5239, 5
      %v5242 = vor.u32 %v5238, %v5241
      %v5243 = vrot.slane %v5242, 4
      %v5245 = vshll.u32 %v4790, 16
      %v5247 = vrot.slane %v5245, 5
      %v5248 = vsel %vm425, %v5243, %v5247
      %v5249 = vshrl.u32 %v4790, 16
      %v5251 = vrot.slane %v5249, 4
      %v5252 = vor.u32 %v5251, %v5247
      %v5253 = vrot.slane %v5252, 4
      %v5255 = vshll.u32 %v4791, 16
      %v5257 = vrot.slane %v5255, 5
      %v5258 = vsel %vm425, %v5253, %v5257
      %v5260 = vshrl.u32 %v4792, 16
      %v5262 = vrot.slane %v5260, 4
      %v5263 = vshll.u32 %v4792, 16
      %v5265 = vrot.slane %v5263, 5
      %v5266 = vor.u32 %v5262, %v5265
      %v5267 = vrot.slane %v5266, 4
      %v5269 = vshll.u32 %v4793, 16
      %v5271 = vrot.slane %v5269, 5
      %v5272 = vsel %vm425, %v5267, %v5271
      %v5273 = vshrl.u32 %v4793, 16
      %v5275 = vrot.slane %v5273, 4
      %v5276 = vor.u32 %v5275, %v5271
      %v5277 = vrot.slane %v5276, 4
      %v5279 = vshll.u32 %v4794, 16
      %v5281 = vrot.slane %v5279, 5
      %v5282 = vsel %vm425, %v5277, %v5281
      %v5284 = vshrl.u32 %v4795, 16
      %v5286 = vrot.slane %v5284, 4
      %v5287 = vshll.u32 %v4795, 16
      %v5289 = vrot.slane %v5287, 5
      %v5290 = vor.u32 %v5286, %v5289
      %v5291 = vrot.slane %v5290, 4
      %v5293 = vshll.u32 %v4796, 16
      %v5295 = vrot.slane %v5293, 5
      %v5296 = vsel %vm425, %v5291, %v5295
      %v5297 = vshrl.u32 %v4796, 16
      %v5299 = vrot.slane %v5297, 4
      %v5300 = vor.u32 %v5299, %v5295
      %v5301 = vrot.slane %v5300, 4
      %v5303 = vshll.u32 %v4797, 16
      %v5305 = vrot.slane %v5303, 5
      %v5306 = vsel %vm425, %v5301, %v5305
      %v5308 = vshrl.u32 %v4798, 16
      %v5310 = vrot.slane %v5308, 4
      %v5311 = vshll.u32 %v4798, 16
      %v5313 = vrot.slane %v5311, 5
      %v5314 = vor.u32 %v5310, %v5313
      %v5315 = vrot.slane %v5314, 4
      %v5317 = vshll.u32 %v4799, 16
      %v5319 = vrot.slane %v5317, 5
      %v5320 = vsel %vm425, %v5315, %v5319
      %v5321 = vshrl.u32 %v4799, 16
      %v5323 = vrot.slane %v5321, 4
      %v5324 = vor.u32 %v5323, %v5319
      %v5325 = vrot.slane %v5324, 4
      %v5327 = vshll.u32 %v4800, 16
      %v5329 = vrot.slane %v5327, 5
      %v5330 = vsel %vm425, %v5325, %v5329
      %v5332 = vshrl.u32 %v4801, 16
      %v5334 = vrot.slane %v5332, 4
      %v5335 = vshll.u32 %v4801, 16
      %v5337 = vrot.slane %v5335, 5
      %v5338 = vor.u32 %v5334, %v5337
      %v5339 = vrot.slane %v5338, 4
      %v5341 = vshll.u32 %v4802, 16
      %v5343 = vrot.slane %v5341, 5
      %v5344 = vsel %vm425, %v5339, %v5343
      %v5345 = vshrl.u32 %v4802, 16
      %v5347 = vrot.slane %v5345, 4
      %v5348 = vor.u32 %v5347, %v5343
      %v5349 = vrot.slane %v5348, 4
      %v5351 = vshll.u32 %v4803, 16
      %v5353 = vrot.slane %v5351, 5
      %v5354 = vsel %vm425, %v5349, %v5353
      %v5356 = vshrl.u32 %v4804, 16
      %v5358 = vrot.slane %v5356, 4
      %v5359 = vshll.u32 %v4804, 16
      %v5361 = vrot.slane %v5359, 5
      %v5362 = vor.u32 %v5358, %v5361
      %v5363 = vrot.slane %v5362, 4
      %v5365 = vshll.u32 %v4805, 16
      %v5367 = vrot.slane %v5365, 5
      %v5368 = vsel %vm425, %v5363, %v5367
      %v5369 = vshrl.u32 %v4805, 16
      %v5371 = vrot.slane %v5369, 4
      %v5372 = vor.u32 %v5371, %v5367
      %v5373 = vrot.slane %v5372, 4
      %v5375 = vshll.u32 %v4806, 16
      %v5377 = vrot.slane %v5375, 5
      %v5378 = vsel %vm425, %v5373, %v5377
      %v5380 = vshrl.u32 %v4807, 16
      %v5382 = vrot.slane %v5380, 4
      %v5383 = vshll.u32 %v4807, 16
      %v5385 = vrot.slane %v5383, 5
      %v5386 = vor.u32 %v5382, %v5385
      %v5387 = vrot.slane %v5386, 4
      %v5389 = vshll.u32 %v4808, 16
      %v5391 = vrot.slane %v5389, 5
      %v5392 = vsel %vm425, %v5387, %v5391
      %v5393 = vshrl.u32 %v4808, 16
      %v5395 = vrot.slane %v5393, 4
      %v5396 = vor.u32 %v5395, %v5391
      %v5397 = vrot.slane %v5396, 4
      %v5399 = vshll.u32 %v4809, 16
      %v5401 = vrot.slane %v5399, 5
      %v5402 = vsel %vm425, %v5397, %v5401
      %v5404 = vshrl.u32 %v4810, 16
      %v5406 = vrot.slane %v5404, 4
      %v5407 = vshll.u32 %v4810, 16
      %v5409 = vrot.slane %v5407, 5
      %v5410 = vor.u32 %v5406, %v5409
      %v5411 = vrot.slane %v5410, 4
      %v5413 = vshll.u32 %v4811, 16
      %v5415 = vrot.slane %v5413, 5
      %v5416 = vsel %vm425, %v5411, %v5415
      %v5417 = vshrl.u32 %v4811, 16
      %v5419 = vrot.slane %v5417, 4
      %v5420 = vor.u32 %v5419, %v5415
      %v5421 = vrot.slane %v5420, 4
      %v5423 = vshll.u32 %v4812, 16
      %v5425 = vrot.slane %v5423, 5
      %v5426 = vsel %vm425, %v5421, %v5425
      %v5428 = vshrl.u32 %v4813, 16
      %v5430 = vrot.slane %v5428, 4
      %v5431 = vshll.u32 %v4813, 16
      %v5433 = vrot.slane %v5431, 5
      %v5434 = vor.u32 %v5430, %v5433
      %v5435 = vrot.slane %v5434, 4
      %v5437 = vshll.u32 %v4814, 16
      %v5439 = vrot.slane %v5437, 5
      %v5440 = vsel %vm425, %v5435, %v5439
      %v5441 = vshrl.u32 %v4814, 16
      %v5443 = vrot.slane %v5441, 4
      %v5444 = vor.u32 %v5443, %v5439
      %v5445 = vrot.slane %v5444, 4
      %v5447 = vshll.u32 %v4815, 16
      %v5449 = vrot.slane %v5447, 5
      %v5450 = vsel %vm425, %v5445, %v5449
      %v5452 = vshrl.u32 %v4816, 16
      %v5454 = vrot.slane %v5452, 4
      %v5455 = vshll.u32 %v4816, 16
      %v5457 = vrot.slane %v5455, 5
      %v5458 = vor.u32 %v5454, %v5457
      %v5459 = vrot.slane %v5458, 4
      %v5461 = vshll.u32 %v4817, 16
      %v5463 = vrot.slane %v5461, 5
      %v5464 = vsel %vm425, %v5459, %v5463
      %v5465 = vshrl.u32 %v4817, 16
      %v5467 = vrot.slane %v5465, 4
      %v5468 = vor.u32 %v5467, %v5463
      %v5469 = vrot.slane %v5468, 4
      %v5471 = vshll.u32 %v4818, 16
      %v5473 = vrot.slane %v5471, 5
      %v5474 = vsel %vm425, %v5469, %v5473
      %s5475 = scalar_lea.vmem %s3, 304
      %v5476 = vld [vmem:[%s5475] sm:$0xf]
      %v5477 = vld [vmem:[%s5475 + $0x4] sm:$0xf]
      %v5478 = vld [vmem:[%s5475 + $0x8] sm:$0xf]
      %v5479 = vld [vmem:[%s5475 + $0xc] sm:$0xf]
      %v5480 = vunpack.c.l.b16 %v5104
      %v5481 = vunpack.c.l.b16 %v5114
      %v5482 = vunpack.c.l.b16 %v5128
      %v5483 = vunpack.c.l.b16 %v5138
      %v5484 = vunpack.c.l.b16 %v5152
      %v5485 = vunpack.c.l.b16 %v5162
      %v5486 = vunpack.c.l.b16 %v5176
      %v5487 = vunpack.c.l.b16 %v5186
      %v5488 = vunpack.c.l.b16 %v5200
      %v5489 = vunpack.c.l.b16 %v5210
      %v5490 = vunpack.c.l.b16 %v5224
      %v5491 = vunpack.c.l.b16 %v5234
      %v5492 = vunpack.c.l.b16 %v5248
      %v5493 = vunpack.c.l.b16 %v5258
      %v5494 = vunpack.c.l.b16 %v5272
      %v5495 = vunpack.c.l.b16 %v5282
      %v5496 = vunpack.c.l.b16 %v5296
      %v5497 = vunpack.c.l.b16 %v5306
      %v5498 = vunpack.c.l.b16 %v5320
      %v5499 = vunpack.c.l.b16 %v5330
      %v5500 = vunpack.c.l.b16 %v5344
      %v5501 = vunpack.c.l.b16 %v5354
      %v5502 = vunpack.c.l.b16 %v5368
      %v5503 = vunpack.c.l.b16 %v5378
      %v5504 = vunpack.c.l.b16 %v5392
      %v5505 = vunpack.c.l.b16 %v5402
      %v5506 = vunpack.c.l.b16 %v5416
      %v5507 = vunpack.c.l.b16 %v5426
      %v5508 = vunpack.c.l.b16 %v5440
      %v5509 = vunpack.c.l.b16 %v5450
      %v5510 = vunpack.c.l.b16 %v5464
      %v5511 = vunpack.c.l.b16 %v5474
      %v5512 = vpack.c.b16 %v5481, %v5480
      %v5513 = vpack.c.b16 %v5483, %v5482
      %v5514 = vpack.c.b16 %v5485, %v5484
      %v5515 = vpack.c.b16 %v5487, %v5486
      %v5516 = vpack.c.b16 %v5489, %v5488
      %v5517 = vpack.c.b16 %v5491, %v5490
      %v5518 = vpack.c.b16 %v5493, %v5492
      %v5519 = vpack.c.b16 %v5495, %v5494
      %v5520 = vpack.c.b16 %v5497, %v5496
      %v5521 = vpack.c.b16 %v5499, %v5498
      %v5522 = vpack.c.b16 %v5501, %v5500
      %v5523 = vpack.c.b16 %v5503, %v5502
      %v5524 = vpack.c.b16 %v5505, %v5504
      %v5525 = vpack.c.b16 %v5507, %v5506
      %v5526 = vpack.c.b16 %v5509, %v5508
      %v5527 = vpack.c.b16 %v5511, %v5510
      %v5532 = vunpack.c.l.b16 %v5476
      %v5533 = vunpack.c.l.b16 %v5477
      %v5534 = vunpack.c.l.b16 %v5478
      %v5535 = vunpack.c.l.b16 %v5479
      %v5536 = vpack.c.b16 %v5533, %v5532
      %v5537 = vpack.c.b16 %v5535, %v5534
      %v5541 = vsel %vm875, %v5512, 0
      %v5544 = vsel %vm875, %v5513, 0
      %v5547 = vsel %vm875, %v5514, 0
      %v5550 = vsel %vm875, %v5515, 0
      %v5553 = vsel %vm875, %v5516, 0
      %v5556 = vsel %vm875, %v5517, 0
      %v5559 = vsel %vm875, %v5518, 0
      %v5562 = vsel %vm875, %v5519, 0
      %v5565 = vsel %vm875, %v5520, 0
      %v5568 = vsel %vm875, %v5521, 0
      %v5571 = vsel %vm875, %v5522, 0
      %v5574 = vsel %vm875, %v5523, 0
      %v5577 = vsel %vm875, %v5524, 0
      %v5580 = vsel %vm875, %v5525, 0
      %v5583 = vsel %vm875, %v5526, 0
      %v5586 = vsel %vm875, %v5527, 0
      %5588 = vmatpush.bf16.msra.mxu0 0
      %5589 = vmatpush.bf16.msra.mxu0 0
      %5590 = vmatpush.bf16.msra.mxu0 0
      %5591 = vmatpush.bf16.msra.mxu0 0
      %5592 = vmatpush.bf16.msra.mxu0 0
      %5593 = vmatpush.bf16.msra.mxu0 0
      %5594 = vmatpush.bf16.msra.mxu0 %v5537
      %5595 = vmatpush.bf16.msra.mxu0 %v5536
      %5596 = vmatmul.bf16.gmra.mxu0 %v5541
      %v5597 = vpop.f32.mrf.mxu0
      %v5598 = vadd.f32 0.0, %v5597
      %v5599 = vpop.f32.mrf.mxu0
      %v5600 = vadd.f32 0.0, %v5599
      %5601 = vmatmul.bf16.gmra.mxu0 %v5544
      %v5602 = vpop.f32.mrf.mxu0
      %v5603 = vadd.f32 0.0, %v5602
      %v5604 = vpop.f32.mrf.mxu0
      %v5605 = vadd.f32 0.0, %v5604
      %5606 = vmatmul.bf16.gmra.mxu0 %v5547
      %v5607 = vpop.f32.mrf.mxu0
      %v5608 = vadd.f32 0.0, %v5607
      %v5609 = vpop.f32.mrf.mxu0
      %v5610 = vadd.f32 0.0, %v5609
      %5611 = vmatmul.bf16.gmra.mxu0 %v5550
      %v5612 = vpop.f32.mrf.mxu0
      %v5613 = vadd.f32 0.0, %v5612
      %v5614 = vpop.f32.mrf.mxu0
      %v5615 = vadd.f32 0.0, %v5614
      %5616 = vmatmul.bf16.gmra.mxu0 %v5553
      %v5617 = vpop.f32.mrf.mxu0
      %v5618 = vadd.f32 0.0, %v5617
      %v5619 = vpop.f32.mrf.mxu0
      %v5620 = vadd.f32 0.0, %v5619
      %5621 = vmatmul.bf16.gmra.mxu0 %v5556
      %v5622 = vpop.f32.mrf.mxu0
      %v5623 = vadd.f32 0.0, %v5622
      %v5624 = vpop.f32.mrf.mxu0
      %v5625 = vadd.f32 0.0, %v5624
      %5626 = vmatmul.bf16.gmra.mxu0 %v5559
      %v5627 = vpop.f32.mrf.mxu0
      %v5628 = vadd.f32 0.0, %v5627
      %v5629 = vpop.f32.mrf.mxu0
      %v5630 = vadd.f32 0.0, %v5629
      %5631 = vmatmul.bf16.gmra.mxu0 %v5562
      %v5632 = vpop.f32.mrf.mxu0
      %v5633 = vadd.f32 0.0, %v5632
      %v5634 = vpop.f32.mrf.mxu0
      %v5635 = vadd.f32 0.0, %v5634
      %5636 = vmatmul.bf16.gmra.mxu0 %v5565
      %v5637 = vpop.f32.mrf.mxu0
      %v5638 = vadd.f32 0.0, %v5637
      %v5639 = vpop.f32.mrf.mxu0
      %v5640 = vadd.f32 0.0, %v5639
      %5641 = vmatmul.bf16.gmra.mxu0 %v5568
      %v5642 = vpop.f32.mrf.mxu0
      %v5643 = vadd.f32 0.0, %v5642
      %v5644 = vpop.f32.mrf.mxu0
      %v5645 = vadd.f32 0.0, %v5644
      %5646 = vmatmul.bf16.gmra.mxu0 %v5571
      %v5647 = vpop.f32.mrf.mxu0
      %v5648 = vadd.f32 0.0, %v5647
      %v5649 = vpop.f32.mrf.mxu0
      %v5650 = vadd.f32 0.0, %v5649
      %5651 = vmatmul.bf16.gmra.mxu0 %v5574
      %v5652 = vpop.f32.mrf.mxu0
      %v5653 = vadd.f32 0.0, %v5652
      %v5654 = vpop.f32.mrf.mxu0
      %v5655 = vadd.f32 0.0, %v5654
      %5656 = vmatmul.bf16.gmra.mxu0 %v5577
      %v5657 = vpop.f32.mrf.mxu0
      %v5658 = vadd.f32 0.0, %v5657
      %v5659 = vpop.f32.mrf.mxu0
      %v5660 = vadd.f32 0.0, %v5659
      %5661 = vmatmul.bf16.gmra.mxu0 %v5580
      %v5662 = vpop.f32.mrf.mxu0
      %v5663 = vadd.f32 0.0, %v5662
      %v5664 = vpop.f32.mrf.mxu0
      %v5665 = vadd.f32 0.0, %v5664
      %5666 = vmatmul.bf16.gmra.mxu0 %v5583
      %v5667 = vpop.f32.mrf.mxu0
      %v5668 = vadd.f32 0.0, %v5667
      %v5669 = vpop.f32.mrf.mxu0
      %v5670 = vadd.f32 0.0, %v5669
      %5671 = vmatmul.bf16.gmra.mxu0 %v5586
      %v5672 = vpop.f32.mrf.mxu0
      %v5673 = vadd.f32 0.0, %v5672
      %v5674 = vpop.f32.mrf.mxu0
      %v5675 = vadd.f32 0.0, %v5674
      %5676 = vdwg.mxu0
      %v5677 = vadd.f32 %v5059, %v5598
      %v5678 = vadd.f32 %v5060, %v5600
      %v5679 = vadd.f32 %v5061, %v5603
      %v5680 = vadd.f32 %v5062, %v5605
      %v5681 = vadd.f32 %v5063, %v5608
      %v5682 = vadd.f32 %v5064, %v5610
      %v5683 = vadd.f32 %v5065, %v5613
      %v5684 = vadd.f32 %v5066, %v5615
      %v5685 = vadd.f32 %v5067, %v5618
      %v5686 = vadd.f32 %v5068, %v5620
      %v5687 = vadd.f32 %v5069, %v5623
      %v5688 = vadd.f32 %v5070, %v5625
      %v5689 = vadd.f32 %v5071, %v5628
      %v5690 = vadd.f32 %v5072, %v5630
      %v5691 = vadd.f32 %v5073, %v5633
      %v5692 = vadd.f32 %v5074, %v5635
      %v5693 = vadd.f32 %v5075, %v5638
      %v5694 = vadd.f32 %v5076, %v5640
      %v5695 = vadd.f32 %v5077, %v5643
      %v5696 = vadd.f32 %v5078, %v5645
      %v5697 = vadd.f32 %v5079, %v5648
      %v5698 = vadd.f32 %v5080, %v5650
      %v5699 = vadd.f32 %v5081, %v5653
      %v5700 = vadd.f32 %v5082, %v5655
      %v5701 = vadd.f32 %v5083, %v5658
      %v5702 = vadd.f32 %v5084, %v5660
      %v5703 = vadd.f32 %v5085, %v5663
      %v5704 = vadd.f32 %v5086, %v5665
      %v5705 = vadd.f32 %v5087, %v5668
      %v5706 = vadd.f32 %v5088, %v5670
      %v5707 = vadd.f32 %v5089, %v5673
      %v5708 = vadd.f32 %v5090, %v5675
      %v5725 = vrot.slane %v4771, 5
      %v5726 = vrot.slane %v5725, 4
      %v5727 = vrot.slane %v4772, 5
      %v5728 = vsel %vm1260, %v5726, %v5727
      %v5729 = vrot.slane %v5727, 4
      %v5730 = vrot.slane %v4773, 5
      %v5731 = vsel %vm1260, %v5729, %v5730
      %v5732 = vrot.slane %v4774, 5
      %v5733 = vrot.slane %v5732, 4
      %v5734 = vrot.slane %v4775, 5
      %v5735 = vsel %vm1260, %v5733, %v5734
      %v5736 = vrot.slane %v5734, 4
      %v5737 = vrot.slane %v4776, 5
      %v5738 = vsel %vm1260, %v5736, %v5737
      %v5739 = vrot.slane %v4777, 5
      %v5740 = vrot.slane %v5739, 4
      %v5741 = vrot.slane %v4778, 5
      %v5742 = vsel %vm1260, %v5740, %v5741
      %v5743 = vrot.slane %v5741, 4
      %v5744 = vrot.slane %v4779, 5
      %v5745 = vsel %vm1260, %v5743, %v5744
      %v5746 = vrot.slane %v4780, 5
      %v5747 = vrot.slane %v5746, 4
      %v5748 = vrot.slane %v4781, 5
      %v5749 = vsel %vm1260, %v5747, %v5748
      %v5750 = vrot.slane %v5748, 4
      %v5751 = vrot.slane %v4782, 5
      %v5752 = vsel %vm1260, %v5750, %v5751
      %v5753 = vrot.slane %v4783, 5
      %v5754 = vrot.slane %v5753, 4
      %v5755 = vrot.slane %v4784, 5
      %v5756 = vsel %vm1260, %v5754, %v5755
      %v5757 = vrot.slane %v5755, 4
      %v5758 = vrot.slane %v4785, 5
      %v5759 = vsel %vm1260, %v5757, %v5758
      %v5760 = vrot.slane %v4786, 5
      %v5761 = vrot.slane %v5760, 4
      %v5762 = vrot.slane %v4787, 5
      %v5763 = vsel %vm1260, %v5761, %v5762
      %v5764 = vrot.slane %v5762, 4
      %v5765 = vrot.slane %v4788, 5
      %v5766 = vsel %vm1260, %v5764, %v5765
      %v5767 = vrot.slane %v4789, 5
      %v5768 = vrot.slane %v5767, 4
      %v5769 = vrot.slane %v4790, 5
      %v5770 = vsel %vm1260, %v5768, %v5769
      %v5771 = vrot.slane %v5769, 4
      %v5772 = vrot.slane %v4791, 5
      %v5773 = vsel %vm1260, %v5771, %v5772
      %v5774 = vrot.slane %v4792, 5
      %v5775 = vrot.slane %v5774, 4
      %v5776 = vrot.slane %v4793, 5
      %v5777 = vsel %vm1260, %v5775, %v5776
      %v5778 = vrot.slane %v5776, 4
      %v5779 = vrot.slane %v4794, 5
      %v5780 = vsel %vm1260, %v5778, %v5779
      %v5781 = vrot.slane %v4795, 5
      %v5782 = vrot.slane %v5781, 4
      %v5783 = vrot.slane %v4796, 5
      %v5784 = vsel %vm1260, %v5782, %v5783
      %v5785 = vrot.slane %v5783, 4
      %v5786 = vrot.slane %v4797, 5
      %v5787 = vsel %vm1260, %v5785, %v5786
      %v5788 = vrot.slane %v4798, 5
      %v5789 = vrot.slane %v5788, 4
      %v5790 = vrot.slane %v4799, 5
      %v5791 = vsel %vm1260, %v5789, %v5790
      %v5792 = vrot.slane %v5790, 4
      %v5793 = vrot.slane %v4800, 5
      %v5794 = vsel %vm1260, %v5792, %v5793
      %v5795 = vrot.slane %v4801, 5
      %v5796 = vrot.slane %v5795, 4
      %v5797 = vrot.slane %v4802, 5
      %v5798 = vsel %vm1260, %v5796, %v5797
      %v5799 = vrot.slane %v5797, 4
      %v5800 = vrot.slane %v4803, 5
      %v5801 = vsel %vm1260, %v5799, %v5800
      %v5802 = vrot.slane %v4804, 5
      %v5803 = vrot.slane %v5802, 4
      %v5804 = vrot.slane %v4805, 5
      %v5805 = vsel %vm1260, %v5803, %v5804
      %v5806 = vrot.slane %v5804, 4
      %v5807 = vrot.slane %v4806, 5
      %v5808 = vsel %vm1260, %v5806, %v5807
      %v5809 = vrot.slane %v4807, 5
      %v5810 = vrot.slane %v5809, 4
      %v5811 = vrot.slane %v4808, 5
      %v5812 = vsel %vm1260, %v5810, %v5811
      %v5813 = vrot.slane %v5811, 4
      %v5814 = vrot.slane %v4809, 5
      %v5815 = vsel %vm1260, %v5813, %v5814
      %v5816 = vrot.slane %v4810, 5
      %v5817 = vrot.slane %v5816, 4
      %v5818 = vrot.slane %v4811, 5
      %v5819 = vsel %vm1260, %v5817, %v5818
      %v5820 = vrot.slane %v5818, 4
      %v5821 = vrot.slane %v4812, 5
      %v5822 = vsel %vm1260, %v5820, %v5821
      %v5823 = vrot.slane %v4813, 5
      %v5824 = vrot.slane %v5823, 4
      %v5825 = vrot.slane %v4814, 5
      %v5826 = vsel %vm1260, %v5824, %v5825
      %v5827 = vrot.slane %v5825, 4
      %v5828 = vrot.slane %v4815, 5
      %v5829 = vsel %vm1260, %v5827, %v5828
      %v5830 = vrot.slane %v4816, 5
      %v5831 = vrot.slane %v5830, 4
      %v5832 = vrot.slane %v4817, 5
      %v5833 = vsel %vm1260, %v5831, %v5832
      %v5834 = vrot.slane %v5832, 4
      %v5835 = vrot.slane %v4818, 5
      %v5836 = vsel %vm1260, %v5834, %v5835
      %s5837 = scalar_lea.vmem %s3, 320
      %v5838 = vld [vmem:[%s5837] sm:$0xf]
      %v5839 = vld [vmem:[%s5837 + $0x4] sm:$0xf]
      %v5840 = vld [vmem:[%s5837 + $0x8] sm:$0xf]
      %v5841 = vld [vmem:[%s5837 + $0xc] sm:$0xf]
      %v5842 = vunpack.c.l.b16 %v5728
      %v5843 = vunpack.c.l.b16 %v5731
      %v5844 = vunpack.c.l.b16 %v5735
      %v5845 = vunpack.c.l.b16 %v5738
      %v5846 = vunpack.c.l.b16 %v5742
      %v5847 = vunpack.c.l.b16 %v5745
      %v5848 = vunpack.c.l.b16 %v5749
      %v5849 = vunpack.c.l.b16 %v5752
      %v5850 = vunpack.c.l.b16 %v5756
      %v5851 = vunpack.c.l.b16 %v5759
      %v5852 = vunpack.c.l.b16 %v5763
      %v5853 = vunpack.c.l.b16 %v5766
      %v5854 = vunpack.c.l.b16 %v5770
      %v5855 = vunpack.c.l.b16 %v5773
      %v5856 = vunpack.c.l.b16 %v5777
      %v5857 = vunpack.c.l.b16 %v5780
      %v5858 = vunpack.c.l.b16 %v5784
      %v5859 = vunpack.c.l.b16 %v5787
      %v5860 = vunpack.c.l.b16 %v5791
      %v5861 = vunpack.c.l.b16 %v5794
      %v5862 = vunpack.c.l.b16 %v5798
      %v5863 = vunpack.c.l.b16 %v5801
      %v5864 = vunpack.c.l.b16 %v5805
      %v5865 = vunpack.c.l.b16 %v5808
      %v5866 = vunpack.c.l.b16 %v5812
      %v5867 = vunpack.c.l.b16 %v5815
      %v5868 = vunpack.c.l.b16 %v5819
      %v5869 = vunpack.c.l.b16 %v5822
      %v5870 = vunpack.c.l.b16 %v5826
      %v5871 = vunpack.c.l.b16 %v5829
      %v5872 = vunpack.c.l.b16 %v5833
      %v5873 = vunpack.c.l.b16 %v5836
      %v5874 = vpack.c.b16 %v5843, %v5842
      %v5875 = vpack.c.b16 %v5845, %v5844
      %v5876 = vpack.c.b16 %v5847, %v5846
      %v5877 = vpack.c.b16 %v5849, %v5848
      %v5878 = vpack.c.b16 %v5851, %v5850
      %v5879 = vpack.c.b16 %v5853, %v5852
      %v5880 = vpack.c.b16 %v5855, %v5854
      %v5881 = vpack.c.b16 %v5857, %v5856
      %v5882 = vpack.c.b16 %v5859, %v5858
      %v5883 = vpack.c.b16 %v5861, %v5860
      %v5884 = vpack.c.b16 %v5863, %v5862
      %v5885 = vpack.c.b16 %v5865, %v5864
      %v5886 = vpack.c.b16 %v5867, %v5866
      %v5887 = vpack.c.b16 %v5869, %v5868
      %v5888 = vpack.c.b16 %v5871, %v5870
      %v5889 = vpack.c.b16 %v5873, %v5872
      %v5894 = vunpack.c.l.b16 %v5838
      %v5895 = vunpack.c.l.b16 %v5839
      %v5896 = vunpack.c.l.b16 %v5840
      %v5897 = vunpack.c.l.b16 %v5841
      %v5898 = vpack.c.b16 %v5895, %v5894
      %v5899 = vpack.c.b16 %v5897, %v5896
      %v5903 = vsel %vm875, %v5874, 0
      %v5906 = vsel %vm875, %v5875, 0
      %v5909 = vsel %vm875, %v5876, 0
      %v5912 = vsel %vm875, %v5877, 0
      %v5915 = vsel %vm875, %v5878, 0
      %v5918 = vsel %vm875, %v5879, 0
      %v5921 = vsel %vm875, %v5880, 0
      %v5924 = vsel %vm875, %v5881, 0
      %v5927 = vsel %vm875, %v5882, 0
      %v5930 = vsel %vm875, %v5883, 0
      %v5933 = vsel %vm875, %v5884, 0
      %v5936 = vsel %vm875, %v5885, 0
      %v5939 = vsel %vm875, %v5886, 0
      %v5942 = vsel %vm875, %v5887, 0
      %v5945 = vsel %vm875, %v5888, 0
      %v5948 = vsel %vm875, %v5889, 0
      %5950 = vmatpush.bf16.msra.mxu0 0
      %5951 = vmatpush.bf16.msra.mxu0 0
      %5952 = vmatpush.bf16.msra.mxu0 0
      %5953 = vmatpush.bf16.msra.mxu0 0
      %5954 = vmatpush.bf16.msra.mxu0 0
      %5955 = vmatpush.bf16.msra.mxu0 0
      %5956 = vmatpush.bf16.msra.mxu0 %v5899
      %5957 = vmatpush.bf16.msra.mxu0 %v5898
      %5958 = vmatmul.bf16.gmra.mxu0 %v5903
      %v5959 = vpop.f32.mrf.mxu0
      %v5960 = vadd.f32 0.0, %v5959
      %v5961 = vpop.f32.mrf.mxu0
      %v5962 = vadd.f32 0.0, %v5961
      %5963 = vmatmul.bf16.gmra.mxu0 %v5906
      %v5964 = vpop.f32.mrf.mxu0
      %v5965 = vadd.f32 0.0, %v5964
      %v5966 = vpop.f32.mrf.mxu0
      %v5967 = vadd.f32 0.0, %v5966
      %5968 = vmatmul.bf16.gmra.mxu0 %v5909
      %v5969 = vpop.f32.mrf.mxu0
      %v5970 = vadd.f32 0.0, %v5969
      %v5971 = vpop.f32.mrf.mxu0
      %v5972 = vadd.f32 0.0, %v5971
      %5973 = vmatmul.bf16.gmra.mxu0 %v5912
      %v5974 = vpop.f32.mrf.mxu0
      %v5975 = vadd.f32 0.0, %v5974
      %v5976 = vpop.f32.mrf.mxu0
      %v5977 = vadd.f32 0.0, %v5976
      %5978 = vmatmul.bf16.gmra.mxu0 %v5915
      %v5979 = vpop.f32.mrf.mxu0
      %v5980 = vadd.f32 0.0, %v5979
      %v5981 = vpop.f32.mrf.mxu0
      %v5982 = vadd.f32 0.0, %v5981
      %5983 = vmatmul.bf16.gmra.mxu0 %v5918
      %v5984 = vpop.f32.mrf.mxu0
      %v5985 = vadd.f32 0.0, %v5984
      %v5986 = vpop.f32.mrf.mxu0
      %v5987 = vadd.f32 0.0, %v5986
      %5988 = vmatmul.bf16.gmra.mxu0 %v5921
      %v5989 = vpop.f32.mrf.mxu0
      %v5990 = vadd.f32 0.0, %v5989
      %v5991 = vpop.f32.mrf.mxu0
      %v5992 = vadd.f32 0.0, %v5991
      %5993 = vmatmul.bf16.gmra.mxu0 %v5924
      %v5994 = vpop.f32.mrf.mxu0
      %v5995 = vadd.f32 0.0, %v5994
      %v5996 = vpop.f32.mrf.mxu0
      %v5997 = vadd.f32 0.0, %v5996
      %5998 = vmatmul.bf16.gmra.mxu0 %v5927
      %v5999 = vpop.f32.mrf.mxu0
      %v6000 = vadd.f32 0.0, %v5999
      %v6001 = vpop.f32.mrf.mxu0
      %v6002 = vadd.f32 0.0, %v6001
      %6003 = vmatmul.bf16.gmra.mxu0 %v5930
      %v6004 = vpop.f32.mrf.mxu0
      %v6005 = vadd.f32 0.0, %v6004
      %v6006 = vpop.f32.mrf.mxu0
      %v6007 = vadd.f32 0.0, %v6006
      %6008 = vmatmul.bf16.gmra.mxu0 %v5933
      %v6009 = vpop.f32.mrf.mxu0
      %v6010 = vadd.f32 0.0, %v6009
      %v6011 = vpop.f32.mrf.mxu0
      %v6012 = vadd.f32 0.0, %v6011
      %6013 = vmatmul.bf16.gmra.mxu0 %v5936
      %v6014 = vpop.f32.mrf.mxu0
      %v6015 = vadd.f32 0.0, %v6014
      %v6016 = vpop.f32.mrf.mxu0
      %v6017 = vadd.f32 0.0, %v6016
      %6018 = vmatmul.bf16.gmra.mxu0 %v5939
      %v6019 = vpop.f32.mrf.mxu0
      %v6020 = vadd.f32 0.0, %v6019
      %v6021 = vpop.f32.mrf.mxu0
      %v6022 = vadd.f32 0.0, %v6021
      %6023 = vmatmul.bf16.gmra.mxu0 %v5942
      %v6024 = vpop.f32.mrf.mxu0
      %v6025 = vadd.f32 0.0, %v6024
      %v6026 = vpop.f32.mrf.mxu0
      %v6027 = vadd.f32 0.0, %v6026
      %6028 = vmatmul.bf16.gmra.mxu0 %v5945
      %v6029 = vpop.f32.mrf.mxu0
      %v6030 = vadd.f32 0.0, %v6029
      %v6031 = vpop.f32.mrf.mxu0
      %v6032 = vadd.f32 0.0, %v6031
      %6033 = vmatmul.bf16.gmra.mxu0 %v5948
      %v6034 = vpop.f32.mrf.mxu0
      %v6035 = vadd.f32 0.0, %v6034
      %v6036 = vpop.f32.mrf.mxu0
      %v6037 = vadd.f32 0.0, %v6036
      %6038 = vdwg.mxu0
      %v6039 = vadd.f32 %v5677, %v5960
      %v6040 = vadd.f32 %v5678, %v5962
      %v6041 = vadd.f32 %v5679, %v5965
      %v6042 = vadd.f32 %v5680, %v5967
      %v6043 = vadd.f32 %v5681, %v5970
      %v6044 = vadd.f32 %v5682, %v5972
      %v6045 = vadd.f32 %v5683, %v5975
      %v6046 = vadd.f32 %v5684, %v5977
      %v6047 = vadd.f32 %v5685, %v5980
      %v6048 = vadd.f32 %v5686, %v5982
      %v6049 = vadd.f32 %v5687, %v5985
      %v6050 = vadd.f32 %v5688, %v5987
      %v6051 = vadd.f32 %v5689, %v5990
      %v6052 = vadd.f32 %v5690, %v5992
      %v6053 = vadd.f32 %v5691, %v5995
      %v6054 = vadd.f32 %v5692, %v5997
      %v6055 = vadd.f32 %v5693, %v6000
      %v6056 = vadd.f32 %v5694, %v6002
      %v6057 = vadd.f32 %v5695, %v6005
      %v6058 = vadd.f32 %v5696, %v6007
      %v6059 = vadd.f32 %v5697, %v6010
      %v6060 = vadd.f32 %v5698, %v6012
      %v6061 = vadd.f32 %v5699, %v6015
      %v6062 = vadd.f32 %v5700, %v6017
      %v6063 = vadd.f32 %v5701, %v6020
      %v6064 = vadd.f32 %v5702, %v6022
      %v6065 = vadd.f32 %v5703, %v6025
      %v6066 = vadd.f32 %v5704, %v6027
      %v6067 = vadd.f32 %v5705, %v6030
      %v6068 = vadd.f32 %v5706, %v6032
      %v6069 = vadd.f32 %v5707, %v6035
      %v6070 = vadd.f32 %v5708, %v6037
      %s6071 = scalar_lea.vmem %s3, 336
      %v6072 = vld [vmem:[%s6071] sm:$0xf]
      %v6073 = vld [vmem:[%s6071 + $0x4] sm:$0xf]
      %v6074 = vld [vmem:[%s6071 + $0x8] sm:$0xf]
      %v6075 = vld [vmem:[%s6071 + $0xc] sm:$0xf]
      %v6078 = vunpack.c.l.b16 %v4819
      %v6079 = vunpack.c.l.b16 %v4820
      %v6080 = vpack.c.b16 %v6079, %v6078
      %v6085 = vunpack.c.l.b16 %v6072
      %v6086 = vunpack.c.l.b16 %v6073
      %v6087 = vunpack.c.l.b16 %v6074
      %v6088 = vunpack.c.l.b16 %v6075
      %v6089 = vpack.c.b16 %v6086, %v6085
      %v6090 = vpack.c.b16 %v6088, %v6087
      %v6094 = vsel %vm875, %v6080, 0
      %6096 = vmatpush.bf16.msra.mxu0 0
      %6097 = vmatpush.bf16.msra.mxu0 0
      %6098 = vmatpush.bf16.msra.mxu0 0
      %6099 = vmatpush.bf16.msra.mxu0 0
      %6100 = vmatpush.bf16.msra.mxu0 0
      %6101 = vmatpush.bf16.msra.mxu0 0
      %6102 = vmatpush.bf16.msra.mxu0 %v6090
      %6103 = vmatpush.bf16.msra.mxu0 %v6089
      %6104 = vmatmul.bf16.gmra.mxu0 %v4926
      %v6105 = vpop.f32.mrf.mxu0
      %v6106 = vadd.f32 0.0, %v6105
      %v6107 = vpop.f32.mrf.mxu0
      %v6108 = vadd.f32 0.0, %v6107
      %6109 = vmatmul.bf16.gmra.mxu0 %v4929
      %v6110 = vpop.f32.mrf.mxu0
      %v6111 = vadd.f32 0.0, %v6110
      %v6112 = vpop.f32.mrf.mxu0
      %v6113 = vadd.f32 0.0, %v6112
      %6114 = vmatmul.bf16.gmra.mxu0 %v4932
      %v6115 = vpop.f32.mrf.mxu0
      %v6116 = vadd.f32 0.0, %v6115
      %v6117 = vpop.f32.mrf.mxu0
      %v6118 = vadd.f32 0.0, %v6117
      %6119 = vmatmul.bf16.gmra.mxu0 %v4935
      %v6120 = vpop.f32.mrf.mxu0
      %v6121 = vadd.f32 0.0, %v6120
      %v6122 = vpop.f32.mrf.mxu0
      %v6123 = vadd.f32 0.0, %v6122
      %6124 = vmatmul.bf16.gmra.mxu0 %v4938
      %v6125 = vpop.f32.mrf.mxu0
      %v6126 = vadd.f32 0.0, %v6125
      %v6127 = vpop.f32.mrf.mxu0
      %v6128 = vadd.f32 0.0, %v6127
      %6129 = vmatmul.bf16.gmra.mxu0 %v4941
      %v6130 = vpop.f32.mrf.mxu0
      %v6131 = vadd.f32 0.0, %v6130
      %v6132 = vpop.f32.mrf.mxu0
      %v6133 = vadd.f32 0.0, %v6132
      %6134 = vmatmul.bf16.gmra.mxu0 %v4944
      %v6135 = vpop.f32.mrf.mxu0
      %v6136 = vadd.f32 0.0, %v6135
      %v6137 = vpop.f32.mrf.mxu0
      %v6138 = vadd.f32 0.0, %v6137
      %6139 = vmatmul.bf16.gmra.mxu0 %v4947
      %v6140 = vpop.f32.mrf.mxu0
      %v6141 = vadd.f32 0.0, %v6140
      %v6142 = vpop.f32.mrf.mxu0
      %v6143 = vadd.f32 0.0, %v6142
      %6144 = vmatmul.bf16.gmra.mxu0 %v4950
      %v6145 = vpop.f32.mrf.mxu0
      %v6146 = vadd.f32 0.0, %v6145
      %v6147 = vpop.f32.mrf.mxu0
      %v6148 = vadd.f32 0.0, %v6147
      %6149 = vmatmul.bf16.gmra.mxu0 %v4953
      %v6150 = vpop.f32.mrf.mxu0
      %v6151 = vadd.f32 0.0, %v6150
      %v6152 = vpop.f32.mrf.mxu0
      %v6153 = vadd.f32 0.0, %v6152
      %6154 = vmatmul.bf16.gmra.mxu0 %v4956
      %v6155 = vpop.f32.mrf.mxu0
      %v6156 = vadd.f32 0.0, %v6155
      %v6157 = vpop.f32.mrf.mxu0
      %v6158 = vadd.f32 0.0, %v6157
      %6159 = vmatmul.bf16.gmra.mxu0 %v4959
      %v6160 = vpop.f32.mrf.mxu0
      %v6161 = vadd.f32 0.0, %v6160
      %v6162 = vpop.f32.mrf.mxu0
      %v6163 = vadd.f32 0.0, %v6162
      %6164 = vmatmul.bf16.gmra.mxu0 %v4962
      %v6165 = vpop.f32.mrf.mxu0
      %v6166 = vadd.f32 0.0, %v6165
      %v6167 = vpop.f32.mrf.mxu0
      %v6168 = vadd.f32 0.0, %v6167
      %6169 = vmatmul.bf16.gmra.mxu0 %v4965
      %v6170 = vpop.f32.mrf.mxu0
      %v6171 = vadd.f32 0.0, %v6170
      %v6172 = vpop.f32.mrf.mxu0
      %v6173 = vadd.f32 0.0, %v6172
      %6174 = vmatmul.bf16.gmra.mxu0 %v4968
      %v6175 = vpop.f32.mrf.mxu0
      %v6176 = vadd.f32 0.0, %v6175
      %v6177 = vpop.f32.mrf.mxu0
      %v6178 = vadd.f32 0.0, %v6177
      %6179 = vmatmul.bf16.gmra.mxu0 %v6094
      %v6180 = vpop.f32.mrf.mxu0
      %v6181 = vadd.f32 0.0, %v6180
      %v6182 = vpop.f32.mrf.mxu0
      %v6183 = vadd.f32 0.0, %v6182
      %6184 = vdwg.mxu0
      %v6185 = vadd.f32 %v6039, %v6106
      %v6186 = vadd.f32 %v6040, %v6108
      %v6187 = vadd.f32 %v6041, %v6111
      %v6188 = vadd.f32 %v6042, %v6113
      %v6189 = vadd.f32 %v6043, %v6116
      %v6190 = vadd.f32 %v6044, %v6118
      %v6191 = vadd.f32 %v6045, %v6121
      %v6192 = vadd.f32 %v6046, %v6123
      %v6193 = vadd.f32 %v6047, %v6126
      %v6194 = vadd.f32 %v6048, %v6128
      %v6195 = vadd.f32 %v6049, %v6131
      %v6196 = vadd.f32 %v6050, %v6133
      %v6197 = vadd.f32 %v6051, %v6136
      %v6198 = vadd.f32 %v6052, %v6138
      %v6199 = vadd.f32 %v6053, %v6141
      %v6200 = vadd.f32 %v6054, %v6143
      %v6201 = vadd.f32 %v6055, %v6146
      %v6202 = vadd.f32 %v6056, %v6148
      %v6203 = vadd.f32 %v6057, %v6151
      %v6204 = vadd.f32 %v6058, %v6153
      %v6205 = vadd.f32 %v6059, %v6156
      %v6206 = vadd.f32 %v6060, %v6158
      %v6207 = vadd.f32 %v6061, %v6161
      %v6208 = vadd.f32 %v6062, %v6163
      %v6209 = vadd.f32 %v6063, %v6166
      %v6210 = vadd.f32 %v6064, %v6168
      %v6211 = vadd.f32 %v6065, %v6171
      %v6212 = vadd.f32 %v6066, %v6173
      %v6213 = vadd.f32 %v6067, %v6176
      %v6214 = vadd.f32 %v6068, %v6178
      %v6215 = vadd.f32 %v6069, %v6181
      %v6216 = vadd.f32 %v6070, %v6183
      %v6218 = vshrl.u32 %v4819, 16
      %v6220 = vrot.slane %v6218, 4
      %v6221 = vshll.u32 %v4819, 16
      %v6223 = vrot.slane %v6221, 5
      %v6224 = vor.u32 %v6220, %v6223
      %v6225 = vrot.slane %v6224, 4
      %v6227 = vshll.u32 %v4820, 16
      %v6229 = vrot.slane %v6227, 5
      %v6230 = vsel %vm425, %v6225, %v6229
      %v6231 = vshrl.u32 %v4820, 16
      %v6233 = vrot.slane %v6231, 4
      %v6234 = vor.u32 %v6233, %v6229
      %v6235 = vrot.slane %v6234, 4
      %v6237 = vshll.u32 %v4821, 16
      %v6239 = vrot.slane %v6237, 5
      %v6240 = vsel %vm425, %v6235, %v6239
      %s6241 = scalar_lea.vmem %s3, 352
      %v6242 = vld [vmem:[%s6241] sm:$0xf]
      %v6243 = vld [vmem:[%s6241 + $0x4] sm:$0xf]
      %v6244 = vld [vmem:[%s6241 + $0x8] sm:$0xf]
      %v6245 = vld [vmem:[%s6241 + $0xc] sm:$0xf]
      %v6246 = vunpack.c.l.b16 %v6230
      %v6247 = vunpack.c.l.b16 %v6240
      %v6248 = vpack.c.b16 %v6247, %v6246
      %v6253 = vunpack.c.l.b16 %v6242
      %v6254 = vunpack.c.l.b16 %v6243
      %v6255 = vunpack.c.l.b16 %v6244
      %v6256 = vunpack.c.l.b16 %v6245
      %v6257 = vpack.c.b16 %v6254, %v6253
      %v6258 = vpack.c.b16 %v6256, %v6255
      %v6262 = vsel %vm875, %v6248, 0
      %6264 = vmatpush.bf16.msra.mxu0 0
      %6265 = vmatpush.bf16.msra.mxu0 0
      %6266 = vmatpush.bf16.msra.mxu0 0
      %6267 = vmatpush.bf16.msra.mxu0 0
      %6268 = vmatpush.bf16.msra.mxu0 0
      %6269 = vmatpush.bf16.msra.mxu0 0
      %6270 = vmatpush.bf16.msra.mxu0 %v6258
      %6271 = vmatpush.bf16.msra.mxu0 %v6257
      %6272 = vmatmul.bf16.gmra.mxu0 %v5544
      %v6273 = vpop.f32.mrf.mxu0
      %v6274 = vadd.f32 0.0, %v6273
      %v6275 = vpop.f32.mrf.mxu0
      %v6276 = vadd.f32 0.0, %v6275
      %6277 = vmatmul.bf16.gmra.mxu0 %v5547
      %v6278 = vpop.f32.mrf.mxu0
      %v6279 = vadd.f32 0.0, %v6278
      %v6280 = vpop.f32.mrf.mxu0
      %v6281 = vadd.f32 0.0, %v6280
      %6282 = vmatmul.bf16.gmra.mxu0 %v5550
      %v6283 = vpop.f32.mrf.mxu0
      %v6284 = vadd.f32 0.0, %v6283
      %v6285 = vpop.f32.mrf.mxu0
      %v6286 = vadd.f32 0.0, %v6285
      %6287 = vmatmul.bf16.gmra.mxu0 %v5553
      %v6288 = vpop.f32.mrf.mxu0
      %v6289 = vadd.f32 0.0, %v6288
      %v6290 = vpop.f32.mrf.mxu0
      %v6291 = vadd.f32 0.0, %v6290
      %6292 = vmatmul.bf16.gmra.mxu0 %v5556
      %v6293 = vpop.f32.mrf.mxu0
      %v6294 = vadd.f32 0.0, %v6293
      %v6295 = vpop.f32.mrf.mxu0
      %v6296 = vadd.f32 0.0, %v6295
      %6297 = vmatmul.bf16.gmra.mxu0 %v5559
      %v6298 = vpop.f32.mrf.mxu0
      %v6299 = vadd.f32 0.0, %v6298
      %v6300 = vpop.f32.mrf.mxu0
      %v6301 = vadd.f32 0.0, %v6300
      %6302 = vmatmul.bf16.gmra.mxu0 %v5562
      %v6303 = vpop.f32.mrf.mxu0
      %v6304 = vadd.f32 0.0, %v6303
      %v6305 = vpop.f32.mrf.mxu0
      %v6306 = vadd.f32 0.0, %v6305
      %6307 = vmatmul.bf16.gmra.mxu0 %v5565
      %v6308 = vpop.f32.mrf.mxu0
      %v6309 = vadd.f32 0.0, %v6308
      %v6310 = vpop.f32.mrf.mxu0
      %v6311 = vadd.f32 0.0, %v6310
      %6312 = vmatmul.bf16.gmra.mxu0 %v5568
      %v6313 = vpop.f32.mrf.mxu0
      %v6314 = vadd.f32 0.0, %v6313
      %v6315 = vpop.f32.mrf.mxu0
      %v6316 = vadd.f32 0.0, %v6315
      %6317 = vmatmul.bf16.gmra.mxu0 %v5571
      %v6318 = vpop.f32.mrf.mxu0
      %v6319 = vadd.f32 0.0, %v6318
      %v6320 = vpop.f32.mrf.mxu0
      %v6321 = vadd.f32 0.0, %v6320
      %6322 = vmatmul.bf16.gmra.mxu0 %v5574
      %v6323 = vpop.f32.mrf.mxu0
      %v6324 = vadd.f32 0.0, %v6323
      %v6325 = vpop.f32.mrf.mxu0
      %v6326 = vadd.f32 0.0, %v6325
      %6327 = vmatmul.bf16.gmra.mxu0 %v5577
      %v6328 = vpop.f32.mrf.mxu0
      %v6329 = vadd.f32 0.0, %v6328
      %v6330 = vpop.f32.mrf.mxu0
      %v6331 = vadd.f32 0.0, %v6330
      %6332 = vmatmul.bf16.gmra.mxu0 %v5580
      %v6333 = vpop.f32.mrf.mxu0
      %v6334 = vadd.f32 0.0, %v6333
      %v6335 = vpop.f32.mrf.mxu0
      %v6336 = vadd.f32 0.0, %v6335
      %6337 = vmatmul.bf16.gmra.mxu0 %v5583
      %v6338 = vpop.f32.mrf.mxu0
      %v6339 = vadd.f32 0.0, %v6338
      %v6340 = vpop.f32.mrf.mxu0
      %v6341 = vadd.f32 0.0, %v6340
      %6342 = vmatmul.bf16.gmra.mxu0 %v5586
      %v6343 = vpop.f32.mrf.mxu0
      %v6344 = vadd.f32 0.0, %v6343
      %v6345 = vpop.f32.mrf.mxu0
      %v6346 = vadd.f32 0.0, %v6345
      %6347 = vmatmul.bf16.gmra.mxu0 %v6262
      %v6348 = vpop.f32.mrf.mxu0
      %v6349 = vadd.f32 0.0, %v6348
      %v6350 = vpop.f32.mrf.mxu0
      %v6351 = vadd.f32 0.0, %v6350
      %6352 = vdwg.mxu0
      %v6353 = vadd.f32 %v6185, %v6274
      %v6354 = vadd.f32 %v6186, %v6276
      %v6355 = vadd.f32 %v6187, %v6279
      %v6356 = vadd.f32 %v6188, %v6281
      %v6357 = vadd.f32 %v6189, %v6284
      %v6358 = vadd.f32 %v6190, %v6286
      %v6359 = vadd.f32 %v6191, %v6289
      %v6360 = vadd.f32 %v6192, %v6291
      %v6361 = vadd.f32 %v6193, %v6294
      %v6362 = vadd.f32 %v6194, %v6296
      %v6363 = vadd.f32 %v6195, %v6299
      %v6364 = vadd.f32 %v6196, %v6301
      %v6365 = vadd.f32 %v6197, %v6304
      %v6366 = vadd.f32 %v6198, %v6306
      %v6367 = vadd.f32 %v6199, %v6309
      %v6368 = vadd.f32 %v6200, %v6311
      %v6369 = vadd.f32 %v6201, %v6314
      %v6370 = vadd.f32 %v6202, %v6316
      %v6371 = vadd.f32 %v6203, %v6319
      %v6372 = vadd.f32 %v6204, %v6321
      %v6373 = vadd.f32 %v6205, %v6324
      %v6374 = vadd.f32 %v6206, %v6326
      %v6375 = vadd.f32 %v6207, %v6329
      %v6376 = vadd.f32 %v6208, %v6331
      %v6377 = vadd.f32 %v6209, %v6334
      %v6378 = vadd.f32 %v6210, %v6336
      %v6379 = vadd.f32 %v6211, %v6339
      %v6380 = vadd.f32 %v6212, %v6341
      %v6381 = vadd.f32 %v6213, %v6344
      %v6382 = vadd.f32 %v6214, %v6346
      %v6383 = vadd.f32 %v6215, %v6349
      %v6384 = vadd.f32 %v6216, %v6351
      %v6386 = vrot.slane %v4819, 5
      %v6387 = vrot.slane %v6386, 4
      %v6388 = vrot.slane %v4820, 5
      %v6389 = vsel %vm1260, %v6387, %v6388
      %v6390 = vrot.slane %v6388, 4
      %v6391 = vrot.slane %v4821, 5
      %v6392 = vsel %vm1260, %v6390, %v6391
      %s6393 = scalar_lea.vmem %s3, 368
      %v6394 = vld [vmem:[%s6393] sm:$0xf]
      %v6395 = vld [vmem:[%s6393 + $0x4] sm:$0xf]
      %v6396 = vld [vmem:[%s6393 + $0x8] sm:$0xf]
      %v6397 = vld [vmem:[%s6393 + $0xc] sm:$0xf]
      %v6398 = vunpack.c.l.b16 %v6389
      %v6399 = vunpack.c.l.b16 %v6392
      %v6400 = vpack.c.b16 %v6399, %v6398
      %v6405 = vunpack.c.l.b16 %v6394
      %v6406 = vunpack.c.l.b16 %v6395
      %v6407 = vunpack.c.l.b16 %v6396
      %v6408 = vunpack.c.l.b16 %v6397
      %v6409 = vpack.c.b16 %v6406, %v6405
      %v6410 = vpack.c.b16 %v6408, %v6407
      %v6414 = vsel %vm875, %v6400, 0
      %6416 = vmatpush.bf16.msra.mxu0 0
      %6417 = vmatpush.bf16.msra.mxu0 0
      %6418 = vmatpush.bf16.msra.mxu0 0
      %6419 = vmatpush.bf16.msra.mxu0 0
      %6420 = vmatpush.bf16.msra.mxu0 0
      %6421 = vmatpush.bf16.msra.mxu0 0
      %6422 = vmatpush.bf16.msra.mxu0 %v6410
      %6423 = vmatpush.bf16.msra.mxu0 %v6409
      %6424 = vmatmul.bf16.gmra.mxu0 %v5906
      %v6425 = vpop.f32.mrf.mxu0
      %v6426 = vadd.f32 0.0, %v6425
      %v6427 = vpop.f32.mrf.mxu0
      %v6428 = vadd.f32 0.0, %v6427
      %6429 = vmatmul.bf16.gmra.mxu0 %v5909
      %v6430 = vpop.f32.mrf.mxu0
      %v6431 = vadd.f32 0.0, %v6430
      %v6432 = vpop.f32.mrf.mxu0
      %v6433 = vadd.f32 0.0, %v6432
      %6434 = vmatmul.bf16.gmra.mxu0 %v5912
      %v6435 = vpop.f32.mrf.mxu0
      %v6436 = vadd.f32 0.0, %v6435
      %v6437 = vpop.f32.mrf.mxu0
      %v6438 = vadd.f32 0.0, %v6437
      %6439 = vmatmul.bf16.gmra.mxu0 %v5915
      %v6440 = vpop.f32.mrf.mxu0
      %v6441 = vadd.f32 0.0, %v6440
      %v6442 = vpop.f32.mrf.mxu0
      %v6443 = vadd.f32 0.0, %v6442
      %6444 = vmatmul.bf16.gmra.mxu0 %v5918
      %v6445 = vpop.f32.mrf.mxu0
      %v6446 = vadd.f32 0.0, %v6445
      %v6447 = vpop.f32.mrf.mxu0
      %v6448 = vadd.f32 0.0, %v6447
      %6449 = vmatmul.bf16.gmra.mxu0 %v5921
      %v6450 = vpop.f32.mrf.mxu0
      %v6451 = vadd.f32 0.0, %v6450
      %v6452 = vpop.f32.mrf.mxu0
      %v6453 = vadd.f32 0.0, %v6452
      %6454 = vmatmul.bf16.gmra.mxu0 %v5924
      %v6455 = vpop.f32.mrf.mxu0
      %v6456 = vadd.f32 0.0, %v6455
      %v6457 = vpop.f32.mrf.mxu0
      %v6458 = vadd.f32 0.0, %v6457
      %6459 = vmatmul.bf16.gmra.mxu0 %v5927
      %v6460 = vpop.f32.mrf.mxu0
      %v6461 = vadd.f32 0.0, %v6460
      %v6462 = vpop.f32.mrf.mxu0
      %v6463 = vadd.f32 0.0, %v6462
      %6464 = vmatmul.bf16.gmra.mxu0 %v5930
      %v6465 = vpop.f32.mrf.mxu0
      %v6466 = vadd.f32 0.0, %v6465
      %v6467 = vpop.f32.mrf.mxu0
      %v6468 = vadd.f32 0.0, %v6467
      %6469 = vmatmul.bf16.gmra.mxu0 %v5933
      %v6470 = vpop.f32.mrf.mxu0
      %v6471 = vadd.f32 0.0, %v6470
      %v6472 = vpop.f32.mrf.mxu0
      %v6473 = vadd.f32 0.0, %v6472
      %6474 = vmatmul.bf16.gmra.mxu0 %v5936
      %v6475 = vpop.f32.mrf.mxu0
      %v6476 = vadd.f32 0.0, %v6475
      %v6477 = vpop.f32.mrf.mxu0
      %v6478 = vadd.f32 0.0, %v6477
      %6479 = vmatmul.bf16.gmra.mxu0 %v5939
      %v6480 = vpop.f32.mrf.mxu0
      %v6481 = vadd.f32 0.0, %v6480
      %v6482 = vpop.f32.mrf.mxu0
      %v6483 = vadd.f32 0.0, %v6482
      %6484 = vmatmul.bf16.gmra.mxu0 %v5942
      %v6485 = vpop.f32.mrf.mxu0
      %v6486 = vadd.f32 0.0, %v6485
      %v6487 = vpop.f32.mrf.mxu0
      %v6488 = vadd.f32 0.0, %v6487
      %6489 = vmatmul.bf16.gmra.mxu0 %v5945
      %v6490 = vpop.f32.mrf.mxu0
      %v6491 = vadd.f32 0.0, %v6490
      %v6492 = vpop.f32.mrf.mxu0
      %v6493 = vadd.f32 0.0, %v6492
      %6494 = vmatmul.bf16.gmra.mxu0 %v5948
      %v6495 = vpop.f32.mrf.mxu0
      %v6496 = vadd.f32 0.0, %v6495
      %v6497 = vpop.f32.mrf.mxu0
      %v6498 = vadd.f32 0.0, %v6497
      %6499 = vmatmul.bf16.gmra.mxu0 %v6414
      %v6500 = vpop.f32.mrf.mxu0
      %v6501 = vadd.f32 0.0, %v6500
      %v6502 = vpop.f32.mrf.mxu0
      %v6503 = vadd.f32 0.0, %v6502
      %6504 = vdwg.mxu0
      %v6505 = vadd.f32 %v6353, %v6426
      %v6506 = vadd.f32 %v6354, %v6428
      %v6507 = vadd.f32 %v6355, %v6431
      %v6508 = vadd.f32 %v6356, %v6433
      %v6509 = vadd.f32 %v6357, %v6436
      %v6510 = vadd.f32 %v6358, %v6438
      %v6511 = vadd.f32 %v6359, %v6441
      %v6512 = vadd.f32 %v6360, %v6443
      %v6513 = vadd.f32 %v6361, %v6446
      %v6514 = vadd.f32 %v6362, %v6448
      %v6515 = vadd.f32 %v6363, %v6451
      %v6516 = vadd.f32 %v6364, %v6453
      %v6517 = vadd.f32 %v6365, %v6456
      %v6518 = vadd.f32 %v6366, %v6458
      %v6519 = vadd.f32 %v6367, %v6461
      %v6520 = vadd.f32 %v6368, %v6463
      %v6521 = vadd.f32 %v6369, %v6466
      %v6522 = vadd.f32 %v6370, %v6468
      %v6523 = vadd.f32 %v6371, %v6471
      %v6524 = vadd.f32 %v6372, %v6473
      %v6525 = vadd.f32 %v6373, %v6476
      %v6526 = vadd.f32 %v6374, %v6478
      %v6527 = vadd.f32 %v6375, %v6481
      %v6528 = vadd.f32 %v6376, %v6483
      %v6529 = vadd.f32 %v6377, %v6486
      %v6530 = vadd.f32 %v6378, %v6488
      %v6531 = vadd.f32 %v6379, %v6491
      %v6532 = vadd.f32 %v6380, %v6493
      %v6533 = vadd.f32 %v6381, %v6496
      %v6534 = vadd.f32 %v6382, %v6498
      %v6535 = vadd.f32 %v6383, %v6501
      %v6536 = vadd.f32 %v6384, %v6503
      %s6537 = scalar_lea.vmem %s3, 384
      %v6538 = vld [vmem:[%s6537] sm:$0xf]
      %v6539 = vld [vmem:[%s6537 + $0x4] sm:$0xf]
      %v6540 = vld [vmem:[%s6537 + $0x8] sm:$0xf]
      %v6541 = vld [vmem:[%s6537 + $0xc] sm:$0xf]
      %v6544 = vunpack.c.l.b16 %v4822
      %v6545 = vunpack.c.l.b16 %v4823
      %v6546 = vpack.c.b16 %v6545, %v6544
      %v6551 = vunpack.c.l.b16 %v6538
      %v6552 = vunpack.c.l.b16 %v6539
      %v6553 = vunpack.c.l.b16 %v6540
      %v6554 = vunpack.c.l.b16 %v6541
      %v6555 = vpack.c.b16 %v6552, %v6551
      %v6556 = vpack.c.b16 %v6554, %v6553
      %v6560 = vsel %vm875, %v6546, 0
      %6562 = vmatpush.bf16.msra.mxu0 0
      %6563 = vmatpush.bf16.msra.mxu0 0
      %6564 = vmatpush.bf16.msra.mxu0 0
      %6565 = vmatpush.bf16.msra.mxu0 0
      %6566 = vmatpush.bf16.msra.mxu0 0
      %6567 = vmatpush.bf16.msra.mxu0 0
      %6568 = vmatpush.bf16.msra.mxu0 %v6556
      %6569 = vmatpush.bf16.msra.mxu0 %v6555
      %6570 = vmatmul.bf16.gmra.mxu0 %v4929
      %v6571 = vpop.f32.mrf.mxu0
      %v6572 = vadd.f32 0.0, %v6571
      %v6573 = vpop.f32.mrf.mxu0
      %v6574 = vadd.f32 0.0, %v6573
      %6575 = vmatmul.bf16.gmra.mxu0 %v4932
      %v6576 = vpop.f32.mrf.mxu0
      %v6577 = vadd.f32 0.0, %v6576
      %v6578 = vpop.f32.mrf.mxu0
      %v6579 = vadd.f32 0.0, %v6578
      %6580 = vmatmul.bf16.gmra.mxu0 %v4935
      %v6581 = vpop.f32.mrf.mxu0
      %v6582 = vadd.f32 0.0, %v6581
      %v6583 = vpop.f32.mrf.mxu0
      %v6584 = vadd.f32 0.0, %v6583
      %6585 = vmatmul.bf16.gmra.mxu0 %v4938
      %v6586 = vpop.f32.mrf.mxu0
      %v6587 = vadd.f32 0.0, %v6586
      %v6588 = vpop.f32.mrf.mxu0
      %v6589 = vadd.f32 0.0, %v6588
      %6590 = vmatmul.bf16.gmra.mxu0 %v4941
      %v6591 = vpop.f32.mrf.mxu0
      %v6592 = vadd.f32 0.0, %v6591
      %v6593 = vpop.f32.mrf.mxu0
      %v6594 = vadd.f32 0.0, %v6593
      %6595 = vmatmul.bf16.gmra.mxu0 %v4944
      %v6596 = vpop.f32.mrf.mxu0
      %v6597 = vadd.f32 0.0, %v6596
      %v6598 = vpop.f32.mrf.mxu0
      %v6599 = vadd.f32 0.0, %v6598
      %6600 = vmatmul.bf16.gmra.mxu0 %v4947
      %v6601 = vpop.f32.mrf.mxu0
      %v6602 = vadd.f32 0.0, %v6601
      %v6603 = vpop.f32.mrf.mxu0
      %v6604 = vadd.f32 0.0, %v6603
      %6605 = vmatmul.bf16.gmra.mxu0 %v4950
      %v6606 = vpop.f32.mrf.mxu0
      %v6607 = vadd.f32 0.0, %v6606
      %v6608 = vpop.f32.mrf.mxu0
      %v6609 = vadd.f32 0.0, %v6608
      %6610 = vmatmul.bf16.gmra.mxu0 %v4953
      %v6611 = vpop.f32.mrf.mxu0
      %v6612 = vadd.f32 0.0, %v6611
      %v6613 = vpop.f32.mrf.mxu0
      %v6614 = vadd.f32 0.0, %v6613
      %6615 = vmatmul.bf16.gmra.mxu0 %v4956
      %v6616 = vpop.f32.mrf.mxu0
      %v6617 = vadd.f32 0.0, %v6616
      %v6618 = vpop.f32.mrf.mxu0
      %v6619 = vadd.f32 0.0, %v6618
      %6620 = vmatmul.bf16.gmra.mxu0 %v4959
      %v6621 = vpop.f32.mrf.mxu0
      %v6622 = vadd.f32 0.0, %v6621
      %v6623 = vpop.f32.mrf.mxu0
      %v6624 = vadd.f32 0.0, %v6623
      %6625 = vmatmul.bf16.gmra.mxu0 %v4962
      %v6626 = vpop.f32.mrf.mxu0
      %v6627 = vadd.f32 0.0, %v6626
      %v6628 = vpop.f32.mrf.mxu0
      %v6629 = vadd.f32 0.0, %v6628
      %6630 = vmatmul.bf16.gmra.mxu0 %v4965
      %v6631 = vpop.f32.mrf.mxu0
      %v6632 = vadd.f32 0.0, %v6631
      %v6633 = vpop.f32.mrf.mxu0
      %v6634 = vadd.f32 0.0, %v6633
      %6635 = vmatmul.bf16.gmra.mxu0 %v4968
      %v6636 = vpop.f32.mrf.mxu0
      %v6637 = vadd.f32 0.0, %v6636
      %v6638 = vpop.f32.mrf.mxu0
      %v6639 = vadd.f32 0.0, %v6638
      %6640 = vmatmul.bf16.gmra.mxu0 %v6094
      %v6641 = vpop.f32.mrf.mxu0
      %v6642 = vadd.f32 0.0, %v6641
      %v6643 = vpop.f32.mrf.mxu0
      %v6644 = vadd.f32 0.0, %v6643
      %6645 = vmatmul.bf16.gmra.mxu0 %v6560
      %v6646 = vpop.f32.mrf.mxu0
      %v6647 = vadd.f32 0.0, %v6646
      %v6648 = vpop.f32.mrf.mxu0
      %v6649 = vadd.f32 0.0, %v6648
      %6650 = vdwg.mxu0
      %v6651 = vadd.f32 %v6505, %v6572
      %v6652 = vadd.f32 %v6506, %v6574
      %v6653 = vadd.f32 %v6507, %v6577
      %v6654 = vadd.f32 %v6508, %v6579
      %v6655 = vadd.f32 %v6509, %v6582
      %v6656 = vadd.f32 %v6510, %v6584
      %v6657 = vadd.f32 %v6511, %v6587
      %v6658 = vadd.f32 %v6512, %v6589
      %v6659 = vadd.f32 %v6513, %v6592
      %v6660 = vadd.f32 %v6514, %v6594
      %v6661 = vadd.f32 %v6515, %v6597
      %v6662 = vadd.f32 %v6516, %v6599
      %v6663 = vadd.f32 %v6517, %v6602
      %v6664 = vadd.f32 %v6518, %v6604
      %v6665 = vadd.f32 %v6519, %v6607
      %v6666 = vadd.f32 %v6520, %v6609
      %v6667 = vadd.f32 %v6521, %v6612
      %v6668 = vadd.f32 %v6522, %v6614
      %v6669 = vadd.f32 %v6523, %v6617
      %v6670 = vadd.f32 %v6524, %v6619
      %v6671 = vadd.f32 %v6525, %v6622
      %v6672 = vadd.f32 %v6526, %v6624
      %v6673 = vadd.f32 %v6527, %v6627
      %v6674 = vadd.f32 %v6528, %v6629
      %v6675 = vadd.f32 %v6529, %v6632
      %v6676 = vadd.f32 %v6530, %v6634
      %v6677 = vadd.f32 %v6531, %v6637
      %v6678 = vadd.f32 %v6532, %v6639
      %v6679 = vadd.f32 %v6533, %v6642
      %v6680 = vadd.f32 %v6534, %v6644
      %v6681 = vadd.f32 %v6535, %v6647
      %v6682 = vadd.f32 %v6536, %v6649
      %v6684 = vshrl.u32 %v4822, 16
      %v6686 = vrot.slane %v6684, 4
      %v6687 = vshll.u32 %v4822, 16
      %v6689 = vrot.slane %v6687, 5
      %v6690 = vor.u32 %v6686, %v6689
      %v6691 = vrot.slane %v6690, 4
      %v6693 = vshll.u32 %v4823, 16
      %v6695 = vrot.slane %v6693, 5
      %v6696 = vsel %vm425, %v6691, %v6695
      %v6697 = vshrl.u32 %v4823, 16
      %v6699 = vrot.slane %v6697, 4
      %v6700 = vor.u32 %v6699, %v6695
      %v6701 = vrot.slane %v6700, 4
      %v6703 = vshll.u32 %v4824, 16
      %v6705 = vrot.slane %v6703, 5
      %v6706 = vsel %vm425, %v6701, %v6705
      %s6707 = scalar_lea.vmem %s3, 400
      %v6708 = vld [vmem:[%s6707] sm:$0xf]
      %v6709 = vld [vmem:[%s6707 + $0x4] sm:$0xf]
      %v6710 = vld [vmem:[%s6707 + $0x8] sm:$0xf]
      %v6711 = vld [vmem:[%s6707 + $0xc] sm:$0xf]
      %v6712 = vunpack.c.l.b16 %v6696
      %v6713 = vunpack.c.l.b16 %v6706
      %v6714 = vpack.c.b16 %v6713, %v6712
      %v6719 = vunpack.c.l.b16 %v6708
      %v6720 = vunpack.c.l.b16 %v6709
      %v6721 = vunpack.c.l.b16 %v6710
      %v6722 = vunpack.c.l.b16 %v6711
      %v6723 = vpack.c.b16 %v6720, %v6719
      %v6724 = vpack.c.b16 %v6722, %v6721
      %v6728 = vsel %vm875, %v6714, 0
      %6730 = vmatpush.bf16.msra.mxu0 0
      %6731 = vmatpush.bf16.msra.mxu0 0
      %6732 = vmatpush.bf16.msra.mxu0 0
      %6733 = vmatpush.bf16.msra.mxu0 0
      %6734 = vmatpush.bf16.msra.mxu0 0
      %6735 = vmatpush.bf16.msra.mxu0 0
      %6736 = vmatpush.bf16.msra.mxu0 %v6724
      %6737 = vmatpush.bf16.msra.mxu0 %v6723
      %6738 = vmatmul.bf16.gmra.mxu0 %v5547
      %v6739 = vpop.f32.mrf.mxu0
      %v6740 = vadd.f32 0.0, %v6739
      %v6741 = vpop.f32.mrf.mxu0
      %v6742 = vadd.f32 0.0, %v6741
      %6743 = vmatmul.bf16.gmra.mxu0 %v5550
      %v6744 = vpop.f32.mrf.mxu0
      %v6745 = vadd.f32 0.0, %v6744
      %v6746 = vpop.f32.mrf.mxu0
      %v6747 = vadd.f32 0.0, %v6746
      %6748 = vmatmul.bf16.gmra.mxu0 %v5553
      %v6749 = vpop.f32.mrf.mxu0
      %v6750 = vadd.f32 0.0, %v6749
      %v6751 = vpop.f32.mrf.mxu0
      %v6752 = vadd.f32 0.0, %v6751
      %6753 = vmatmul.bf16.gmra.mxu0 %v5556
      %v6754 = vpop.f32.mrf.mxu0
      %v6755 = vadd.f32 0.0, %v6754
      %v6756 = vpop.f32.mrf.mxu0
      %v6757 = vadd.f32 0.0, %v6756
      %6758 = vmatmul.bf16.gmra.mxu0 %v5559
      %v6759 = vpop.f32.mrf.mxu0
      %v6760 = vadd.f32 0.0, %v6759
      %v6761 = vpop.f32.mrf.mxu0
      %v6762 = vadd.f32 0.0, %v6761
      %6763 = vmatmul.bf16.gmra.mxu0 %v5562
      %v6764 = vpop.f32.mrf.mxu0
      %v6765 = vadd.f32 0.0, %v6764
      %v6766 = vpop.f32.mrf.mxu0
      %v6767 = vadd.f32 0.0, %v6766
      %6768 = vmatmul.bf16.gmra.mxu0 %v5565
      %v6769 = vpop.f32.mrf.mxu0
      %v6770 = vadd.f32 0.0, %v6769
      %v6771 = vpop.f32.mrf.mxu0
      %v6772 = vadd.f32 0.0, %v6771
      %6773 = vmatmul.bf16.gmra.mxu0 %v5568
      %v6774 = vpop.f32.mrf.mxu0
      %v6775 = vadd.f32 0.0, %v6774
      %v6776 = vpop.f32.mrf.mxu0
      %v6777 = vadd.f32 0.0, %v6776
      %6778 = vmatmul.bf16.gmra.mxu0 %v5571
      %v6779 = vpop.f32.mrf.mxu0
      %v6780 = vadd.f32 0.0, %v6779
      %v6781 = vpop.f32.mrf.mxu0
      %v6782 = vadd.f32 0.0, %v6781
      %6783 = vmatmul.bf16.gmra.mxu0 %v5574
      %v6784 = vpop.f32.mrf.mxu0
      %v6785 = vadd.f32 0.0, %v6784
      %v6786 = vpop.f32.mrf.mxu0
      %v6787 = vadd.f32 0.0, %v6786
      %6788 = vmatmul.bf16.gmra.mxu0 %v5577
      %v6789 = vpop.f32.mrf.mxu0
      %v6790 = vadd.f32 0.0, %v6789
      %v6791 = vpop.f32.mrf.mxu0
      %v6792 = vadd.f32 0.0, %v6791
      %6793 = vmatmul.bf16.gmra.mxu0 %v5580
      %v6794 = vpop.f32.mrf.mxu0
      %v6795 = vadd.f32 0.0, %v6794
      %v6796 = vpop.f32.mrf.mxu0
      %v6797 = vadd.f32 0.0, %v6796
      %6798 = vmatmul.bf16.gmra.mxu0 %v5583
      %v6799 = vpop.f32.mrf.mxu0
      %v6800 = vadd.f32 0.0, %v6799
      %v6801 = vpop.f32.mrf.mxu0
      %v6802 = vadd.f32 0.0, %v6801
      %6803 = vmatmul.bf16.gmra.mxu0 %v5586
      %v6804 = vpop.f32.mrf.mxu0
      %v6805 = vadd.f32 0.0, %v6804
      %v6806 = vpop.f32.mrf.mxu0
      %v6807 = vadd.f32 0.0, %v6806
      %6808 = vmatmul.bf16.gmra.mxu0 %v6262
      %v6809 = vpop.f32.mrf.mxu0
      %v6810 = vadd.f32 0.0, %v6809
      %v6811 = vpop.f32.mrf.mxu0
      %v6812 = vadd.f32 0.0, %v6811
      %6813 = vmatmul.bf16.gmra.mxu0 %v6728
      %v6814 = vpop.f32.mrf.mxu0
      %v6815 = vadd.f32 0.0, %v6814
      %v6816 = vpop.f32.mrf.mxu0
      %v6817 = vadd.f32 0.0, %v6816
      %6818 = vdwg.mxu0
      %v6819 = vadd.f32 %v6651, %v6740
      %v6820 = vadd.f32 %v6652, %v6742
      %v6821 = vadd.f32 %v6653, %v6745
      %v6822 = vadd.f32 %v6654, %v6747
      %v6823 = vadd.f32 %v6655, %v6750
      %v6824 = vadd.f32 %v6656, %v6752
      %v6825 = vadd.f32 %v6657, %v6755
      %v6826 = vadd.f32 %v6658, %v6757
      %v6827 = vadd.f32 %v6659, %v6760
      %v6828 = vadd.f32 %v6660, %v6762
      %v6829 = vadd.f32 %v6661, %v6765
      %v6830 = vadd.f32 %v6662, %v6767
      %v6831 = vadd.f32 %v6663, %v6770
      %v6832 = vadd.f32 %v6664, %v6772
      %v6833 = vadd.f32 %v6665, %v6775
      %v6834 = vadd.f32 %v6666, %v6777
      %v6835 = vadd.f32 %v6667, %v6780
      %v6836 = vadd.f32 %v6668, %v6782
      %v6837 = vadd.f32 %v6669, %v6785
      %v6838 = vadd.f32 %v6670, %v6787
      %v6839 = vadd.f32 %v6671, %v6790
      %v6840 = vadd.f32 %v6672, %v6792
      %v6841 = vadd.f32 %v6673, %v6795
      %v6842 = vadd.f32 %v6674, %v6797
      %v6843 = vadd.f32 %v6675, %v6800
      %v6844 = vadd.f32 %v6676, %v6802
      %v6845 = vadd.f32 %v6677, %v6805
      %v6846 = vadd.f32 %v6678, %v6807
      %v6847 = vadd.f32 %v6679, %v6810
      %v6848 = vadd.f32 %v6680, %v6812
      %v6849 = vadd.f32 %v6681, %v6815
      %v6850 = vadd.f32 %v6682, %v6817
      %v6852 = vrot.slane %v4822, 5
      %v6853 = vrot.slane %v6852, 4
      %v6854 = vrot.slane %v4823, 5
      %v6855 = vsel %vm1260, %v6853, %v6854
      %v6856 = vrot.slane %v6854, 4
      %v6857 = vrot.slane %v4824, 5
      %v6858 = vsel %vm1260, %v6856, %v6857
      %s6859 = scalar_lea.vmem %s3, 416
      %v6860 = vld [vmem:[%s6859] sm:$0xf]
      %v6861 = vld [vmem:[%s6859 + $0x4] sm:$0xf]
      %v6862 = vld [vmem:[%s6859 + $0x8] sm:$0xf]
      %v6863 = vld [vmem:[%s6859 + $0xc] sm:$0xf]
      %v6864 = vunpack.c.l.b16 %v6855
      %v6865 = vunpack.c.l.b16 %v6858
      %v6866 = vpack.c.b16 %v6865, %v6864
      %v6871 = vunpack.c.l.b16 %v6860
      %v6872 = vunpack.c.l.b16 %v6861
      %v6873 = vunpack.c.l.b16 %v6862
      %v6874 = vunpack.c.l.b16 %v6863
      %v6875 = vpack.c.b16 %v6872, %v6871
      %v6876 = vpack.c.b16 %v6874, %v6873
      %v6880 = vsel %vm875, %v6866, 0
      %6882 = vmatpush.bf16.msra.mxu0 0
      %6883 = vmatpush.bf16.msra.mxu0 0
      %6884 = vmatpush.bf16.msra.mxu0 0
      %6885 = vmatpush.bf16.msra.mxu0 0
      %6886 = vmatpush.bf16.msra.mxu0 0
      %6887 = vmatpush.bf16.msra.mxu0 0
      %6888 = vmatpush.bf16.msra.mxu0 %v6876
      %6889 = vmatpush.bf16.msra.mxu0 %v6875
      %6890 = vmatmul.bf16.gmra.mxu0 %v5909
      %v6891 = vpop.f32.mrf.mxu0
      %v6892 = vadd.f32 0.0, %v6891
      %v6893 = vpop.f32.mrf.mxu0
      %v6894 = vadd.f32 0.0, %v6893
      %6895 = vmatmul.bf16.gmra.mxu0 %v5912
      %v6896 = vpop.f32.mrf.mxu0
      %v6897 = vadd.f32 0.0, %v6896
      %v6898 = vpop.f32.mrf.mxu0
      %v6899 = vadd.f32 0.0, %v6898
      %6900 = vmatmul.bf16.gmra.mxu0 %v5915
      %v6901 = vpop.f32.mrf.mxu0
      %v6902 = vadd.f32 0.0, %v6901
      %v6903 = vpop.f32.mrf.mxu0
      %v6904 = vadd.f32 0.0, %v6903
      %6905 = vmatmul.bf16.gmra.mxu0 %v5918
      %v6906 = vpop.f32.mrf.mxu0
      %v6907 = vadd.f32 0.0, %v6906
      %v6908 = vpop.f32.mrf.mxu0
      %v6909 = vadd.f32 0.0, %v6908
      %6910 = vmatmul.bf16.gmra.mxu0 %v5921
      %v6911 = vpop.f32.mrf.mxu0
      %v6912 = vadd.f32 0.0, %v6911
      %v6913 = vpop.f32.mrf.mxu0
      %v6914 = vadd.f32 0.0, %v6913
      %6915 = vmatmul.bf16.gmra.mxu0 %v5924
      %v6916 = vpop.f32.mrf.mxu0
      %v6917 = vadd.f32 0.0, %v6916
      %v6918 = vpop.f32.mrf.mxu0
      %v6919 = vadd.f32 0.0, %v6918
      %6920 = vmatmul.bf16.gmra.mxu0 %v5927
      %v6921 = vpop.f32.mrf.mxu0
      %v6922 = vadd.f32 0.0, %v6921
      %v6923 = vpop.f32.mrf.mxu0
      %v6924 = vadd.f32 0.0, %v6923
      %6925 = vmatmul.bf16.gmra.mxu0 %v5930
      %v6926 = vpop.f32.mrf.mxu0
      %v6927 = vadd.f32 0.0, %v6926
      %v6928 = vpop.f32.mrf.mxu0
      %v6929 = vadd.f32 0.0, %v6928
      %6930 = vmatmul.bf16.gmra.mxu0 %v5933
      %v6931 = vpop.f32.mrf.mxu0
      %v6932 = vadd.f32 0.0, %v6931
      %v6933 = vpop.f32.mrf.mxu0
      %v6934 = vadd.f32 0.0, %v6933
      %6935 = vmatmul.bf16.gmra.mxu0 %v5936
      %v6936 = vpop.f32.mrf.mxu0
      %v6937 = vadd.f32 0.0, %v6936
      %v6938 = vpop.f32.mrf.mxu0
      %v6939 = vadd.f32 0.0, %v6938
      %6940 = vmatmul.bf16.gmra.mxu0 %v5939
      %v6941 = vpop.f32.mrf.mxu0
      %v6942 = vadd.f32 0.0, %v6941
      %v6943 = vpop.f32.mrf.mxu0
      %v6944 = vadd.f32 0.0, %v6943
      %6945 = vmatmul.bf16.gmra.mxu0 %v5942
      %v6946 = vpop.f32.mrf.mxu0
      %v6947 = vadd.f32 0.0, %v6946
      %v6948 = vpop.f32.mrf.mxu0
      %v6949 = vadd.f32 0.0, %v6948
      %6950 = vmatmul.bf16.gmra.mxu0 %v5945
      %v6951 = vpop.f32.mrf.mxu0
      %v6952 = vadd.f32 0.0, %v6951
      %v6953 = vpop.f32.mrf.mxu0
      %v6954 = vadd.f32 0.0, %v6953
      %6955 = vmatmul.bf16.gmra.mxu0 %v5948
      %v6956 = vpop.f32.mrf.mxu0
      %v6957 = vadd.f32 0.0, %v6956
      %v6958 = vpop.f32.mrf.mxu0
      %v6959 = vadd.f32 0.0, %v6958
      %6960 = vmatmul.bf16.gmra.mxu0 %v6414
      %v6961 = vpop.f32.mrf.mxu0
      %v6962 = vadd.f32 0.0, %v6961
      %v6963 = vpop.f32.mrf.mxu0
      %v6964 = vadd.f32 0.0, %v6963
      %6965 = vmatmul.bf16.gmra.mxu0 %v6880
      %v6966 = vpop.f32.mrf.mxu0
      %v6967 = vadd.f32 0.0, %v6966
      %v6968 = vpop.f32.mrf.mxu0
      %v6969 = vadd.f32 0.0, %v6968
      %6970 = vdwg.mxu0
      %v6971 = vadd.f32 %v6819, %v6892
      %v6972 = vadd.f32 %v6820, %v6894
      %v6973 = vadd.f32 %v6821, %v6897
      %v6974 = vadd.f32 %v6822, %v6899
      %v6975 = vadd.f32 %v6823, %v6902
      %v6976 = vadd.f32 %v6824, %v6904
      %v6977 = vadd.f32 %v6825, %v6907
      %v6978 = vadd.f32 %v6826, %v6909
      %v6979 = vadd.f32 %v6827, %v6912
      %v6980 = vadd.f32 %v6828, %v6914
      %v6981 = vadd.f32 %v6829, %v6917
      %v6982 = vadd.f32 %v6830, %v6919
      %v6983 = vadd.f32 %v6831, %v6922
      %v6984 = vadd.f32 %v6832, %v6924
      %v6985 = vadd.f32 %v6833, %v6927
      %v6986 = vadd.f32 %v6834, %v6929
      %v6987 = vadd.f32 %v6835, %v6932
      %v6988 = vadd.f32 %v6836, %v6934
      %v6989 = vadd.f32 %v6837, %v6937
      %v6990 = vadd.f32 %v6838, %v6939
      %v6991 = vadd.f32 %v6839, %v6942
      %v6992 = vadd.f32 %v6840, %v6944
      %v6993 = vadd.f32 %v6841, %v6947
      %v6994 = vadd.f32 %v6842, %v6949
      %v6995 = vadd.f32 %v6843, %v6952
      %v6996 = vadd.f32 %v6844, %v6954
      %v6997 = vadd.f32 %v6845, %v6957
      %v6998 = vadd.f32 %v6846, %v6959
      %v6999 = vadd.f32 %v6847, %v6962
      %v7000 = vadd.f32 %v6848, %v6964
      %v7001 = vadd.f32 %v6849, %v6967
      %v7002 = vadd.f32 %v6850, %v6969
      %7003 = vst.msk [vmem:[%s355] sm:$0xff] %vm875, %v6971
      %7004 = vst.msk [vmem:[%s355 + $0x8] sm:$0xff] %vm875, %v6972
      %7005 = vst.msk [vmem:[%s355 + $0x10] sm:$0xff] %vm875, %v6973
      %7006 = vst.msk [vmem:[%s355 + $0x18] sm:$0xff] %vm875, %v6974
      %7007 = vst.msk [vmem:[%s355 + $0x20] sm:$0xff] %vm875, %v6975
      %7008 = vst.msk [vmem:[%s355 + $0x28] sm:$0xff] %vm875, %v6976
      %7009 = vst.msk [vmem:[%s355 + $0x30] sm:$0xff] %vm875, %v6977
      %7010 = vst.msk [vmem:[%s355 + $0x38] sm:$0xff] %vm875, %v6978
      %7011 = vst.msk [vmem:[%s355 + $0x40] sm:$0xff] %vm875, %v6979
      %7012 = vst.msk [vmem:[%s355 + $0x48] sm:$0xff] %vm875, %v6980
      %7013 = vst.msk [vmem:[%s355 + $0x50] sm:$0xff] %vm875, %v6981
      %7014 = vst.msk [vmem:[%s355 + $0x58] sm:$0xff] %vm875, %v6982
      %7015 = vst.msk [vmem:[%s355 + $0x60] sm:$0xff] %vm875, %v6983
      %7016 = vst.msk [vmem:[%s355 + $0x68] sm:$0xff] %vm875, %v6984
      %7017 = vst.msk [vmem:[%s355 + $0x70] sm:$0xff] %vm875, %v6985
      %7018 = vst.msk [vmem:[%s355 + $0x78] sm:$0xff] %vm875, %v6986
      %7019 = vst.msk [vmem:[%s355 + $0x80] sm:$0xff] %vm875, %v6987
      %7020 = vst.msk [vmem:[%s355 + $0x88] sm:$0xff] %vm875, %v6988
      %7021 = vst.msk [vmem:[%s355 + $0x90] sm:$0xff] %vm875, %v6989
      %7022 = vst.msk [vmem:[%s355 + $0x98] sm:$0xff] %vm875, %v6990
      %7023 = vst.msk [vmem:[%s355 + $0xa0] sm:$0xff] %vm875, %v6991
      %7024 = vst.msk [vmem:[%s355 + $0xa8] sm:$0xff] %vm875, %v6992
      %7025 = vst.msk [vmem:[%s355 + $0xb0] sm:$0xff] %vm875, %v6993
      %7026 = vst.msk [vmem:[%s355 + $0xb8] sm:$0xff] %vm875, %v6994
      %7027 = vst.msk [vmem:[%s355 + $0xc0] sm:$0xff] %vm875, %v6995
      %7028 = vst.msk [vmem:[%s355 + $0xc8] sm:$0xff] %vm875, %v6996
      %7029 = vst.msk [vmem:[%s355 + $0xd0] sm:$0xff] %vm875, %v6997
      %7030 = vst.msk [vmem:[%s355 + $0xd8] sm:$0xff] %vm875, %v6998
      %7031 = vst.msk [vmem:[%s355 + $0xe0] sm:$0xff] %vm875, %v6999
      %7032 = vst.msk [vmem:[%s355 + $0xe8] sm:$0xff] %vm875, %v7000
      %7033 = vst.msk [vmem:[%s355 + $0xf0] sm:$0xff] %vm875, %v7001
      %7034 = vst.msk [vmem:[%s355 + $0xf8] sm:$0xff] %vm875, %v7002
      %v7035 = vsel %vm875, %v6971, 0.0
      %v7036 = vsel %vm875, %v6972, 0.0
      %v7037 = vadd.f32 %v7035, %v7036
      %v7038 = vsel %vm875, %v6973, 0.0
      %v7039 = vadd.f32 %v7037, %v7038
      %v7040 = vsel %vm875, %v6974, 0.0
      %v7041 = vadd.f32 %v7039, %v7040
      %v7042 = vsel %vm875, %v6975, 0.0
      %v7043 = vadd.f32 %v7041, %v7042
      %v7044 = vsel %vm875, %v6976, 0.0
      %v7045 = vadd.f32 %v7043, %v7044
      %v7046 = vsel %vm875, %v6977, 0.0
      %v7047 = vadd.f32 %v7045, %v7046
      %v7048 = vsel %vm875, %v6978, 0.0
      %v7049 = vadd.f32 %v7047, %v7048
      %v7050 = vsel %vm875, %v6979, 0.0
      %v7051 = vadd.f32 %v7049, %v7050
      %v7052 = vsel %vm875, %v6980, 0.0
      %v7053 = vadd.f32 %v7051, %v7052
      %v7054 = vsel %vm875, %v6981, 0.0
      %v7055 = vadd.f32 %v7053, %v7054
      %v7056 = vsel %vm875, %v6982, 0.0
      %v7057 = vadd.f32 %v7055, %v7056
      %v7058 = vsel %vm875, %v6983, 0.0
      %v7059 = vadd.f32 %v7057, %v7058
      %v7060 = vsel %vm875, %v6984, 0.0
      %v7061 = vadd.f32 %v7059, %v7060
      %v7062 = vsel %vm875, %v6985, 0.0
      %v7063 = vadd.f32 %v7061, %v7062
      %v7064 = vsel %vm875, %v6986, 0.0
      %v7065 = vadd.f32 %v7063, %v7064
      %v7066 = vsel %vm875, %v6987, 0.0
      %v7067 = vadd.f32 %v7065, %v7066
      %v7068 = vsel %vm875, %v6988, 0.0
      %v7069 = vadd.f32 %v7067, %v7068
      %v7070 = vsel %vm875, %v6989, 0.0
      %v7071 = vadd.f32 %v7069, %v7070
      %v7072 = vsel %vm875, %v6990, 0.0
      %v7073 = vadd.f32 %v7071, %v7072
      %v7074 = vsel %vm875, %v6991, 0.0
      %v7075 = vadd.f32 %v7073, %v7074
      %v7076 = vsel %vm875, %v6992, 0.0
      %v7077 = vadd.f32 %v7075, %v7076
      %v7078 = vsel %vm875, %v6993, 0.0
      %v7079 = vadd.f32 %v7077, %v7078
      %v7080 = vsel %vm875, %v6994, 0.0
      %v7081 = vadd.f32 %v7079, %v7080
      %v7082 = vsel %vm875, %v6995, 0.0
      %v7083 = vadd.f32 %v7081, %v7082
      %v7084 = vsel %vm875, %v6996, 0.0
      %v7085 = vadd.f32 %v7083, %v7084
      %v7086 = vsel %vm875, %v6997, 0.0
      %v7087 = vadd.f32 %v7085, %v7086
      %v7088 = vsel %vm875, %v6998, 0.0
      %v7089 = vadd.f32 %v7087, %v7088
      %v7090 = vsel %vm875, %v6999, 0.0
      %v7091 = vadd.f32 %v7089, %v7090
      %v7092 = vsel %vm875, %v7000, 0.0
      %v7093 = vadd.f32 %v7091, %v7092
      %v7094 = vsel %vm875, %v7001, 0.0
      %v7095 = vadd.f32 %v7093, %v7094
      %v7096 = vsel %vm875, %v7002, 0.0
      %v7097 = vadd.f32 %v7095, %v7096
      %v7098 = vrot.slane %v7097, 4
      %v7099 = vadd.f32 %v7097, %v7098
      %v7100 = vrot.slane %v7099, 2
      %v7101 = vadd.f32 %v7099, %v7100
      %v7102 = vrot.slane %v7101, 1
      %v7103 = vadd.f32 %v7101, %v7102
      %v7104 = vmul.f32 %v6971, %v6971
      %v7105 = vmul.f32 %v6972, %v6972
      %v7106 = vmul.f32 %v6973, %v6973
      %v7107 = vmul.f32 %v6974, %v6974
      %v7108 = vmul.f32 %v6975, %v6975
      %v7109 = vmul.f32 %v6976, %v6976
      %v7110 = vmul.f32 %v6977, %v6977
      %v7111 = vmul.f32 %v6978, %v6978
      %v7112 = vmul.f32 %v6979, %v6979
      %v7113 = vmul.f32 %v6980, %v6980
      %v7114 = vmul.f32 %v6981, %v6981
      %v7115 = vmul.f32 %v6982, %v6982
      %v7116 = vmul.f32 %v6983, %v6983
      %v7117 = vmul.f32 %v6984, %v6984
      %v7118 = vmul.f32 %v6985, %v6985
      %v7119 = vmul.f32 %v6986, %v6986
      %v7120 = vmul.f32 %v6987, %v6987
      %v7121 = vmul.f32 %v6988, %v6988
      %v7122 = vmul.f32 %v6989, %v6989
      %v7123 = vmul.f32 %v6990, %v6990
      %v7124 = vmul.f32 %v6991, %v6991
      %v7125 = vmul.f32 %v6992, %v6992
      %v7126 = vmul.f32 %v6993, %v6993
      %v7127 = vmul.f32 %v6994, %v6994
      %v7128 = vmul.f32 %v6995, %v6995
      %v7129 = vmul.f32 %v6996, %v6996
      %v7130 = vmul.f32 %v6997, %v6997
      %v7131 = vmul.f32 %v6998, %v6998
      %v7132 = vmul.f32 %v6999, %v6999
      %v7133 = vmul.f32 %v7000, %v7000
      %v7134 = vmul.f32 %v7001, %v7001
      %v7135 = vmul.f32 %v7002, %v7002
      %v7136 = vsel %vm875, %v7104, 0.0
      %v7137 = vsel %vm875, %v7105, 0.0
      %v7138 = vadd.f32 %v7136, %v7137
      %v7139 = vsel %vm875, %v7106, 0.0
      %v7140 = vadd.f32 %v7138, %v7139
      %v7141 = vsel %vm875, %v7107, 0.0
      %v7142 = vadd.f32 %v7140, %v7141
      %v7143 = vsel %vm875, %v7108, 0.0
      %v7144 = vadd.f32 %v7142, %v7143
      %v7145 = vsel %vm875, %v7109, 0.0
      %v7146 = vadd.f32 %v7144, %v7145
      %v7147 = vsel %vm875, %v7110, 0.0
      %v7148 = vadd.f32 %v7146, %v7147
      %v7149 = vsel %vm875, %v7111, 0.0
      %v7150 = vadd.f32 %v7148, %v7149
      %v7151 = vsel %vm875, %v7112, 0.0
      %v7152 = vadd.f32 %v7150, %v7151
      %v7153 = vsel %vm875, %v7113, 0.0
      %v7154 = vadd.f32 %v7152, %v7153
      %v7155 = vsel %vm875, %v7114, 0.0
      %v7156 = vadd.f32 %v7154, %v7155
      %v7157 = vsel %vm875, %v7115, 0.0
      %v7158 = vadd.f32 %v7156, %v7157
      %v7159 = vsel %vm875, %v7116, 0.0
      %v7160 = vadd.f32 %v7158, %v7159
      %v7161 = vsel %vm875, %v7117, 0.0
      %v7162 = vadd.f32 %v7160, %v7161
      %v7163 = vsel %vm875, %v7118, 0.0
      %v7164 = vadd.f32 %v7162, %v7163
      %v7165 = vsel %vm875, %v7119, 0.0
      %v7166 = vadd.f32 %v7164, %v7165
      %v7167 = vsel %vm875, %v7120, 0.0
      %v7168 = vadd.f32 %v7166, %v7167
      %v7169 = vsel %vm875, %v7121, 0.0
      %v7170 = vadd.f32 %v7168, %v7169
      %v7171 = vsel %vm875, %v7122, 0.0
      %v7172 = vadd.f32 %v7170, %v7171
      %v7173 = vsel %vm875, %v7123, 0.0
      %v7174 = vadd.f32 %v7172, %v7173
      %v7175 = vsel %vm875, %v7124, 0.0
      %v7176 = vadd.f32 %v7174, %v7175
      %v7177 = vsel %vm875, %v7125, 0.0
      %v7178 = vadd.f32 %v7176, %v7177
      %v7179 = vsel %vm875, %v7126, 0.0
      %v7180 = vadd.f32 %v7178, %v7179
      %v7181 = vsel %vm875, %v7127, 0.0
      %v7182 = vadd.f32 %v7180, %v7181
      %v7183 = vsel %vm875, %v7128, 0.0
      %v7184 = vadd.f32 %v7182, %v7183
      %v7185 = vsel %vm875, %v7129, 0.0
      %v7186 = vadd.f32 %v7184, %v7185
      %v7187 = vsel %vm875, %v7130, 0.0
      %v7188 = vadd.f32 %v7186, %v7187
      %v7189 = vsel %vm875, %v7131, 0.0
      %v7190 = vadd.f32 %v7188, %v7189
      %v7191 = vsel %vm875, %v7132, 0.0
      %v7192 = vadd.f32 %v7190, %v7191
      %v7193 = vsel %vm875, %v7133, 0.0
      %v7194 = vadd.f32 %v7192, %v7193
      %v7195 = vsel %vm875, %v7134, 0.0
      %v7196 = vadd.f32 %v7194, %v7195
      %v7197 = vsel %vm875, %v7135, 0.0
      %v7198 = vadd.f32 %v7196, %v7197
      %v7199 = vrot.slane %v7198, 4
      %v7200 = vadd.f32 %v7198, %v7199
      %v7201 = vrot.slane %v7200, 2
      %v7202 = vadd.f32 %v7200, %v7201
      %v7203 = vrot.slane %v7202, 1
      %v7204 = vadd.f32 %v7202, %v7203
      %vm7205 = vcmask 1040384
      %v7206 = vsel %vm7205, %v7103, %v7204
      %vm7207 = vcmask 254976
      %7208 = vst.msk [vmem:[%s363] sm:$0x3] %vm7207, %v7206
      %p7209 = scmp.lt.s32.totalorder %s21, 1
      %s7210 = scalar_select %p7209, %s21, 1
      %p7211 = scmp.lt.s32.totalorder %s22, 7
      %s7212 = scalar_select %p7211, %s22, 7
      %s7213 = smul.addr %s7212, 32
      %s7214 = smul.addr %s7210, 256
      %s7215 = sadd.s32 %s7213, %s7214
      %s7216 = smul.addr %s7215, 8
      %s7217 = scalar_lea.vmem %s4, %s7216
      %p7218 = scmp.lt.s32.totalorder %s21, 1
      %s7219 = scalar_select %p7218, %s21, 1
      %p7220 = scmp.lt.s32.totalorder %s22, 7
      %s7221 = scalar_select %p7220, %s22, 7
      %s7222 = smul.addr %s7219, 8
      %s7223 = sadd.s32 %s7221, %s7222
      %s7224 = smul.addr %s7223, 2
      %s7225 = scalar_lea.vmem %s5, %s7224
      // Predicated region
      $region37: #{basic_block_forward.4} parent=35 // pred_check
        %p7226 = pneg %p158
      $region38: #{basic_block_forward.4} parent=35 // pred_check_branch
        %7228 = sbr.rel (%p7226) target = $region40
      $region39: #{basic_block_forward.4} parent=35 // pred_region
        _
      $region40: #{basic_block_forward.4} parent=35 // pred_fallthru
        _
      // Predicated region
      $region41: #{basic_block_forward.4} parent=35 // pred_check
        %p7229 = pneg %p186
      $region42: #{basic_block_forward.4} parent=35 // pred_check_branch
        %7231 = sbr.rel (%p7229) target = $region44
      $region43: #{basic_block_forward.4} parent=35 // pred_region
        _
      $region44: #{basic_block_forward.4} parent=35 // pred_fallthru
        _
    $region36: #{basic_block_forward.4} parent=5 // pred_fallthru
      _
    %p7232 = scmp.le.s32.totalorder 2, %s12
    // Predicated region
    $region45: #{basic_block_forward.4} parent=5 // pred_check
      %p7233 = pneg %p7232
    $region46: #{basic_block_forward.4} parent=5 // pred_check_branch
      %7235 = sbr.rel (%p7233) target = $region48
    $region47: #{basic_block_forward.4} parent=5 // pred_region
      %s7236 = ssub.s32 %s12, 2
      // Predicated region
      $region49: #{basic_block_forward.4} parent=47 // pred_check
        %p7237 = pneg %p164
      $region50: #{basic_block_forward.4} parent=47 // pred_check_branch
        %7239 = sbr.rel (%p7237) target = $region52
      $region51: #{basic_block_forward.4} parent=47 // pred_region
        %p7240 = scmp.lt.s32.totalorder %s23, 1
        %s7241 = scalar_select %p7240, %s23, 1
        %p7242 = scmp.lt.s32.totalorder %s24, 7
        %s7243 = scalar_select %p7242, %s24, 7
        %s7244 = smul.addr %s7243, 32
        %s7245 = smul.addr %s7241, 256
        %s7246 = sadd.s32 %s7244, %s7245
        %s7247 = smul.addr %s7246, 8
        %s7248 = scalar_lea.vmem %s4, %s7247
      $region52: #{basic_block_forward.4} parent=47 // pred_fallthru
        _
      // Predicated region
      $region53: #{basic_block_forward.4} parent=47 // pred_check
        %p7249 = pneg %p192
      $region54: #{basic_block_forward.4} parent=47 // pred_check_branch
        %7251 = sbr.rel (%p7249) target = $region56
      $region55: #{basic_block_forward.4} parent=47 // pred_region
        %p7252 = scmp.lt.s32.totalorder %s23, 1
        %s7253 = scalar_select %p7252, %s23, 1
        %p7254 = scmp.lt.s32.totalorder %s24, 7
        %s7255 = scalar_select %p7254, %s24, 7
        %s7256 = smul.addr %s7253, 8
        %s7257 = sadd.s32 %s7255, %s7256
        %s7258 = smul.addr %s7257, 2
        %s7259 = scalar_lea.vmem %s5, %s7258
      $region56: #{basic_block_forward.4} parent=47 // pred_fallthru
        _
    $region48: #{basic_block_forward.4} parent=5 // pred_fallthru
      _
  $region6: #{basic_block_forward.4} parent=0 // loop_footer
    %s16 = sadd.s32 1, %s12
  $region7: #{basic_block_forward.4} parent=0 // loop_footer_branch
    %11 = sbr.rel target = $region3
  $region8: #{basic_block_forward.4} parent=0 // loop_exit
    _

</llo_original>
